<compile_context>
chip_gen: v5e
topology: v5e:2x2
jax: 0.10.0
libtpu: 0.0.40
codegen_flags: <defaults>
</compile_context>

<pallas_src>
import functools

import jax
import jax.numpy as jnp
from jax.experimental import pallas as pl
from jax.experimental.pallas import tpu as pltpu

CP = 128                         # padded channel width (lane-dense loads/stores)
CIN1 = 8                         # conv1 input channels padded 3 -> 8 (clean MXU K)
VMEM_LIMIT = 32 * 1024 * 1024    # safe on v5e/v6e (128 MiB) and v7x (64 MiB)


# ---------------------------------------------------------------------------
# Fused conv3x3(pad=1) + bias + ReLU + maxpool2x2 kernel
# ---------------------------------------------------------------------------
def _conv_pool_kernel(x_ref, w_ref, b_ref, o_ref, rs_ref, *, conv_rows, width, cin, cp):
    """One (batch, row-band) step.

    x_ref : (conv_rows + 2, width + 2, cin)   bf16  padded input band (with halo)
    w_ref : (9, cin, cp)                      bf16  taps, index = ky*3 + kx
    b_ref : (1, cp)                           f32
    o_ref : (conv_rows // 2, width // 2, cp)  bf16  pooled output band
    rs_ref: (conv_rows // 2, width, cp)       f32   row-pooled scratch
    """
    m = conv_rows * width
    acc = jnp.zeros((m, cp), jnp.float32)
    # in-kernel im2col: 9 shifted taps accumulated on the MXU in f32
    for ky in range(3):
        for kx in range(3):
            tap = x_ref[ky:ky + conv_rows, kx:kx + width, :]
            tap = tap.reshape(m, cin)
            acc = acc + jnp.dot(tap, w_ref[ky * 3 + kx],
                                preferred_element_type=jnp.float32)
    acc = jnp.maximum(acc + b_ref[...], 0.0)            # bias + ReLU (f32 epilogue)

    # fused 2x2 max-pool epilogue
    pool_rows = conv_rows // 2
    half_w = width // 2
    for i in range(pool_rows):                          # pool adjacent row pairs
        top = acc[(2 * i) * width:(2 * i + 1) * width, :]
        bot = acc[(2 * i + 1) * width:(2 * i + 2) * width, :]
        rs_ref[i, :, :] = jnp.maximum(top, bot)
    even = rs_ref[:, pl.ds(0, half_w, 2), :]            # pool adjacent column pairs
    odd = rs_ref[:, pl.ds(1, half_w, 2), :]
    o_ref[...] = jnp.maximum(even, odd).astype(o_ref.dtype)


def _pick_band(h, target=16):
    """Largest even divisor of h that is <= target (conv rows per band)."""
    best = 2
    for b in range(2, min(target, h) + 1, 2):
        if h % b == 0:
            best = b
    return best


def conv3x3_relu_pool(x_nhwc, w9, b):
    """x_nhwc (N,H,W,Cin) bf16, w9 (9,Cin,CP) bf16, b (1,CP) f32 -> (N,H/2,W/2,CP) bf16."""
    n, h, w, cin = x_nhwc.shape
    cp = w9.shape[-1]
    cb = _pick_band(h)               # conv rows per band (even, divides h)
    nb = h // cb
    pb = cb // 2
    wp = w + 2
    hh, wh = h // 2, w // 2

    # Spatial zero-pad + halo-banded copy of the input (each band carries its
    # 1-row halo); ~(cb+2)/cb duplication, far cheaper than the 9x im2col copy.
    # TODO(synk): replace with an in-kernel manual DMA (memory_space=pl.ANY) to
    # drop even this small duplicated copy.
    xp = jnp.pad(x_nhwc, ((0, 0), (1, 1), (1, 1), (0, 0)))
    rows = (jnp.arange(nb)[:, None] * cb + jnp.arange(cb + 2)[None, :]).reshape(-1)
    xb = xp[:, rows, :, :].reshape(n, nb, cb + 2, wp, cin)

    kern = functools.partial(_conv_pool_kernel, conv_rows=cb, width=w, cin=cin, cp=cp)
    flops = 2 * n * h * w * 9 * cin * cp
    bytes_accessed = xb.size * 2 + w9.size * 2 + b.size * 4 + n * hh * wh * cp * 2
    return pl.pallas_call(
        kern,
        out_shape=jax.ShapeDtypeStruct((n, hh, wh, cp), jnp.bfloat16),
        grid=(n, nb),
        in_specs=[
            pl.BlockSpec((None, None, cb + 2, wp, cin), lambda ni, bi: (ni, bi, 0, 0, 0)),
            pl.BlockSpec((9, cin, cp), lambda ni, bi: (0, 0, 0)),     # resident weights
            pl.BlockSpec((1, cp), lambda ni, bi: (0, 0)),             # resident bias
        ],
        out_specs=pl.BlockSpec((None, pb, wh, cp), lambda ni, bi: (ni, bi, 0, 0)),
        scratch_shapes=[pltpu.VMEM((pb, w, cp), jnp.float32)],
        compiler_params=pltpu.CompilerParams(
            dimension_semantics=("parallel", "parallel"),
            vmem_limit_bytes=VMEM_LIMIT,
        ),
        cost_estimate=pl.CostEstimate(
            flops=flops, transcendentals=0, bytes_accessed=bytes_accessed),
    )(xb, w9, b)


# ---------------------------------------------------------------------------
# K-tiled fully-connected kernel: y = act(x @ w + b), f32 VMEM accumulator
# ---------------------------------------------------------------------------
def _fc_kernel(x_ref, w_ref, b_ref, o_ref, acc_ref, *, relu):
    @pl.when(pl.program_id(0) == 0)
    def _init():
        acc_ref[...] = jnp.zeros_like(acc_ref)

    acc_ref[...] += jnp.dot(x_ref[...], w_ref[...],
                            preferred_element_type=jnp.float32)

    @pl.when(pl.program_id(0) == pl.num_programs(0) - 1)
    def _finalize():
        y = acc_ref[...] + b_ref[...]
        if relu:
            y = jnp.maximum(y, 0.0)
        o_ref[...] = y.astype(o_ref.dtype)


def _pick_tile_k(k, target=512):
    if k <= target:
        return k
    for t in range(target, 127, -128):
        if k % t == 0:
            return t
    return k  # fallback: single block (never hit for this model's sizes)


def fc_layer(x, w, b, *, relu, out_dtype, target_tile_k=512):
    m, k = x.shape
    k2, np_ = w.shape
    assert k == k2, (k, k2)
    tk = _pick_tile_k(k, target_tile_k)
    grid_k = k // tk
    out_bytes = 2 if out_dtype == jnp.bfloat16 else 4
    kern = functools.partial(_fc_kernel, relu=relu)
    return pl.pallas_call(
        kern,
        out_shape=jax.ShapeDtypeStruct((m, np_), out_dtype),
        grid=(grid_k,),
        in_specs=[
            pl.BlockSpec((m, tk), lambda ki: (0, ki)),
            pl.BlockSpec((tk, np_), lambda ki: (ki, 0)),
            pl.BlockSpec((1, np_), lambda ki: (0, 0)),
        ],
        out_specs=pl.BlockSpec((m, np_), lambda ki: (0, 0)),
        scratch_shapes=[pltpu.VMEM((m, np_), jnp.float32)],
        compiler_params=pltpu.CompilerParams(
            dimension_semantics=("arbitrary",),
            vmem_limit_bytes=VMEM_LIMIT,
        ),
        cost_estimate=pl.CostEstimate(
            flops=2 * m * k * np_,
            transcendentals=0,
            bytes_accessed=x.size * 2 + w.size * 2 + b.size * 4 + m * np_ * out_bytes),
    )(x, w, b)


# ---------------------------------------------------------------------------
# Parameters: torch layouts at init, one-time conversion to kernel layouts
# ---------------------------------------------------------------------------
def _feature_size(img_res):
    size = img_res
    size = (size - 3 + 2 * 1) // 1 + 1
    size = (size - 2) // 2 + 1
    size = (size - 3 + 2 * 1) // 1 + 1
    size = (size - 2) // 2 + 1
    return size


def init_torch_params(key, img_res, num_classes):
    """Parameters in PyTorch layouts (Conv2d: (Cout,Cin,kh,kw), Linear: (out,in))."""
    fs = _feature_size(img_res)
    ks = jax.random.split(key, 12)

    def w(k, shape, fan_in):
        return jax.random.normal(k, shape, jnp.float32) * (1.0 / jnp.sqrt(fan_in))

    return {
        "conv1_w": w(ks[0], (32, 3, 3, 3), 3 * 9),
        "conv1_b": w(ks[1], (32,), 3 * 9),
        "conv2_w": w(ks[2], (64, 32, 3, 3), 32 * 9),
        "conv2_b": w(ks[3], (64,), 32 * 9),
        "fc1_w": w(ks[4], (64, 64 * fs * fs), 64 * fs * fs),
        "fc1_b": w(ks[5], (64,), 64 * fs * fs),
        "fc2_w": w(ks[6], (128, 64), 64),
        "fc2_b": w(ks[7], (128,), 64),
        "fc3_w": w(ks[8], (256, 128), 128),
        "fc3_b": w(ks[9], (256,), 128),
        "fc4_w": w(ks[10], (num_classes, 256), 256),
        "fc4_b": w(ks[11], (num_classes,), 256),
    }


def prepare_params(p, img_res, num_classes):
    """One-time layout prep: (ky,kx,Cin,Cout) conv taps padded to 128 lanes, fc
    weights pre-transposed to (in,out), NCHW-flatten permutation folded into fc1,
    and all in/out features zero-padded to 128 (padding contributes exact zeros)."""
    fs = _feature_size(img_res)
    bf = lambda a: a.astype(jnp.bfloat16)

    # conv1: (32,3,3,3) -> (3,3,3,32) -> pad -> (9, CIN1, CP)
    c1 = jnp.transpose(p["conv1_w"], (2, 3, 1, 0))
    c1 = jnp.pad(c1, ((0, 0), (0, 0), (0, CIN1 - 3), (0, CP - 32)))
    c1w = bf(c1.reshape(9, CIN1, CP))
    c1b = jnp.pad(p["conv1_b"], (0, CP - 32)).reshape(1, CP).astype(jnp.float32)

    # conv2: (64,32,3,3) -> (3,3,32,64) -> pad (in 32->CP: conv1 output stays padded)
    c2 = jnp.transpose(p["conv2_w"], (2, 3, 1, 0))
    c2 = jnp.pad(c2, ((0, 0), (0, 0), (0, CP - 32), (0, CP - 64)))
    c2w = bf(c2.reshape(9, CP, CP))
    c2b = jnp.pad(p["conv2_b"], (0, CP - 64)).reshape(1, CP).astype(jnp.float32)

    # fc1: torch expects NCHW-flatten (c,h,w) features; our activation is
    # NHWC-flatten with channels padded to CP -> fold the permutation + padding
    # into the weight so the forward pass only does a free reshape.
    w1 = p["fc1_w"].reshape(64, 64, fs, fs)              # (out, c, h, w)
    w1 = jnp.transpose(w1, (2, 3, 1, 0))                 # (h, w, c, out)
    w1 = jnp.pad(w1, ((0, 0), (0, 0), (0, CP - 64), (0, 128 - 64)))
    w1 = bf(w1.reshape(fs * fs * CP, 128))
    b1 = jnp.pad(p["fc1_b"], (0, 128 - 64)).reshape(1, 128).astype(jnp.float32)

    # fc2: (128,64) -> (64,128), input rows padded 64->128 (fc1 output is padded)
    w2 = bf(jnp.pad(p["fc2_w"].T, ((0, 128 - 64), (0, 0))))
    b2 = p["fc2_b"].reshape(1, 128).astype(jnp.float32)

    # fc3: (256,128) -> (128,256)
    w3 = bf(p["fc3_w"].T)
    b3 = p["fc3_b"].reshape(1, 256).astype(jnp.float32)

    # fc4: (nc,256) -> (256,nc) -> pad out nc->128 (padding sliced off in wrapper)
    w4 = bf(jnp.pad(p["fc4_w"].T, ((0, 0), (0, 128 - num_classes))))
    b4 = jnp.pad(p["fc4_b"], (0, 128 - num_classes)).reshape(1, 128).astype(jnp.float32)

    return {"c1w": c1w, "c1b": c1b, "c2w": c2w, "c2b": c2b,
            "w1": w1, "b1": b1, "w2": w2, "b2": b2,
            "w3": w3, "b3": b3, "w4": w4, "b4": b4}


# ---------------------------------------------------------------------------
# SimpleCNN forward
# ---------------------------------------------------------------------------
def simple_cnn_forward(x_nchw, prep, num_classes):
    n = x_nchw.shape[0]
    x = jnp.transpose(x_nchw, (0, 2, 3, 1)).astype(jnp.bfloat16)      # NCHW -> NHWC
    x = jnp.pad(x, ((0, 0), (0, 0), (0, 0), (0, CIN1 - x.shape[-1])))
    x = conv3x3_relu_pool(x, prep["c1w"], prep["c1b"])                # (n, H/2, W/2, 128)
    x = conv3x3_relu_pool(x, prep["c2w"], prep["c2b"])                # (n, H/4, W/4, 128)
    x = x.reshape(n, -1)            # NHWC flatten (NCHW permutation folded into fc1 weight)
    x = fc_layer(x, prep["w1"], prep["b1"], relu=True, out_dtype=jnp.bfloat16)
    x = fc_layer(x, prep["w2"], prep["b2"], relu=True, out_dtype=jnp.bfloat16)
    x = fc_layer(x, prep["w3"], prep["b3"], relu=True, out_dtype=jnp.bfloat16)
    x = fc_layer(x, prep["w4"], prep["b4"], relu=False, out_dtype=jnp.float32)
    return x[:, :num_classes]


if __name__ == "__main__":
    IMG_RES = 16          # small stand-in for the module's img_res=480
    NUM_CLASSES = 4
    BATCH = 2

    key = jax.random.PRNGKey(0)
    k_x, k_p = jax.random.split(key)
    torch_params = init_torch_params(k_p, IMG_RES, NUM_CLASSES)
    prep = prepare_params(torch_params, IMG_RES, NUM_CLASSES)
    x = jax.random.normal(k_x, (BATCH, 3, IMG_RES, IMG_RES), jnp.float32)

    fwd = jax.jit(functools.partial(simple_cnn_forward, num_classes=NUM_CLASSES))
    out = jax.block_until_ready(fwd(x, prep))
    assert out.shape == (BATCH, NUM_CLASSES), out.shape
    assert out.dtype == jnp.float32, out.dtype
    print("KERNEL_OK")
</pallas_src>

<mosaic_0001>
module attributes {stable_mosaic.version = 11 : i64} {
  func.func @_conv_pool_kernel(%arg0: i32, %arg1: i32, %arg2: memref<1x1x18x18x8xbf16, #tpu.memory_space<vmem>>, %arg3: memref<9x8x128xbf16, #tpu.memory_space<vmem>>, %arg4: memref<1x128xf32, #tpu.memory_space<vmem>>, %arg5: memref<1x8x8x128xbf16, #tpu.memory_space<vmem>>, %arg6: memref<8x16x128xf32, #tpu.memory_space<vmem>>) attributes {dimension_semantics = [#tpu.dimension_semantics<parallel>, #tpu.dimension_semantics<parallel>], iteration_bounds = array<i64: 2, 1>, scalar_prefetch = 0 : i64, scratch_operands = 1 : i64, tpu.core_type = #tpu.core_type<tc>, window_params = [{transform_indices = @transform_0, window_bounds = array<i64: 1, 1, 18, 18, 8>}, {pipeline_mode = #tpu.pipeline_mode<synchronous>, transform_indices = @transform_1, window_bounds = array<i64: 9, 8, 128>}, {pipeline_mode = #tpu.pipeline_mode<synchronous>, transform_indices = @transform_2, window_bounds = array<i64: 1, 128>}, {transform_indices = @transform_3, window_bounds = array<i64: 1, 8, 8, 128>}]} {
    %cst = arith.constant 0.000000e+00 : f32
    %0 = vector.broadcast %cst : f32 to vector<256x128xf32>
    %c0 = arith.constant 0 : index
    %c0_0 = arith.constant 0 : index
    %c0_1 = arith.constant 0 : index
    %c0_2 = arith.constant 0 : index
    %c0_3 = arith.constant 0 : index
    %1 = vector.load %arg2[%c0, %c0_0, %c0_1, %c0_2, %c0_3] : memref<1x1x18x18x8xbf16, #tpu.memory_space<vmem>>, vector<1x1x16x16x8xbf16>
    %2 = vector.shape_cast %1 : vector<1x1x16x16x8xbf16> to vector<16x16x8xbf16>
    %3 = vector.shape_cast %2 : vector<16x16x8xbf16> to vector<256x8xbf16>
    %c0_4 = arith.constant 0 : index
    %c0_5 = arith.constant 0 : index
    %c0_6 = arith.constant 0 : index
    %4 = vector.load %arg3[%c0_4, %c0_5, %c0_6] : memref<9x8x128xbf16, #tpu.memory_space<vmem>>, vector<1x8x128xbf16>
    %5 = vector.shape_cast %4 : vector<1x8x128xbf16> to vector<8x128xbf16>
    %cst_7 = arith.constant dense<0.000000e+00> : vector<256x128xf32>
    %6 = tpu.matmul %3, %5, %cst_7 {dimension_numbers = #tpu.dot_dimension_numbers<[1], [0], [0], [1], [0, 0, 1, 1], [], []>} : vector<256x8xbf16>, vector<8x128xbf16>, vector<256x128xf32> -> vector<256x128xf32>
    %7 = arith.addf %0, %6 : vector<256x128xf32>
    %c0_8 = arith.constant 0 : index
    %c0_9 = arith.constant 0 : index
    %c0_10 = arith.constant 0 : index
    %c1 = arith.constant 1 : index
    %c0_11 = arith.constant 0 : index
    %8 = vector.load %arg2[%c0_8, %c0_9, %c0_10, %c1, %c0_11] : memref<1x1x18x18x8xbf16, #tpu.memory_space<vmem>>, vector<1x1x16x16x8xbf16>
    %9 = vector.shape_cast %8 : vector<1x1x16x16x8xbf16> to vector<16x16x8xbf16>
    %10 = vector.shape_cast %9 : vector<16x16x8xbf16> to vector<256x8xbf16>
    %c1_12 = arith.constant 1 : index
    %c0_13 = arith.constant 0 : index
    %c0_14 = arith.constant 0 : index
    %11 = vector.load %arg3[%c1_12, %c0_13, %c0_14] : memref<9x8x128xbf16, #tpu.memory_space<vmem>>, vector<1x8x128xbf16>
    %12 = vector.shape_cast %11 : vector<1x8x128xbf16> to vector<8x128xbf16>
    %cst_15 = arith.constant dense<0.000000e+00> : vector<256x128xf32>
    %13 = tpu.matmul %10, %12, %cst_15 {dimension_numbers = #tpu.dot_dimension_numbers<[1], [0], [0], [1], [0, 0, 1, 1], [], []>} : vector<256x8xbf16>, vector<8x128xbf16>, vector<256x128xf32> -> vector<256x128xf32>
    %14 = arith.addf %7, %13 : vector<256x128xf32>
    %c0_16 = arith.constant 0 : index
    %c0_17 = arith.constant 0 : index
    %c0_18 = arith.constant 0 : index
    %c2 = arith.constant 2 : index
    %c0_19 = arith.constant 0 : index
    %15 = vector.load %arg2[%c0_16, %c0_17, %c0_18, %c2, %c0_19] : memref<1x1x18x18x8xbf16, #tpu.memory_space<vmem>>, vector<1x1x16x16x8xbf16>
    %16 = vector.shape_cast %15 : vector<1x1x16x16x8xbf16> to vector<16x16x8xbf16>
    %17 = vector.shape_cast %16 : vector<16x16x8xbf16> to vector<256x8xbf16>
    %c2_20 = arith.constant 2 : index
    %c0_21 = arith.constant 0 : index
    %c0_22 = arith.constant 0 : index
    %18 = vector.load %arg3[%c2_20, %c0_21, %c0_22] : memref<9x8x128xbf16, #tpu.memory_space<vmem>>, vector<1x8x128xbf16>
    %19 = vector.shape_cast %18 : vector<1x8x128xbf16> to vector<8x128xbf16>
    %cst_23 = arith.constant dense<0.000000e+00> : vector<256x128xf32>
    %20 = tpu.matmul %17, %19, %cst_23 {dimension_numbers = #tpu.dot_dimension_numbers<[1], [0], [0], [1], [0, 0, 1, 1], [], []>} : vector<256x8xbf16>, vector<8x128xbf16>, vector<256x128xf32> -> vector<256x128xf32>
    %21 = arith.addf %14, %20 : vector<256x128xf32>
    %c0_24 = arith.constant 0 : index
    %c0_25 = arith.constant 0 : index
    %c1_26 = arith.constant 1 : index
    %c0_27 = arith.constant 0 : index
    %c0_28 = arith.constant 0 : index
    %22 = vector.load %arg2[%c0_24, %c0_25, %c1_26, %c0_27, %c0_28] : memref<1x1x18x18x8xbf16, #tpu.memory_space<vmem>>, vector<1x1x16x16x8xbf16>
    %23 = vector.shape_cast %22 : vector<1x1x16x16x8xbf16> to vector<16x16x8xbf16>
    %24 = vector.shape_cast %23 : vector<16x16x8xbf16> to vector<256x8xbf16>
    %c3 = arith.constant 3 : index
    %c0_29 = arith.constant 0 : index
    %c0_30 = arith.constant 0 : index
    %25 = vector.load %arg3[%c3, %c0_29, %c0_30] : memref<9x8x128xbf16, #tpu.memory_space<vmem>>, vector<1x8x128xbf16>
    %26 = vector.shape_cast %25 : vector<1x8x128xbf16> to vector<8x128xbf16>
    %cst_31 = arith.constant dense<0.000000e+00> : vector<256x128xf32>
    %27 = tpu.matmul %24, %26, %cst_31 {dimension_numbers = #tpu.dot_dimension_numbers<[1], [0], [0], [1], [0, 0, 1, 1], [], []>} : vector<256x8xbf16>, vector<8x128xbf16>, vector<256x128xf32> -> vector<256x128xf32>
    %28 = arith.addf %21, %27 : vector<256x128xf32>
    %c0_32 = arith.constant 0 : index
    %c0_33 = arith.constant 0 : index
    %c1_34 = arith.constant 1 : index
    %c1_35 = arith.constant 1 : index
    %c0_36 = arith.constant 0 : index
    %29 = vector.load %arg2[%c0_32, %c0_33, %c1_34, %c1_35, %c0_36] : memref<1x1x18x18x8xbf16, #tpu.memory_space<vmem>>, vector<1x1x16x16x8xbf16>
    %30 = vector.shape_cast %29 : vector<1x1x16x16x8xbf16> to vector<16x16x8xbf16>
    %31 = vector.shape_cast %30 : vector<16x16x8xbf16> to vector<256x8xbf16>
    %c4 = arith.constant 4 : index
    %c0_37 = arith.constant 0 : index
    %c0_38 = arith.constant 0 : index
    %32 = vector.load %arg3[%c4, %c0_37, %c0_38] : memref<9x8x128xbf16, #tpu.memory_space<vmem>>, vector<1x8x128xbf16>
    %33 = vector.shape_cast %32 : vector<1x8x128xbf16> to vector<8x128xbf16>
    %cst_39 = arith.constant dense<0.000000e+00> : vector<256x128xf32>
    %34 = tpu.matmul %31, %33, %cst_39 {dimension_numbers = #tpu.dot_dimension_numbers<[1], [0], [0], [1], [0, 0, 1, 1], [], []>} : vector<256x8xbf16>, vector<8x128xbf16>, vector<256x128xf32> -> vector<256x128xf32>
    %35 = arith.addf %28, %34 : vector<256x128xf32>
    %c0_40 = arith.constant 0 : index
    %c0_41 = arith.constant 0 : index
    %c1_42 = arith.constant 1 : index
    %c2_43 = arith.constant 2 : index
    %c0_44 = arith.constant 0 : index
    %36 = vector.load %arg2[%c0_40, %c0_41, %c1_42, %c2_43, %c0_44] : memref<1x1x18x18x8xbf16, #tpu.memory_space<vmem>>, vector<1x1x16x16x8xbf16>
    %37 = vector.shape_cast %36 : vector<1x1x16x16x8xbf16> to vector<16x16x8xbf16>
    %38 = vector.shape_cast %37 : vector<16x16x8xbf16> to vector<256x8xbf16>
    %c5 = arith.constant 5 : index
    %c0_45 = arith.constant 0 : index
    %c0_46 = arith.constant 0 : index
    %39 = vector.load %arg3[%c5, %c0_45, %c0_46] : memref<9x8x128xbf16, #tpu.memory_space<vmem>>, vector<1x8x128xbf16>
    %40 = vector.shape_cast %39 : vector<1x8x128xbf16> to vector<8x128xbf16>
    %cst_47 = arith.constant dense<0.000000e+00> : vector<256x128xf32>
    %41 = tpu.matmul %38, %40, %cst_47 {dimension_numbers = #tpu.dot_dimension_numbers<[1], [0], [0], [1], [0, 0, 1, 1], [], []>} : vector<256x8xbf16>, vector<8x128xbf16>, vector<256x128xf32> -> vector<256x128xf32>
    %42 = arith.addf %35, %41 : vector<256x128xf32>
    %c0_48 = arith.constant 0 : index
    %c0_49 = arith.constant 0 : index
    %c2_50 = arith.constant 2 : index
    %c0_51 = arith.constant 0 : index
    %c0_52 = arith.constant 0 : index
    %43 = vector.load %arg2[%c0_48, %c0_49, %c2_50, %c0_51, %c0_52] : memref<1x1x18x18x8xbf16, #tpu.memory_space<vmem>>, vector<1x1x16x16x8xbf16>
    %44 = vector.shape_cast %43 : vector<1x1x16x16x8xbf16> to vector<16x16x8xbf16>
    %45 = vector.shape_cast %44 : vector<16x16x8xbf16> to vector<256x8xbf16>
    %c6 = arith.constant 6 : index
    %c0_53 = arith.constant 0 : index
    %c0_54 = arith.constant 0 : index
    %46 = vector.load %arg3[%c6, %c0_53, %c0_54] : memref<9x8x128xbf16, #tpu.memory_space<vmem>>, vector<1x8x128xbf16>
    %47 = vector.shape_cast %46 : vector<1x8x128xbf16> to vector<8x128xbf16>
    %cst_55 = arith.constant dense<0.000000e+00> : vector<256x128xf32>
    %48 = tpu.matmul %45, %47, %cst_55 {dimension_numbers = #tpu.dot_dimension_numbers<[1], [0], [0], [1], [0, 0, 1, 1], [], []>} : vector<256x8xbf16>, vector<8x128xbf16>, vector<256x128xf32> -> vector<256x128xf32>
    %49 = arith.addf %42, %48 : vector<256x128xf32>
    %c0_56 = arith.constant 0 : index
    %c0_57 = arith.constant 0 : index
    %c2_58 = arith.constant 2 : index
    %c1_59 = arith.constant 1 : index
    %c0_60 = arith.constant 0 : index
    %50 = vector.load %arg2[%c0_56, %c0_57, %c2_58, %c1_59, %c0_60] : memref<1x1x18x18x8xbf16, #tpu.memory_space<vmem>>, vector<1x1x16x16x8xbf16>
    %51 = vector.shape_cast %50 : vector<1x1x16x16x8xbf16> to vector<16x16x8xbf16>
    %52 = vector.shape_cast %51 : vector<16x16x8xbf16> to vector<256x8xbf16>
    %c7 = arith.constant 7 : index
    %c0_61 = arith.constant 0 : index
    %c0_62 = arith.constant 0 : index
    %53 = vector.load %arg3[%c7, %c0_61, %c0_62] : memref<9x8x128xbf16, #tpu.memory_space<vmem>>, vector<1x8x128xbf16>
    %54 = vector.shape_cast %53 : vector<1x8x128xbf16> to vector<8x128xbf16>
    %cst_63 = arith.constant dense<0.000000e+00> : vector<256x128xf32>
    %55 = tpu.matmul %52, %54, %cst_63 {dimension_numbers = #tpu.dot_dimension_numbers<[1], [0], [0], [1], [0, 0, 1, 1], [], []>} : vector<256x8xbf16>, vector<8x128xbf16>, vector<256x128xf32> -> vector<256x128xf32>
    %56 = arith.addf %49, %55 : vector<256x128xf32>
    %c0_64 = arith.constant 0 : index
    %c0_65 = arith.constant 0 : index
    %c2_66 = arith.constant 2 : index
    %c2_67 = arith.constant 2 : index
    %c0_68 = arith.constant 0 : index
    %57 = vector.load %arg2[%c0_64, %c0_65, %c2_66, %c2_67, %c0_68] : memref<1x1x18x18x8xbf16, #tpu.memory_space<vmem>>, vector<1x1x16x16x8xbf16>
    %58 = vector.shape_cast %57 : vector<1x1x16x16x8xbf16> to vector<16x16x8xbf16>
    %59 = vector.shape_cast %58 : vector<16x16x8xbf16> to vector<256x8xbf16>
    %c8 = arith.constant 8 : index
    %c0_69 = arith.constant 0 : index
    %c0_70 = arith.constant 0 : index
    %60 = vector.load %arg3[%c8, %c0_69, %c0_70] : memref<9x8x128xbf16, #tpu.memory_space<vmem>>, vector<1x8x128xbf16>
    %61 = vector.shape_cast %60 : vector<1x8x128xbf16> to vector<8x128xbf16>
    %cst_71 = arith.constant dense<0.000000e+00> : vector<256x128xf32>
    %62 = tpu.matmul %59, %61, %cst_71 {dimension_numbers = #tpu.dot_dimension_numbers<[1], [0], [0], [1], [0, 0, 1, 1], [], []>} : vector<256x8xbf16>, vector<8x128xbf16>, vector<256x128xf32> -> vector<256x128xf32>
    %63 = arith.addf %56, %62 : vector<256x128xf32>
    %c0_72 = arith.constant 0 : index
    %c0_73 = arith.constant 0 : index
    %64 = vector.load %arg4[%c0_72, %c0_73] : memref<1x128xf32, #tpu.memory_space<vmem>>, vector<1x128xf32>
    %65 = vector.broadcast %64 : vector<1x128xf32> to vector<256x128xf32>
    %66 = arith.addf %63, %65 : vector<256x128xf32>
    %cst_74 = arith.constant 0.000000e+00 : f32
    %67 = vector.broadcast %cst_74 : f32 to vector<256x128xf32>
    %68 = arith.maximumf %66, %67 : vector<256x128xf32>
    %69 = vector.extract_strided_slice %68 {offsets = [0, 0], sizes = [16, 128], strides = [1, 1]} : vector<256x128xf32> to vector<16x128xf32>
    %70 = vector.extract_strided_slice %68 {offsets = [16, 0], sizes = [16, 128], strides = [1, 1]} : vector<256x128xf32> to vector<16x128xf32>
    %71 = arith.maximumf %69, %70 : vector<16x128xf32>
    %c0_75 = arith.constant 0 : index
    %c0_76 = arith.constant 0 : index
    %c0_77 = arith.constant 0 : index
    %72 = vector.load %arg6[%c0_75, %c0_76, %c0_77] : memref<8x16x128xf32, #tpu.memory_space<vmem>>, vector<1x16x128xf32>
    %73 = vector.shape_cast %72 : vector<1x16x128xf32> to vector<16x128xf32>
    %74 = vector.shape_cast %71 : vector<16x128xf32> to vector<1x16x128xf32>
    tpu.vector_store %arg6[%c0_75, %c0_76, %c0_77], %74 {strides = array<i32>} : memref<8x16x128xf32, #tpu.memory_space<vmem>>, vector<1x16x128xf32>,
    %75 = vector.extract_strided_slice %68 {offsets = [32, 0], sizes = [16, 128], strides = [1, 1]} : vector<256x128xf32> to vector<16x128xf32>
    %76 = vector.extract_strided_slice %68 {offsets = [48, 0], sizes = [16, 128], strides = [1, 1]} : vector<256x128xf32> to vector<16x128xf32>
    %77 = arith.maximumf %75, %76 : vector<16x128xf32>
    %c1_78 = arith.constant 1 : index
    %c0_79 = arith.constant 0 : index
    %c0_80 = arith.constant 0 : index
    %78 = vector.load %arg6[%c1_78, %c0_79, %c0_80] : memref<8x16x128xf32, #tpu.memory_space<vmem>>, vector<1x16x128xf32>
    %79 = vector.shape_cast %78 : vector<1x16x128xf32> to vector<16x128xf32>
    %80 = vector.shape_cast %77 : vector<16x128xf32> to vector<1x16x128xf32>
    tpu.vector_store %arg6[%c1_78, %c0_79, %c0_80], %80 {strides = array<i32>} : memref<8x16x128xf32, #tpu.memory_space<vmem>>, vector<1x16x128xf32>,
    %81 = vector.extract_strided_slice %68 {offsets = [64, 0], sizes = [16, 128], strides = [1, 1]} : vector<256x128xf32> to vector<16x128xf32>
    %82 = vector.extract_strided_slice %68 {offsets = [80, 0], sizes = [16, 128], strides = [1, 1]} : vector<256x128xf32> to vector<16x128xf32>
    %83 = arith.maximumf %81, %82 : vector<16x128xf32>
    %c2_81 = arith.constant 2 : index
    %c0_82 = arith.constant 0 : index
    %c0_83 = arith.constant 0 : index
    %84 = vector.load %arg6[%c2_81, %c0_82, %c0_83] : memref<8x16x128xf32, #tpu.memory_space<vmem>>, vector<1x16x128xf32>
    %85 = vector.shape_cast %84 : vector<1x16x128xf32> to vector<16x128xf32>
    %86 = vector.shape_cast %83 : vector<16x128xf32> to vector<1x16x128xf32>
    tpu.vector_store %arg6[%c2_81, %c0_82, %c0_83], %86 {strides = array<i32>} : memref<8x16x128xf32, #tpu.memory_space<vmem>>, vector<1x16x128xf32>,
    %87 = vector.extract_strided_slice %68 {offsets = [96, 0], sizes = [16, 128], strides = [1, 1]} : vector<256x128xf32> to vector<16x128xf32>
    %88 = vector.extract_strided_slice %68 {offsets = [112, 0], sizes = [16, 128], strides = [1, 1]} : vector<256x128xf32> to vector<16x128xf32>
    %89 = arith.maximumf %87, %88 : vector<16x128xf32>
    %c3_84 = arith.constant 3 : index
    %c0_85 = arith.constant 0 : index
    %c0_86 = arith.constant 0 : index
    %90 = vector.load %arg6[%c3_84, %c0_85, %c0_86] : memref<8x16x128xf32, #tpu.memory_space<vmem>>, vector<1x16x128xf32>
    %91 = vector.shape_cast %90 : vector<1x16x128xf32> to vector<16x128xf32>
    %92 = vector.shape_cast %89 : vector<16x128xf32> to vector<1x16x128xf32>
    tpu.vector_store %arg6[%c3_84, %c0_85, %c0_86], %92 {strides = array<i32>} : memref<8x16x128xf32, #tpu.memory_space<vmem>>, vector<1x16x128xf32>,
    %93 = vector.extract_strided_slice %68 {offsets = [128, 0], sizes = [16, 128], strides = [1, 1]} : vector<256x128xf32> to vector<16x128xf32>
    %94 = vector.extract_strided_slice %68 {offsets = [144, 0], sizes = [16, 128], strides = [1, 1]} : vector<256x128xf32> to vector<16x128xf32>
    %95 = arith.maximumf %93, %94 : vector<16x128xf32>
    %c4_87 = arith.constant 4 : index
    %c0_88 = arith.constant 0 : index
    %c0_89 = arith.constant 0 : index
    %96 = vector.load %arg6[%c4_87, %c0_88, %c0_89] : memref<8x16x128xf32, #tpu.memory_space<vmem>>, vector<1x16x128xf32>
    %97 = vector.shape_cast %96 : vector<1x16x128xf32> to vector<16x128xf32>
    %98 = vector.shape_cast %95 : vector<16x128xf32> to vector<1x16x128xf32>
    tpu.vector_store %arg6[%c4_87, %c0_88, %c0_89], %98 {strides = array<i32>} : memref<8x16x128xf32, #tpu.memory_space<vmem>>, vector<1x16x128xf32>,
    %99 = vector.extract_strided_slice %68 {offsets = [160, 0], sizes = [16, 128], strides = [1, 1]} : vector<256x128xf32> to vector<16x128xf32>
    %100 = vector.extract_strided_slice %68 {offsets = [176, 0], sizes = [16, 128], strides = [1, 1]} : vector<256x128xf32> to vector<16x128xf32>
    %101 = arith.maximumf %99, %100 : vector<16x128xf32>
    %c5_90 = arith.constant 5 : index
    %c0_91 = arith.constant 0 : index
    %c0_92 = arith.constant 0 : index
    %102 = vector.load %arg6[%c5_90, %c0_91, %c0_92] : memref<8x16x128xf32, #tpu.memory_space<vmem>>, vector<1x16x128xf32>
    %103 = vector.shape_cast %102 : vector<1x16x128xf32> to vector<16x128xf32>
    %104 = vector.shape_cast %101 : vector<16x128xf32> to vector<1x16x128xf32>
    tpu.vector_store %arg6[%c5_90, %c0_91, %c0_92], %104 {strides = array<i32>} : memref<8x16x128xf32, #tpu.memory_space<vmem>>, vector<1x16x128xf32>,
    %105 = vector.extract_strided_slice %68 {offsets = [192, 0], sizes = [16, 128], strides = [1, 1]} : vector<256x128xf32> to vector<16x128xf32>
    %106 = vector.extract_strided_slice %68 {offsets = [208, 0], sizes = [16, 128], strides = [1, 1]} : vector<256x128xf32> to vector<16x128xf32>
    %107 = arith.maximumf %105, %106 : vector<16x128xf32>
    %c6_93 = arith.constant 6 : index
    %c0_94 = arith.constant 0 : index
    %c0_95 = arith.constant 0 : index
    %108 = vector.load %arg6[%c6_93, %c0_94, %c0_95] : memref<8x16x128xf32, #tpu.memory_space<vmem>>, vector<1x16x128xf32>
    %109 = vector.shape_cast %108 : vector<1x16x128xf32> to vector<16x128xf32>
    %110 = vector.shape_cast %107 : vector<16x128xf32> to vector<1x16x128xf32>
    tpu.vector_store %arg6[%c6_93, %c0_94, %c0_95], %110 {strides = array<i32>} : memref<8x16x128xf32, #tpu.memory_space<vmem>>, vector<1x16x128xf32>,
    %111 = vector.extract_strided_slice %68 {offsets = [224, 0], sizes = [16, 128], strides = [1, 1]} : vector<256x128xf32> to vector<16x128xf32>
    %112 = vector.extract_strided_slice %68 {offsets = [240, 0], sizes = [16, 128], strides = [1, 1]} : vector<256x128xf32> to vector<16x128xf32>
    %113 = arith.maximumf %111, %112 : vector<16x128xf32>
    %c7_96 = arith.constant 7 : index
    %c0_97 = arith.constant 0 : index
    %c0_98 = arith.constant 0 : index
    %114 = vector.load %arg6[%c7_96, %c0_97, %c0_98] : memref<8x16x128xf32, #tpu.memory_space<vmem>>, vector<1x16x128xf32>
    %115 = vector.shape_cast %114 : vector<1x16x128xf32> to vector<16x128xf32>
    %116 = vector.shape_cast %113 : vector<16x128xf32> to vector<1x16x128xf32>
    tpu.vector_store %arg6[%c7_96, %c0_97, %c0_98], %116 {strides = array<i32>} : memref<8x16x128xf32, #tpu.memory_space<vmem>>, vector<1x16x128xf32>,
    %c0_99 = arith.constant 0 : index
    %c0_100 = arith.constant 0 : index
    %c0_101 = arith.constant 0 : index
    %117 = tpu.strided_load %arg6[%c0_99, %c0_100, %c0_101] {strides = array<i32: 1, 2, 1>} : memref<8x16x128xf32, #tpu.memory_space<vmem>>, vector<8x8x128xf32>
    %c0_102 = arith.constant 0 : index
    %c1_103 = arith.constant 1 : index
    %c0_104 = arith.constant 0 : index
    %118 = tpu.strided_load %arg6[%c0_102, %c1_103, %c0_104] {strides = array<i32: 1, 2, 1>} : memref<8x16x128xf32, #tpu.memory_space<vmem>>, vector<8x8x128xf32>
    %119 = arith.maximumf %117, %118 : vector<8x8x128xf32>
    %120 = arith.truncf %119 : vector<8x8x128xf32> to vector<8x8x128xbf16>
    %c0_105 = arith.constant 0 : index
    %c0_106 = arith.constant 0 : index
    %c0_107 = arith.constant 0 : index
    %c0_108 = arith.constant 0 : index
    %121 = vector.load %arg5[%c0_105, %c0_106, %c0_107, %c0_108] : memref<1x8x8x128xbf16, #tpu.memory_space<vmem>>, vector<1x8x8x128xbf16>
    %122 = vector.shape_cast %121 : vector<1x8x8x128xbf16> to vector<8x8x128xbf16>
    %123 = vector.shape_cast %120 : vector<8x8x128xbf16> to vector<1x8x8x128xbf16>
    tpu.vector_store %arg5[%c0_105, %c0_106, %c0_107, %c0_108], %123 {strides = array<i32>} : memref<1x8x8x128xbf16, #tpu.memory_space<vmem>>, vector<1x8x8x128xbf16>,
    return
  }
  func.func @transform_0(%arg0: i32, %arg1: i32) -> (i32, i32, i32, i32, i32) {
    %c0_i32 = arith.constant 0 : i32
    %c0_i32_0 = arith.constant 0 : i32
    %c0_i32_1 = arith.constant 0 : i32
    %c0_i32_2 = arith.constant 0 : i32
    return %arg0, %arg1, %c0_i32, %c0_i32_0, %c0_i32_1 : i32, i32, i32, i32, i32
  }
  func.func @transform_1(%arg0: i32, %arg1: i32) -> (i32, i32, i32) {
    %c0_i32 = arith.constant 0 : i32
    %c0_i32_0 = arith.constant 0 : i32
    %c0_i32_1 = arith.constant 0 : i32
    %c0_i32_2 = arith.constant 0 : i32
    return %c0_i32, %c0_i32_0, %c0_i32_1 : i32, i32, i32
  }
  func.func @transform_2(%arg0: i32, %arg1: i32) -> (i32, i32) {
    %c0_i32 = arith.constant 0 : i32
    %c0_i32_0 = arith.constant 0 : i32
    %c0_i32_1 = arith.constant 0 : i32
    return %c0_i32, %c0_i32_0 : i32, i32
  }
  func.func @transform_3(%arg0: i32, %arg1: i32) -> (i32, i32, i32, i32) {
    %c0_i32 = arith.constant 0 : i32
    %c0_i32_0 = arith.constant 0 : i32
    %c0_i32_1 = arith.constant 0 : i32
    return %arg0, %arg1, %c0_i32, %c0_i32_0 : i32, i32, i32, i32
  }
}

module attributes {stable_mosaic.version = 11 : i64} {
  func.func @_conv_pool_kernel(%arg0: i32, %arg1: i32, %arg2: memref<1x1x10x10x128xbf16, #tpu.memory_space<vmem>>, %arg3: memref<9x128x128xbf16, #tpu.memory_space<vmem>>, %arg4: memref<1x128xf32, #tpu.memory_space<vmem>>, %arg5: memref<1x4x4x128xbf16, #tpu.memory_space<vmem>>, %arg6: memref<4x8x128xf32, #tpu.memory_space<vmem>>) attributes {dimension_semantics = [#tpu.dimension_semantics<parallel>, #tpu.dimension_semantics<parallel>], iteration_bounds = array<i64: 2, 1>, scalar_prefetch = 0 : i64, scratch_operands = 1 : i64, tpu.core_type = #tpu.core_type<tc>, window_params = [{transform_indices = @transform_0, window_bounds = array<i64: 1, 1, 10, 10, 128>}, {pipeline_mode = #tpu.pipeline_mode<synchronous>, transform_indices = @transform_1, window_bounds = array<i64: 9, 128, 128>}, {pipeline_mode = #tpu.pipeline_mode<synchronous>, transform_indices = @transform_2, window_bounds = array<i64: 1, 128>}, {transform_indices = @transform_3, window_bounds = array<i64: 1, 4, 4, 128>}]} {
    %cst = arith.constant 0.000000e+00 : f32
    %0 = vector.broadcast %cst : f32 to vector<64x128xf32>
    %c0 = arith.constant 0 : index
    %c0_0 = arith.constant 0 : index
    %c0_1 = arith.constant 0 : index
    %c0_2 = arith.constant 0 : index
    %c0_3 = arith.constant 0 : index
    %1 = vector.load %arg2[%c0, %c0_0, %c0_1, %c0_2, %c0_3] : memref<1x1x10x10x128xbf16, #tpu.memory_space<vmem>>, vector<1x1x8x8x128xbf16>
    %2 = vector.shape_cast %1 : vector<1x1x8x8x128xbf16> to vector<8x8x128xbf16>
    %3 = vector.shape_cast %2 : vector<8x8x128xbf16> to vector<64x128xbf16>
    %c0_4 = arith.constant 0 : index
    %c0_5 = arith.constant 0 : index
    %c0_6 = arith.constant 0 : index
    %4 = vector.load %arg3[%c0_4, %c0_5, %c0_6] : memref<9x128x128xbf16, #tpu.memory_space<vmem>>, vector<1x128x128xbf16>
    %5 = vector.shape_cast %4 : vector<1x128x128xbf16> to vector<128x128xbf16>
    %cst_7 = arith.constant dense<0.000000e+00> : vector<64x128xf32>
    %6 = tpu.matmul %3, %5, %cst_7 {dimension_numbers = #tpu.dot_dimension_numbers<[1], [0], [0], [1], [0, 0, 1, 1], [], []>} : vector<64x128xbf16>, vector<128x128xbf16>, vector<64x128xf32> -> vector<64x128xf32>
    %7 = arith.addf %0, %6 : vector<64x128xf32>
    %c0_8 = arith.constant 0 : index
    %c0_9 = arith.constant 0 : index
    %c0_10 = arith.constant 0 : index
    %c1 = arith.constant 1 : index
    %c0_11 = arith.constant 0 : index
    %8 = vector.load %arg2[%c0_8, %c0_9, %c0_10, %c1, %c0_11] : memref<1x1x10x10x128xbf16, #tpu.memory_space<vmem>>, vector<1x1x8x8x128xbf16>
    %9 = vector.shape_cast %8 : vector<1x1x8x8x128xbf16> to vector<8x8x128xbf16>
    %10 = vector.shape_cast %9 : vector<8x8x128xbf16> to vector<64x128xbf16>
    %c1_12 = arith.constant 1 : index
    %c0_13 = arith.constant 0 : index
    %c0_14 = arith.constant 0 : index
    %11 = vector.load %arg3[%c1_12, %c0_13, %c0_14] : memref<9x128x128xbf16, #tpu.memory_space<vmem>>, vector<1x128x128xbf16>
    %12 = vector.shape_cast %11 : vector<1x128x128xbf16> to vector<128x128xbf16>
    %cst_15 = arith.constant dense<0.000000e+00> : vector<64x128xf32>
    %13 = tpu.matmul %10, %12, %cst_15 {dimension_numbers = #tpu.dot_dimension_numbers<[1], [0], [0], [1], [0, 0, 1, 1], [], []>} : vector<64x128xbf16>, vector<128x128xbf16>, vector<64x128xf32> -> vector<64x128xf32>
    %14 = arith.addf %7, %13 : vector<64x128xf32>
    %c0_16 = arith.constant 0 : index
    %c0_17 = arith.constant 0 : index
    %c0_18 = arith.constant 0 : index
    %c2 = arith.constant 2 : index
    %c0_19 = arith.constant 0 : index
    %15 = vector.load %arg2[%c0_16, %c0_17, %c0_18, %c2, %c0_19] : memref<1x1x10x10x128xbf16, #tpu.memory_space<vmem>>, vector<1x1x8x8x128xbf16>
    %16 = vector.shape_cast %15 : vector<1x1x8x8x128xbf16> to vector<8x8x128xbf16>
    %17 = vector.shape_cast %16 : vector<8x8x128xbf16> to vector<64x128xbf16>
    %c2_20 = arith.constant 2 : index
    %c0_21 = arith.constant 0 : index
    %c0_22 = arith.constant 0 : index
    %18 = vector.load %arg3[%c2_20, %c0_21, %c0_22] : memref<9x128x128xbf16, #tpu.memory_space<vmem>>, vector<1x128x128xbf16>
    %19 = vector.shape_cast %18 : vector<1x128x128xbf16> to vector<128x128xbf16>
    %cst_23 = arith.constant dense<0.000000e+00> : vector<64x128xf32>
    %20 = tpu.matmul %17, %19, %cst_23 {dimension_numbers = #tpu.dot_dimension_numbers<[1], [0], [0], [1], [0, 0, 1, 1], [], []>} : vector<64x128xbf16>, vector<128x128xbf16>, vector<64x128xf32> -> vector<64x128xf32>
    %21 = arith.addf %14, %20 : vector<64x128xf32>
    %c0_24 = arith.constant 0 : index
    %c0_25 = arith.constant 0 : index
    %c1_26 = arith.constant 1 : index
    %c0_27 = arith.constant 0 : index
    %c0_28 = arith.constant 0 : index
    %22 = vector.load %arg2[%c0_24, %c0_25, %c1_26, %c0_27, %c0_28] : memref<1x1x10x10x128xbf16, #tpu.memory_space<vmem>>, vector<1x1x8x8x128xbf16>
    %23 = vector.shape_cast %22 : vector<1x1x8x8x128xbf16> to vector<8x8x128xbf16>
    %24 = vector.shape_cast %23 : vector<8x8x128xbf16> to vector<64x128xbf16>
    %c3 = arith.constant 3 : index
    %c0_29 = arith.constant 0 : index
    %c0_30 = arith.constant 0 : index
    %25 = vector.load %arg3[%c3, %c0_29, %c0_30] : memref<9x128x128xbf16, #tpu.memory_space<vmem>>, vector<1x128x128xbf16>
    %26 = vector.shape_cast %25 : vector<1x128x128xbf16> to vector<128x128xbf16>
    %cst_31 = arith.constant dense<0.000000e+00> : vector<64x128xf32>
    %27 = tpu.matmul %24, %26, %cst_31 {dimension_numbers = #tpu.dot_dimension_numbers<[1], [0], [0], [1], [0, 0, 1, 1], [], []>} : vector<64x128xbf16>, vector<128x128xbf16>, vector<64x128xf32> -> vector<64x128xf32>
    %28 = arith.addf %21, %27 : vector<64x128xf32>
    %c0_32 = arith.constant 0 : index
    %c0_33 = arith.constant 0 : index
    %c1_34 = arith.constant 1 : index
    %c1_35 = arith.constant 1 : index
    %c0_36 = arith.constant 0 : index
    %29 = vector.load %arg2[%c0_32, %c0_33, %c1_34, %c1_35, %c0_36] : memref<1x1x10x10x128xbf16, #tpu.memory_space<vmem>>, vector<1x1x8x8x128xbf16>
    %30 = vector.shape_cast %29 : vector<1x1x8x8x128xbf16> to vector<8x8x128xbf16>
    %31 = vector.shape_cast %30 : vector<8x8x128xbf16> to vector<64x128xbf16>
    %c4 = arith.constant 4 : index
    %c0_37 = arith.constant 0 : index
    %c0_38 = arith.constant 0 : index
    %32 = vector.load %arg3[%c4, %c0_37, %c0_38] : memref<9x128x128xbf16, #tpu.memory_space<vmem>>, vector<1x128x128xbf16>
    %33 = vector.shape_cast %32 : vector<1x128x128xbf16> to vector<128x128xbf16>
    %cst_39 = arith.constant dense<0.000000e+00> : vector<64x128xf32>
    %34 = tpu.matmul %31, %33, %cst_39 {dimension_numbers = #tpu.dot_dimension_numbers<[1], [0], [0], [1], [0, 0, 1, 1], [], []>} : vector<64x128xbf16>, vector<128x128xbf16>, vector<64x128xf32> -> vector<64x128xf32>
    %35 = arith.addf %28, %34 : vector<64x128xf32>
    %c0_40 = arith.constant 0 : index
    %c0_41 = arith.constant 0 : index
    %c1_42 = arith.constant 1 : index
    %c2_43 = arith.constant 2 : index
    %c0_44 = arith.constant 0 : index
    %36 = vector.load %arg2[%c0_40, %c0_41, %c1_42, %c2_43, %c0_44] : memref<1x1x10x10x128xbf16, #tpu.memory_space<vmem>>, vector<1x1x8x8x128xbf16>
    %37 = vector.shape_cast %36 : vector<1x1x8x8x128xbf16> to vector<8x8x128xbf16>
    %38 = vector.shape_cast %37 : vector<8x8x128xbf16> to vector<64x128xbf16>
    %c5 = arith.constant 5 : index
    %c0_45 = arith.constant 0 : index
    %c0_46 = arith.constant 0 : index
    %39 = vector.load %arg3[%c5, %c0_45, %c0_46] : memref<9x128x128xbf16, #tpu.memory_space<vmem>>, vector<1x128x128xbf16>
    %40 = vector.shape_cast %39 : vector<1x128x128xbf16> to vector<128x128xbf16>
    %cst_47 = arith.constant dense<0.000000e+00> : vector<64x128xf32>
    %41 = tpu.matmul %38, %40, %cst_47 {dimension_numbers = #tpu.dot_dimension_numbers<[1], [0], [0], [1], [0, 0, 1, 1], [], []>} : vector<64x128xbf16>, vector<128x128xbf16>, vector<64x128xf32> -> vector<64x128xf32>
    %42 = arith.addf %35, %41 : vector<64x128xf32>
    %c0_48 = arith.constant 0 : index
    %c0_49 = arith.constant 0 : index
    %c2_50 = arith.constant 2 : index
    %c0_51 = arith.constant 0 : index
    %c0_52 = arith.constant 0 : index
    %43 = vector.load %arg2[%c0_48, %c0_49, %c2_50, %c0_51, %c0_52] : memref<1x1x10x10x128xbf16, #tpu.memory_space<vmem>>, vector<1x1x8x8x128xbf16>
    %44 = vector.shape_cast %43 : vector<1x1x8x8x128xbf16> to vector<8x8x128xbf16>
    %45 = vector.shape_cast %44 : vector<8x8x128xbf16> to vector<64x128xbf16>
    %c6 = arith.constant 6 : index
    %c0_53 = arith.constant 0 : index
    %c0_54 = arith.constant 0 : index
    %46 = vector.load %arg3[%c6, %c0_53, %c0_54] : memref<9x128x128xbf16, #tpu.memory_space<vmem>>, vector<1x128x128xbf16>
    %47 = vector.shape_cast %46 : vector<1x128x128xbf16> to vector<128x128xbf16>
    %cst_55 = arith.constant dense<0.000000e+00> : vector<64x128xf32>
    %48 = tpu.matmul %45, %47, %cst_55 {dimension_numbers = #tpu.dot_dimension_numbers<[1], [0], [0], [1], [0, 0, 1, 1], [], []>} : vector<64x128xbf16>, vector<128x128xbf16>, vector<64x128xf32> -> vector<64x128xf32>
    %49 = arith.addf %42, %48 : vector<64x128xf32>
    %c0_56 = arith.constant 0 : index
    %c0_57 = arith.constant 0 : index
    %c2_58 = arith.constant 2 : index
    %c1_59 = arith.constant 1 : index
    %c0_60 = arith.constant 0 : index
    %50 = vector.load %arg2[%c0_56, %c0_57, %c2_58, %c1_59, %c0_60] : memref<1x1x10x10x128xbf16, #tpu.memory_space<vmem>>, vector<1x1x8x8x128xbf16>
    %51 = vector.shape_cast %50 : vector<1x1x8x8x128xbf16> to vector<8x8x128xbf16>
    %52 = vector.shape_cast %51 : vector<8x8x128xbf16> to vector<64x128xbf16>
    %c7 = arith.constant 7 : index
    %c0_61 = arith.constant 0 : index
    %c0_62 = arith.constant 0 : index
    %53 = vector.load %arg3[%c7, %c0_61, %c0_62] : memref<9x128x128xbf16, #tpu.memory_space<vmem>>, vector<1x128x128xbf16>
    %54 = vector.shape_cast %53 : vector<1x128x128xbf16> to vector<128x128xbf16>
    %cst_63 = arith.constant dense<0.000000e+00> : vector<64x128xf32>
    %55 = tpu.matmul %52, %54, %cst_63 {dimension_numbers = #tpu.dot_dimension_numbers<[1], [0], [0], [1], [0, 0, 1, 1], [], []>} : vector<64x128xbf16>, vector<128x128xbf16>, vector<64x128xf32> -> vector<64x128xf32>
    %56 = arith.addf %49, %55 : vector<64x128xf32>
    %c0_64 = arith.constant 0 : index
    %c0_65 = arith.constant 0 : index
    %c2_66 = arith.constant 2 : index
    %c2_67 = arith.constant 2 : index
    %c0_68 = arith.constant 0 : index
    %57 = vector.load %arg2[%c0_64, %c0_65, %c2_66, %c2_67, %c0_68] : memref<1x1x10x10x128xbf16, #tpu.memory_space<vmem>>, vector<1x1x8x8x128xbf16>
    %58 = vector.shape_cast %57 : vector<1x1x8x8x128xbf16> to vector<8x8x128xbf16>
    %59 = vector.shape_cast %58 : vector<8x8x128xbf16> to vector<64x128xbf16>
    %c8 = arith.constant 8 : index
    %c0_69 = arith.constant 0 : index
    %c0_70 = arith.constant 0 : index
    %60 = vector.load %arg3[%c8, %c0_69, %c0_70] : memref<9x128x128xbf16, #tpu.memory_space<vmem>>, vector<1x128x128xbf16>
    %61 = vector.shape_cast %60 : vector<1x128x128xbf16> to vector<128x128xbf16>
    %cst_71 = arith.constant dense<0.000000e+00> : vector<64x128xf32>
    %62 = tpu.matmul %59, %61, %cst_71 {dimension_numbers = #tpu.dot_dimension_numbers<[1], [0], [0], [1], [0, 0, 1, 1], [], []>} : vector<64x128xbf16>, vector<128x128xbf16>, vector<64x128xf32> -> vector<64x128xf32>
    %63 = arith.addf %56, %62 : vector<64x128xf32>
    %c0_72 = arith.constant 0 : index
    %c0_73 = arith.constant 0 : index
    %64 = vector.load %arg4[%c0_72, %c0_73] : memref<1x128xf32, #tpu.memory_space<vmem>>, vector<1x128xf32>
    %65 = vector.broadcast %64 : vector<1x128xf32> to vector<64x128xf32>
    %66 = arith.addf %63, %65 : vector<64x128xf32>
    %cst_74 = arith.constant 0.000000e+00 : f32
    %67 = vector.broadcast %cst_74 : f32 to vector<64x128xf32>
    %68 = arith.maximumf %66, %67 : vector<64x128xf32>
    %69 = vector.extract_strided_slice %68 {offsets = [0, 0], sizes = [8, 128], strides = [1, 1]} : vector<64x128xf32> to vector<8x128xf32>
    %70 = vector.extract_strided_slice %68 {offsets = [8, 0], sizes = [8, 128], strides = [1, 1]} : vector<64x128xf32> to vector<8x128xf32>
    %71 = arith.maximumf %69, %70 : vector<8x128xf32>
    %c0_75 = arith.constant 0 : index
    %c0_76 = arith.constant 0 : index
    %c0_77 = arith.constant 0 : index
    %72 = vector.load %arg6[%c0_75, %c0_76, %c0_77] : memref<4x8x128xf32, #tpu.memory_space<vmem>>, vector<1x8x128xf32>
    %73 = vector.shape_cast %72 : vector<1x8x128xf32> to vector<8x128xf32>
    %74 = vector.shape_cast %71 : vector<8x128xf32> to vector<1x8x128xf32>
    tpu.vector_store %arg6[%c0_75, %c0_76, %c0_77], %74 {strides = array<i32>} : memref<4x8x128xf32, #tpu.memory_space<vmem>>, vector<1x8x128xf32>,
    %75 = vector.extract_strided_slice %68 {offsets = [16, 0], sizes = [8, 128], strides = [1, 1]} : vector<64x128xf32> to vector<8x128xf32>
    %76 = vector.extract_strided_slice %68 {offsets = [24, 0], sizes = [8, 128], strides = [1, 1]} : vector<64x128xf32> to vector<8x128xf32>
    %77 = arith.maximumf %75, %76 : vector<8x128xf32>
    %c1_78 = arith.constant 1 : index
    %c0_79 = arith.constant 0 : index
    %c0_80 = arith.constant 0 : index
    %78 = vector.load %arg6[%c1_78, %c0_79, %c0_80] : memref<4x8x128xf32, #tpu.memory_space<vmem>>, vector<1x8x128xf32>
    %79 = vector.shape_cast %78 : vector<1x8x128xf32> to vector<8x128xf32>
    %80 = vector.shape_cast %77 : vector<8x128xf32> to vector<1x8x128xf32>
    tpu.vector_store %arg6[%c1_78, %c0_79, %c0_80], %80 {strides = array<i32>} : memref<4x8x128xf32, #tpu.memory_space<vmem>>, vector<1x8x128xf32>,
    %81 = vector.extract_strided_slice %68 {offsets = [32, 0], sizes = [8, 128], strides = [1, 1]} : vector<64x128xf32> to vector<8x128xf32>
    %82 = vector.extract_strided_slice %68 {offsets = [40, 0], sizes = [8, 128], strides = [1, 1]} : vector<64x128xf32> to vector<8x128xf32>
    %83 = arith.maximumf %81, %82 : vector<8x128xf32>
    %c2_81 = arith.constant 2 : index
    %c0_82 = arith.constant 0 : index
    %c0_83 = arith.constant 0 : index
    %84 = vector.load %arg6[%c2_81, %c0_82, %c0_83] : memref<4x8x128xf32, #tpu.memory_space<vmem>>, vector<1x8x128xf32>
    %85 = vector.shape_cast %84 : vector<1x8x128xf32> to vector<8x128xf32>
    %86 = vector.shape_cast %83 : vector<8x128xf32> to vector<1x8x128xf32>
    tpu.vector_store %arg6[%c2_81, %c0_82, %c0_83], %86 {strides = array<i32>} : memref<4x8x128xf32, #tpu.memory_space<vmem>>, vector<1x8x128xf32>,
    %87 = vector.extract_strided_slice %68 {offsets = [48, 0], sizes = [8, 128], strides = [1, 1]} : vector<64x128xf32> to vector<8x128xf32>
    %88 = vector.extract_strided_slice %68 {offsets = [56, 0], sizes = [8, 128], strides = [1, 1]} : vector<64x128xf32> to vector<8x128xf32>
    %89 = arith.maximumf %87, %88 : vector<8x128xf32>
    %c3_84 = arith.constant 3 : index
    %c0_85 = arith.constant 0 : index
    %c0_86 = arith.constant 0 : index
    %90 = vector.load %arg6[%c3_84, %c0_85, %c0_86] : memref<4x8x128xf32, #tpu.memory_space<vmem>>, vector<1x8x128xf32>
    %91 = vector.shape_cast %90 : vector<1x8x128xf32> to vector<8x128xf32>
    %92 = vector.shape_cast %89 : vector<8x128xf32> to vector<1x8x128xf32>
    tpu.vector_store %arg6[%c3_84, %c0_85, %c0_86], %92 {strides = array<i32>} : memref<4x8x128xf32, #tpu.memory_space<vmem>>, vector<1x8x128xf32>,
    %c0_87 = arith.constant 0 : index
    %c0_88 = arith.constant 0 : index
    %c0_89 = arith.constant 0 : index
    %93 = tpu.strided_load %arg6[%c0_87, %c0_88, %c0_89] {strides = array<i32: 1, 2, 1>} : memref<4x8x128xf32, #tpu.memory_space<vmem>>, vector<4x4x128xf32>
    %c0_90 = arith.constant 0 : index
    %c1_91 = arith.constant 1 : index
    %c0_92 = arith.constant 0 : index
    %94 = tpu.strided_load %arg6[%c0_90, %c1_91, %c0_92] {strides = array<i32: 1, 2, 1>} : memref<4x8x128xf32, #tpu.memory_space<vmem>>, vector<4x4x128xf32>
    %95 = arith.maximumf %93, %94 : vector<4x4x128xf32>
    %96 = arith.truncf %95 : vector<4x4x128xf32> to vector<4x4x128xbf16>
    %c0_93 = arith.constant 0 : index
    %c0_94 = arith.constant 0 : index
    %c0_95 = arith.constant 0 : index
    %c0_96 = arith.constant 0 : index
    %97 = vector.load %arg5[%c0_93, %c0_94, %c0_95, %c0_96] : memref<1x4x4x128xbf16, #tpu.memory_space<vmem>>, vector<1x4x4x128xbf16>
    %98 = vector.shape_cast %97 : vector<1x4x4x128xbf16> to vector<4x4x128xbf16>
    %99 = vector.shape_cast %96 : vector<4x4x128xbf16> to vector<1x4x4x128xbf16>
    tpu.vector_store %arg5[%c0_93, %c0_94, %c0_95, %c0_96], %99 {strides = array<i32>} : memref<1x4x4x128xbf16, #tpu.memory_space<vmem>>, vector<1x4x4x128xbf16>,
    return
  }
  func.func @transform_0(%arg0: i32, %arg1: i32) -> (i32, i32, i32, i32, i32) {
    %c0_i32 = arith.constant 0 : i32
    %c0_i32_0 = arith.constant 0 : i32
    %c0_i32_1 = arith.constant 0 : i32
    %c0_i32_2 = arith.constant 0 : i32
    return %arg0, %arg1, %c0_i32, %c0_i32_0, %c0_i32_1 : i32, i32, i32, i32, i32
  }
  func.func @transform_1(%arg0: i32, %arg1: i32) -> (i32, i32, i32) {
    %c0_i32 = arith.constant 0 : i32
    %c0_i32_0 = arith.constant 0 : i32
    %c0_i32_1 = arith.constant 0 : i32
    %c0_i32_2 = arith.constant 0 : i32
    return %c0_i32, %c0_i32_0, %c0_i32_1 : i32, i32, i32
  }
  func.func @transform_2(%arg0: i32, %arg1: i32) -> (i32, i32) {
    %c0_i32 = arith.constant 0 : i32
    %c0_i32_0 = arith.constant 0 : i32
    %c0_i32_1 = arith.constant 0 : i32
    return %c0_i32, %c0_i32_0 : i32, i32
  }
  func.func @transform_3(%arg0: i32, %arg1: i32) -> (i32, i32, i32, i32) {
    %c0_i32 = arith.constant 0 : i32
    %c0_i32_0 = arith.constant 0 : i32
    %c0_i32_1 = arith.constant 0 : i32
    return %arg0, %arg1, %c0_i32, %c0_i32_0 : i32, i32, i32, i32
  }
}

module attributes {stable_mosaic.version = 11 : i64} {
  func.func @_fc_kernel(%arg0: i32, %arg1: memref<2x512xbf16, #tpu.memory_space<vmem>>, %arg2: memref<512x128xbf16, #tpu.memory_space<vmem>>, %arg3: memref<1x128xf32, #tpu.memory_space<vmem>>, %arg4: memref<2x128xbf16, #tpu.memory_space<vmem>>, %arg5: memref<2x128xf32, #tpu.memory_space<vmem>>) attributes {dimension_semantics = [#tpu.dimension_semantics<arbitrary>], iteration_bounds = array<i64: 4>, scalar_prefetch = 0 : i64, scratch_operands = 1 : i64, tpu.core_type = #tpu.core_type<tc>, window_params = [{transform_indices = @transform_0, window_bounds = array<i64: 2, 512>}, {transform_indices = @transform_1, window_bounds = array<i64: 512, 128>}, {pipeline_mode = #tpu.pipeline_mode<synchronous>, transform_indices = @transform_2, window_bounds = array<i64: 1, 128>}, {pipeline_mode = #tpu.pipeline_mode<synchronous>, transform_indices = @transform_3, window_bounds = array<i64: 2, 128>}]} {
    %c0_i32 = arith.constant 0 : i32
    %0 = arith.cmpi eq, %arg0, %c0_i32 : i32
    %1 = arith.extui %0 : i1 to i32
    %c0_i32_0 = arith.constant 0 : i32
    %2 = arith.cmpi ne, %1, %c0_i32_0 : i32
    scf.if %2 {
      %cst_9 = arith.constant 0.000000e+00 : f32
      %12 = vector.broadcast %cst_9 : f32 to vector<2x128xf32>
      %c0_10 = arith.constant 0 : index
      %c0_11 = arith.constant 0 : index
      %13 = vector.load %arg5[%c0_10, %c0_11] : memref<2x128xf32, #tpu.memory_space<vmem>>, vector<2x128xf32>
      tpu.vector_store %arg5[%c0_10, %c0_11], %12 {strides = array<i32>} : memref<2x128xf32, #tpu.memory_space<vmem>>, vector<2x128xf32>,
    } else {
    }
    %c0 = arith.constant 0 : index
    %c0_1 = arith.constant 0 : index
    %3 = vector.load %arg5[%c0, %c0_1] : memref<2x128xf32, #tpu.memory_space<vmem>>, vector<2x128xf32>
    %c0_2 = arith.constant 0 : index
    %c0_3 = arith.constant 0 : index
    %4 = vector.load %arg1[%c0_2, %c0_3] : memref<2x512xbf16, #tpu.memory_space<vmem>>, vector<2x512xbf16>
    %c0_4 = arith.constant 0 : index
    %c0_5 = arith.constant 0 : index
    %5 = vector.load %arg2[%c0_4, %c0_5] : memref<512x128xbf16, #tpu.memory_space<vmem>>, vector<512x128xbf16>
    %cst = arith.constant dense<0.000000e+00> : vector<2x128xf32>
    %6 = tpu.matmul %4, %5, %cst {dimension_numbers = #tpu.dot_dimension_numbers<[1], [0], [0], [1], [0, 0, 1, 1], [], []>} : vector<2x512xbf16>, vector<512x128xbf16>, vector<2x128xf32> -> vector<2x128xf32>
    %7 = arith.addf %3, %6 : vector<2x128xf32>
    %c0_6 = arith.constant 0 : index
    %c0_7 = arith.constant 0 : index
    %8 = vector.load %arg5[%c0_6, %c0_7] : memref<2x128xf32, #tpu.memory_space<vmem>>, vector<2x128xf32>
    tpu.vector_store %arg5[%c0_6, %c0_7], %7 {strides = array<i32>} : memref<2x128xf32, #tpu.memory_space<vmem>>, vector<2x128xf32>,
    %c3_i32 = arith.constant 3 : i32
    %9 = arith.cmpi eq, %arg0, %c3_i32 : i32
    %10 = arith.extui %9 : i1 to i32
    %c0_i32_8 = arith.constant 0 : i32
    %11 = arith.cmpi ne, %10, %c0_i32_8 : i32
    scf.if %11 {
      %c0_9 = arith.constant 0 : index
      %c0_10 = arith.constant 0 : index
      %12 = vector.load %arg5[%c0_9, %c0_10] : memref<2x128xf32, #tpu.memory_space<vmem>>, vector<2x128xf32>
      %c0_11 = arith.constant 0 : index
      %c0_12 = arith.constant 0 : index
      %13 = vector.load %arg3[%c0_11, %c0_12] : memref<1x128xf32, #tpu.memory_space<vmem>>, vector<1x128xf32>
      %14 = vector.broadcast %13 : vector<1x128xf32> to vector<2x128xf32>
      %15 = arith.addf %12, %14 : vector<2x128xf32>
      %cst_13 = arith.constant 0.000000e+00 : f32
      %16 = vector.broadcast %cst_13 : f32 to vector<2x128xf32>
      %17 = arith.maximumf %15, %16 : vector<2x128xf32>
      %18 = arith.truncf %17 : vector<2x128xf32> to vector<2x128xbf16>
      %c0_14 = arith.constant 0 : index
      %c0_15 = arith.constant 0 : index
      %19 = vector.load %arg4[%c0_14, %c0_15] : memref<2x128xbf16, #tpu.memory_space<vmem>>, vector<2x128xbf16>
      tpu.vector_store %arg4[%c0_14, %c0_15], %18 {strides = array<i32>} : memref<2x128xbf16, #tpu.memory_space<vmem>>, vector<2x128xbf16>,
    } else {
    }
    return
  }
  func.func @transform_0(%arg0: i32) -> (i32, i32) {
    %c0_i32 = arith.constant 0 : i32
    %c0_i32_0 = arith.constant 0 : i32
    return %c0_i32, %arg0 : i32, i32
  }
  func.func @transform_1(%arg0: i32) -> (i32, i32) {
    %c0_i32 = arith.constant 0 : i32
    %c0_i32_0 = arith.constant 0 : i32
    return %arg0, %c0_i32 : i32, i32
  }
  func.func @transform_2(%arg0: i32) -> (i32, i32) {
    %c0_i32 = arith.constant 0 : i32
    %c0_i32_0 = arith.constant 0 : i32
    %c0_i32_1 = arith.constant 0 : i32
    return %c0_i32, %c0_i32_0 : i32, i32
  }
  func.func @transform_3(%arg0: i32) -> (i32, i32) {
    %c0_i32 = arith.constant 0 : i32
    %c0_i32_0 = arith.constant 0 : i32
    %c0_i32_1 = arith.constant 0 : i32
    return %c0_i32, %c0_i32_0 : i32, i32
  }
}

module attributes {stable_mosaic.version = 11 : i64} {
  func.func @_fc_kernel(%arg0: i32, %arg1: memref<2x128xbf16, #tpu.memory_space<vmem>>, %arg2: memref<128x128xbf16, #tpu.memory_space<vmem>>, %arg3: memref<1x128xf32, #tpu.memory_space<vmem>>, %arg4: memref<2x128xbf16, #tpu.memory_space<vmem>>, %arg5: memref<2x128xf32, #tpu.memory_space<vmem>>) attributes {dimension_semantics = [#tpu.dimension_semantics<arbitrary>], iteration_bounds = array<i64: 1>, scalar_prefetch = 0 : i64, scratch_operands = 1 : i64, tpu.core_type = #tpu.core_type<tc>, window_params = [{transform_indices = @transform_0, window_bounds = array<i64: 2, 128>}, {transform_indices = @transform_1, window_bounds = array<i64: 128, 128>}, {pipeline_mode = #tpu.pipeline_mode<synchronous>, transform_indices = @transform_2, window_bounds = array<i64: 1, 128>}, {pipeline_mode = #tpu.pipeline_mode<synchronous>, transform_indices = @transform_3, window_bounds = array<i64: 2, 128>}]} {
    %c0_i32 = arith.constant 0 : i32
    %0 = arith.cmpi eq, %arg0, %c0_i32 : i32
    %1 = arith.extui %0 : i1 to i32
    %c0_i32_0 = arith.constant 0 : i32
    %2 = arith.cmpi ne, %1, %c0_i32_0 : i32
    scf.if %2 {
      %cst_10 = arith.constant 0.000000e+00 : f32
      %12 = vector.broadcast %cst_10 : f32 to vector<2x128xf32>
      %c0_11 = arith.constant 0 : index
      %c0_12 = arith.constant 0 : index
      %13 = vector.load %arg5[%c0_11, %c0_12] : memref<2x128xf32, #tpu.memory_space<vmem>>, vector<2x128xf32>
      tpu.vector_store %arg5[%c0_11, %c0_12], %12 {strides = array<i32>} : memref<2x128xf32, #tpu.memory_space<vmem>>, vector<2x128xf32>,
    } else {
    }
    %c0 = arith.constant 0 : index
    %c0_1 = arith.constant 0 : index
    %3 = vector.load %arg5[%c0, %c0_1] : memref<2x128xf32, #tpu.memory_space<vmem>>, vector<2x128xf32>
    %c0_2 = arith.constant 0 : index
    %c0_3 = arith.constant 0 : index
    %4 = vector.load %arg1[%c0_2, %c0_3] : memref<2x128xbf16, #tpu.memory_space<vmem>>, vector<2x128xbf16>
    %c0_4 = arith.constant 0 : index
    %c0_5 = arith.constant 0 : index
    %5 = vector.load %arg2[%c0_4, %c0_5] : memref<128x128xbf16, #tpu.memory_space<vmem>>, vector<128x128xbf16>
    %cst = arith.constant dense<0.000000e+00> : vector<2x128xf32>
    %6 = tpu.matmul %4, %5, %cst {dimension_numbers = #tpu.dot_dimension_numbers<[1], [0], [0], [1], [0, 0, 1, 1], [], []>} : vector<2x128xbf16>, vector<128x128xbf16>, vector<2x128xf32> -> vector<2x128xf32>
    %7 = arith.addf %3, %6 : vector<2x128xf32>
    %c0_6 = arith.constant 0 : index
    %c0_7 = arith.constant 0 : index
    %8 = vector.load %arg5[%c0_6, %c0_7] : memref<2x128xf32, #tpu.memory_space<vmem>>, vector<2x128xf32>
    tpu.vector_store %arg5[%c0_6, %c0_7], %7 {strides = array<i32>} : memref<2x128xf32, #tpu.memory_space<vmem>>, vector<2x128xf32>,
    %c0_i32_8 = arith.constant 0 : i32
    %9 = arith.cmpi eq, %arg0, %c0_i32_8 : i32
    %10 = arith.extui %9 : i1 to i32
    %c0_i32_9 = arith.constant 0 : i32
    %11 = arith.cmpi ne, %10, %c0_i32_9 : i32
    scf.if %11 {
      %c0_10 = arith.constant 0 : index
      %c0_11 = arith.constant 0 : index
      %12 = vector.load %arg5[%c0_10, %c0_11] : memref<2x128xf32, #tpu.memory_space<vmem>>, vector<2x128xf32>
      %c0_12 = arith.constant 0 : index
      %c0_13 = arith.constant 0 : index
      %13 = vector.load %arg3[%c0_12, %c0_13] : memref<1x128xf32, #tpu.memory_space<vmem>>, vector<1x128xf32>
      %14 = vector.broadcast %13 : vector<1x128xf32> to vector<2x128xf32>
      %15 = arith.addf %12, %14 : vector<2x128xf32>
      %cst_14 = arith.constant 0.000000e+00 : f32
      %16 = vector.broadcast %cst_14 : f32 to vector<2x128xf32>
      %17 = arith.maximumf %15, %16 : vector<2x128xf32>
      %18 = arith.truncf %17 : vector<2x128xf32> to vector<2x128xbf16>
      %c0_15 = arith.constant 0 : index
      %c0_16 = arith.constant 0 : index
      %19 = vector.load %arg4[%c0_15, %c0_16] : memref<2x128xbf16, #tpu.memory_space<vmem>>, vector<2x128xbf16>
      tpu.vector_store %arg4[%c0_15, %c0_16], %18 {strides = array<i32>} : memref<2x128xbf16, #tpu.memory_space<vmem>>, vector<2x128xbf16>,
    } else {
    }
    return
  }
  func.func @transform_0(%arg0: i32) -> (i32, i32) {
    %c0_i32 = arith.constant 0 : i32
    %c0_i32_0 = arith.constant 0 : i32
    return %c0_i32, %arg0 : i32, i32
  }
  func.func @transform_1(%arg0: i32) -> (i32, i32) {
    %c0_i32 = arith.constant 0 : i32
    %c0_i32_0 = arith.constant 0 : i32
    return %arg0, %c0_i32 : i32, i32
  }
  func.func @transform_2(%arg0: i32) -> (i32, i32) {
    %c0_i32 = arith.constant 0 : i32
    %c0_i32_0 = arith.constant 0 : i32
    %c0_i32_1 = arith.constant 0 : i32
    return %c0_i32, %c0_i32_0 : i32, i32
  }
  func.func @transform_3(%arg0: i32) -> (i32, i32) {
    %c0_i32 = arith.constant 0 : i32
    %c0_i32_0 = arith.constant 0 : i32
    %c0_i32_1 = arith.constant 0 : i32
    return %c0_i32, %c0_i32_0 : i32, i32
  }
}

module attributes {stable_mosaic.version = 11 : i64} {
  func.func @_fc_kernel(%arg0: i32, %arg1: memref<2x128xbf16, #tpu.memory_space<vmem>>, %arg2: memref<128x256xbf16, #tpu.memory_space<vmem>>, %arg3: memref<1x256xf32, #tpu.memory_space<vmem>>, %arg4: memref<2x256xbf16, #tpu.memory_space<vmem>>, %arg5: memref<2x256xf32, #tpu.memory_space<vmem>>) attributes {dimension_semantics = [#tpu.dimension_semantics<arbitrary>], iteration_bounds = array<i64: 1>, scalar_prefetch = 0 : i64, scratch_operands = 1 : i64, tpu.core_type = #tpu.core_type<tc>, window_params = [{transform_indices = @transform_0, window_bounds = array<i64: 2, 128>}, {transform_indices = @transform_1, window_bounds = array<i64: 128, 256>}, {pipeline_mode = #tpu.pipeline_mode<synchronous>, transform_indices = @transform_2, window_bounds = array<i64: 1, 256>}, {pipeline_mode = #tpu.pipeline_mode<synchronous>, transform_indices = @transform_3, window_bounds = array<i64: 2, 256>}]} {
    %c0_i32 = arith.constant 0 : i32
    %0 = arith.cmpi eq, %arg0, %c0_i32 : i32
    %1 = arith.extui %0 : i1 to i32
    %c0_i32_0 = arith.constant 0 : i32
    %2 = arith.cmpi ne, %1, %c0_i32_0 : i32
    scf.if %2 {
      %cst_10 = arith.constant 0.000000e+00 : f32
      %12 = vector.broadcast %cst_10 : f32 to vector<2x256xf32>
      %c0_11 = arith.constant 0 : index
      %c0_12 = arith.constant 0 : index
      %13 = vector.load %arg5[%c0_11, %c0_12] : memref<2x256xf32, #tpu.memory_space<vmem>>, vector<2x256xf32>
      tpu.vector_store %arg5[%c0_11, %c0_12], %12 {strides = array<i32>} : memref<2x256xf32, #tpu.memory_space<vmem>>, vector<2x256xf32>,
    } else {
    }
    %c0 = arith.constant 0 : index
    %c0_1 = arith.constant 0 : index
    %3 = vector.load %arg5[%c0, %c0_1] : memref<2x256xf32, #tpu.memory_space<vmem>>, vector<2x256xf32>
    %c0_2 = arith.constant 0 : index
    %c0_3 = arith.constant 0 : index
    %4 = vector.load %arg1[%c0_2, %c0_3] : memref<2x128xbf16, #tpu.memory_space<vmem>>, vector<2x128xbf16>
    %c0_4 = arith.constant 0 : index
    %c0_5 = arith.constant 0 : index
    %5 = vector.load %arg2[%c0_4, %c0_5] : memref<128x256xbf16, #tpu.memory_space<vmem>>, vector<128x256xbf16>
    %cst = arith.constant dense<0.000000e+00> : vector<2x256xf32>
    %6 = tpu.matmul %4, %5, %cst {dimension_numbers = #tpu.dot_dimension_numbers<[1], [0], [0], [1], [0, 0, 1, 1], [], []>} : vector<2x128xbf16>, vector<128x256xbf16>, vector<2x256xf32> -> vector<2x256xf32>
    %7 = arith.addf %3, %6 : vector<2x256xf32>
    %c0_6 = arith.constant 0 : index
    %c0_7 = arith.constant 0 : index
    %8 = vector.load %arg5[%c0_6, %c0_7] : memref<2x256xf32, #tpu.memory_space<vmem>>, vector<2x256xf32>
    tpu.vector_store %arg5[%c0_6, %c0_7], %7 {strides = array<i32>} : memref<2x256xf32, #tpu.memory_space<vmem>>, vector<2x256xf32>,
    %c0_i32_8 = arith.constant 0 : i32
    %9 = arith.cmpi eq, %arg0, %c0_i32_8 : i32
    %10 = arith.extui %9 : i1 to i32
    %c0_i32_9 = arith.constant 0 : i32
    %11 = arith.cmpi ne, %10, %c0_i32_9 : i32
    scf.if %11 {
      %c0_10 = arith.constant 0 : index
      %c0_11 = arith.constant 0 : index
      %12 = vector.load %arg5[%c0_10, %c0_11] : memref<2x256xf32, #tpu.memory_space<vmem>>, vector<2x256xf32>
      %c0_12 = arith.constant 0 : index
      %c0_13 = arith.constant 0 : index
      %13 = vector.load %arg3[%c0_12, %c0_13] : memref<1x256xf32, #tpu.memory_space<vmem>>, vector<1x256xf32>
      %14 = vector.broadcast %13 : vector<1x256xf32> to vector<2x256xf32>
      %15 = arith.addf %12, %14 : vector<2x256xf32>
      %cst_14 = arith.constant 0.000000e+00 : f32
      %16 = vector.broadcast %cst_14 : f32 to vector<2x256xf32>
      %17 = arith.maximumf %15, %16 : vector<2x256xf32>
      %18 = arith.truncf %17 : vector<2x256xf32> to vector<2x256xbf16>
      %c0_15 = arith.constant 0 : index
      %c0_16 = arith.constant 0 : index
      %19 = vector.load %arg4[%c0_15, %c0_16] : memref<2x256xbf16, #tpu.memory_space<vmem>>, vector<2x256xbf16>
      tpu.vector_store %arg4[%c0_15, %c0_16], %18 {strides = array<i32>} : memref<2x256xbf16, #tpu.memory_space<vmem>>, vector<2x256xbf16>,
    } else {
    }
    return
  }
  func.func @transform_0(%arg0: i32) -> (i32, i32) {
    %c0_i32 = arith.constant 0 : i32
    %c0_i32_0 = arith.constant 0 : i32
    return %c0_i32, %arg0 : i32, i32
  }
  func.func @transform_1(%arg0: i32) -> (i32, i32) {
    %c0_i32 = arith.constant 0 : i32
    %c0_i32_0 = arith.constant 0 : i32
    return %arg0, %c0_i32 : i32, i32
  }
  func.func @transform_2(%arg0: i32) -> (i32, i32) {
    %c0_i32 = arith.constant 0 : i32
    %c0_i32_0 = arith.constant 0 : i32
    %c0_i32_1 = arith.constant 0 : i32
    return %c0_i32, %c0_i32_0 : i32, i32
  }
  func.func @transform_3(%arg0: i32) -> (i32, i32) {
    %c0_i32 = arith.constant 0 : i32
    %c0_i32_0 = arith.constant 0 : i32
    %c0_i32_1 = arith.constant 0 : i32
    return %c0_i32, %c0_i32_0 : i32, i32
  }
}

module attributes {stable_mosaic.version = 11 : i64} {
  func.func @_fc_kernel(%arg0: i32, %arg1: memref<2x256xbf16, #tpu.memory_space<vmem>>, %arg2: memref<256x128xbf16, #tpu.memory_space<vmem>>, %arg3: memref<1x128xf32, #tpu.memory_space<vmem>>, %arg4: memref<2x128xf32, #tpu.memory_space<vmem>>, %arg5: memref<2x128xf32, #tpu.memory_space<vmem>>) attributes {dimension_semantics = [#tpu.dimension_semantics<arbitrary>], iteration_bounds = array<i64: 1>, scalar_prefetch = 0 : i64, scratch_operands = 1 : i64, tpu.core_type = #tpu.core_type<tc>, window_params = [{transform_indices = @transform_0, window_bounds = array<i64: 2, 256>}, {transform_indices = @transform_1, window_bounds = array<i64: 256, 128>}, {pipeline_mode = #tpu.pipeline_mode<synchronous>, transform_indices = @transform_2, window_bounds = array<i64: 1, 128>}, {pipeline_mode = #tpu.pipeline_mode<synchronous>, transform_indices = @transform_3, window_bounds = array<i64: 2, 128>}]} {
    %c0_i32 = arith.constant 0 : i32
    %0 = arith.cmpi eq, %arg0, %c0_i32 : i32
    %1 = arith.extui %0 : i1 to i32
    %c0_i32_0 = arith.constant 0 : i32
    %2 = arith.cmpi ne, %1, %c0_i32_0 : i32
    scf.if %2 {
      %cst_10 = arith.constant 0.000000e+00 : f32
      %12 = vector.broadcast %cst_10 : f32 to vector<2x128xf32>
      %c0_11 = arith.constant 0 : index
      %c0_12 = arith.constant 0 : index
      %13 = vector.load %arg5[%c0_11, %c0_12] : memref<2x128xf32, #tpu.memory_space<vmem>>, vector<2x128xf32>
      tpu.vector_store %arg5[%c0_11, %c0_12], %12 {strides = array<i32>} : memref<2x128xf32, #tpu.memory_space<vmem>>, vector<2x128xf32>,
    } else {
    }
    %c0 = arith.constant 0 : index
    %c0_1 = arith.constant 0 : index
    %3 = vector.load %arg5[%c0, %c0_1] : memref<2x128xf32, #tpu.memory_space<vmem>>, vector<2x128xf32>
    %c0_2 = arith.constant 0 : index
    %c0_3 = arith.constant 0 : index
    %4 = vector.load %arg1[%c0_2, %c0_3] : memref<2x256xbf16, #tpu.memory_space<vmem>>, vector<2x256xbf16>
    %c0_4 = arith.constant 0 : index
    %c0_5 = arith.constant 0 : index
    %5 = vector.load %arg2[%c0_4, %c0_5] : memref<256x128xbf16, #tpu.memory_space<vmem>>, vector<256x128xbf16>
    %cst = arith.constant dense<0.000000e+00> : vector<2x128xf32>
    %6 = tpu.matmul %4, %5, %cst {dimension_numbers = #tpu.dot_dimension_numbers<[1], [0], [0], [1], [0, 0, 1, 1], [], []>} : vector<2x256xbf16>, vector<256x128xbf16>, vector<2x128xf32> -> vector<2x128xf32>
    %7 = arith.addf %3, %6 : vector<2x128xf32>
    %c0_6 = arith.constant 0 : index
    %c0_7 = arith.constant 0 : index
    %8 = vector.load %arg5[%c0_6, %c0_7] : memref<2x128xf32, #tpu.memory_space<vmem>>, vector<2x128xf32>
    tpu.vector_store %arg5[%c0_6, %c0_7], %7 {strides = array<i32>} : memref<2x128xf32, #tpu.memory_space<vmem>>, vector<2x128xf32>,
    %c0_i32_8 = arith.constant 0 : i32
    %9 = arith.cmpi eq, %arg0, %c0_i32_8 : i32
    %10 = arith.extui %9 : i1 to i32
    %c0_i32_9 = arith.constant 0 : i32
    %11 = arith.cmpi ne, %10, %c0_i32_9 : i32
    scf.if %11 {
      %c0_10 = arith.constant 0 : index
      %c0_11 = arith.constant 0 : index
      %12 = vector.load %arg5[%c0_10, %c0_11] : memref<2x128xf32, #tpu.memory_space<vmem>>, vector<2x128xf32>
      %c0_12 = arith.constant 0 : index
      %c0_13 = arith.constant 0 : index
      %13 = vector.load %arg3[%c0_12, %c0_13] : memref<1x128xf32, #tpu.memory_space<vmem>>, vector<1x128xf32>
      %14 = vector.broadcast %13 : vector<1x128xf32> to vector<2x128xf32>
      %15 = arith.addf %12, %14 : vector<2x128xf32>
      %c0_14 = arith.constant 0 : index
      %c0_15 = arith.constant 0 : index
      %16 = vector.load %arg4[%c0_14, %c0_15] : memref<2x128xf32, #tpu.memory_space<vmem>>, vector<2x128xf32>
      tpu.vector_store %arg4[%c0_14, %c0_15], %15 {strides = array<i32>} : memref<2x128xf32, #tpu.memory_space<vmem>>, vector<2x128xf32>,
    } else {
    }
    return
  }
  func.func @transform_0(%arg0: i32) -> (i32, i32) {
    %c0_i32 = arith.constant 0 : i32
    %c0_i32_0 = arith.constant 0 : i32
    return %c0_i32, %arg0 : i32, i32
  }
  func.func @transform_1(%arg0: i32) -> (i32, i32) {
    %c0_i32 = arith.constant 0 : i32
    %c0_i32_0 = arith.constant 0 : i32
    return %arg0, %c0_i32 : i32, i32
  }
  func.func @transform_2(%arg0: i32) -> (i32, i32) {
    %c0_i32 = arith.constant 0 : i32
    %c0_i32_0 = arith.constant 0 : i32
    %c0_i32_1 = arith.constant 0 : i32
    return %c0_i32, %c0_i32_0 : i32, i32
  }
  func.func @transform_3(%arg0: i32) -> (i32, i32) {
    %c0_i32 = arith.constant 0 : i32
    %c0_i32_0 = arith.constant 0 : i32
    %c0_i32_1 = arith.constant 0 : i32
    return %c0_i32, %c0_i32_0 : i32, i32
  }
}

</mosaic_0001>

<llo_original>
// kernel: simple_cnn_forward.8
$region0: #{simple_cnn_forward.8}
  #allocation0 [shape = 'u32[]', space=smem, size = 0x4, offset = 0x4, fixed_abs, tag = 'smem constant byte address 0x4 - core index']
  #allocation1 [shape = 'u32[72,128]{1,0:T(1,128)}', space=vmem, size = 0x9000, scoped, tag = 'internal scratch']
  #allocation2 [shape = 'f32[2,128]{1,0:T(2,128)}', space=vmem, size = 0x400, scoped, tag = 'scratch operand']
  %s0 = inlined_call_operand.vmem [shape: bf16[2,2048], index: 0, kind: input, shape index: {}]
  %s1 = inlined_call_operand.vmem [shape: bf16[2048,128], index: 1, kind: input, shape index: {}]
  %s2 = inlined_call_operand.vmem [shape: f32[1,128], index: 2, kind: input, shape index: {}]
  %s3 = inlined_call_operand.vmem [shape: bf16[2,128], index: 3, kind: output, shape index: {}]
  %s4 = sld [smem:[#allocation0]]
  $region53: #{simple_cnn_forward.8} parent=0
    _
  %s6 = ssub.s32 1, %s4
  %s7 = scalar_select 0, %s6, %s4
  loop: start=0, step=1, limit=6
  $region2: #{simple_cnn_forward.8} parent=0 // loop_pre_header
    _
  $region3: #{simple_cnn_forward.8} parent=0 // loop_header
    %s9 = sphi 0, %s13
    %p10 = scmp.ge.s32.totalorder %s9, 6
    %s19 = sphi 0, %s21
    %s22 = sphi 0, %s19
    %s23 = sphi 0, %s22
    %s39 = sphi 0, %s23
    %s45 = sphi 0, %s47
    %s48 = sphi 0, %s45
    %s49 = sphi 0, %s48
    %s65 = sphi 0, %s49
    %s69 = sphi 0, %s69
    %s71 = sphi 0, %s69
    %s72 = sphi 0, %s71
    %s86 = sphi 0, %s72
    %s90 = sphi 0, %s90
    %s92 = sphi 0, %s90
    %s93 = sphi 0, %s92
    %s107 = sphi 0, %s93
  $region4: #{simple_cnn_forward.8} parent=0 // loop_header_branch
    %12 = sbr.rel (%p10) target = $region8
  $region5: #{simple_cnn_forward.8} parent=0 // loop_body
    %s14 = ssub.s32 %s9, 1
    %s15 = ssub.s32 %s9, 2
    %s16 = sadd.s32 %s9, 1
    %s17 = ssub.s32 %s9, %s16
    %p18 = scmp.eq.s32.totalorder %s17, 0
    %s20 = sadd.s32 %s19, 1
    %s21 = scalar_select %p18, %s19, %s20
    %p24 = pneg %p18
    %p25 = scmp.eq.s32.totalorder %s9, 3
    %p26 = por %p24, %p25
    %p27 = scmp.ne.s32.totalorder %s19, %s22
    %p28 = scmp.eq.s32.totalorder %s9, 0
    %p29 = por %p27, %p28
    %p30 = scmp.ne.s32.totalorder %s19, %s22
    %p31 = scmp.eq.s32.totalorder %s14, 3
    %p32 = por %p30, %p31
    %p33 = scmp.ne.s32.totalorder %s22, %s23
    %p34 = scmp.eq.s32.totalorder %s14, 0
    %p35 = por %p33, %p34
    %p36 = scmp.ne.s32.totalorder %s22, %s23
    %p37 = scmp.eq.s32.totalorder %s15, 3
    %p38 = por %p36, %p37
    %p40 = scmp.ne.s32.totalorder %s23, %s39
    %p41 = scmp.eq.s32.totalorder %s15, 0
    %p42 = por %p40, %p41
    %s43 = ssub.s32 %s9, %s16
    %p44 = scmp.eq.s32.totalorder %s43, 0
    %s46 = sadd.s32 %s45, 1
    %s47 = scalar_select %p44, %s45, %s46
    %p50 = pneg %p44
    %p51 = scmp.eq.s32.totalorder %s9, 3
    %p52 = por %p50, %p51
    %p53 = scmp.ne.s32.totalorder %s45, %s48
    %p54 = scmp.eq.s32.totalorder %s9, 0
    %p55 = por %p53, %p54
    %p56 = scmp.ne.s32.totalorder %s45, %s48
    %p57 = scmp.eq.s32.totalorder %s14, 3
    %p58 = por %p56, %p57
    %p59 = scmp.ne.s32.totalorder %s48, %s49
    %p60 = scmp.eq.s32.totalorder %s14, 0
    %p61 = por %p59, %p60
    %p62 = scmp.ne.s32.totalorder %s48, %s49
    %p63 = scmp.eq.s32.totalorder %s15, 3
    %p64 = por %p62, %p63
    %p66 = scmp.ne.s32.totalorder %s49, %s65
    %p67 = scmp.eq.s32.totalorder %s15, 0
    %p68 = por %p66, %p67
    %s70 = sadd.s32 %s69, 1
    %p73 = scmp.eq.s32.totalorder %s9, 3
    %p74 = scmp.ne.s32.totalorder %s69, %s71
    %p75 = scmp.eq.s32.totalorder %s9, 0
    %p76 = por %p74, %p75
    %p77 = scmp.ne.s32.totalorder %s69, %s71
    %p78 = scmp.eq.s32.totalorder %s14, 3
    %p79 = por %p77, %p78
    %p80 = scmp.ne.s32.totalorder %s71, %s72
    %p81 = scmp.eq.s32.totalorder %s14, 0
    %p82 = por %p80, %p81
    %p83 = scmp.ne.s32.totalorder %s71, %s72
    %p84 = scmp.eq.s32.totalorder %s15, 3
    %p85 = por %p83, %p84
    %p87 = scmp.ne.s32.totalorder %s72, %s86
    %p88 = scmp.eq.s32.totalorder %s15, 0
    %p89 = por %p87, %p88
    %s91 = sadd.s32 %s90, 1
    %p94 = scmp.eq.s32.totalorder %s9, 3
    %p95 = scmp.ne.s32.totalorder %s90, %s92
    %p96 = scmp.eq.s32.totalorder %s9, 0
    %p97 = por %p95, %p96
    %p98 = scmp.ne.s32.totalorder %s90, %s92
    %p99 = scmp.eq.s32.totalorder %s14, 3
    %p100 = por %p98, %p99
    %p101 = scmp.ne.s32.totalorder %s92, %s93
    %p102 = scmp.eq.s32.totalorder %s14, 0
    %p103 = por %p101, %p102
    %p104 = scmp.ne.s32.totalorder %s92, %s93
    %p105 = scmp.eq.s32.totalorder %s15, 3
    %p106 = por %p104, %p105
    %p108 = scmp.ne.s32.totalorder %s93, %s107
    %p109 = scmp.eq.s32.totalorder %s15, 0
    %p110 = por %p108, %p109
    %p111 = scmp.le.s32.totalorder 1, %s9
    %p112 = scmp.lt.s32.totalorder %s9, 5
    %p113 = pnand %p111, %p112
    %p114 = pneg %p113
    // Predicated region
    $region9: #{simple_cnn_forward.8} parent=5 // pred_check
      _
    $region10: #{simple_cnn_forward.8} parent=5 // pred_check_branch
      %116 = sbr.rel (%p113) target = $region12
    $region11: #{simple_cnn_forward.8} parent=5 // pred_region
      %s117 = ssub.s32 %s9, 1
      // Predicated region
      $region13: #{simple_cnn_forward.8} parent=11 // pred_check
        %p118 = pneg %p82
      $region14: #{simple_cnn_forward.8} parent=11 // pred_check_branch
        %120 = sbr.rel (%p118) target = $region16
      $region15: #{simple_cnn_forward.8} parent=11 // pred_region
        _
      $region16: #{simple_cnn_forward.8} parent=11 // pred_fallthru
        _
    $region12: #{simple_cnn_forward.8} parent=5 // pred_fallthru
      _
    %p121 = scmp.lt.s32.totalorder %s9, 4
    // Predicated region
    $region17: #{simple_cnn_forward.8} parent=5 // pred_check
      %p122 = pneg %p121
    $region18: #{simple_cnn_forward.8} parent=5 // pred_check_branch
      %124 = sbr.rel (%p122) target = $region20
    $region19: #{simple_cnn_forward.8} parent=5 // pred_region
      // Predicated region
      $region21: #{simple_cnn_forward.8} parent=19 // pred_check
        %p125 = pneg %p29
      $region22: #{simple_cnn_forward.8} parent=19 // pred_check_branch
        %127 = sbr.rel (%p125) target = $region24
      $region23: #{simple_cnn_forward.8} parent=19 // pred_region
        %s128 = smul.u32 4, %s9
        %p129 = scmp.lt.s32.totalorder %s128, 15
        %s130 = scalar_select %p129, %s128, 15
        %s131 = scalar_lea.vmem %s0, %s130
        %s132 = smul.u32 4, %s9
      $region24: #{simple_cnn_forward.8} parent=19 // pred_fallthru
        _
      // Predicated region
      $region25: #{simple_cnn_forward.8} parent=19 // pred_check
        %p133 = pneg %p55
      $region26: #{simple_cnn_forward.8} parent=19 // pred_check_branch
        %135 = sbr.rel (%p133) target = $region28
      $region27: #{simple_cnn_forward.8} parent=19 // pred_region
        %s136 = smul.u32 64, %s9
        %p137 = scmp.lt.s32.totalorder %s136, 255
        %s138 = scalar_select %p137, %s136, 255
        %s139 = smul.addr %s138, 4
        %s140 = scalar_lea.vmem %s1, %s139
        %s141 = smul.u32 64, %s9
      $region28: #{simple_cnn_forward.8} parent=19 // pred_fallthru
        _
    $region20: #{simple_cnn_forward.8} parent=5 // pred_fallthru
      _
    %p142 = scmp.le.s32.totalorder 1, %s9
    %p143 = scmp.lt.s32.totalorder %s9, 5
    %p144 = pnand %p142, %p143
    %p145 = pneg %p144
    // Predicated region
    $region29: #{simple_cnn_forward.8} parent=5 // pred_check
      _
    $region30: #{simple_cnn_forward.8} parent=5 // pred_check_branch
      %147 = sbr.rel (%p144) target = $region32
    $region31: #{simple_cnn_forward.8} parent=5 // pred_region
      %s148 = ssub.s32 %s9, 1
      %s149 = smul.u32 4, %s14
      %p150 = scmp.lt.s32.totalorder %s149, 15
      %s151 = scalar_select %p150, %s149, 15
      %s152 = scalar_lea.vmem %s0, %s151
      %p153 = pneg %p35
      %p154 = pneg %p32
      %s155 = smul.u32 64, %s14
      %p156 = scmp.lt.s32.totalorder %s155, 255
      %s157 = scalar_select %p156, %s155, 255
      %s158 = smul.addr %s157, 4
      %s159 = scalar_lea.vmem %s1, %s158
      %p160 = pneg %p61
      %p161 = pneg %p58
      %p162 = pneg %p82
      %p163 = pneg %p79
      %p164 = pneg %p103
      %p165 = pneg %p100
      %s166 = smul.u32 4, %s14
      %p167 = scmp.lt.s32.totalorder %s166, 15
      %s168 = scalar_select %p167, %s166, 15
      %s169 = scalar_lea.vmem %s0, %s168
      %s170 = smul.u32 4, %s14
      %s171 = smul.u32 64, %s14
      %p172 = scmp.lt.s32.totalorder %s171, 255
      %s173 = scalar_select %p172, %s171, 255
      %s174 = smul.addr %s173, 4
      %s175 = scalar_lea.vmem %s1, %s174
      %s176 = smul.u32 64, %s14
      %p177 = scmp.eq.s32.totalorder %s14, 0
      // Predicated region
      $region33: #{simple_cnn_forward.8} parent=31 // pred_check
        %p178 = pneg %p177
      $region34: #{simple_cnn_forward.8} parent=31 // pred_check_branch
        %180 = sbr.rel (%p178) target = $region36
      $region35: #{simple_cnn_forward.8} parent=31 // pred_region
        %181 = vst [vmem:[#allocation2] sm:$0x3] 0.0
      $region36: #{simple_cnn_forward.8} parent=31 // pred_fallthru
        _
      %v182 = vld [vmem:[#allocation2] sm:$0x3]
      %v183 = vld [vmem:[%s169] sm:$0xf]
      %v184 = vld [vmem:[%s175] sm:$0xf]
      %v185 = vld [vmem:[%s175 + $0x4] sm:$0xf]
      %v186 = vld [vmem:[%s175 + $0x8] sm:$0xf]
      %v187 = vld [vmem:[%s175 + $0xc] sm:$0xf]
      %v188 = vld [vmem:[%s175 + $0x10] sm:$0xf]
      %v189 = vld [vmem:[%s175 + $0x14] sm:$0xf]
      %v190 = vld [vmem:[%s175 + $0x18] sm:$0xf]
      %v191 = vld [vmem:[%s175 + $0x1c] sm:$0xf]
      %v192 = vld [vmem:[%s175 + $0x20] sm:$0xf]
      %v193 = vld [vmem:[%s175 + $0x24] sm:$0xf]
      %v194 = vld [vmem:[%s175 + $0x28] sm:$0xf]
      %v195 = vld [vmem:[%s175 + $0x2c] sm:$0xf]
      %v196 = vld [vmem:[%s175 + $0x30] sm:$0xf]
      %v197 = vld [vmem:[%s175 + $0x34] sm:$0xf]
      %v198 = vld [vmem:[%s175 + $0x38] sm:$0xf]
      %v199 = vld [vmem:[%s175 + $0x3c] sm:$0xf]
      %v200 = vld [vmem:[%s175 + $0x40] sm:$0xf]
      %v201 = vld [vmem:[%s175 + $0x44] sm:$0xf]
      %v202 = vld [vmem:[%s175 + $0x48] sm:$0xf]
      %v203 = vld [vmem:[%s175 + $0x4c] sm:$0xf]
      %v204 = vld [vmem:[%s175 + $0x50] sm:$0xf]
      %v205 = vld [vmem:[%s175 + $0x54] sm:$0xf]
      %v206 = vld [vmem:[%s175 + $0x58] sm:$0xf]
      %v207 = vld [vmem:[%s175 + $0x5c] sm:$0xf]
      %v208 = vld [vmem:[%s175 + $0x60] sm:$0xf]
      %v209 = vld [vmem:[%s175 + $0x64] sm:$0xf]
      %v210 = vld [vmem:[%s175 + $0x68] sm:$0xf]
      %v211 = vld [vmem:[%s175 + $0x6c] sm:$0xf]
      %v212 = vld [vmem:[%s175 + $0x70] sm:$0xf]
      %v213 = vld [vmem:[%s175 + $0x74] sm:$0xf]
      %v214 = vld [vmem:[%s175 + $0x78] sm:$0xf]
      %v215 = vld [vmem:[%s175 + $0x7c] sm:$0xf]
      %v216 = vld [vmem:[%s175 + $0x80] sm:$0xf]
      %v217 = vld [vmem:[%s175 + $0x84] sm:$0xf]
      %v218 = vld [vmem:[%s175 + $0x88] sm:$0xf]
      %v219 = vld [vmem:[%s175 + $0x8c] sm:$0xf]
      %v220 = vld [vmem:[%s175 + $0x90] sm:$0xf]
      %v221 = vld [vmem:[%s175 + $0x94] sm:$0xf]
      %v222 = vld [vmem:[%s175 + $0x98] sm:$0xf]
      %v223 = vld [vmem:[%s175 + $0x9c] sm:$0xf]
      %v224 = vld [vmem:[%s175 + $0xa0] sm:$0xf]
      %v225 = vld [vmem:[%s175 + $0xa4] sm:$0xf]
      %v226 = vld [vmem:[%s175 + $0xa8] sm:$0xf]
      %v227 = vld [vmem:[%s175 + $0xac] sm:$0xf]
      %v228 = vld [vmem:[%s175 + $0xb0] sm:$0xf]
      %v229 = vld [vmem:[%s175 + $0xb4] sm:$0xf]
      %v230 = vld [vmem:[%s175 + $0xb8] sm:$0xf]
      %v231 = vld [vmem:[%s175 + $0xbc] sm:$0xf]
      %v232 = vld [vmem:[%s175 + $0xc0] sm:$0xf]
      %v233 = vld [vmem:[%s175 + $0xc4] sm:$0xf]
      %v234 = vld [vmem:[%s175 + $0xc8] sm:$0xf]
      %v235 = vld [vmem:[%s175 + $0xcc] sm:$0xf]
      %v236 = vld [vmem:[%s175 + $0xd0] sm:$0xf]
      %v237 = vld [vmem:[%s175 + $0xd4] sm:$0xf]
      %v238 = vld [vmem:[%s175 + $0xd8] sm:$0xf]
      %v239 = vld [vmem:[%s175 + $0xdc] sm:$0xf]
      %v240 = vld [vmem:[%s175 + $0xe0] sm:$0xf]
      %v241 = vld [vmem:[%s175 + $0xe4] sm:$0xf]
      %v242 = vld [vmem:[%s175 + $0xe8] sm:$0xf]
      %v243 = vld [vmem:[%s175 + $0xec] sm:$0xf]
      %v244 = vld [vmem:[%s175 + $0xf0] sm:$0xf]
      %v245 = vld [vmem:[%s175 + $0xf4] sm:$0xf]
      %v246 = vld [vmem:[%s175 + $0xf8] sm:$0xf]
      %v247 = vld [vmem:[%s175 + $0xfc] sm:$0xf]
      %249 = vst [vmem:[#allocation1] ss:$9 sm:$0xff] %v183
      %v250 = vld [vmem:[#allocation1] sm:$0xff]
      %v251 = vld [vmem:[#allocation1 + $0x9] sm:$0xff]
      %v252 = vld [vmem:[#allocation1 + $0x12] sm:$0xff]
      %v253 = vld [vmem:[#allocation1 + $0x1b] sm:$0xff]
      %v322 = vunpack.c.l.b16 %v184
      %v323 = vunpack.c.l.b16 %v185
      %v324 = vunpack.c.l.b16 %v186
      %v325 = vunpack.c.l.b16 %v187
      %v326 = vunpack.c.l.b16 %v188
      %v327 = vunpack.c.l.b16 %v189
      %v328 = vunpack.c.l.b16 %v190
      %v329 = vunpack.c.l.b16 %v191
      %v330 = vunpack.c.l.b16 %v192
      %v331 = vunpack.c.l.b16 %v193
      %v332 = vunpack.c.l.b16 %v194
      %v333 = vunpack.c.l.b16 %v195
      %v334 = vunpack.c.l.b16 %v196
      %v335 = vunpack.c.l.b16 %v197
      %v336 = vunpack.c.l.b16 %v198
      %v337 = vunpack.c.l.b16 %v199
      %v338 = vunpack.c.l.b16 %v200
      %v339 = vunpack.c.l.b16 %v201
      %v340 = vunpack.c.l.b16 %v202
      %v341 = vunpack.c.l.b16 %v203
      %v342 = vunpack.c.l.b16 %v204
      %v343 = vunpack.c.l.b16 %v205
      %v344 = vunpack.c.l.b16 %v206
      %v345 = vunpack.c.l.b16 %v207
      %v346 = vunpack.c.l.b16 %v208
      %v347 = vunpack.c.l.b16 %v209
      %v348 = vunpack.c.l.b16 %v210
      %v349 = vunpack.c.l.b16 %v211
      %v350 = vunpack.c.l.b16 %v212
      %v351 = vunpack.c.l.b16 %v213
      %v352 = vunpack.c.l.b16 %v214
      %v353 = vunpack.c.l.b16 %v215
      %v354 = vunpack.c.l.b16 %v216
      %v355 = vunpack.c.l.b16 %v217
      %v356 = vunpack.c.l.b16 %v218
      %v357 = vunpack.c.l.b16 %v219
      %v358 = vunpack.c.l.b16 %v220
      %v359 = vunpack.c.l.b16 %v221
      %v360 = vunpack.c.l.b16 %v222
      %v361 = vunpack.c.l.b16 %v223
      %v362 = vunpack.c.l.b16 %v224
      %v363 = vunpack.c.l.b16 %v225
      %v364 = vunpack.c.l.b16 %v226
      %v365 = vunpack.c.l.b16 %v227
      %v366 = vunpack.c.l.b16 %v228
      %v367 = vunpack.c.l.b16 %v229
      %v368 = vunpack.c.l.b16 %v230
      %v369 = vunpack.c.l.b16 %v231
      %v370 = vunpack.c.l.b16 %v232
      %v371 = vunpack.c.l.b16 %v233
      %v372 = vunpack.c.l.b16 %v234
      %v373 = vunpack.c.l.b16 %v235
      %v374 = vunpack.c.l.b16 %v236
      %v375 = vunpack.c.l.b16 %v237
      %v376 = vunpack.c.l.b16 %v238
      %v377 = vunpack.c.l.b16 %v239
      %v378 = vunpack.c.l.b16 %v240
      %v379 = vunpack.c.l.b16 %v241
      %v380 = vunpack.c.l.b16 %v242
      %v381 = vunpack.c.l.b16 %v243
      %v382 = vunpack.c.l.b16 %v244
      %v383 = vunpack.c.l.b16 %v245
      %v384 = vunpack.c.l.b16 %v246
      %v385 = vunpack.c.l.b16 %v247
      %v386 = vpack.c.b16 %v323, %v322
      %v387 = vpack.c.b16 %v325, %v324
      %v388 = vpack.c.b16 %v327, %v326
      %v389 = vpack.c.b16 %v329, %v328
      %v390 = vpack.c.b16 %v331, %v330
      %v391 = vpack.c.b16 %v333, %v332
      %v392 = vpack.c.b16 %v335, %v334
      %v393 = vpack.c.b16 %v337, %v336
      %v394 = vpack.c.b16 %v339, %v338
      %v395 = vpack.c.b16 %v341, %v340
      %v396 = vpack.c.b16 %v343, %v342
      %v397 = vpack.c.b16 %v345, %v344
      %v398 = vpack.c.b16 %v347, %v346
      %v399 = vpack.c.b16 %v349, %v348
      %v400 = vpack.c.b16 %v351, %v350
      %v401 = vpack.c.b16 %v353, %v352
      %v402 = vpack.c.b16 %v355, %v354
      %v403 = vpack.c.b16 %v357, %v356
      %v404 = vpack.c.b16 %v359, %v358
      %v405 = vpack.c.b16 %v361, %v360
      %v406 = vpack.c.b16 %v363, %v362
      %v407 = vpack.c.b16 %v365, %v364
      %v408 = vpack.c.b16 %v367, %v366
      %v409 = vpack.c.b16 %v369, %v368
      %v410 = vpack.c.b16 %v371, %v370
      %v411 = vpack.c.b16 %v373, %v372
      %v412 = vpack.c.b16 %v375, %v374
      %v413 = vpack.c.b16 %v377, %v376
      %v414 = vpack.c.b16 %v379, %v378
      %v415 = vpack.c.b16 %v381, %v380
      %v416 = vpack.c.b16 %v383, %v382
      %v417 = vpack.c.b16 %v385, %v384
      %450 = vmatpush.bf16.msra.mxu0 %v393
      %451 = vmatpush.bf16.msra.mxu0 %v392
      %452 = vmatpush.bf16.msra.mxu0 %v391
      %453 = vmatpush.bf16.msra.mxu0 %v390
      %454 = vmatpush.bf16.msra.mxu0 %v389
      %455 = vmatpush.bf16.msra.mxu0 %v388
      %456 = vmatpush.bf16.msra.mxu0 %v387
      %457 = vmatpush.bf16.msra.mxu0 %v386
      %458 = vmatmul.bf16.gmra.mxu0 %v250
      %v459 = vpop.f32.mrf.mxu0
      %v460 = vadd.f32 0.0, %v459
      %v461 = vpop.f32.mrf.mxu0
      %462 = vdwg.mxu0
      %463 = vmatpush.bf16.msra.mxu0 %v401
      %464 = vmatpush.bf16.msra.mxu0 %v400
      %465 = vmatpush.bf16.msra.mxu0 %v399
      %466 = vmatpush.bf16.msra.mxu0 %v398
      %467 = vmatpush.bf16.msra.mxu0 %v397
      %468 = vmatpush.bf16.msra.mxu0 %v396
      %469 = vmatpush.bf16.msra.mxu0 %v395
      %470 = vmatpush.bf16.msra.mxu0 %v394
      %471 = vmatmul.bf16.gmra.mxu0 %v251
      %v472 = vpop.f32.mrf.mxu0
      %v473 = vadd.f32 %v460, %v472
      %v474 = vpop.f32.mrf.mxu0
      %475 = vdwg.mxu0
      %476 = vmatpush.bf16.msra.mxu0 %v409
      %477 = vmatpush.bf16.msra.mxu0 %v408
      %478 = vmatpush.bf16.msra.mxu0 %v407
      %479 = vmatpush.bf16.msra.mxu0 %v406
      %480 = vmatpush.bf16.msra.mxu0 %v405
      %481 = vmatpush.bf16.msra.mxu0 %v404
      %482 = vmatpush.bf16.msra.mxu0 %v403
      %483 = vmatpush.bf16.msra.mxu0 %v402
      %484 = vmatmul.bf16.gmra.mxu0 %v252
      %v485 = vpop.f32.mrf.mxu0
      %v486 = vadd.f32 %v473, %v485
      %v487 = vpop.f32.mrf.mxu0
      %488 = vdwg.mxu0
      %489 = vmatpush.bf16.msra.mxu0 %v417
      %490 = vmatpush.bf16.msra.mxu0 %v416
      %491 = vmatpush.bf16.msra.mxu0 %v415
      %492 = vmatpush.bf16.msra.mxu0 %v414
      %493 = vmatpush.bf16.msra.mxu0 %v413
      %494 = vmatpush.bf16.msra.mxu0 %v412
      %495 = vmatpush.bf16.msra.mxu0 %v411
      %496 = vmatpush.bf16.msra.mxu0 %v410
      %497 = vmatmul.bf16.gmra.mxu0 %v253
      %v498 = vpop.f32.mrf.mxu0
      %v499 = vadd.f32 %v486, %v498
      %v500 = vpop.f32.mrf.mxu0
      %501 = vdwg.mxu0
      %v502 = vadd.f32 %v182, %v499
      %503 = vst [vmem:[#allocation2] sm:$0x3] %v502
      %p504 = scmp.eq.s32.totalorder %s14, 3
      // Predicated region
      $region37: #{simple_cnn_forward.8} parent=31 // pred_check
        %p505 = pneg %p504
      $region38: #{simple_cnn_forward.8} parent=31 // pred_check_branch
        %507 = sbr.rel (%p505) target = $region40
      $region39: #{simple_cnn_forward.8} parent=31 // pred_region
        %v508 = vld [vmem:[#allocation2] sm:$0x3]
        %v509 = vld [vmem:[%s2] sm:$0x1]
        %v511 = vperm.slane %v509, 0
        %v513 = vadd.f32 %v508, %v511
        %v514 = vmax.f32 %v513, 0.0
        %v515 = vpack.c.bf16 %v514, %v514
        %516 = vst [vmem:[%s3] sm:$0x1] %v515
      $region40: #{simple_cnn_forward.8} parent=31 // pred_fallthru
        _
      // Predicated region
      $region41: #{simple_cnn_forward.8} parent=31 // pred_check
        %p517 = pneg %p100
      $region42: #{simple_cnn_forward.8} parent=31 // pred_check_branch
        %519 = sbr.rel (%p517) target = $region44
      $region43: #{simple_cnn_forward.8} parent=31 // pred_region
        _
      $region44: #{simple_cnn_forward.8} parent=31 // pred_fallthru
        _
      // Predicated region
      $region45: #{simple_cnn_forward.8} parent=31 // pred_check
        %p520 = pneg %p100
      $region46: #{simple_cnn_forward.8} parent=31 // pred_check_branch
        %522 = sbr.rel (%p520) target = $region48
      $region47: #{simple_cnn_forward.8} parent=31 // pred_region
        _
      $region48: #{simple_cnn_forward.8} parent=31 // pred_fallthru
        _
    $region32: #{simple_cnn_forward.8} parent=5 // pred_fallthru
      _
    %p523 = scmp.le.s32.totalorder 2, %s9
    // Predicated region
    $region49: #{simple_cnn_forward.8} parent=5 // pred_check
      %p524 = pneg %p523
    $region50: #{simple_cnn_forward.8} parent=5 // pred_check_branch
      %526 = sbr.rel (%p524) target = $region52
    $region51: #{simple_cnn_forward.8} parent=5 // pred_region
      %s527 = ssub.s32 %s9, 2
    $region52: #{simple_cnn_forward.8} parent=5 // pred_fallthru
      _
  $region6: #{simple_cnn_forward.8} parent=0 // loop_footer
    %s13 = sadd.s32 1, %s9
  $region7: #{simple_cnn_forward.8} parent=0 // loop_footer_branch
    %8 = sbr.rel target = $region3
  $region8: #{simple_cnn_forward.8} parent=0 // loop_exit
    _

// kernel: simple_cnn_forward.9
$region0: #{simple_cnn_forward.9}
  #allocation0 [shape = 'u32[]', space=smem, size = 0x4, offset = 0x4, fixed_abs, tag = 'smem constant byte address 0x4 - core index']
  #allocation1 [shape = 'u32[72,128]{1,0:T(1,128)}', space=vmem, size = 0x9000, scoped, tag = 'internal scratch']
  #allocation2 [shape = 'f32[2,128]{1,0:T(2,128)}', space=vmem, size = 0x400, scoped, tag = 'scratch operand']
  %s0 = inlined_call_operand.vmem [shape: bf16[2,128], index: 0, kind: input, shape index: {}]
  %s1 = inlined_call_operand.vmem [shape: bf16[128,128], index: 1, kind: input, shape index: {}]
  %s2 = inlined_call_operand.vmem [shape: f32[1,128], index: 2, kind: input, shape index: {}]
  %s3 = inlined_call_operand.vmem [shape: bf16[2,128], index: 3, kind: output, shape index: {}]
  %s4 = sld [smem:[#allocation0]]
  $region30: #{simple_cnn_forward.9} parent=0
    _
  %s6 = ssub.s32 1, %s4
  %s7 = scalar_select 0, %s6, %s4
  // Predicated region
  $region2: #{simple_cnn_forward.9} parent=0 // pred_check
    _
  $region3: #{simple_cnn_forward.9} parent=0 // pred_check_branch
    %9 = sbr.rel (0) target = $region5
  $region4: #{simple_cnn_forward.9} parent=0 // pred_region
    _
  $region5: #{simple_cnn_forward.9} parent=0 // pred_fallthru
    _
  // Predicated region
  $region6: #{simple_cnn_forward.9} parent=0 // pred_check
    _
  $region7: #{simple_cnn_forward.9} parent=0 // pred_check_branch
    %11 = sbr.rel (0) target = $region9
  $region8: #{simple_cnn_forward.9} parent=0 // pred_region
    _
  $region9: #{simple_cnn_forward.9} parent=0 // pred_fallthru
    _
  // Predicated region
  $region10: #{simple_cnn_forward.9} parent=0 // pred_check
    _
  $region11: #{simple_cnn_forward.9} parent=0 // pred_check_branch
    %13 = sbr.rel (0) target = $region13
  $region12: #{simple_cnn_forward.9} parent=0 // pred_region
    _
  $region13: #{simple_cnn_forward.9} parent=0 // pred_fallthru
    _
  %p14 = scmp.eq.s32.totalorder 0, 0
  // Predicated region
  $region14: #{simple_cnn_forward.9} parent=0 // pred_check
    %p15 = pneg %p14
  $region15: #{simple_cnn_forward.9} parent=0 // pred_check_branch
    %17 = sbr.rel (%p15) target = $region17
  $region16: #{simple_cnn_forward.9} parent=0 // pred_region
    %18 = vst [vmem:[#allocation2] sm:$0x3] 0.0
  $region17: #{simple_cnn_forward.9} parent=0 // pred_fallthru
    _
  %v19 = vld [vmem:[#allocation2] sm:$0x3]
  %v20 = vld [vmem:[%s0] sm:$0x1]
  %v21 = vld [vmem:[%s1] sm:$0xf]
  %v22 = vld [vmem:[%s1 + $0x4] sm:$0xf]
  %v23 = vld [vmem:[%s1 + $0x8] sm:$0xf]
  %v24 = vld [vmem:[%s1 + $0xc] sm:$0xf]
  %v25 = vld [vmem:[%s1 + $0x10] sm:$0xf]
  %v26 = vld [vmem:[%s1 + $0x14] sm:$0xf]
  %v27 = vld [vmem:[%s1 + $0x18] sm:$0xf]
  %v28 = vld [vmem:[%s1 + $0x1c] sm:$0xf]
  %v29 = vld [vmem:[%s1 + $0x20] sm:$0xf]
  %v30 = vld [vmem:[%s1 + $0x24] sm:$0xf]
  %v31 = vld [vmem:[%s1 + $0x28] sm:$0xf]
  %v32 = vld [vmem:[%s1 + $0x2c] sm:$0xf]
  %v33 = vld [vmem:[%s1 + $0x30] sm:$0xf]
  %v34 = vld [vmem:[%s1 + $0x34] sm:$0xf]
  %v35 = vld [vmem:[%s1 + $0x38] sm:$0xf]
  %v36 = vld [vmem:[%s1 + $0x3c] sm:$0xf]
  %v53 = vunpack.c.l.b16 %v21
  %v54 = vunpack.c.l.b16 %v22
  %v55 = vunpack.c.l.b16 %v23
  %v56 = vunpack.c.l.b16 %v24
  %v57 = vunpack.c.l.b16 %v25
  %v58 = vunpack.c.l.b16 %v26
  %v59 = vunpack.c.l.b16 %v27
  %v60 = vunpack.c.l.b16 %v28
  %v61 = vunpack.c.l.b16 %v29
  %v62 = vunpack.c.l.b16 %v30
  %v63 = vunpack.c.l.b16 %v31
  %v64 = vunpack.c.l.b16 %v32
  %v65 = vunpack.c.l.b16 %v33
  %v66 = vunpack.c.l.b16 %v34
  %v67 = vunpack.c.l.b16 %v35
  %v68 = vunpack.c.l.b16 %v36
  %v69 = vpack.c.b16 %v54, %v53
  %v70 = vpack.c.b16 %v56, %v55
  %v71 = vpack.c.b16 %v58, %v57
  %v72 = vpack.c.b16 %v60, %v59
  %v73 = vpack.c.b16 %v62, %v61
  %v74 = vpack.c.b16 %v64, %v63
  %v75 = vpack.c.b16 %v66, %v65
  %v76 = vpack.c.b16 %v68, %v67
  %85 = vmatpush.bf16.msra.mxu0 %v76
  %86 = vmatpush.bf16.msra.mxu0 %v75
  %87 = vmatpush.bf16.msra.mxu0 %v74
  %88 = vmatpush.bf16.msra.mxu0 %v73
  %89 = vmatpush.bf16.msra.mxu0 %v72
  %90 = vmatpush.bf16.msra.mxu0 %v71
  %91 = vmatpush.bf16.msra.mxu0 %v70
  %92 = vmatpush.bf16.msra.mxu0 %v69
  %93 = vmatmul.bf16.gmra.mxu0 %v20
  %v94 = vpop.f32.mrf.mxu0
  %v95 = vadd.f32 0.0, %v94
  %v96 = vpop.f32.mrf.mxu0
  %97 = vdwg.mxu0
  %v98 = vadd.f32 %v19, %v95
  %99 = vst [vmem:[#allocation2] sm:$0x3] %v98
  // Predicated region
  $region18: #{simple_cnn_forward.9} parent=0 // pred_check
    %p100 = pneg %p14
  $region19: #{simple_cnn_forward.9} parent=0 // pred_check_branch
    %102 = sbr.rel (%p100) target = $region21
  $region20: #{simple_cnn_forward.9} parent=0 // pred_region
    %v103 = vld [vmem:[#allocation2] sm:$0x3]
    %v104 = vld [vmem:[%s2] sm:$0x1]
    %v106 = vperm.slane %v104, 0
    %v108 = vadd.f32 %v103, %v106
    %v109 = vmax.f32 %v108, 0.0
    %v110 = vpack.c.bf16 %v109, %v109
    %111 = vst [vmem:[%s3] sm:$0x1] %v110
  $region21: #{simple_cnn_forward.9} parent=0 // pred_fallthru
    _
  // Predicated region
  $region22: #{simple_cnn_forward.9} parent=0 // pred_check
    _
  $region23: #{simple_cnn_forward.9} parent=0 // pred_check_branch
    %113 = sbr.rel (0) target = $region25
  $region24: #{simple_cnn_forward.9} parent=0 // pred_region
    _
  $region25: #{simple_cnn_forward.9} parent=0 // pred_fallthru
    _
  // Predicated region
  $region26: #{simple_cnn_forward.9} parent=0 // pred_check
    _
  $region27: #{simple_cnn_forward.9} parent=0 // pred_check_branch
    %115 = sbr.rel (0) target = $region29
  $region28: #{simple_cnn_forward.9} parent=0 // pred_region
    _
  $region29: #{simple_cnn_forward.9} parent=0 // pred_fallthru
    _

// kernel: simple_cnn_forward.7
$region0: #{simple_cnn_forward.7}
  #allocation0 [shape = 'u32[]', space=smem, size = 0x4, offset = 0x4, fixed_abs, tag = 'smem constant byte address 0x4 - core index']
  #allocation1 [shape = 'u32[72,128]{1,0:T(1,128)}', space=vmem, size = 0x9000, scoped, tag = 'internal scratch']
  #allocation2 [shape = 'f32[4,8,128]{2,1,0:T(8,128)}', space=vmem, size = 0x4000, scoped, tag = 'scratch operand']
  %s0 = inlined_call_operand.vmem [shape: bf16[2,1,10,10,128], index: 0, kind: input, shape index: {}]
  %s1 = inlined_call_operand.vmem [shape: bf16[9,128,128], index: 1, kind: input, shape index: {}]
  %s2 = inlined_call_operand.vmem [shape: f32[1,128], index: 2, kind: input, shape index: {}]
  %s3 = inlined_call_operand.vmem [shape: bf16[2,4,4,128], index: 3, kind: output, shape index: {}]
  %s4 = sld [smem:[#allocation0]]
  $region45: #{simple_cnn_forward.7} parent=0
    _
  %s6 = ssub.s32 1, %s4
  %s7 = scalar_select 0, %s6, %s4
  loop: start=0, step=1, limit=4
  $region2: #{simple_cnn_forward.7} parent=0 // loop_pre_header
    _
  $region3: #{simple_cnn_forward.7} parent=0 // loop_header
    %s9 = sphi 0, %s13
    %p10 = scmp.ge.s32.totalorder %s9, 4
    %s16 = sphi 0, %s28
    %s17 = sphi 0, %s24
    %s18 = sphi 0, %s16
    %s19 = sphi 0, %s17
    %s20 = sphi 0, %s18
    %s21 = sphi 0, %s19
    %s33 = sphi 0, %s35
    %s36 = sphi 0, %s33
    %s37 = sphi 0, %s36
    %s53 = sphi 0, %s37
    %s57 = sphi 0, %s57
    %s59 = sphi 0, %s57
    %s60 = sphi 0, %s59
    %s74 = sphi 0, %s60
    %s78 = sphi 0, %s78
    %s80 = sphi 0, %s78
    %s81 = sphi 0, %s80
    %s95 = sphi 0, %s81
    %s103 = sphi 0, %s105
    %s106 = sphi 0, %s103
    %s107 = sphi 0, %s106
    %s123 = sphi 0, %s107
  $region4: #{simple_cnn_forward.7} parent=0 // loop_header_branch
    %12 = sbr.rel (%p10) target = $region8
  $region5: #{simple_cnn_forward.7} parent=0 // loop_body
    %s14 = ssub.s32 %s9, 1
    %s15 = ssub.s32 %s9, 2
    %s22 = sadd.s32 1, %s17
    %p23 = scmp.ge.s32.totalorder %s22, 1
    %s24 = scalar_select %p23, 0, %s22
    %s25 = sadd.s32 1, %s16
    %s26 = scalar_select %p23, %s25, %s16
    %p27 = scmp.ge.s32.totalorder %s26, 2
    %s28 = scalar_select %p27, 0, %s26
    %s29 = ssub.s32 %s16, %s28
    %s30 = ssub.s32 %s17, %s24
    %s31 = sor.u32 %s29, %s30
    %p32 = scmp.eq.s32.totalorder %s31, 0
    %s34 = sadd.s32 %s33, 1
    %s35 = scalar_select %p32, %s33, %s34
    %p38 = pneg %p32
    %p39 = scmp.eq.s32.totalorder %s9, 1
    %p40 = por %p38, %p39
    %p41 = scmp.ne.s32.totalorder %s33, %s36
    %p42 = scmp.eq.s32.totalorder %s9, 0
    %p43 = por %p41, %p42
    %p44 = scmp.ne.s32.totalorder %s33, %s36
    %p45 = scmp.eq.s32.totalorder %s14, 1
    %p46 = por %p44, %p45
    %p47 = scmp.ne.s32.totalorder %s36, %s37
    %p48 = scmp.eq.s32.totalorder %s14, 0
    %p49 = por %p47, %p48
    %p50 = scmp.ne.s32.totalorder %s36, %s37
    %p51 = scmp.eq.s32.totalorder %s15, 1
    %p52 = por %p50, %p51
    %p54 = scmp.ne.s32.totalorder %s37, %s53
    %p55 = scmp.eq.s32.totalorder %s15, 0
    %p56 = por %p54, %p55
    %s58 = sadd.s32 %s57, 1
    %p61 = scmp.eq.s32.totalorder %s9, 1
    %p62 = scmp.ne.s32.totalorder %s57, %s59
    %p63 = scmp.eq.s32.totalorder %s9, 0
    %p64 = por %p62, %p63
    %p65 = scmp.ne.s32.totalorder %s57, %s59
    %p66 = scmp.eq.s32.totalorder %s14, 1
    %p67 = por %p65, %p66
    %p68 = scmp.ne.s32.totalorder %s59, %s60
    %p69 = scmp.eq.s32.totalorder %s14, 0
    %p70 = por %p68, %p69
    %p71 = scmp.ne.s32.totalorder %s59, %s60
    %p72 = scmp.eq.s32.totalorder %s15, 1
    %p73 = por %p71, %p72
    %p75 = scmp.ne.s32.totalorder %s60, %s74
    %p76 = scmp.eq.s32.totalorder %s15, 0
    %p77 = por %p75, %p76
    %s79 = sadd.s32 %s78, 1
    %p82 = scmp.eq.s32.totalorder %s9, 1
    %p83 = scmp.ne.s32.totalorder %s78, %s80
    %p84 = scmp.eq.s32.totalorder %s9, 0
    %p85 = por %p83, %p84
    %p86 = scmp.ne.s32.totalorder %s78, %s80
    %p87 = scmp.eq.s32.totalorder %s14, 1
    %p88 = por %p86, %p87
    %p89 = scmp.ne.s32.totalorder %s80, %s81
    %p90 = scmp.eq.s32.totalorder %s14, 0
    %p91 = por %p89, %p90
    %p92 = scmp.ne.s32.totalorder %s80, %s81
    %p93 = scmp.eq.s32.totalorder %s15, 1
    %p94 = por %p92, %p93
    %p96 = scmp.ne.s32.totalorder %s81, %s95
    %p97 = scmp.eq.s32.totalorder %s15, 0
    %p98 = por %p96, %p97
    %s99 = ssub.s32 %s16, %s28
    %s100 = ssub.s32 %s17, %s24
    %s101 = sor.u32 %s99, %s100
    %p102 = scmp.eq.s32.totalorder %s101, 0
    %s104 = sadd.s32 %s103, 1
    %s105 = scalar_select %p102, %s103, %s104
    %p108 = pneg %p102
    %p109 = scmp.eq.s32.totalorder %s9, 1
    %p110 = por %p108, %p109
    %p111 = scmp.ne.s32.totalorder %s103, %s106
    %p112 = scmp.eq.s32.totalorder %s9, 0
    %p113 = por %p111, %p112
    %p114 = scmp.ne.s32.totalorder %s103, %s106
    %p115 = scmp.eq.s32.totalorder %s14, 1
    %p116 = por %p114, %p115
    %p117 = scmp.ne.s32.totalorder %s106, %s107
    %p118 = scmp.eq.s32.totalorder %s14, 0
    %p119 = por %p117, %p118
    %p120 = scmp.ne.s32.totalorder %s106, %s107
    %p121 = scmp.eq.s32.totalorder %s15, 1
    %p122 = por %p120, %p121
    %p124 = scmp.ne.s32.totalorder %s107, %s123
    %p125 = scmp.eq.s32.totalorder %s15, 0
    %p126 = por %p124, %p125
    %p127 = scmp.le.s32.totalorder 1, %s9
    %p128 = scmp.lt.s32.totalorder %s9, 3
    %p129 = pnand %p127, %p128
    %p130 = pneg %p129
    // Predicated region
    $region9: #{simple_cnn_forward.7} parent=5 // pred_check
      _
    $region10: #{simple_cnn_forward.7} parent=5 // pred_check_branch
      %132 = sbr.rel (%p129) target = $region12
    $region11: #{simple_cnn_forward.7} parent=5 // pred_region
      %s133 = ssub.s32 %s9, 1
      // Predicated region
      $region13: #{simple_cnn_forward.7} parent=11 // pred_check
        %p134 = pneg %p70
      $region14: #{simple_cnn_forward.7} parent=11 // pred_check_branch
        %136 = sbr.rel (%p134) target = $region16
      $region15: #{simple_cnn_forward.7} parent=11 // pred_region
        _
      $region16: #{simple_cnn_forward.7} parent=11 // pred_fallthru
        _
      // Predicated region
      $region17: #{simple_cnn_forward.7} parent=11 // pred_check
        %p137 = pneg %p91
      $region18: #{simple_cnn_forward.7} parent=11 // pred_check_branch
        %139 = sbr.rel (%p137) target = $region20
      $region19: #{simple_cnn_forward.7} parent=11 // pred_region
        _
      $region20: #{simple_cnn_forward.7} parent=11 // pred_fallthru
        _
    $region12: #{simple_cnn_forward.7} parent=5 // pred_fallthru
      _
    %p140 = scmp.lt.s32.totalorder %s9, 2
    // Predicated region
    $region21: #{simple_cnn_forward.7} parent=5 // pred_check
      %p141 = pneg %p140
    $region22: #{simple_cnn_forward.7} parent=5 // pred_check_branch
      %143 = sbr.rel (%p141) target = $region24
    $region23: #{simple_cnn_forward.7} parent=5 // pred_region
      // Predicated region
      $region25: #{simple_cnn_forward.7} parent=23 // pred_check
        %p144 = pneg %p43
      $region26: #{simple_cnn_forward.7} parent=23 // pred_check_branch
        %146 = sbr.rel (%p144) target = $region28
      $region27: #{simple_cnn_forward.7} parent=23 // pred_region
        %p147 = scmp.lt.s32.totalorder %s16, 1
        %s148 = scalar_select %p147, %s16, 1
        %p149 = scmp.lt.s32.totalorder %s17, 0
        %s150 = scalar_select %p149, %s17, 0
        %s151 = smul.addr %s150, 20
        %s152 = smul.addr %s148, 20
        %s153 = sadd.s32 %s151, %s152
        %s154 = smul.addr %s153, 4
        %s155 = scalar_lea.vmem %s0, %s154
      $region28: #{simple_cnn_forward.7} parent=23 // pred_fallthru
        _
    $region24: #{simple_cnn_forward.7} parent=5 // pred_fallthru
      _
    %p156 = scmp.le.s32.totalorder 1, %s9
    %p157 = scmp.lt.s32.totalorder %s9, 3
    %p158 = pnand %p156, %p157
    %p159 = pneg %p158
    // Predicated region
    $region29: #{simple_cnn_forward.7} parent=5 // pred_check
      _
    $region30: #{simple_cnn_forward.7} parent=5 // pred_check_branch
      %161 = sbr.rel (%p158) target = $region32
    $region31: #{simple_cnn_forward.7} parent=5 // pred_region
      %s162 = ssub.s32 %s9, 1
      %p163 = scmp.lt.s32.totalorder %s18, 1
      %s164 = scalar_select %p163, %s18, 1
      %p165 = scmp.lt.s32.totalorder %s19, 0
      %s166 = scalar_select %p165, %s19, 0
      %s167 = smul.addr %s166, 20
      %s168 = smul.addr %s164, 20
      %s169 = sadd.s32 %s167, %s168
      %s170 = smul.addr %s169, 4
      %s171 = scalar_lea.vmem %s0, %s170
      %p172 = pneg %p49
      %p173 = pneg %p46
      %p174 = pneg %p70
      %p175 = pneg %p67
      %p176 = pneg %p91
      %p177 = pneg %p88
      %p178 = pneg %p119
      %p179 = pneg %p116
      %s180 = smul.u32 4, %s19
      %p181 = scmp.lt.s32.totalorder %s18, 1
      %s182 = scalar_select %p181, %s18, 1
      %p183 = scmp.lt.s32.totalorder %s180, 3
      %s184 = scalar_select %p183, %s180, 3
      %s185 = smul.addr %s182, 4
      %s186 = sadd.s32 %s184, %s185
      %s187 = smul.addr %s186, 2
      %s188 = scalar_lea.vmem %s3, %s187
      %p189 = scmp.lt.s32.totalorder %s18, 1
      %s190 = scalar_select %p189, %s18, 1
      %p191 = scmp.lt.s32.totalorder %s19, 0
      %s192 = scalar_select %p191, %s19, 0
      %s193 = smul.addr %s192, 20
      %s194 = smul.addr %s190, 20
      %s195 = sadd.s32 %s193, %s194
      %s196 = smul.addr %s195, 4
      %s197 = scalar_lea.vmem %s0, %s196
      %s198 = smul.u32 4, %s19
      %p199 = scmp.lt.s32.totalorder %s18, 1
      %s200 = scalar_select %p199, %s18, 1
      %p201 = scmp.lt.s32.totalorder %s198, 3
      %s202 = scalar_select %p201, %s198, 3
      %s203 = smul.addr %s200, 4
      %s204 = sadd.s32 %s202, %s203
      %s205 = smul.addr %s204, 2
      %s206 = scalar_lea.vmem %s3, %s205
      %s207 = smul.u32 4, %s19
      %v208 = vld [vmem:[%s197] sm:$0xf]
      %v209 = vld [vmem:[%s197 + $0x8] sm:$0xf]
      %v210 = vld [vmem:[%s197 + $0x10] sm:$0xf]
      %v211 = vld [vmem:[%s197 + $0x18] sm:$0xf]
      %v212 = vld [vmem:[%s197 + $0x20] sm:$0xf]
      %v213 = vld [vmem:[%s197 + $0x28] sm:$0xf]
      %v214 = vld [vmem:[%s197 + $0x30] sm:$0xf]
      %v215 = vld [vmem:[%s197 + $0x38] sm:$0xf]
      %v216 = vld [vmem:[%s1] sm:$0xf]
      %v217 = vld [vmem:[%s1 + $0x4] sm:$0xf]
      %v218 = vld [vmem:[%s1 + $0x8] sm:$0xf]
      %v219 = vld [vmem:[%s1 + $0xc] sm:$0xf]
      %v220 = vld [vmem:[%s1 + $0x10] sm:$0xf]
      %v221 = vld [vmem:[%s1 + $0x14] sm:$0xf]
      %v222 = vld [vmem:[%s1 + $0x18] sm:$0xf]
      %v223 = vld [vmem:[%s1 + $0x1c] sm:$0xf]
      %v224 = vld [vmem:[%s1 + $0x20] sm:$0xf]
      %v225 = vld [vmem:[%s1 + $0x24] sm:$0xf]
      %v226 = vld [vmem:[%s1 + $0x28] sm:$0xf]
      %v227 = vld [vmem:[%s1 + $0x2c] sm:$0xf]
      %v228 = vld [vmem:[%s1 + $0x30] sm:$0xf]
      %v229 = vld [vmem:[%s1 + $0x34] sm:$0xf]
      %v230 = vld [vmem:[%s1 + $0x38] sm:$0xf]
      %v231 = vld [vmem:[%s1 + $0x3c] sm:$0xf]
      %v232 = vld [vmem:[%s197 + $0x4] sm:$0x1]
      %v233 = vld [vmem:[%s197 + $0xc] sm:$0x1]
      %v234 = vld [vmem:[%s197 + $0x14] sm:$0x1]
      %v235 = vld [vmem:[%s197 + $0x1c] sm:$0x1]
      %v236 = vld [vmem:[%s197 + $0x24] sm:$0x1]
      %v237 = vld [vmem:[%s197 + $0x2c] sm:$0x1]
      %v238 = vld [vmem:[%s197 + $0x34] sm:$0x1]
      %v239 = vld [vmem:[%s197 + $0x3c] sm:$0x1]
      %vm240 = vsmask.f32 3328
      %vm241 = vsmask.f32 7440
      %vm242 = vmor %vm240, %vm241
      %v244 = vshrl.u32 %v208, 16
      %v246 = vrot.slane %v244, 4
      %v247 = vshll.u32 %v208, 16
      %v249 = vrot.slane %v247, 5
      %v250 = vor.u32 %v246, %v249
      %v251 = vrot.slane %v250, 4
      %v253 = vshll.u32 %v232, 16
      %v255 = vrot.slane %v253, 5
      %v256 = vsel %vm242, %v251, %v255
      %v258 = vshrl.u32 %v209, 16
      %v260 = vrot.slane %v258, 4
      %v261 = vshll.u32 %v209, 16
      %v263 = vrot.slane %v261, 5
      %v264 = vor.u32 %v260, %v263
      %v265 = vrot.slane %v264, 4
      %v267 = vshll.u32 %v233, 16
      %v269 = vrot.slane %v267, 5
      %v270 = vsel %vm242, %v265, %v269
      %v272 = vshrl.u32 %v210, 16
      %v274 = vrot.slane %v272, 4
      %v275 = vshll.u32 %v210, 16
      %v277 = vrot.slane %v275, 5
      %v278 = vor.u32 %v274, %v277
      %v279 = vrot.slane %v278, 4
      %v281 = vshll.u32 %v234, 16
      %v283 = vrot.slane %v281, 5
      %v284 = vsel %vm242, %v279, %v283
      %v286 = vshrl.u32 %v211, 16
      %v288 = vrot.slane %v286, 4
      %v289 = vshll.u32 %v211, 16
      %v291 = vrot.slane %v289, 5
      %v292 = vor.u32 %v288, %v291
      %v293 = vrot.slane %v292, 4
      %v295 = vshll.u32 %v235, 16
      %v297 = vrot.slane %v295, 5
      %v298 = vsel %vm242, %v293, %v297
      %v300 = vshrl.u32 %v212, 16
      %v302 = vrot.slane %v300, 4
      %v303 = vshll.u32 %v212, 16
      %v305 = vrot.slane %v303, 5
      %v306 = vor.u32 %v302, %v305
      %v307 = vrot.slane %v306, 4
      %v309 = vshll.u32 %v236, 16
      %v311 = vrot.slane %v309, 5
      %v312 = vsel %vm242, %v307, %v311
      %v314 = vshrl.u32 %v213, 16
      %v316 = vrot.slane %v314, 4
      %v317 = vshll.u32 %v213, 16
      %v319 = vrot.slane %v317, 5
      %v320 = vor.u32 %v316, %v319
      %v321 = vrot.slane %v320, 4
      %v323 = vshll.u32 %v237, 16
      %v325 = vrot.slane %v323, 5
      %v326 = vsel %vm242, %v321, %v325
      %v328 = vshrl.u32 %v214, 16
      %v330 = vrot.slane %v328, 4
      %v331 = vshll.u32 %v214, 16
      %v333 = vrot.slane %v331, 5
      %v334 = vor.u32 %v330, %v333
      %v335 = vrot.slane %v334, 4
      %v337 = vshll.u32 %v238, 16
      %v339 = vrot.slane %v337, 5
      %v340 = vsel %vm242, %v335, %v339
      %v342 = vshrl.u32 %v215, 16
      %v344 = vrot.slane %v342, 4
      %v345 = vshll.u32 %v215, 16
      %v347 = vrot.slane %v345, 5
      %v348 = vor.u32 %v344, %v347
      %v349 = vrot.slane %v348, 4
      %v351 = vshll.u32 %v239, 16
      %v353 = vrot.slane %v351, 5
      %v354 = vsel %vm242, %v349, %v353
      %s355 = scalar_lea.vmem %s1, 64
      %v356 = vld [vmem:[%s355] sm:$0xf]
      %v357 = vld [vmem:[%s355 + $0x4] sm:$0xf]
      %v358 = vld [vmem:[%s355 + $0x8] sm:$0xf]
      %v359 = vld [vmem:[%s355 + $0xc] sm:$0xf]
      %v360 = vld [vmem:[%s355 + $0x10] sm:$0xf]
      %v361 = vld [vmem:[%s355 + $0x14] sm:$0xf]
      %v362 = vld [vmem:[%s355 + $0x18] sm:$0xf]
      %v363 = vld [vmem:[%s355 + $0x1c] sm:$0xf]
      %v364 = vld [vmem:[%s355 + $0x20] sm:$0xf]
      %v365 = vld [vmem:[%s355 + $0x24] sm:$0xf]
      %v366 = vld [vmem:[%s355 + $0x28] sm:$0xf]
      %v367 = vld [vmem:[%s355 + $0x2c] sm:$0xf]
      %v368 = vld [vmem:[%s355 + $0x30] sm:$0xf]
      %v369 = vld [vmem:[%s355 + $0x34] sm:$0xf]
      %v370 = vld [vmem:[%s355 + $0x38] sm:$0xf]
      %v371 = vld [vmem:[%s355 + $0x3c] sm:$0xf]
      %v372 = vunpack.c.l.b16 %v256
      %v373 = vunpack.c.l.b16 %v270
      %v374 = vunpack.c.l.b16 %v284
      %v375 = vunpack.c.l.b16 %v298
      %v376 = vunpack.c.l.b16 %v312
      %v377 = vunpack.c.l.b16 %v326
      %v378 = vunpack.c.l.b16 %v340
      %v379 = vunpack.c.l.b16 %v354
      %v380 = vpack.c.b16 %v373, %v372
      %v381 = vpack.c.b16 %v375, %v374
      %v382 = vpack.c.b16 %v377, %v376
      %v383 = vpack.c.b16 %v379, %v378
      %v404 = vunpack.c.l.b16 %v356
      %v405 = vunpack.c.l.b16 %v357
      %v406 = vunpack.c.l.b16 %v358
      %v407 = vunpack.c.l.b16 %v359
      %v408 = vunpack.c.l.b16 %v360
      %v409 = vunpack.c.l.b16 %v361
      %v410 = vunpack.c.l.b16 %v362
      %v411 = vunpack.c.l.b16 %v363
      %v412 = vunpack.c.l.b16 %v364
      %v413 = vunpack.c.l.b16 %v365
      %v414 = vunpack.c.l.b16 %v366
      %v415 = vunpack.c.l.b16 %v367
      %v416 = vunpack.c.l.b16 %v368
      %v417 = vunpack.c.l.b16 %v369
      %v418 = vunpack.c.l.b16 %v370
      %v419 = vunpack.c.l.b16 %v371
      %v420 = vpack.c.b16 %v405, %v404
      %v421 = vpack.c.b16 %v407, %v406
      %v422 = vpack.c.b16 %v409, %v408
      %v423 = vpack.c.b16 %v411, %v410
      %v424 = vpack.c.b16 %v413, %v412
      %v425 = vpack.c.b16 %v415, %v414
      %v426 = vpack.c.b16 %v417, %v416
      %v427 = vpack.c.b16 %v419, %v418
      %436 = vmatpush.bf16.msra.mxu0 %v427
      %437 = vmatpush.bf16.msra.mxu0 %v426
      %438 = vmatpush.bf16.msra.mxu0 %v425
      %439 = vmatpush.bf16.msra.mxu0 %v424
      %440 = vmatpush.bf16.msra.mxu0 %v423
      %441 = vmatpush.bf16.msra.mxu0 %v422
      %442 = vmatpush.bf16.msra.mxu0 %v421
      %443 = vmatpush.bf16.msra.mxu0 %v420
      %444 = vmatmul.bf16.gmra.mxu0 %v380
      %v445 = vpop.f32.mrf.mxu0
      %v446 = vadd.f32 0.0, %v445
      %v447 = vpop.f32.mrf.mxu0
      %v448 = vadd.f32 0.0, %v447
      %449 = vmatmul.bf16.gmra.mxu0 %v381
      %v450 = vpop.f32.mrf.mxu0
      %v451 = vadd.f32 0.0, %v450
      %v452 = vpop.f32.mrf.mxu0
      %v453 = vadd.f32 0.0, %v452
      %454 = vmatmul.bf16.gmra.mxu0 %v382
      %v455 = vpop.f32.mrf.mxu0
      %v456 = vadd.f32 0.0, %v455
      %v457 = vpop.f32.mrf.mxu0
      %v458 = vadd.f32 0.0, %v457
      %459 = vmatmul.bf16.gmra.mxu0 %v383
      %v460 = vpop.f32.mrf.mxu0
      %v461 = vadd.f32 0.0, %v460
      %v462 = vpop.f32.mrf.mxu0
      %v463 = vadd.f32 0.0, %v462
      %464 = vdwg.mxu0
      %v473 = vunpack.c.l.b16 %v208
      %v474 = vunpack.c.l.b16 %v209
      %v475 = vunpack.c.l.b16 %v210
      %v476 = vunpack.c.l.b16 %v211
      %v477 = vunpack.c.l.b16 %v212
      %v478 = vunpack.c.l.b16 %v213
      %v479 = vunpack.c.l.b16 %v214
      %v480 = vunpack.c.l.b16 %v215
      %v481 = vpack.c.b16 %v474, %v473
      %v482 = vpack.c.b16 %v476, %v475
      %v483 = vpack.c.b16 %v478, %v477
      %v484 = vpack.c.b16 %v480, %v479
      %v505 = vunpack.c.l.b16 %v216
      %v506 = vunpack.c.l.b16 %v217
      %v507 = vunpack.c.l.b16 %v218
      %v508 = vunpack.c.l.b16 %v219
      %v509 = vunpack.c.l.b16 %v220
      %v510 = vunpack.c.l.b16 %v221
      %v511 = vunpack.c.l.b16 %v222
      %v512 = vunpack.c.l.b16 %v223
      %v513 = vunpack.c.l.b16 %v224
      %v514 = vunpack.c.l.b16 %v225
      %v515 = vunpack.c.l.b16 %v226
      %v516 = vunpack.c.l.b16 %v227
      %v517 = vunpack.c.l.b16 %v228
      %v518 = vunpack.c.l.b16 %v229
      %v519 = vunpack.c.l.b16 %v230
      %v520 = vunpack.c.l.b16 %v231
      %v521 = vpack.c.b16 %v506, %v505
      %v522 = vpack.c.b16 %v508, %v507
      %v523 = vpack.c.b16 %v510, %v509
      %v524 = vpack.c.b16 %v512, %v511
      %v525 = vpack.c.b16 %v514, %v513
      %v526 = vpack.c.b16 %v516, %v515
      %v527 = vpack.c.b16 %v518, %v517
      %v528 = vpack.c.b16 %v520, %v519
      %537 = vmatpush.bf16.msra.mxu0 %v528
      %538 = vmatpush.bf16.msra.mxu0 %v527
      %539 = vmatpush.bf16.msra.mxu0 %v526
      %540 = vmatpush.bf16.msra.mxu0 %v525
      %541 = vmatpush.bf16.msra.mxu0 %v524
      %542 = vmatpush.bf16.msra.mxu0 %v523
      %543 = vmatpush.bf16.msra.mxu0 %v522
      %544 = vmatpush.bf16.msra.mxu0 %v521
      %545 = vmatmul.bf16.gmra.mxu0 %v481
      %v546 = vpop.f32.mrf.mxu0
      %v547 = vadd.f32 %v446, %v546
      %v548 = vpop.f32.mrf.mxu0
      %v549 = vadd.f32 %v448, %v548
      %550 = vmatmul.bf16.gmra.mxu0 %v482
      %v551 = vpop.f32.mrf.mxu0
      %v552 = vadd.f32 %v451, %v551
      %v553 = vpop.f32.mrf.mxu0
      %v554 = vadd.f32 %v453, %v553
      %555 = vmatmul.bf16.gmra.mxu0 %v483
      %v556 = vpop.f32.mrf.mxu0
      %v557 = vadd.f32 %v456, %v556
      %v558 = vpop.f32.mrf.mxu0
      %v559 = vadd.f32 %v458, %v558
      %560 = vmatmul.bf16.gmra.mxu0 %v484
      %v561 = vpop.f32.mrf.mxu0
      %v562 = vadd.f32 %v461, %v561
      %v563 = vpop.f32.mrf.mxu0
      %v564 = vadd.f32 %v463, %v563
      %565 = vdwg.mxu0
      %v566 = vld [vmem:[%s197] sm:$0xe]
      %v567 = vld [vmem:[%s197 + $0x8] sm:$0xe]
      %v568 = vld [vmem:[%s197 + $0x10] sm:$0xe]
      %v569 = vld [vmem:[%s197 + $0x18] sm:$0xe]
      %v570 = vld [vmem:[%s197 + $0x20] sm:$0xe]
      %v571 = vld [vmem:[%s197 + $0x28] sm:$0xe]
      %v572 = vld [vmem:[%s197 + $0x30] sm:$0xe]
      %v573 = vld [vmem:[%s197 + $0x38] sm:$0xe]
      %vm590 = vcmask 1042432
      %vm591 = vcmask 1046532
      %vm592 = vmor %vm590, %vm591
      %v593 = vrot.slane %v566, 5
      %v594 = vrot.slane %v593, 4
      %v595 = vrot.slane %v232, 5
      %v596 = vsel %vm592, %v594, %v595
      %v597 = vrot.slane %v567, 5
      %v598 = vrot.slane %v597, 4
      %v599 = vrot.slane %v233, 5
      %v600 = vsel %vm592, %v598, %v599
      %v601 = vrot.slane %v568, 5
      %v602 = vrot.slane %v601, 4
      %v603 = vrot.slane %v234, 5
      %v604 = vsel %vm592, %v602, %v603
      %v605 = vrot.slane %v569, 5
      %v606 = vrot.slane %v605, 4
      %v607 = vrot.slane %v235, 5
      %v608 = vsel %vm592, %v606, %v607
      %v609 = vrot.slane %v570, 5
      %v610 = vrot.slane %v609, 4
      %v611 = vrot.slane %v236, 5
      %v612 = vsel %vm592, %v610, %v611
      %v613 = vrot.slane %v571, 5
      %v614 = vrot.slane %v613, 4
      %v615 = vrot.slane %v237, 5
      %v616 = vsel %vm592, %v614, %v615
      %v617 = vrot.slane %v572, 5
      %v618 = vrot.slane %v617, 4
      %v619 = vrot.slane %v238, 5
      %v620 = vsel %vm592, %v618, %v619
      %v621 = vrot.slane %v573, 5
      %v622 = vrot.slane %v621, 4
      %v623 = vrot.slane %v239, 5
      %v624 = vsel %vm592, %v622, %v623
      %s625 = scalar_lea.vmem %s1, 128
      %v626 = vld [vmem:[%s625] sm:$0xf]
      %v627 = vld [vmem:[%s625 + $0x4] sm:$0xf]
      %v628 = vld [vmem:[%s625 + $0x8] sm:$0xf]
      %v629 = vld [vmem:[%s625 + $0xc] sm:$0xf]
      %v630 = vld [vmem:[%s625 + $0x10] sm:$0xf]
      %v631 = vld [vmem:[%s625 + $0x14] sm:$0xf]
      %v632 = vld [vmem:[%s625 + $0x18] sm:$0xf]
      %v633 = vld [vmem:[%s625 + $0x1c] sm:$0xf]
      %v634 = vld [vmem:[%s625 + $0x20] sm:$0xf]
      %v635 = vld [vmem:[%s625 + $0x24] sm:$0xf]
      %v636 = vld [vmem:[%s625 + $0x28] sm:$0xf]
      %v637 = vld [vmem:[%s625 + $0x2c] sm:$0xf]
      %v638 = vld [vmem:[%s625 + $0x30] sm:$0xf]
      %v639 = vld [vmem:[%s625 + $0x34] sm:$0xf]
      %v640 = vld [vmem:[%s625 + $0x38] sm:$0xf]
      %v641 = vld [vmem:[%s625 + $0x3c] sm:$0xf]
      %v642 = vunpack.c.l.b16 %v596
      %v643 = vunpack.c.l.b16 %v600
      %v644 = vunpack.c.l.b16 %v604
      %v645 = vunpack.c.l.b16 %v608
      %v646 = vunpack.c.l.b16 %v612
      %v647 = vunpack.c.l.b16 %v616
      %v648 = vunpack.c.l.b16 %v620
      %v649 = vunpack.c.l.b16 %v624
      %v650 = vpack.c.b16 %v643, %v642
      %v651 = vpack.c.b16 %v645, %v644
      %v652 = vpack.c.b16 %v647, %v646
      %v653 = vpack.c.b16 %v649, %v648
      %v674 = vunpack.c.l.b16 %v626
      %v675 = vunpack.c.l.b16 %v627
      %v676 = vunpack.c.l.b16 %v628
      %v677 = vunpack.c.l.b16 %v629
      %v678 = vunpack.c.l.b16 %v630
      %v679 = vunpack.c.l.b16 %v631
      %v680 = vunpack.c.l.b16 %v632
      %v681 = vunpack.c.l.b16 %v633
      %v682 = vunpack.c.l.b16 %v634
      %v683 = vunpack.c.l.b16 %v635
      %v684 = vunpack.c.l.b16 %v636
      %v685 = vunpack.c.l.b16 %v637
      %v686 = vunpack.c.l.b16 %v638
      %v687 = vunpack.c.l.b16 %v639
      %v688 = vunpack.c.l.b16 %v640
      %v689 = vunpack.c.l.b16 %v641
      %v690 = vpack.c.b16 %v675, %v674
      %v691 = vpack.c.b16 %v677, %v676
      %v692 = vpack.c.b16 %v679, %v678
      %v693 = vpack.c.b16 %v681, %v680
      %v694 = vpack.c.b16 %v683, %v682
      %v695 = vpack.c.b16 %v685, %v684
      %v696 = vpack.c.b16 %v687, %v686
      %v697 = vpack.c.b16 %v689, %v688
      %706 = vmatpush.bf16.msra.mxu0 %v697
      %707 = vmatpush.bf16.msra.mxu0 %v696
      %708 = vmatpush.bf16.msra.mxu0 %v695
      %709 = vmatpush.bf16.msra.mxu0 %v694
      %710 = vmatpush.bf16.msra.mxu0 %v693
      %711 = vmatpush.bf16.msra.mxu0 %v692
      %712 = vmatpush.bf16.msra.mxu0 %v691
      %713 = vmatpush.bf16.msra.mxu0 %v690
      %714 = vmatmul.bf16.gmra.mxu0 %v650
      %v715 = vpop.f32.mrf.mxu0
      %v716 = vadd.f32 0.0, %v715
      %v717 = vpop.f32.mrf.mxu0
      %v718 = vadd.f32 0.0, %v717
      %719 = vmatmul.bf16.gmra.mxu0 %v651
      %v720 = vpop.f32.mrf.mxu0
      %v721 = vadd.f32 0.0, %v720
      %v722 = vpop.f32.mrf.mxu0
      %v723 = vadd.f32 0.0, %v722
      %724 = vmatmul.bf16.gmra.mxu0 %v652
      %v725 = vpop.f32.mrf.mxu0
      %v726 = vadd.f32 0.0, %v725
      %v727 = vpop.f32.mrf.mxu0
      %v728 = vadd.f32 0.0, %v727
      %729 = vmatmul.bf16.gmra.mxu0 %v653
      %v730 = vpop.f32.mrf.mxu0
      %v731 = vadd.f32 0.0, %v730
      %v732 = vpop.f32.mrf.mxu0
      %v733 = vadd.f32 0.0, %v732
      %734 = vdwg.mxu0
      %v735 = vadd.f32 %v547, %v716
      %v736 = vadd.f32 %v549, %v718
      %v737 = vadd.f32 %v552, %v721
      %v738 = vadd.f32 %v554, %v723
      %v739 = vadd.f32 %v557, %v726
      %v740 = vadd.f32 %v559, %v728
      %v741 = vadd.f32 %v562, %v731
      %v742 = vadd.f32 %v564, %v733
      %s743 = scalar_lea.vmem %s197, 8
      %v744 = vld [vmem:[%s743] sm:$0xf]
      %v745 = vld [vmem:[%s743 + $0x8] sm:$0xf]
      %v746 = vld [vmem:[%s743 + $0x10] sm:$0xf]
      %v747 = vld [vmem:[%s743 + $0x18] sm:$0xf]
      %v748 = vld [vmem:[%s743 + $0x20] sm:$0xf]
      %v749 = vld [vmem:[%s743 + $0x28] sm:$0xf]
      %v750 = vld [vmem:[%s743 + $0x30] sm:$0xf]
      %v751 = vld [vmem:[%s743 + $0x38] sm:$0xf]
      %s752 = scalar_lea.vmem %s1, 192
      %v753 = vld [vmem:[%s752] sm:$0xf]
      %v754 = vld [vmem:[%s752 + $0x4] sm:$0xf]
      %v755 = vld [vmem:[%s752 + $0x8] sm:$0xf]
      %v756 = vld [vmem:[%s752 + $0xc] sm:$0xf]
      %v757 = vld [vmem:[%s752 + $0x10] sm:$0xf]
      %v758 = vld [vmem:[%s752 + $0x14] sm:$0xf]
      %v759 = vld [vmem:[%s752 + $0x18] sm:$0xf]
      %v760 = vld [vmem:[%s752 + $0x1c] sm:$0xf]
      %v761 = vld [vmem:[%s752 + $0x20] sm:$0xf]
      %v762 = vld [vmem:[%s752 + $0x24] sm:$0xf]
      %v763 = vld [vmem:[%s752 + $0x28] sm:$0xf]
      %v764 = vld [vmem:[%s752 + $0x2c] sm:$0xf]
      %v765 = vld [vmem:[%s752 + $0x30] sm:$0xf]
      %v766 = vld [vmem:[%s752 + $0x34] sm:$0xf]
      %v767 = vld [vmem:[%s752 + $0x38] sm:$0xf]
      %v768 = vld [vmem:[%s752 + $0x3c] sm:$0xf]
      %v777 = vunpack.c.l.b16 %v744
      %v778 = vunpack.c.l.b16 %v745
      %v779 = vunpack.c.l.b16 %v746
      %v780 = vunpack.c.l.b16 %v747
      %v781 = vunpack.c.l.b16 %v748
      %v782 = vunpack.c.l.b16 %v749
      %v783 = vunpack.c.l.b16 %v750
      %v784 = vunpack.c.l.b16 %v751
      %v785 = vpack.c.b16 %v778, %v777
      %v786 = vpack.c.b16 %v780, %v779
      %v787 = vpack.c.b16 %v782, %v781
      %v788 = vpack.c.b16 %v784, %v783
      %v809 = vunpack.c.l.b16 %v753
      %v810 = vunpack.c.l.b16 %v754
      %v811 = vunpack.c.l.b16 %v755
      %v812 = vunpack.c.l.b16 %v756
      %v813 = vunpack.c.l.b16 %v757
      %v814 = vunpack.c.l.b16 %v758
      %v815 = vunpack.c.l.b16 %v759
      %v816 = vunpack.c.l.b16 %v760
      %v817 = vunpack.c.l.b16 %v761
      %v818 = vunpack.c.l.b16 %v762
      %v819 = vunpack.c.l.b16 %v763
      %v820 = vunpack.c.l.b16 %v764
      %v821 = vunpack.c.l.b16 %v765
      %v822 = vunpack.c.l.b16 %v766
      %v823 = vunpack.c.l.b16 %v767
      %v824 = vunpack.c.l.b16 %v768
      %v825 = vpack.c.b16 %v810, %v809
      %v826 = vpack.c.b16 %v812, %v811
      %v827 = vpack.c.b16 %v814, %v813
      %v828 = vpack.c.b16 %v816, %v815
      %v829 = vpack.c.b16 %v818, %v817
      %v830 = vpack.c.b16 %v820, %v819
      %v831 = vpack.c.b16 %v822, %v821
      %v832 = vpack.c.b16 %v824, %v823
      %841 = vmatpush.bf16.msra.mxu0 %v832
      %842 = vmatpush.bf16.msra.mxu0 %v831
      %843 = vmatpush.bf16.msra.mxu0 %v830
      %844 = vmatpush.bf16.msra.mxu0 %v829
      %845 = vmatpush.bf16.msra.mxu0 %v828
      %846 = vmatpush.bf16.msra.mxu0 %v827
      %847 = vmatpush.bf16.msra.mxu0 %v826
      %848 = vmatpush.bf16.msra.mxu0 %v825
      %849 = vmatmul.bf16.gmra.mxu0 %v785
      %v850 = vpop.f32.mrf.mxu0
      %v851 = vadd.f32 0.0, %v850
      %v852 = vpop.f32.mrf.mxu0
      %v853 = vadd.f32 0.0, %v852
      %854 = vmatmul.bf16.gmra.mxu0 %v786
      %v855 = vpop.f32.mrf.mxu0
      %v856 = vadd.f32 0.0, %v855
      %v857 = vpop.f32.mrf.mxu0
      %v858 = vadd.f32 0.0, %v857
      %859 = vmatmul.bf16.gmra.mxu0 %v787
      %v860 = vpop.f32.mrf.mxu0
      %v861 = vadd.f32 0.0, %v860
      %v862 = vpop.f32.mrf.mxu0
      %v863 = vadd.f32 0.0, %v862
      %864 = vmatmul.bf16.gmra.mxu0 %v788
      %v865 = vpop.f32.mrf.mxu0
      %v866 = vadd.f32 0.0, %v865
      %v867 = vpop.f32.mrf.mxu0
      %v868 = vadd.f32 0.0, %v867
      %869 = vdwg.mxu0
      %v870 = vadd.f32 %v735, %v851
      %v871 = vadd.f32 %v736, %v853
      %v872 = vadd.f32 %v737, %v856
      %v873 = vadd.f32 %v738, %v858
      %v874 = vadd.f32 %v739, %v861
      %v875 = vadd.f32 %v740, %v863
      %v876 = vadd.f32 %v741, %v866
      %v877 = vadd.f32 %v742, %v868
      %v878 = vld [vmem:[%s743] sm:$0xf]
      %v879 = vld [vmem:[%s743 + $0x4] sm:$0x1]
      %v880 = vld [vmem:[%s743 + $0x8] sm:$0xf]
      %v881 = vld [vmem:[%s743 + $0xc] sm:$0x1]
      %v882 = vld [vmem:[%s743 + $0x10] sm:$0xf]
      %v883 = vld [vmem:[%s743 + $0x14] sm:$0x1]
      %v884 = vld [vmem:[%s743 + $0x18] sm:$0xf]
      %v885 = vld [vmem:[%s743 + $0x1c] sm:$0x1]
      %v886 = vld [vmem:[%s743 + $0x20] sm:$0xf]
      %v887 = vld [vmem:[%s743 + $0x24] sm:$0x1]
      %v888 = vld [vmem:[%s743 + $0x28] sm:$0xf]
      %v889 = vld [vmem:[%s743 + $0x2c] sm:$0x1]
      %v890 = vld [vmem:[%s743 + $0x30] sm:$0xf]
      %v891 = vld [vmem:[%s743 + $0x34] sm:$0x1]
      %v892 = vld [vmem:[%s743 + $0x38] sm:$0xf]
      %v893 = vld [vmem:[%s743 + $0x3c] sm:$0x1]
      %v895 = vshrl.u32 %v878, 16
      %v897 = vrot.slane %v895, 4
      %v898 = vshll.u32 %v878, 16
      %v900 = vrot.slane %v898, 5
      %v901 = vor.u32 %v897, %v900
      %v902 = vrot.slane %v901, 4
      %v904 = vshll.u32 %v879, 16
      %v906 = vrot.slane %v904, 5
      %v907 = vsel %vm242, %v902, %v906
      %v909 = vshrl.u32 %v880, 16
      %v911 = vrot.slane %v909, 4
      %v912 = vshll.u32 %v880, 16
      %v914 = vrot.slane %v912, 5
      %v915 = vor.u32 %v911, %v914
      %v916 = vrot.slane %v915, 4
      %v918 = vshll.u32 %v881, 16
      %v920 = vrot.slane %v918, 5
      %v921 = vsel %vm242, %v916, %v920
      %v923 = vshrl.u32 %v882, 16
      %v925 = vrot.slane %v923, 4
      %v926 = vshll.u32 %v882, 16
      %v928 = vrot.slane %v926, 5
      %v929 = vor.u32 %v925, %v928
      %v930 = vrot.slane %v929, 4
      %v932 = vshll.u32 %v883, 16
      %v934 = vrot.slane %v932, 5
      %v935 = vsel %vm242, %v930, %v934
      %v937 = vshrl.u32 %v884, 16
      %v939 = vrot.slane %v937, 4
      %v940 = vshll.u32 %v884, 16
      %v942 = vrot.slane %v940, 5
      %v943 = vor.u32 %v939, %v942
      %v944 = vrot.slane %v943, 4
      %v946 = vshll.u32 %v885, 16
      %v948 = vrot.slane %v946, 5
      %v949 = vsel %vm242, %v944, %v948
      %v951 = vshrl.u32 %v886, 16
      %v953 = vrot.slane %v951, 4
      %v954 = vshll.u32 %v886, 16
      %v956 = vrot.slane %v954, 5
      %v957 = vor.u32 %v953, %v956
      %v958 = vrot.slane %v957, 4
      %v960 = vshll.u32 %v887, 16
      %v962 = vrot.slane %v960, 5
      %v963 = vsel %vm242, %v958, %v962
      %v965 = vshrl.u32 %v888, 16
      %v967 = vrot.slane %v965, 4
      %v968 = vshll.u32 %v888, 16
      %v970 = vrot.slane %v968, 5
      %v971 = vor.u32 %v967, %v970
      %v972 = vrot.slane %v971, 4
      %v974 = vshll.u32 %v889, 16
      %v976 = vrot.slane %v974, 5
      %v977 = vsel %vm242, %v972, %v976
      %v979 = vshrl.u32 %v890, 16
      %v981 = vrot.slane %v979, 4
      %v982 = vshll.u32 %v890, 16
      %v984 = vrot.slane %v982, 5
      %v985 = vor.u32 %v981, %v984
      %v986 = vrot.slane %v985, 4
      %v988 = vshll.u32 %v891, 16
      %v990 = vrot.slane %v988, 5
      %v991 = vsel %vm242, %v986, %v990
      %v993 = vshrl.u32 %v892, 16
      %v995 = vrot.slane %v993, 4
      %v996 = vshll.u32 %v892, 16
      %v998 = vrot.slane %v996, 5
      %v999 = vor.u32 %v995, %v998
      %v1000 = vrot.slane %v999, 4
      %v1002 = vshll.u32 %v893, 16
      %v1004 = vrot.slane %v1002, 5
      %v1005 = vsel %vm242, %v1000, %v1004
      %s1006 = scalar_lea.vmem %s1, 256
      %v1007 = vld [vmem:[%s1006] sm:$0xf]
      %v1008 = vld [vmem:[%s1006 + $0x4] sm:$0xf]
      %v1009 = vld [vmem:[%s1006 + $0x8] sm:$0xf]
      %v1010 = vld [vmem:[%s1006 + $0xc] sm:$0xf]
      %v1011 = vld [vmem:[%s1006 + $0x10] sm:$0xf]
      %v1012 = vld [vmem:[%s1006 + $0x14] sm:$0xf]
      %v1013 = vld [vmem:[%s1006 + $0x18] sm:$0xf]
      %v1014 = vld [vmem:[%s1006 + $0x1c] sm:$0xf]
      %v1015 = vld [vmem:[%s1006 + $0x20] sm:$0xf]
      %v1016 = vld [vmem:[%s1006 + $0x24] sm:$0xf]
      %v1017 = vld [vmem:[%s1006 + $0x28] sm:$0xf]
      %v1018 = vld [vmem:[%s1006 + $0x2c] sm:$0xf]
      %v1019 = vld [vmem:[%s1006 + $0x30] sm:$0xf]
      %v1020 = vld [vmem:[%s1006 + $0x34] sm:$0xf]
      %v1021 = vld [vmem:[%s1006 + $0x38] sm:$0xf]
      %v1022 = vld [vmem:[%s1006 + $0x3c] sm:$0xf]
      %v1023 = vunpack.c.l.b16 %v907
      %v1024 = vunpack.c.l.b16 %v921
      %v1025 = vunpack.c.l.b16 %v935
      %v1026 = vunpack.c.l.b16 %v949
      %v1027 = vunpack.c.l.b16 %v963
      %v1028 = vunpack.c.l.b16 %v977
      %v1029 = vunpack.c.l.b16 %v991
      %v1030 = vunpack.c.l.b16 %v1005
      %v1031 = vpack.c.b16 %v1024, %v1023
      %v1032 = vpack.c.b16 %v1026, %v1025
      %v1033 = vpack.c.b16 %v1028, %v1027
      %v1034 = vpack.c.b16 %v1030, %v1029
      %v1055 = vunpack.c.l.b16 %v1007
      %v1056 = vunpack.c.l.b16 %v1008
      %v1057 = vunpack.c.l.b16 %v1009
      %v1058 = vunpack.c.l.b16 %v1010
      %v1059 = vunpack.c.l.b16 %v1011
      %v1060 = vunpack.c.l.b16 %v1012
      %v1061 = vunpack.c.l.b16 %v1013
      %v1062 = vunpack.c.l.b16 %v1014
      %v1063 = vunpack.c.l.b16 %v1015
      %v1064 = vunpack.c.l.b16 %v1016
      %v1065 = vunpack.c.l.b16 %v1017
      %v1066 = vunpack.c.l.b16 %v1018
      %v1067 = vunpack.c.l.b16 %v1019
      %v1068 = vunpack.c.l.b16 %v1020
      %v1069 = vunpack.c.l.b16 %v1021
      %v1070 = vunpack.c.l.b16 %v1022
      %v1071 = vpack.c.b16 %v1056, %v1055
      %v1072 = vpack.c.b16 %v1058, %v1057
      %v1073 = vpack.c.b16 %v1060, %v1059
      %v1074 = vpack.c.b16 %v1062, %v1061
      %v1075 = vpack.c.b16 %v1064, %v1063
      %v1076 = vpack.c.b16 %v1066, %v1065
      %v1077 = vpack.c.b16 %v1068, %v1067
      %v1078 = vpack.c.b16 %v1070, %v1069
      %1087 = vmatpush.bf16.msra.mxu0 %v1078
      %1088 = vmatpush.bf16.msra.mxu0 %v1077
      %1089 = vmatpush.bf16.msra.mxu0 %v1076
      %1090 = vmatpush.bf16.msra.mxu0 %v1075
      %1091 = vmatpush.bf16.msra.mxu0 %v1074
      %1092 = vmatpush.bf16.msra.mxu0 %v1073
      %1093 = vmatpush.bf16.msra.mxu0 %v1072
      %1094 = vmatpush.bf16.msra.mxu0 %v1071
      %1095 = vmatmul.bf16.gmra.mxu0 %v1031
      %v1096 = vpop.f32.mrf.mxu0
      %v1097 = vadd.f32 0.0, %v1096
      %v1098 = vpop.f32.mrf.mxu0
      %v1099 = vadd.f32 0.0, %v1098
      %1100 = vmatmul.bf16.gmra.mxu0 %v1032
      %v1101 = vpop.f32.mrf.mxu0
      %v1102 = vadd.f32 0.0, %v1101
      %v1103 = vpop.f32.mrf.mxu0
      %v1104 = vadd.f32 0.0, %v1103
      %1105 = vmatmul.bf16.gmra.mxu0 %v1033
      %v1106 = vpop.f32.mrf.mxu0
      %v1107 = vadd.f32 0.0, %v1106
      %v1108 = vpop.f32.mrf.mxu0
      %v1109 = vadd.f32 0.0, %v1108
      %1110 = vmatmul.bf16.gmra.mxu0 %v1034
      %v1111 = vpop.f32.mrf.mxu0
      %v1112 = vadd.f32 0.0, %v1111
      %v1113 = vpop.f32.mrf.mxu0
      %v1114 = vadd.f32 0.0, %v1113
      %1115 = vdwg.mxu0
      %v1116 = vadd.f32 %v870, %v1097
      %v1117 = vadd.f32 %v871, %v1099
      %v1118 = vadd.f32 %v872, %v1102
      %v1119 = vadd.f32 %v873, %v1104
      %v1120 = vadd.f32 %v874, %v1107
      %v1121 = vadd.f32 %v875, %v1109
      %v1122 = vadd.f32 %v876, %v1112
      %v1123 = vadd.f32 %v877, %v1114
      %v1124 = vld [vmem:[%s743] sm:$0xe]
      %v1125 = vld [vmem:[%s743 + $0x8] sm:$0xe]
      %v1126 = vld [vmem:[%s743 + $0x10] sm:$0xe]
      %v1127 = vld [vmem:[%s743 + $0x18] sm:$0xe]
      %v1128 = vld [vmem:[%s743 + $0x20] sm:$0xe]
      %v1129 = vld [vmem:[%s743 + $0x28] sm:$0xe]
      %v1130 = vld [vmem:[%s743 + $0x30] sm:$0xe]
      %v1131 = vld [vmem:[%s743 + $0x38] sm:$0xe]
      %v1148 = vrot.slane %v1124, 5
      %v1149 = vrot.slane %v1148, 4
      %v1150 = vrot.slane %v879, 5
      %v1151 = vsel %vm592, %v1149, %v1150
      %v1152 = vrot.slane %v1125, 5
      %v1153 = vrot.slane %v1152, 4
      %v1154 = vrot.slane %v881, 5
      %v1155 = vsel %vm592, %v1153, %v1154
      %v1156 = vrot.slane %v1126, 5
      %v1157 = vrot.slane %v1156, 4
      %v1158 = vrot.slane %v883, 5
      %v1159 = vsel %vm592, %v1157, %v1158
      %v1160 = vrot.slane %v1127, 5
      %v1161 = vrot.slane %v1160, 4
      %v1162 = vrot.slane %v885, 5
      %v1163 = vsel %vm592, %v1161, %v1162
      %v1164 = vrot.slane %v1128, 5
      %v1165 = vrot.slane %v1164, 4
      %v1166 = vrot.slane %v887, 5
      %v1167 = vsel %vm592, %v1165, %v1166
      %v1168 = vrot.slane %v1129, 5
      %v1169 = vrot.slane %v1168, 4
      %v1170 = vrot.slane %v889, 5
      %v1171 = vsel %vm592, %v1169, %v1170
      %v1172 = vrot.slane %v1130, 5
      %v1173 = vrot.slane %v1172, 4
      %v1174 = vrot.slane %v891, 5
      %v1175 = vsel %vm592, %v1173, %v1174
      %v1176 = vrot.slane %v1131, 5
      %v1177 = vrot.slane %v1176, 4
      %v1178 = vrot.slane %v893, 5
      %v1179 = vsel %vm592, %v1177, %v1178
      %s1180 = scalar_lea.vmem %s1, 320
      %v1181 = vld [vmem:[%s1180] sm:$0xf]
      %v1182 = vld [vmem:[%s1180 + $0x4] sm:$0xf]
      %v1183 = vld [vmem:[%s1180 + $0x8] sm:$0xf]
      %v1184 = vld [vmem:[%s1180 + $0xc] sm:$0xf]
      %v1185 = vld [vmem:[%s1180 + $0x10] sm:$0xf]
      %v1186 = vld [vmem:[%s1180 + $0x14] sm:$0xf]
      %v1187 = vld [vmem:[%s1180 + $0x18] sm:$0xf]
      %v1188 = vld [vmem:[%s1180 + $0x1c] sm:$0xf]
      %v1189 = vld [vmem:[%s1180 + $0x20] sm:$0xf]
      %v1190 = vld [vmem:[%s1180 + $0x24] sm:$0xf]
      %v1191 = vld [vmem:[%s1180 + $0x28] sm:$0xf]
      %v1192 = vld [vmem:[%s1180 + $0x2c] sm:$0xf]
      %v1193 = vld [vmem:[%s1180 + $0x30] sm:$0xf]
      %v1194 = vld [vmem:[%s1180 + $0x34] sm:$0xf]
      %v1195 = vld [vmem:[%s1180 + $0x38] sm:$0xf]
      %v1196 = vld [vmem:[%s1180 + $0x3c] sm:$0xf]
      %v1197 = vunpack.c.l.b16 %v1151
      %v1198 = vunpack.c.l.b16 %v1155
      %v1199 = vunpack.c.l.b16 %v1159
      %v1200 = vunpack.c.l.b16 %v1163
      %v1201 = vunpack.c.l.b16 %v1167
      %v1202 = vunpack.c.l.b16 %v1171
      %v1203 = vunpack.c.l.b16 %v1175
      %v1204 = vunpack.c.l.b16 %v1179
      %v1205 = vpack.c.b16 %v1198, %v1197
      %v1206 = vpack.c.b16 %v1200, %v1199
      %v1207 = vpack.c.b16 %v1202, %v1201
      %v1208 = vpack.c.b16 %v1204, %v1203
      %v1229 = vunpack.c.l.b16 %v1181
      %v1230 = vunpack.c.l.b16 %v1182
      %v1231 = vunpack.c.l.b16 %v1183
      %v1232 = vunpack.c.l.b16 %v1184
      %v1233 = vunpack.c.l.b16 %v1185
      %v1234 = vunpack.c.l.b16 %v1186
      %v1235 = vunpack.c.l.b16 %v1187
      %v1236 = vunpack.c.l.b16 %v1188
      %v1237 = vunpack.c.l.b16 %v1189
      %v1238 = vunpack.c.l.b16 %v1190
      %v1239 = vunpack.c.l.b16 %v1191
      %v1240 = vunpack.c.l.b16 %v1192
      %v1241 = vunpack.c.l.b16 %v1193
      %v1242 = vunpack.c.l.b16 %v1194
      %v1243 = vunpack.c.l.b16 %v1195
      %v1244 = vunpack.c.l.b16 %v1196
      %v1245 = vpack.c.b16 %v1230, %v1229
      %v1246 = vpack.c.b16 %v1232, %v1231
      %v1247 = vpack.c.b16 %v1234, %v1233
      %v1248 = vpack.c.b16 %v1236, %v1235
      %v1249 = vpack.c.b16 %v1238, %v1237
      %v1250 = vpack.c.b16 %v1240, %v1239
      %v1251 = vpack.c.b16 %v1242, %v1241
      %v1252 = vpack.c.b16 %v1244, %v1243
      %1261 = vmatpush.bf16.msra.mxu0 %v1252
      %1262 = vmatpush.bf16.msra.mxu0 %v1251
      %1263 = vmatpush.bf16.msra.mxu0 %v1250
      %1264 = vmatpush.bf16.msra.mxu0 %v1249
      %1265 = vmatpush.bf16.msra.mxu0 %v1248
      %1266 = vmatpush.bf16.msra.mxu0 %v1247
      %1267 = vmatpush.bf16.msra.mxu0 %v1246
      %1268 = vmatpush.bf16.msra.mxu0 %v1245
      %1269 = vmatmul.bf16.gmra.mxu0 %v1205
      %v1270 = vpop.f32.mrf.mxu0
      %v1271 = vadd.f32 0.0, %v1270
      %v1272 = vpop.f32.mrf.mxu0
      %v1273 = vadd.f32 0.0, %v1272
      %1274 = vmatmul.bf16.gmra.mxu0 %v1206
      %v1275 = vpop.f32.mrf.mxu0
      %v1276 = vadd.f32 0.0, %v1275
      %v1277 = vpop.f32.mrf.mxu0
      %v1278 = vadd.f32 0.0, %v1277
      %1279 = vmatmul.bf16.gmra.mxu0 %v1207
      %v1280 = vpop.f32.mrf.mxu0
      %v1281 = vadd.f32 0.0, %v1280
      %v1282 = vpop.f32.mrf.mxu0
      %v1283 = vadd.f32 0.0, %v1282
      %1284 = vmatmul.bf16.gmra.mxu0 %v1208
      %v1285 = vpop.f32.mrf.mxu0
      %v1286 = vadd.f32 0.0, %v1285
      %v1287 = vpop.f32.mrf.mxu0
      %v1288 = vadd.f32 0.0, %v1287
      %1289 = vdwg.mxu0
      %v1290 = vadd.f32 %v1116, %v1271
      %v1291 = vadd.f32 %v1117, %v1273
      %v1292 = vadd.f32 %v1118, %v1276
      %v1293 = vadd.f32 %v1119, %v1278
      %v1294 = vadd.f32 %v1120, %v1281
      %v1295 = vadd.f32 %v1121, %v1283
      %v1296 = vadd.f32 %v1122, %v1286
      %v1297 = vadd.f32 %v1123, %v1288
      %s1298 = scalar_lea.vmem %s197, 16
      %v1299 = vld [vmem:[%s1298] sm:$0xf]
      %v1300 = vld [vmem:[%s1298 + $0x8] sm:$0xf]
      %v1301 = vld [vmem:[%s1298 + $0x10] sm:$0xf]
      %v1302 = vld [vmem:[%s1298 + $0x18] sm:$0xf]
      %v1303 = vld [vmem:[%s1298 + $0x20] sm:$0xf]
      %v1304 = vld [vmem:[%s1298 + $0x28] sm:$0xf]
      %v1305 = vld [vmem:[%s1298 + $0x30] sm:$0xf]
      %v1306 = vld [vmem:[%s1298 + $0x38] sm:$0xf]
      %s1307 = scalar_lea.vmem %s1, 384
      %v1308 = vld [vmem:[%s1307] sm:$0xf]
      %v1309 = vld [vmem:[%s1307 + $0x4] sm:$0xf]
      %v1310 = vld [vmem:[%s1307 + $0x8] sm:$0xf]
      %v1311 = vld [vmem:[%s1307 + $0xc] sm:$0xf]
      %v1312 = vld [vmem:[%s1307 + $0x10] sm:$0xf]
      %v1313 = vld [vmem:[%s1307 + $0x14] sm:$0xf]
      %v1314 = vld [vmem:[%s1307 + $0x18] sm:$0xf]
      %v1315 = vld [vmem:[%s1307 + $0x1c] sm:$0xf]
      %v1316 = vld [vmem:[%s1307 + $0x20] sm:$0xf]
      %v1317 = vld [vmem:[%s1307 + $0x24] sm:$0xf]
      %v1318 = vld [vmem:[%s1307 + $0x28] sm:$0xf]
      %v1319 = vld [vmem:[%s1307 + $0x2c] sm:$0xf]
      %v1320 = vld [vmem:[%s1307 + $0x30] sm:$0xf]
      %v1321 = vld [vmem:[%s1307 + $0x34] sm:$0xf]
      %v1322 = vld [vmem:[%s1307 + $0x38] sm:$0xf]
      %v1323 = vld [vmem:[%s1307 + $0x3c] sm:$0xf]
      %v1332 = vunpack.c.l.b16 %v1299
      %v1333 = vunpack.c.l.b16 %v1300
      %v1334 = vunpack.c.l.b16 %v1301
      %v1335 = vunpack.c.l.b16 %v1302
      %v1336 = vunpack.c.l.b16 %v1303
      %v1337 = vunpack.c.l.b16 %v1304
      %v1338 = vunpack.c.l.b16 %v1305
      %v1339 = vunpack.c.l.b16 %v1306
      %v1340 = vpack.c.b16 %v1333, %v1332
      %v1341 = vpack.c.b16 %v1335, %v1334
      %v1342 = vpack.c.b16 %v1337, %v1336
      %v1343 = vpack.c.b16 %v1339, %v1338
      %v1364 = vunpack.c.l.b16 %v1308
      %v1365 = vunpack.c.l.b16 %v1309
      %v1366 = vunpack.c.l.b16 %v1310
      %v1367 = vunpack.c.l.b16 %v1311
      %v1368 = vunpack.c.l.b16 %v1312
      %v1369 = vunpack.c.l.b16 %v1313
      %v1370 = vunpack.c.l.b16 %v1314
      %v1371 = vunpack.c.l.b16 %v1315
      %v1372 = vunpack.c.l.b16 %v1316
      %v1373 = vunpack.c.l.b16 %v1317
      %v1374 = vunpack.c.l.b16 %v1318
      %v1375 = vunpack.c.l.b16 %v1319
      %v1376 = vunpack.c.l.b16 %v1320
      %v1377 = vunpack.c.l.b16 %v1321
      %v1378 = vunpack.c.l.b16 %v1322
      %v1379 = vunpack.c.l.b16 %v1323
      %v1380 = vpack.c.b16 %v1365, %v1364
      %v1381 = vpack.c.b16 %v1367, %v1366
      %v1382 = vpack.c.b16 %v1369, %v1368
      %v1383 = vpack.c.b16 %v1371, %v1370
      %v1384 = vpack.c.b16 %v1373, %v1372
      %v1385 = vpack.c.b16 %v1375, %v1374
      %v1386 = vpack.c.b16 %v1377, %v1376
      %v1387 = vpack.c.b16 %v1379, %v1378
      %1396 = vmatpush.bf16.msra.mxu0 %v1387
      %1397 = vmatpush.bf16.msra.mxu0 %v1386
      %1398 = vmatpush.bf16.msra.mxu0 %v1385
      %1399 = vmatpush.bf16.msra.mxu0 %v1384
      %1400 = vmatpush.bf16.msra.mxu0 %v1383
      %1401 = vmatpush.bf16.msra.mxu0 %v1382
      %1402 = vmatpush.bf16.msra.mxu0 %v1381
      %1403 = vmatpush.bf16.msra.mxu0 %v1380
      %1404 = vmatmul.bf16.gmra.mxu0 %v1340
      %v1405 = vpop.f32.mrf.mxu0
      %v1406 = vadd.f32 0.0, %v1405
      %v1407 = vpop.f32.mrf.mxu0
      %v1408 = vadd.f32 0.0, %v1407
      %1409 = vmatmul.bf16.gmra.mxu0 %v1341
      %v1410 = vpop.f32.mrf.mxu0
      %v1411 = vadd.f32 0.0, %v1410
      %v1412 = vpop.f32.mrf.mxu0
      %v1413 = vadd.f32 0.0, %v1412
      %1414 = vmatmul.bf16.gmra.mxu0 %v1342
      %v1415 = vpop.f32.mrf.mxu0
      %v1416 = vadd.f32 0.0, %v1415
      %v1417 = vpop.f32.mrf.mxu0
      %v1418 = vadd.f32 0.0, %v1417
      %1419 = vmatmul.bf16.gmra.mxu0 %v1343
      %v1420 = vpop.f32.mrf.mxu0
      %v1421 = vadd.f32 0.0, %v1420
      %v1422 = vpop.f32.mrf.mxu0
      %v1423 = vadd.f32 0.0, %v1422
      %1424 = vdwg.mxu0
      %v1425 = vadd.f32 %v1290, %v1406
      %v1426 = vadd.f32 %v1291, %v1408
      %v1427 = vadd.f32 %v1292, %v1411
      %v1428 = vadd.f32 %v1293, %v1413
      %v1429 = vadd.f32 %v1294, %v1416
      %v1430 = vadd.f32 %v1295, %v1418
      %v1431 = vadd.f32 %v1296, %v1421
      %v1432 = vadd.f32 %v1297, %v1423
      %v1433 = vld [vmem:[%s1298] sm:$0xf]
      %v1434 = vld [vmem:[%s1298 + $0x4] sm:$0x1]
      %v1435 = vld [vmem:[%s1298 + $0x8] sm:$0xf]
      %v1436 = vld [vmem:[%s1298 + $0xc] sm:$0x1]
      %v1437 = vld [vmem:[%s1298 + $0x10] sm:$0xf]
      %v1438 = vld [vmem:[%s1298 + $0x14] sm:$0x1]
      %v1439 = vld [vmem:[%s1298 + $0x18] sm:$0xf]
      %v1440 = vld [vmem:[%s1298 + $0x1c] sm:$0x1]
      %v1441 = vld [vmem:[%s1298 + $0x20] sm:$0xf]
      %v1442 = vld [vmem:[%s1298 + $0x24] sm:$0x1]
      %v1443 = vld [vmem:[%s1298 + $0x28] sm:$0xf]
      %v1444 = vld [vmem:[%s1298 + $0x2c] sm:$0x1]
      %v1445 = vld [vmem:[%s1298 + $0x30] sm:$0xf]
      %v1446 = vld [vmem:[%s1298 + $0x34] sm:$0x1]
      %v1447 = vld [vmem:[%s1298 + $0x38] sm:$0xf]
      %v1448 = vld [vmem:[%s1298 + $0x3c] sm:$0x1]
      %v1450 = vshrl.u32 %v1433, 16
      %v1452 = vrot.slane %v1450, 4
      %v1453 = vshll.u32 %v1433, 16
      %v1455 = vrot.slane %v1453, 5
      %v1456 = vor.u32 %v1452, %v1455
      %v1457 = vrot.slane %v1456, 4
      %v1459 = vshll.u32 %v1434, 16
      %v1461 = vrot.slane %v1459, 5
      %v1462 = vsel %vm242, %v1457, %v1461
      %v1464 = vshrl.u32 %v1435, 16
      %v1466 = vrot.slane %v1464, 4
      %v1467 = vshll.u32 %v1435, 16
      %v1469 = vrot.slane %v1467, 5
      %v1470 = vor.u32 %v1466, %v1469
      %v1471 = vrot.slane %v1470, 4
      %v1473 = vshll.u32 %v1436, 16
      %v1475 = vrot.slane %v1473, 5
      %v1476 = vsel %vm242, %v1471, %v1475
      %v1478 = vshrl.u32 %v1437, 16
      %v1480 = vrot.slane %v1478, 4
      %v1481 = vshll.u32 %v1437, 16
      %v1483 = vrot.slane %v1481, 5
      %v1484 = vor.u32 %v1480, %v1483
      %v1485 = vrot.slane %v1484, 4
      %v1487 = vshll.u32 %v1438, 16
      %v1489 = vrot.slane %v1487, 5
      %v1490 = vsel %vm242, %v1485, %v1489
      %v1492 = vshrl.u32 %v1439, 16
      %v1494 = vrot.slane %v1492, 4
      %v1495 = vshll.u32 %v1439, 16
      %v1497 = vrot.slane %v1495, 5
      %v1498 = vor.u32 %v1494, %v1497
      %v1499 = vrot.slane %v1498, 4
      %v1501 = vshll.u32 %v1440, 16
      %v1503 = vrot.slane %v1501, 5
      %v1504 = vsel %vm242, %v1499, %v1503
      %v1506 = vshrl.u32 %v1441, 16
      %v1508 = vrot.slane %v1506, 4
      %v1509 = vshll.u32 %v1441, 16
      %v1511 = vrot.slane %v1509, 5
      %v1512 = vor.u32 %v1508, %v1511
      %v1513 = vrot.slane %v1512, 4
      %v1515 = vshll.u32 %v1442, 16
      %v1517 = vrot.slane %v1515, 5
      %v1518 = vsel %vm242, %v1513, %v1517
      %v1520 = vshrl.u32 %v1443, 16
      %v1522 = vrot.slane %v1520, 4
      %v1523 = vshll.u32 %v1443, 16
      %v1525 = vrot.slane %v1523, 5
      %v1526 = vor.u32 %v1522, %v1525
      %v1527 = vrot.slane %v1526, 4
      %v1529 = vshll.u32 %v1444, 16
      %v1531 = vrot.slane %v1529, 5
      %v1532 = vsel %vm242, %v1527, %v1531
      %v1534 = vshrl.u32 %v1445, 16
      %v1536 = vrot.slane %v1534, 4
      %v1537 = vshll.u32 %v1445, 16
      %v1539 = vrot.slane %v1537, 5
      %v1540 = vor.u32 %v1536, %v1539
      %v1541 = vrot.slane %v1540, 4
      %v1543 = vshll.u32 %v1446, 16
      %v1545 = vrot.slane %v1543, 5
      %v1546 = vsel %vm242, %v1541, %v1545
      %v1548 = vshrl.u32 %v1447, 16
      %v1550 = vrot.slane %v1548, 4
      %v1551 = vshll.u32 %v1447, 16
      %v1553 = vrot.slane %v1551, 5
      %v1554 = vor.u32 %v1550, %v1553
      %v1555 = vrot.slane %v1554, 4
      %v1557 = vshll.u32 %v1448, 16
      %v1559 = vrot.slane %v1557, 5
      %v1560 = vsel %vm242, %v1555, %v1559
      %s1561 = scalar_lea.vmem %s1, 448
      %v1562 = vld [vmem:[%s1561] sm:$0xf]
      %v1563 = vld [vmem:[%s1561 + $0x4] sm:$0xf]
      %v1564 = vld [vmem:[%s1561 + $0x8] sm:$0xf]
      %v1565 = vld [vmem:[%s1561 + $0xc] sm:$0xf]
      %v1566 = vld [vmem:[%s1561 + $0x10] sm:$0xf]
      %v1567 = vld [vmem:[%s1561 + $0x14] sm:$0xf]
      %v1568 = vld [vmem:[%s1561 + $0x18] sm:$0xf]
      %v1569 = vld [vmem:[%s1561 + $0x1c] sm:$0xf]
      %v1570 = vld [vmem:[%s1561 + $0x20] sm:$0xf]
      %v1571 = vld [vmem:[%s1561 + $0x24] sm:$0xf]
      %v1572 = vld [vmem:[%s1561 + $0x28] sm:$0xf]
      %v1573 = vld [vmem:[%s1561 + $0x2c] sm:$0xf]
      %v1574 = vld [vmem:[%s1561 + $0x30] sm:$0xf]
      %v1575 = vld [vmem:[%s1561 + $0x34] sm:$0xf]
      %v1576 = vld [vmem:[%s1561 + $0x38] sm:$0xf]
      %v1577 = vld [vmem:[%s1561 + $0x3c] sm:$0xf]
      %v1578 = vunpack.c.l.b16 %v1462
      %v1579 = vunpack.c.l.b16 %v1476
      %v1580 = vunpack.c.l.b16 %v1490
      %v1581 = vunpack.c.l.b16 %v1504
      %v1582 = vunpack.c.l.b16 %v1518
      %v1583 = vunpack.c.l.b16 %v1532
      %v1584 = vunpack.c.l.b16 %v1546
      %v1585 = vunpack.c.l.b16 %v1560
      %v1586 = vpack.c.b16 %v1579, %v1578
      %v1587 = vpack.c.b16 %v1581, %v1580
      %v1588 = vpack.c.b16 %v1583, %v1582
      %v1589 = vpack.c.b16 %v1585, %v1584
      %v1610 = vunpack.c.l.b16 %v1562
      %v1611 = vunpack.c.l.b16 %v1563
      %v1612 = vunpack.c.l.b16 %v1564
      %v1613 = vunpack.c.l.b16 %v1565
      %v1614 = vunpack.c.l.b16 %v1566
      %v1615 = vunpack.c.l.b16 %v1567
      %v1616 = vunpack.c.l.b16 %v1568
      %v1617 = vunpack.c.l.b16 %v1569
      %v1618 = vunpack.c.l.b16 %v1570
      %v1619 = vunpack.c.l.b16 %v1571
      %v1620 = vunpack.c.l.b16 %v1572
      %v1621 = vunpack.c.l.b16 %v1573
      %v1622 = vunpack.c.l.b16 %v1574
      %v1623 = vunpack.c.l.b16 %v1575
      %v1624 = vunpack.c.l.b16 %v1576
      %v1625 = vunpack.c.l.b16 %v1577
      %v1626 = vpack.c.b16 %v1611, %v1610
      %v1627 = vpack.c.b16 %v1613, %v1612
      %v1628 = vpack.c.b16 %v1615, %v1614
      %v1629 = vpack.c.b16 %v1617, %v1616
      %v1630 = vpack.c.b16 %v1619, %v1618
      %v1631 = vpack.c.b16 %v1621, %v1620
      %v1632 = vpack.c.b16 %v1623, %v1622
      %v1633 = vpack.c.b16 %v1625, %v1624
      %1642 = vmatpush.bf16.msra.mxu0 %v1633
      %1643 = vmatpush.bf16.msra.mxu0 %v1632
      %1644 = vmatpush.bf16.msra.mxu0 %v1631
      %1645 = vmatpush.bf16.msra.mxu0 %v1630
      %1646 = vmatpush.bf16.msra.mxu0 %v1629
      %1647 = vmatpush.bf16.msra.mxu0 %v1628
      %1648 = vmatpush.bf16.msra.mxu0 %v1627
      %1649 = vmatpush.bf16.msra.mxu0 %v1626
      %1650 = vmatmul.bf16.gmra.mxu0 %v1586
      %v1651 = vpop.f32.mrf.mxu0
      %v1652 = vadd.f32 0.0, %v1651
      %v1653 = vpop.f32.mrf.mxu0
      %v1654 = vadd.f32 0.0, %v1653
      %1655 = vmatmul.bf16.gmra.mxu0 %v1587
      %v1656 = vpop.f32.mrf.mxu0
      %v1657 = vadd.f32 0.0, %v1656
      %v1658 = vpop.f32.mrf.mxu0
      %v1659 = vadd.f32 0.0, %v1658
      %1660 = vmatmul.bf16.gmra.mxu0 %v1588
      %v1661 = vpop.f32.mrf.mxu0
      %v1662 = vadd.f32 0.0, %v1661
      %v1663 = vpop.f32.mrf.mxu0
      %v1664 = vadd.f32 0.0, %v1663
      %1665 = vmatmul.bf16.gmra.mxu0 %v1589
      %v1666 = vpop.f32.mrf.mxu0
      %v1667 = vadd.f32 0.0, %v1666
      %v1668 = vpop.f32.mrf.mxu0
      %v1669 = vadd.f32 0.0, %v1668
      %1670 = vdwg.mxu0
      %v1671 = vadd.f32 %v1425, %v1652
      %v1672 = vadd.f32 %v1426, %v1654
      %v1673 = vadd.f32 %v1427, %v1657
      %v1674 = vadd.f32 %v1428, %v1659
      %v1675 = vadd.f32 %v1429, %v1662
      %v1676 = vadd.f32 %v1430, %v1664
      %v1677 = vadd.f32 %v1431, %v1667
      %v1678 = vadd.f32 %v1432, %v1669
      %v1679 = vld [vmem:[%s1298] sm:$0xe]
      %v1680 = vld [vmem:[%s1298 + $0x8] sm:$0xe]
      %v1681 = vld [vmem:[%s1298 + $0x10] sm:$0xe]
      %v1682 = vld [vmem:[%s1298 + $0x18] sm:$0xe]
      %v1683 = vld [vmem:[%s1298 + $0x20] sm:$0xe]
      %v1684 = vld [vmem:[%s1298 + $0x28] sm:$0xe]
      %v1685 = vld [vmem:[%s1298 + $0x30] sm:$0xe]
      %v1686 = vld [vmem:[%s1298 + $0x38] sm:$0xe]
      %v1703 = vrot.slane %v1679, 5
      %v1704 = vrot.slane %v1703, 4
      %v1705 = vrot.slane %v1434, 5
      %v1706 = vsel %vm592, %v1704, %v1705
      %v1707 = vrot.slane %v1680, 5
      %v1708 = vrot.slane %v1707, 4
      %v1709 = vrot.slane %v1436, 5
      %v1710 = vsel %vm592, %v1708, %v1709
      %v1711 = vrot.slane %v1681, 5
      %v1712 = vrot.slane %v1711, 4
      %v1713 = vrot.slane %v1438, 5
      %v1714 = vsel %vm592, %v1712, %v1713
      %v1715 = vrot.slane %v1682, 5
      %v1716 = vrot.slane %v1715, 4
      %v1717 = vrot.slane %v1440, 5
      %v1718 = vsel %vm592, %v1716, %v1717
      %v1719 = vrot.slane %v1683, 5
      %v1720 = vrot.slane %v1719, 4
      %v1721 = vrot.slane %v1442, 5
      %v1722 = vsel %vm592, %v1720, %v1721
      %v1723 = vrot.slane %v1684, 5
      %v1724 = vrot.slane %v1723, 4
      %v1725 = vrot.slane %v1444, 5
      %v1726 = vsel %vm592, %v1724, %v1725
      %v1727 = vrot.slane %v1685, 5
      %v1728 = vrot.slane %v1727, 4
      %v1729 = vrot.slane %v1446, 5
      %v1730 = vsel %vm592, %v1728, %v1729
      %v1731 = vrot.slane %v1686, 5
      %v1732 = vrot.slane %v1731, 4
      %v1733 = vrot.slane %v1448, 5
      %v1734 = vsel %vm592, %v1732, %v1733
      %s1735 = scalar_lea.vmem %s1, 512
      %v1736 = vld [vmem:[%s1735] sm:$0xf]
      %v1737 = vld [vmem:[%s1735 + $0x4] sm:$0xf]
      %v1738 = vld [vmem:[%s1735 + $0x8] sm:$0xf]
      %v1739 = vld [vmem:[%s1735 + $0xc] sm:$0xf]
      %v1740 = vld [vmem:[%s1735 + $0x10] sm:$0xf]
      %v1741 = vld [vmem:[%s1735 + $0x14] sm:$0xf]
      %v1742 = vld [vmem:[%s1735 + $0x18] sm:$0xf]
      %v1743 = vld [vmem:[%s1735 + $0x1c] sm:$0xf]
      %v1744 = vld [vmem:[%s1735 + $0x20] sm:$0xf]
      %v1745 = vld [vmem:[%s1735 + $0x24] sm:$0xf]
      %v1746 = vld [vmem:[%s1735 + $0x28] sm:$0xf]
      %v1747 = vld [vmem:[%s1735 + $0x2c] sm:$0xf]
      %v1748 = vld [vmem:[%s1735 + $0x30] sm:$0xf]
      %v1749 = vld [vmem:[%s1735 + $0x34] sm:$0xf]
      %v1750 = vld [vmem:[%s1735 + $0x38] sm:$0xf]
      %v1751 = vld [vmem:[%s1735 + $0x3c] sm:$0xf]
      %v1752 = vunpack.c.l.b16 %v1706
      %v1753 = vunpack.c.l.b16 %v1710
      %v1754 = vunpack.c.l.b16 %v1714
      %v1755 = vunpack.c.l.b16 %v1718
      %v1756 = vunpack.c.l.b16 %v1722
      %v1757 = vunpack.c.l.b16 %v1726
      %v1758 = vunpack.c.l.b16 %v1730
      %v1759 = vunpack.c.l.b16 %v1734
      %v1760 = vpack.c.b16 %v1753, %v1752
      %v1761 = vpack.c.b16 %v1755, %v1754
      %v1762 = vpack.c.b16 %v1757, %v1756
      %v1763 = vpack.c.b16 %v1759, %v1758
      %v1784 = vunpack.c.l.b16 %v1736
      %v1785 = vunpack.c.l.b16 %v1737
      %v1786 = vunpack.c.l.b16 %v1738
      %v1787 = vunpack.c.l.b16 %v1739
      %v1788 = vunpack.c.l.b16 %v1740
      %v1789 = vunpack.c.l.b16 %v1741
      %v1790 = vunpack.c.l.b16 %v1742
      %v1791 = vunpack.c.l.b16 %v1743
      %v1792 = vunpack.c.l.b16 %v1744
      %v1793 = vunpack.c.l.b16 %v1745
      %v1794 = vunpack.c.l.b16 %v1746
      %v1795 = vunpack.c.l.b16 %v1747
      %v1796 = vunpack.c.l.b16 %v1748
      %v1797 = vunpack.c.l.b16 %v1749
      %v1798 = vunpack.c.l.b16 %v1750
      %v1799 = vunpack.c.l.b16 %v1751
      %v1800 = vpack.c.b16 %v1785, %v1784
      %v1801 = vpack.c.b16 %v1787, %v1786
      %v1802 = vpack.c.b16 %v1789, %v1788
      %v1803 = vpack.c.b16 %v1791, %v1790
      %v1804 = vpack.c.b16 %v1793, %v1792
      %v1805 = vpack.c.b16 %v1795, %v1794
      %v1806 = vpack.c.b16 %v1797, %v1796
      %v1807 = vpack.c.b16 %v1799, %v1798
      %1816 = vmatpush.bf16.msra.mxu0 %v1807
      %1817 = vmatpush.bf16.msra.mxu0 %v1806
      %1818 = vmatpush.bf16.msra.mxu0 %v1805
      %1819 = vmatpush.bf16.msra.mxu0 %v1804
      %1820 = vmatpush.bf16.msra.mxu0 %v1803
      %1821 = vmatpush.bf16.msra.mxu0 %v1802
      %1822 = vmatpush.bf16.msra.mxu0 %v1801
      %1823 = vmatpush.bf16.msra.mxu0 %v1800
      %1824 = vmatmul.bf16.gmra.mxu0 %v1760
      %v1825 = vpop.f32.mrf.mxu0
      %v1826 = vadd.f32 0.0, %v1825
      %v1827 = vpop.f32.mrf.mxu0
      %v1828 = vadd.f32 0.0, %v1827
      %1829 = vmatmul.bf16.gmra.mxu0 %v1761
      %v1830 = vpop.f32.mrf.mxu0
      %v1831 = vadd.f32 0.0, %v1830
      %v1832 = vpop.f32.mrf.mxu0
      %v1833 = vadd.f32 0.0, %v1832
      %1834 = vmatmul.bf16.gmra.mxu0 %v1762
      %v1835 = vpop.f32.mrf.mxu0
      %v1836 = vadd.f32 0.0, %v1835
      %v1837 = vpop.f32.mrf.mxu0
      %v1838 = vadd.f32 0.0, %v1837
      %1839 = vmatmul.bf16.gmra.mxu0 %v1763
      %v1840 = vpop.f32.mrf.mxu0
      %v1841 = vadd.f32 0.0, %v1840
      %v1842 = vpop.f32.mrf.mxu0
      %v1843 = vadd.f32 0.0, %v1842
      %1844 = vdwg.mxu0
      %v1845 = vadd.f32 %v1671, %v1826
      %v1846 = vadd.f32 %v1672, %v1828
      %v1847 = vadd.f32 %v1673, %v1831
      %v1848 = vadd.f32 %v1674, %v1833
      %v1849 = vadd.f32 %v1675, %v1836
      %v1850 = vadd.f32 %v1676, %v1838
      %v1851 = vadd.f32 %v1677, %v1841
      %v1852 = vadd.f32 %v1678, %v1843
      %v1853 = vld [vmem:[%s2] sm:$0x1]
      %v1855 = vperm.slane %v1853, 0
      %v1857 = vadd.f32 %v1845, %v1855
      %v1858 = vadd.f32 %v1846, %v1855
      %v1859 = vadd.f32 %v1847, %v1855
      %v1860 = vadd.f32 %v1848, %v1855
      %v1861 = vadd.f32 %v1849, %v1855
      %v1862 = vadd.f32 %v1850, %v1855
      %v1863 = vadd.f32 %v1851, %v1855
      %v1864 = vadd.f32 %v1852, %v1855
      %v1865 = vmax.f32 %v1857, 0.0
      %v1866 = vmax.f32 %v1858, 0.0
      %v1867 = vmax.f32 %v1859, 0.0
      %v1868 = vmax.f32 %v1860, 0.0
      %v1869 = vmax.f32 %v1861, 0.0
      %v1870 = vmax.f32 %v1862, 0.0
      %v1871 = vmax.f32 %v1863, 0.0
      %v1872 = vmax.f32 %v1864, 0.0
      %v1873 = vmax.f32 %v1865, %v1866
      %1874 = vst [vmem:[#allocation2] sm:$0xff] %v1873
      %v1875 = vmax.f32 %v1867, %v1868
      %s1876 = scalar_lea.vmem [#allocation2], 8
      %1877 = vst [vmem:[%s1876] sm:$0xff] %v1875
      %v1878 = vmax.f32 %v1869, %v1870
      %s1879 = scalar_lea.vmem [#allocation2], 16
      %1880 = vst [vmem:[%s1879] sm:$0xff] %v1878
      %v1881 = vmax.f32 %v1871, %v1872
      %s1882 = scalar_lea.vmem [#allocation2], 24
      %1883 = vst [vmem:[%s1882] sm:$0xff] %v1881
      %v1884 = vld [vmem:[#allocation2] ss:$2 sm:$0xf]
      %s1885 = scalar_lea.vmem [#allocation2], 8
      %v1886 = vld [vmem:[%s1885] ss:$2 sm:$0xf]
      %s1887 = scalar_lea.vmem [#allocation2], 16
      %v1888 = vld [vmem:[%s1887] ss:$2 sm:$0xf]
      %s1889 = scalar_lea.vmem [#allocation2], 24
      %v1890 = vld [vmem:[%s1889] ss:$2 sm:$0xf]
      %s1891 = scalar_lea.vmem [#allocation2], 1
      %v1892 = vld [vmem:[%s1891] ss:$2 sm:$0xf]
      %s1893 = scalar_lea.vmem [#allocation2], 9
      %v1894 = vld [vmem:[%s1893] ss:$2 sm:$0xf]
      %s1895 = scalar_lea.vmem [#allocation2], 17
      %v1896 = vld [vmem:[%s1895] ss:$2 sm:$0xf]
      %s1897 = scalar_lea.vmem [#allocation2], 25
      %v1898 = vld [vmem:[%s1897] ss:$2 sm:$0xf]
      %v1899 = vmax.f32 %v1884, %v1892
      %v1900 = vmax.f32 %v1886, %v1894
      %v1901 = vmax.f32 %v1888, %v1896
      %v1902 = vmax.f32 %v1890, %v1898
      %v1903 = vpack.c.bf16 %v1899, %v1899
      %v1904 = vpack.c.bf16 %v1900, %v1900
      %v1905 = vpack.c.bf16 %v1901, %v1901
      %v1906 = vpack.c.bf16 %v1902, %v1902
      %1907 = vst [vmem:[%s206] sm:$0x3] %v1903
      %1908 = vst [vmem:[%s206 + $0x2] sm:$0x3] %v1904
      %1909 = vst [vmem:[%s206 + $0x4] sm:$0x3] %v1905
      %1910 = vst [vmem:[%s206 + $0x6] sm:$0x3] %v1906
      %s1911 = smul.u32 4, %s19
      %p1912 = scmp.lt.s32.totalorder %s18, 1
      %s1913 = scalar_select %p1912, %s18, 1
      %p1914 = scmp.lt.s32.totalorder %s1911, 3
      %s1915 = scalar_select %p1914, %s1911, 3
      %s1916 = smul.addr %s1913, 4
      %s1917 = sadd.s32 %s1915, %s1916
      %s1918 = smul.addr %s1917, 2
      %s1919 = scalar_lea.vmem %s3, %s1918
      // Predicated region
      $region33: #{simple_cnn_forward.7} parent=31 // pred_check
        %p1920 = pneg %p116
      $region34: #{simple_cnn_forward.7} parent=31 // pred_check_branch
        %1922 = sbr.rel (%p1920) target = $region36
      $region35: #{simple_cnn_forward.7} parent=31 // pred_region
        %s1923 = smul.u32 4, %s19
      $region36: #{simple_cnn_forward.7} parent=31 // pred_fallthru
        _
    $region32: #{simple_cnn_forward.7} parent=5 // pred_fallthru
      _
    %p1924 = scmp.le.s32.totalorder 2, %s9
    // Predicated region
    $region37: #{simple_cnn_forward.7} parent=5 // pred_check
      %p1925 = pneg %p1924
    $region38: #{simple_cnn_forward.7} parent=5 // pred_check_branch
      %1927 = sbr.rel (%p1925) target = $region40
    $region39: #{simple_cnn_forward.7} parent=5 // pred_region
      %s1928 = ssub.s32 %s9, 2
      // Predicated region
      $region41: #{simple_cnn_forward.7} parent=39 // pred_check
        %p1929 = pneg %p122
      $region42: #{simple_cnn_forward.7} parent=39 // pred_check_branch
        %1931 = sbr.rel (%p1929) target = $region44
      $region43: #{simple_cnn_forward.7} parent=39 // pred_region
        %s1932 = smul.u32 4, %s21
        %p1933 = scmp.lt.s32.totalorder %s20, 1
        %s1934 = scalar_select %p1933, %s20, 1
        %p1935 = scmp.lt.s32.totalorder %s1932, 3
        %s1936 = scalar_select %p1935, %s1932, 3
        %s1937 = smul.addr %s1934, 4
        %s1938 = sadd.s32 %s1936, %s1937
        %s1939 = smul.addr %s1938, 2
        %s1940 = scalar_lea.vmem %s3, %s1939
      $region44: #{simple_cnn_forward.7} parent=39 // pred_fallthru
        _
    $region40: #{simple_cnn_forward.7} parent=5 // pred_fallthru
      _
  $region6: #{simple_cnn_forward.7} parent=0 // loop_footer
    %s13 = sadd.s32 1, %s9
  $region7: #{simple_cnn_forward.7} parent=0 // loop_footer_branch
    %8 = sbr.rel target = $region3
  $region8: #{simple_cnn_forward.7} parent=0 // loop_exit
    _

// kernel: simple_cnn_forward.10
$region0: #{simple_cnn_forward.10}
  #allocation0 [shape = 'u32[]', space=smem, size = 0x4, offset = 0x4, fixed_abs, tag = 'smem constant byte address 0x4 - core index']
  #allocation1 [shape = 'u32[72,128]{1,0:T(1,128)}', space=vmem, size = 0x9000, scoped, tag = 'internal scratch']
  #allocation2 [shape = 'f32[2,256]{1,0:T(2,128)}', space=vmem, size = 0x800, scoped, tag = 'scratch operand']
  %s0 = inlined_call_operand.vmem [shape: bf16[2,128], index: 0, kind: input, shape index: {}]
  %s1 = inlined_call_operand.vmem [shape: bf16[128,256], index: 1, kind: input, shape index: {}]
  %s2 = inlined_call_operand.vmem [shape: f32[1,256], index: 2, kind: input, shape index: {}]
  %s3 = inlined_call_operand.vmem [shape: bf16[2,256], index: 3, kind: output, shape index: {}]
  %s4 = sld [smem:[#allocation0]]
  $region30: #{simple_cnn_forward.10} parent=0
    _
  %s6 = ssub.s32 1, %s4
  %s7 = scalar_select 0, %s6, %s4
  // Predicated region
  $region2: #{simple_cnn_forward.10} parent=0 // pred_check
    _
  $region3: #{simple_cnn_forward.10} parent=0 // pred_check_branch
    %9 = sbr.rel (0) target = $region5
  $region4: #{simple_cnn_forward.10} parent=0 // pred_region
    _
  $region5: #{simple_cnn_forward.10} parent=0 // pred_fallthru
    _
  // Predicated region
  $region6: #{simple_cnn_forward.10} parent=0 // pred_check
    _
  $region7: #{simple_cnn_forward.10} parent=0 // pred_check_branch
    %11 = sbr.rel (0) target = $region9
  $region8: #{simple_cnn_forward.10} parent=0 // pred_region
    _
  $region9: #{simple_cnn_forward.10} parent=0 // pred_fallthru
    _
  // Predicated region
  $region10: #{simple_cnn_forward.10} parent=0 // pred_check
    _
  $region11: #{simple_cnn_forward.10} parent=0 // pred_check_branch
    %13 = sbr.rel (0) target = $region13
  $region12: #{simple_cnn_forward.10} parent=0 // pred_region
    _
  $region13: #{simple_cnn_forward.10} parent=0 // pred_fallthru
    _
  %p14 = scmp.eq.s32.totalorder 0, 0
  // Predicated region
  $region14: #{simple_cnn_forward.10} parent=0 // pred_check
    %p15 = pneg %p14
  $region15: #{simple_cnn_forward.10} parent=0 // pred_check_branch
    %17 = sbr.rel (%p15) target = $region17
  $region16: #{simple_cnn_forward.10} parent=0 // pred_region
    %18 = vst [vmem:[#allocation2] sm:$0xf] 0.0
  $region17: #{simple_cnn_forward.10} parent=0 // pred_fallthru
    _
  %v19 = vld [vmem:[#allocation2] sm:$0xf]
  %v20 = vld [vmem:[%s0] sm:$0x1]
  %v21 = vld [vmem:[%s1] sm:$0xff]
  %v22 = vld [vmem:[%s1 + $0x8] sm:$0xff]
  %v23 = vld [vmem:[%s1 + $0x10] sm:$0xff]
  %v24 = vld [vmem:[%s1 + $0x18] sm:$0xff]
  %v25 = vld [vmem:[%s1 + $0x20] sm:$0xff]
  %v26 = vld [vmem:[%s1 + $0x28] sm:$0xff]
  %v27 = vld [vmem:[%s1 + $0x30] sm:$0xff]
  %v28 = vld [vmem:[%s1 + $0x38] sm:$0xff]
  %v29 = vld [vmem:[%s1 + $0x40] sm:$0xff]
  %v30 = vld [vmem:[%s1 + $0x48] sm:$0xff]
  %v31 = vld [vmem:[%s1 + $0x50] sm:$0xff]
  %v32 = vld [vmem:[%s1 + $0x58] sm:$0xff]
  %v33 = vld [vmem:[%s1 + $0x60] sm:$0xff]
  %v34 = vld [vmem:[%s1 + $0x68] sm:$0xff]
  %v35 = vld [vmem:[%s1 + $0x70] sm:$0xff]
  %v36 = vld [vmem:[%s1 + $0x78] sm:$0xff]
  %v53 = vunpack.c.l.b16 %v21
  %v54 = vunpack.c.h.b16 %v21
  %v55 = vunpack.c.l.b16 %v22
  %v56 = vunpack.c.h.b16 %v22
  %v57 = vunpack.c.l.b16 %v23
  %v58 = vunpack.c.h.b16 %v23
  %v59 = vunpack.c.l.b16 %v24
  %v60 = vunpack.c.h.b16 %v24
  %v61 = vunpack.c.l.b16 %v25
  %v62 = vunpack.c.h.b16 %v25
  %v63 = vunpack.c.l.b16 %v26
  %v64 = vunpack.c.h.b16 %v26
  %v65 = vunpack.c.l.b16 %v27
  %v66 = vunpack.c.h.b16 %v27
  %v67 = vunpack.c.l.b16 %v28
  %v68 = vunpack.c.h.b16 %v28
  %v69 = vunpack.c.l.b16 %v29
  %v70 = vunpack.c.h.b16 %v29
  %v71 = vunpack.c.l.b16 %v30
  %v72 = vunpack.c.h.b16 %v30
  %v73 = vunpack.c.l.b16 %v31
  %v74 = vunpack.c.h.b16 %v31
  %v75 = vunpack.c.l.b16 %v32
  %v76 = vunpack.c.h.b16 %v32
  %v77 = vunpack.c.l.b16 %v33
  %v78 = vunpack.c.h.b16 %v33
  %v79 = vunpack.c.l.b16 %v34
  %v80 = vunpack.c.h.b16 %v34
  %v81 = vunpack.c.l.b16 %v35
  %v82 = vunpack.c.h.b16 %v35
  %v83 = vunpack.c.l.b16 %v36
  %v84 = vunpack.c.h.b16 %v36
  %v85 = vpack.c.b16 %v55, %v53
  %v86 = vpack.c.b16 %v56, %v54
  %v87 = vpack.c.b16 %v59, %v57
  %v88 = vpack.c.b16 %v60, %v58
  %v89 = vpack.c.b16 %v63, %v61
  %v90 = vpack.c.b16 %v64, %v62
  %v91 = vpack.c.b16 %v67, %v65
  %v92 = vpack.c.b16 %v68, %v66
  %v93 = vpack.c.b16 %v71, %v69
  %v94 = vpack.c.b16 %v72, %v70
  %v95 = vpack.c.b16 %v75, %v73
  %v96 = vpack.c.b16 %v76, %v74
  %v97 = vpack.c.b16 %v79, %v77
  %v98 = vpack.c.b16 %v80, %v78
  %v99 = vpack.c.b16 %v83, %v81
  %v100 = vpack.c.b16 %v84, %v82
  %117 = vmatpush.bf16.msra.mxu0 %v99
  %118 = vmatpush.bf16.msra.mxu0 %v97
  %119 = vmatpush.bf16.msra.mxu0 %v95
  %120 = vmatpush.bf16.msra.mxu0 %v93
  %121 = vmatpush.bf16.msra.mxu0 %v91
  %122 = vmatpush.bf16.msra.mxu0 %v89
  %123 = vmatpush.bf16.msra.mxu0 %v87
  %124 = vmatpush.bf16.msra.mxu0 %v85
  %125 = vmatmul.bf16.gmra.mxu0 %v20
  %v126 = vpop.f32.mrf.mxu0
  %v127 = vadd.f32 0.0, %v126
  %v128 = vpop.f32.mrf.mxu0
  %129 = vdwg.mxu0
  %130 = vmatpush.bf16.msra.mxu0 %v100
  %131 = vmatpush.bf16.msra.mxu0 %v98
  %132 = vmatpush.bf16.msra.mxu0 %v96
  %133 = vmatpush.bf16.msra.mxu0 %v94
  %134 = vmatpush.bf16.msra.mxu0 %v92
  %135 = vmatpush.bf16.msra.mxu0 %v90
  %136 = vmatpush.bf16.msra.mxu0 %v88
  %137 = vmatpush.bf16.msra.mxu0 %v86
  %138 = vmatmul.bf16.gmra.mxu0 %v20
  %v139 = vpop.f32.mrf.mxu0
  %v140 = vadd.f32 0.0, %v139
  %v141 = vpop.f32.mrf.mxu0
  %142 = vdwg.mxu0
  %v145 = vrot.slane %v140, 6
  %vm146 = vcmask 1041408
  %v147 = vsel %vm146, %v127, %v145
  %v149 = vadd.f32 %v19, %v147
  %150 = vst [vmem:[#allocation2] sm:$0xf] %v149
  // Predicated region
  $region18: #{simple_cnn_forward.10} parent=0 // pred_check
    %p151 = pneg %p14
  $region19: #{simple_cnn_forward.10} parent=0 // pred_check_branch
    %153 = sbr.rel (%p151) target = $region21
  $region20: #{simple_cnn_forward.10} parent=0 // pred_region
    %v154 = vld [vmem:[#allocation2] sm:$0xf]
    %v155 = vld [vmem:[%s2] sm:$0x3]
    %v157 = vperm.slane %v155, 0
    %v158 = vperm.slane %v155, 1
    %v159 = vrot.slane %v158, 6
    %v160 = vsel %vm146, %v157, %v159
    %v162 = vadd.f32 %v154, %v160
    %v163 = vmax.f32 %v162, 0.0
    %165 = vst [vmem:[#allocation1] ss:$4 sm:$0xff] %v163
    %v166 = vld.sshfl [vmem:[#allocation1] sm:$0xff pattern:$0x73625140]
    %v167 = vld.sshfl [vmem:[#allocation1 + $0x8] sm:$0xff pattern:$0x73625140]
    %v170 = vpack.c.bf16 %v167, %v166
    %v172 = vrot.slane %v170, 3
    %vm173 = vcmask 1040384
    %v176 = vsel %vm173, %v170, %v172
    %178 = vst [vmem:[%s3] sm:$0x3] %v176
  $region21: #{simple_cnn_forward.10} parent=0 // pred_fallthru
    _
  // Predicated region
  $region22: #{simple_cnn_forward.10} parent=0 // pred_check
    _
  $region23: #{simple_cnn_forward.10} parent=0 // pred_check_branch
    %180 = sbr.rel (0) target = $region25
  $region24: #{simple_cnn_forward.10} parent=0 // pred_region
    _
  $region25: #{simple_cnn_forward.10} parent=0 // pred_fallthru
    _
  // Predicated region
  $region26: #{simple_cnn_forward.10} parent=0 // pred_check
    _
  $region27: #{simple_cnn_forward.10} parent=0 // pred_check_branch
    %182 = sbr.rel (0) target = $region29
  $region28: #{simple_cnn_forward.10} parent=0 // pred_region
    _
  $region29: #{simple_cnn_forward.10} parent=0 // pred_fallthru
    _

// kernel: simple_cnn_forward.11
$region0: #{simple_cnn_forward.11}
  #allocation0 [shape = 'u32[]', space=smem, size = 0x4, offset = 0x4, fixed_abs, tag = 'smem constant byte address 0x4 - core index']
  #allocation1 [shape = 'u32[72,128]{1,0:T(1,128)}', space=vmem, size = 0x9000, scoped, tag = 'internal scratch']
  #allocation2 [shape = 'f32[2,128]{1,0:T(2,128)}', space=vmem, size = 0x400, scoped, tag = 'scratch operand']
  %s0 = inlined_call_operand.vmem [shape: bf16[2,256], index: 0, kind: input, shape index: {}]
  %s1 = inlined_call_operand.vmem [shape: bf16[256,128], index: 1, kind: input, shape index: {}]
  %s2 = inlined_call_operand.vmem [shape: f32[1,128], index: 2, kind: input, shape index: {}]
  %s3 = inlined_call_operand.hbm [shape: f32[2,128], index: 3, kind: output, shape index: {}]
  %s4 = sld [smem:[#allocation0]]
  $region30: #{simple_cnn_forward.11} parent=0
    _
  %s6 = ssub.s32 1, %s4
  %s7 = scalar_select 0, %s6, %s4
  $region1: #{simple_cnn_forward.11} parent=0
    #allocation3 [shape = 'u8[1024]{0}', space=vmem, size = 0x400, scoped, tag = 'output window, operand 0, single buffered']
    #allocation4 [shape = 's32[1]{0}', space=sflag, size = 0x4, scoped, tag = 'scoped memory for simple_cnn_forward.11']
    %8 = vsyncpa [#allocation4], 0
    // Predicated region
    $region2: #{simple_cnn_forward.11} parent=1 // pred_check
      _
    $region3: #{simple_cnn_forward.11} parent=1 // pred_check_branch
      %10 = sbr.rel (0) target = $region5
    $region4: #{simple_cnn_forward.11} parent=1 // pred_region
      _
    $region5: #{simple_cnn_forward.11} parent=1 // pred_fallthru
      _
    // Predicated region
    $region6: #{simple_cnn_forward.11} parent=1 // pred_check
      _
    $region7: #{simple_cnn_forward.11} parent=1 // pred_check_branch
      %12 = sbr.rel (0) target = $region9
    $region8: #{simple_cnn_forward.11} parent=1 // pred_region
      _
    $region9: #{simple_cnn_forward.11} parent=1 // pred_fallthru
      _
    // Predicated region
    $region10: #{simple_cnn_forward.11} parent=1 // pred_check
      _
    $region11: #{simple_cnn_forward.11} parent=1 // pred_check_branch
      %14 = sbr.rel (0) target = $region13
    $region12: #{simple_cnn_forward.11} parent=1 // pred_region
      _
    $region13: #{simple_cnn_forward.11} parent=1 // pred_fallthru
      _
    %p15 = scmp.eq.s32.totalorder 0, 0
    // Predicated region
    $region14: #{simple_cnn_forward.11} parent=1 // pred_check
      %p16 = pneg %p15
    $region15: #{simple_cnn_forward.11} parent=1 // pred_check_branch
      %18 = sbr.rel (%p16) target = $region17
    $region16: #{simple_cnn_forward.11} parent=1 // pred_region
      %19 = vst [vmem:[#allocation2] sm:$0x3] 0.0
    $region17: #{simple_cnn_forward.11} parent=1 // pred_fallthru
      _
    %v20 = vld [vmem:[#allocation2] sm:$0x3]
    %v21 = vld [vmem:[%s0] sm:$0x3]
    %v22 = vld [vmem:[%s1] sm:$0xf]
    %v23 = vld [vmem:[%s1 + $0x4] sm:$0xf]
    %v24 = vld [vmem:[%s1 + $0x8] sm:$0xf]
    %v25 = vld [vmem:[%s1 + $0xc] sm:$0xf]
    %v26 = vld [vmem:[%s1 + $0x10] sm:$0xf]
    %v27 = vld [vmem:[%s1 + $0x14] sm:$0xf]
    %v28 = vld [vmem:[%s1 + $0x18] sm:$0xf]
    %v29 = vld [vmem:[%s1 + $0x1c] sm:$0xf]
    %v30 = vld [vmem:[%s1 + $0x20] sm:$0xf]
    %v31 = vld [vmem:[%s1 + $0x24] sm:$0xf]
    %v32 = vld [vmem:[%s1 + $0x28] sm:$0xf]
    %v33 = vld [vmem:[%s1 + $0x2c] sm:$0xf]
    %v34 = vld [vmem:[%s1 + $0x30] sm:$0xf]
    %v35 = vld [vmem:[%s1 + $0x34] sm:$0xf]
    %v36 = vld [vmem:[%s1 + $0x38] sm:$0xf]
    %v37 = vld [vmem:[%s1 + $0x3c] sm:$0xf]
    %v38 = vld [vmem:[%s1 + $0x40] sm:$0xf]
    %v39 = vld [vmem:[%s1 + $0x44] sm:$0xf]
    %v40 = vld [vmem:[%s1 + $0x48] sm:$0xf]
    %v41 = vld [vmem:[%s1 + $0x4c] sm:$0xf]
    %v42 = vld [vmem:[%s1 + $0x50] sm:$0xf]
    %v43 = vld [vmem:[%s1 + $0x54] sm:$0xf]
    %v44 = vld [vmem:[%s1 + $0x58] sm:$0xf]
    %v45 = vld [vmem:[%s1 + $0x5c] sm:$0xf]
    %v46 = vld [vmem:[%s1 + $0x60] sm:$0xf]
    %v47 = vld [vmem:[%s1 + $0x64] sm:$0xf]
    %v48 = vld [vmem:[%s1 + $0x68] sm:$0xf]
    %v49 = vld [vmem:[%s1 + $0x6c] sm:$0xf]
    %v50 = vld [vmem:[%s1 + $0x70] sm:$0xf]
    %v51 = vld [vmem:[%s1 + $0x74] sm:$0xf]
    %v52 = vld [vmem:[%s1 + $0x78] sm:$0xf]
    %v53 = vld [vmem:[%s1 + $0x7c] sm:$0xf]
    %55 = vst [vmem:[#allocation1] ss:$9 sm:$0xff] %v21
    %v56 = vld [vmem:[#allocation1] sm:$0xff]
    %v57 = vld [vmem:[#allocation1 + $0x9] sm:$0xff]
    %v92 = vunpack.c.l.b16 %v22
    %v93 = vunpack.c.l.b16 %v23
    %v94 = vunpack.c.l.b16 %v24
    %v95 = vunpack.c.l.b16 %v25
    %v96 = vunpack.c.l.b16 %v26
    %v97 = vunpack.c.l.b16 %v27
    %v98 = vunpack.c.l.b16 %v28
    %v99 = vunpack.c.l.b16 %v29
    %v100 = vunpack.c.l.b16 %v30
    %v101 = vunpack.c.l.b16 %v31
    %v102 = vunpack.c.l.b16 %v32
    %v103 = vunpack.c.l.b16 %v33
    %v104 = vunpack.c.l.b16 %v34
    %v105 = vunpack.c.l.b16 %v35
    %v106 = vunpack.c.l.b16 %v36
    %v107 = vunpack.c.l.b16 %v37
    %v108 = vunpack.c.l.b16 %v38
    %v109 = vunpack.c.l.b16 %v39
    %v110 = vunpack.c.l.b16 %v40
    %v111 = vunpack.c.l.b16 %v41
    %v112 = vunpack.c.l.b16 %v42
    %v113 = vunpack.c.l.b16 %v43
    %v114 = vunpack.c.l.b16 %v44
    %v115 = vunpack.c.l.b16 %v45
    %v116 = vunpack.c.l.b16 %v46
    %v117 = vunpack.c.l.b16 %v47
    %v118 = vunpack.c.l.b16 %v48
    %v119 = vunpack.c.l.b16 %v49
    %v120 = vunpack.c.l.b16 %v50
    %v121 = vunpack.c.l.b16 %v51
    %v122 = vunpack.c.l.b16 %v52
    %v123 = vunpack.c.l.b16 %v53
    %v124 = vpack.c.b16 %v93, %v92
    %v125 = vpack.c.b16 %v95, %v94
    %v126 = vpack.c.b16 %v97, %v96
    %v127 = vpack.c.b16 %v99, %v98
    %v128 = vpack.c.b16 %v101, %v100
    %v129 = vpack.c.b16 %v103, %v102
    %v130 = vpack.c.b16 %v105, %v104
    %v131 = vpack.c.b16 %v107, %v106
    %v132 = vpack.c.b16 %v109, %v108
    %v133 = vpack.c.b16 %v111, %v110
    %v134 = vpack.c.b16 %v113, %v112
    %v135 = vpack.c.b16 %v115, %v114
    %v136 = vpack.c.b16 %v117, %v116
    %v137 = vpack.c.b16 %v119, %v118
    %v138 = vpack.c.b16 %v121, %v120
    %v139 = vpack.c.b16 %v123, %v122
    %156 = vmatpush.bf16.msra.mxu0 %v131
    %157 = vmatpush.bf16.msra.mxu0 %v130
    %158 = vmatpush.bf16.msra.mxu0 %v129
    %159 = vmatpush.bf16.msra.mxu0 %v128
    %160 = vmatpush.bf16.msra.mxu0 %v127
    %161 = vmatpush.bf16.msra.mxu0 %v126
    %162 = vmatpush.bf16.msra.mxu0 %v125
    %163 = vmatpush.bf16.msra.mxu0 %v124
    %164 = vmatmul.bf16.gmra.mxu0 %v56
    %v165 = vpop.f32.mrf.mxu0
    %v166 = vadd.f32 0.0, %v165
    %v167 = vpop.f32.mrf.mxu0
    %168 = vdwg.mxu0
    %169 = vmatpush.bf16.msra.mxu0 %v139
    %170 = vmatpush.bf16.msra.mxu0 %v138
    %171 = vmatpush.bf16.msra.mxu0 %v137
    %172 = vmatpush.bf16.msra.mxu0 %v136
    %173 = vmatpush.bf16.msra.mxu0 %v135
    %174 = vmatpush.bf16.msra.mxu0 %v134
    %175 = vmatpush.bf16.msra.mxu0 %v133
    %176 = vmatpush.bf16.msra.mxu0 %v132
    %177 = vmatmul.bf16.gmra.mxu0 %v57
    %v178 = vpop.f32.mrf.mxu0
    %v179 = vadd.f32 %v166, %v178
    %v180 = vpop.f32.mrf.mxu0
    %181 = vdwg.mxu0
    %v182 = vadd.f32 %v20, %v179
    %183 = vst [vmem:[#allocation2] sm:$0x3] %v182
    // Predicated region
    $region18: #{simple_cnn_forward.11} parent=1 // pred_check
      %p184 = pneg %p15
    $region19: #{simple_cnn_forward.11} parent=1 // pred_check_branch
      %186 = sbr.rel (%p184) target = $region21
    $region20: #{simple_cnn_forward.11} parent=1 // pred_region
      %v187 = vld [vmem:[#allocation2] sm:$0x3]
      %v188 = vld [vmem:[%s2] sm:$0x1]
      %v190 = vperm.slane %v188, 0
      %v192 = vadd.f32 %v187, %v190
      %193 = vst [vmem:[#allocation3] sm:$0x3] %v192
    $region21: #{simple_cnn_forward.11} parent=1 // pred_fallthru
      _
    // Predicated region
    $region22: #{simple_cnn_forward.11} parent=1 // pred_check
      _
    $region23: #{simple_cnn_forward.11} parent=1 // pred_check_branch
      %195 = sbr.rel (0) target = $region25
    $region24: #{simple_cnn_forward.11} parent=1 // pred_region
      %197 = vsyncadd [#allocation4], 0
      %s199 = sshll.u32 [#allocation3], 4
      %s200 = int_to_ptr.vmem [resolvable:$true] %s199
      %s201 = sshll.u32 %s3, 4
      %s202 = int_to_ptr.hbm [resolvable:$true] %s201
      %204 = dma.vmem_to_hbm [thread:$0]  %s200, 32, %s202, [#allocation4]
    $region25: #{simple_cnn_forward.11} parent=1 // pred_fallthru
      _
    // Predicated region
    $region26: #{simple_cnn_forward.11} parent=1 // pred_check
      _
    $region27: #{simple_cnn_forward.11} parent=1 // pred_check_branch
      %206 = sbr.rel (0) target = $region29
    $region28: #{simple_cnn_forward.11} parent=1 // pred_region
      %208 = dma.done [#allocation4], 32
    $region29: #{simple_cnn_forward.11} parent=1 // pred_fallthru
      _
    %209 = vsyncpa [#allocation4], 1

// kernel: simple_cnn_forward.6
$region0: #{simple_cnn_forward.6}
  #allocation0 [shape = 'u32[]', space=smem, size = 0x4, offset = 0x4, fixed_abs, tag = 'smem constant byte address 0x4 - core index']
  #allocation1 [shape = 'u32[72,128]{1,0:T(1,128)}', space=vmem, size = 0x9000, scoped, tag = 'internal scratch']
  #allocation2 [shape = 'f32[8,16,128]{2,1,0:T(8,128)}', space=vmem, size = 0x10000, scoped, tag = 'scratch operand']
  %s0 = inlined_call_operand.vmem [shape: bf16[2,1,18,18,8], index: 0, kind: input, shape index: {}]
  %s1 = inlined_call_operand.vmem [shape: bf16[9,8,128], index: 1, kind: input, shape index: {}]
  %s2 = inlined_call_operand.vmem [shape: f32[1,128], index: 2, kind: input, shape index: {}]
  %s3 = inlined_call_operand.vmem [shape: bf16[2,8,8,128], index: 3, kind: output, shape index: {}]
  %s4 = sld [smem:[#allocation0]]
  $region45: #{simple_cnn_forward.6} parent=0
    _
  %s6 = ssub.s32 1, %s4
  %s7 = scalar_select 0, %s6, %s4
  loop: start=0, step=1, limit=4
  $region2: #{simple_cnn_forward.6} parent=0 // loop_pre_header
    _
  $region3: #{simple_cnn_forward.6} parent=0 // loop_header
    %s9 = sphi 0, %s13
    %p10 = scmp.ge.s32.totalorder %s9, 4
    %s16 = sphi 0, %s28
    %s17 = sphi 0, %s24
    %s18 = sphi 0, %s16
    %s19 = sphi 0, %s17
    %s20 = sphi 0, %s18
    %s21 = sphi 0, %s19
    %s33 = sphi 0, %s35
    %s36 = sphi 0, %s33
    %s37 = sphi 0, %s36
    %s53 = sphi 0, %s37
    %s57 = sphi 0, %s57
    %s59 = sphi 0, %s57
    %s60 = sphi 0, %s59
    %s74 = sphi 0, %s60
    %s78 = sphi 0, %s78
    %s80 = sphi 0, %s78
    %s81 = sphi 0, %s80
    %s95 = sphi 0, %s81
    %s103 = sphi 0, %s105
    %s106 = sphi 0, %s103
    %s107 = sphi 0, %s106
    %s123 = sphi 0, %s107
  $region4: #{simple_cnn_forward.6} parent=0 // loop_header_branch
    %12 = sbr.rel (%p10) target = $region8
  $region5: #{simple_cnn_forward.6} parent=0 // loop_body
    %s14 = ssub.s32 %s9, 1
    %s15 = ssub.s32 %s9, 2
    %s22 = sadd.s32 1, %s17
    %p23 = scmp.ge.s32.totalorder %s22, 1
    %s24 = scalar_select %p23, 0, %s22
    %s25 = sadd.s32 1, %s16
    %s26 = scalar_select %p23, %s25, %s16
    %p27 = scmp.ge.s32.totalorder %s26, 2
    %s28 = scalar_select %p27, 0, %s26
    %s29 = ssub.s32 %s16, %s28
    %s30 = ssub.s32 %s17, %s24
    %s31 = sor.u32 %s29, %s30
    %p32 = scmp.eq.s32.totalorder %s31, 0
    %s34 = sadd.s32 %s33, 1
    %s35 = scalar_select %p32, %s33, %s34
    %p38 = pneg %p32
    %p39 = scmp.eq.s32.totalorder %s9, 1
    %p40 = por %p38, %p39
    %p41 = scmp.ne.s32.totalorder %s33, %s36
    %p42 = scmp.eq.s32.totalorder %s9, 0
    %p43 = por %p41, %p42
    %p44 = scmp.ne.s32.totalorder %s33, %s36
    %p45 = scmp.eq.s32.totalorder %s14, 1
    %p46 = por %p44, %p45
    %p47 = scmp.ne.s32.totalorder %s36, %s37
    %p48 = scmp.eq.s32.totalorder %s14, 0
    %p49 = por %p47, %p48
    %p50 = scmp.ne.s32.totalorder %s36, %s37
    %p51 = scmp.eq.s32.totalorder %s15, 1
    %p52 = por %p50, %p51
    %p54 = scmp.ne.s32.totalorder %s37, %s53
    %p55 = scmp.eq.s32.totalorder %s15, 0
    %p56 = por %p54, %p55
    %s58 = sadd.s32 %s57, 1
    %p61 = scmp.eq.s32.totalorder %s9, 1
    %p62 = scmp.ne.s32.totalorder %s57, %s59
    %p63 = scmp.eq.s32.totalorder %s9, 0
    %p64 = por %p62, %p63
    %p65 = scmp.ne.s32.totalorder %s57, %s59
    %p66 = scmp.eq.s32.totalorder %s14, 1
    %p67 = por %p65, %p66
    %p68 = scmp.ne.s32.totalorder %s59, %s60
    %p69 = scmp.eq.s32.totalorder %s14, 0
    %p70 = por %p68, %p69
    %p71 = scmp.ne.s32.totalorder %s59, %s60
    %p72 = scmp.eq.s32.totalorder %s15, 1
    %p73 = por %p71, %p72
    %p75 = scmp.ne.s32.totalorder %s60, %s74
    %p76 = scmp.eq.s32.totalorder %s15, 0
    %p77 = por %p75, %p76
    %s79 = sadd.s32 %s78, 1
    %p82 = scmp.eq.s32.totalorder %s9, 1
    %p83 = scmp.ne.s32.totalorder %s78, %s80
    %p84 = scmp.eq.s32.totalorder %s9, 0
    %p85 = por %p83, %p84
    %p86 = scmp.ne.s32.totalorder %s78, %s80
    %p87 = scmp.eq.s32.totalorder %s14, 1
    %p88 = por %p86, %p87
    %p89 = scmp.ne.s32.totalorder %s80, %s81
    %p90 = scmp.eq.s32.totalorder %s14, 0
    %p91 = por %p89, %p90
    %p92 = scmp.ne.s32.totalorder %s80, %s81
    %p93 = scmp.eq.s32.totalorder %s15, 1
    %p94 = por %p92, %p93
    %p96 = scmp.ne.s32.totalorder %s81, %s95
    %p97 = scmp.eq.s32.totalorder %s15, 0
    %p98 = por %p96, %p97
    %s99 = ssub.s32 %s16, %s28
    %s100 = ssub.s32 %s17, %s24
    %s101 = sor.u32 %s99, %s100
    %p102 = scmp.eq.s32.totalorder %s101, 0
    %s104 = sadd.s32 %s103, 1
    %s105 = scalar_select %p102, %s103, %s104
    %p108 = pneg %p102
    %p109 = scmp.eq.s32.totalorder %s9, 1
    %p110 = por %p108, %p109
    %p111 = scmp.ne.s32.totalorder %s103, %s106
    %p112 = scmp.eq.s32.totalorder %s9, 0
    %p113 = por %p111, %p112
    %p114 = scmp.ne.s32.totalorder %s103, %s106
    %p115 = scmp.eq.s32.totalorder %s14, 1
    %p116 = por %p114, %p115
    %p117 = scmp.ne.s32.totalorder %s106, %s107
    %p118 = scmp.eq.s32.totalorder %s14, 0
    %p119 = por %p117, %p118
    %p120 = scmp.ne.s32.totalorder %s106, %s107
    %p121 = scmp.eq.s32.totalorder %s15, 1
    %p122 = por %p120, %p121
    %p124 = scmp.ne.s32.totalorder %s107, %s123
    %p125 = scmp.eq.s32.totalorder %s15, 0
    %p126 = por %p124, %p125
    %p127 = scmp.le.s32.totalorder 1, %s9
    %p128 = scmp.lt.s32.totalorder %s9, 3
    %p129 = pnand %p127, %p128
    %p130 = pneg %p129
    // Predicated region
    $region9: #{simple_cnn_forward.6} parent=5 // pred_check
      _
    $region10: #{simple_cnn_forward.6} parent=5 // pred_check_branch
      %132 = sbr.rel (%p129) target = $region12
    $region11: #{simple_cnn_forward.6} parent=5 // pred_region
      %s133 = ssub.s32 %s9, 1
      // Predicated region
      $region13: #{simple_cnn_forward.6} parent=11 // pred_check
        %p134 = pneg %p70
      $region14: #{simple_cnn_forward.6} parent=11 // pred_check_branch
        %136 = sbr.rel (%p134) target = $region16
      $region15: #{simple_cnn_forward.6} parent=11 // pred_region
        _
      $region16: #{simple_cnn_forward.6} parent=11 // pred_fallthru
        _
      // Predicated region
      $region17: #{simple_cnn_forward.6} parent=11 // pred_check
        %p137 = pneg %p91
      $region18: #{simple_cnn_forward.6} parent=11 // pred_check_branch
        %139 = sbr.rel (%p137) target = $region20
      $region19: #{simple_cnn_forward.6} parent=11 // pred_region
        _
      $region20: #{simple_cnn_forward.6} parent=11 // pred_fallthru
        _
    $region12: #{simple_cnn_forward.6} parent=5 // pred_fallthru
      _
    %p140 = scmp.lt.s32.totalorder %s9, 2
    // Predicated region
    $region21: #{simple_cnn_forward.6} parent=5 // pred_check
      %p141 = pneg %p140
    $region22: #{simple_cnn_forward.6} parent=5 // pred_check_branch
      %143 = sbr.rel (%p141) target = $region24
    $region23: #{simple_cnn_forward.6} parent=5 // pred_region
      // Predicated region
      $region25: #{simple_cnn_forward.6} parent=23 // pred_check
        %p144 = pneg %p43
      $region26: #{simple_cnn_forward.6} parent=23 // pred_check_branch
        %146 = sbr.rel (%p144) target = $region28
      $region27: #{simple_cnn_forward.6} parent=23 // pred_region
        %p147 = scmp.lt.s32.totalorder %s16, 1
        %s148 = scalar_select %p147, %s16, 1
        %p149 = scmp.lt.s32.totalorder %s17, 0
        %s150 = scalar_select %p149, %s17, 0
        %s151 = smul.addr %s150, 54
        %s152 = smul.addr %s148, 54
        %s153 = sadd.s32 %s151, %s152
        %s154 = smul.addr %s153, 4
        %s155 = scalar_lea.vmem %s0, %s154
      $region28: #{simple_cnn_forward.6} parent=23 // pred_fallthru
        _
    $region24: #{simple_cnn_forward.6} parent=5 // pred_fallthru
      _
    %p156 = scmp.le.s32.totalorder 1, %s9
    %p157 = scmp.lt.s32.totalorder %s9, 3
    %p158 = pnand %p156, %p157
    %p159 = pneg %p158
    // Predicated region
    $region29: #{simple_cnn_forward.6} parent=5 // pred_check
      _
    $region30: #{simple_cnn_forward.6} parent=5 // pred_check_branch
      %161 = sbr.rel (%p158) target = $region32
    $region31: #{simple_cnn_forward.6} parent=5 // pred_region
      %s162 = ssub.s32 %s9, 1
      %p163 = scmp.lt.s32.totalorder %s18, 1
      %s164 = scalar_select %p163, %s18, 1
      %p165 = scmp.lt.s32.totalorder %s19, 0
      %s166 = scalar_select %p165, %s19, 0
      %s167 = smul.addr %s166, 54
      %s168 = smul.addr %s164, 54
      %s169 = sadd.s32 %s167, %s168
      %s170 = smul.addr %s169, 4
      %s171 = scalar_lea.vmem %s0, %s170
      %p172 = pneg %p49
      %p173 = pneg %p46
      %p174 = pneg %p70
      %p175 = pneg %p67
      %p176 = pneg %p91
      %p177 = pneg %p88
      %p178 = pneg %p119
      %p179 = pneg %p116
      %s180 = smul.u32 8, %s19
      %p181 = scmp.lt.s32.totalorder %s18, 1
      %s182 = scalar_select %p181, %s18, 1
      %p183 = scmp.lt.s32.totalorder %s180, 7
      %s184 = scalar_select %p183, %s180, 7
      %s185 = smul.addr %s182, 8
      %s186 = sadd.s32 %s184, %s185
      %s187 = smul.addr %s186, 4
      %s188 = scalar_lea.vmem %s3, %s187
      %p189 = scmp.lt.s32.totalorder %s18, 1
      %s190 = scalar_select %p189, %s18, 1
      %p191 = scmp.lt.s32.totalorder %s19, 0
      %s192 = scalar_select %p191, %s19, 0
      %s193 = smul.addr %s192, 54
      %s194 = smul.addr %s190, 54
      %s195 = sadd.s32 %s193, %s194
      %s196 = smul.addr %s195, 4
      %s197 = scalar_lea.vmem %s0, %s196
      %s198 = smul.u32 8, %s19
      %p199 = scmp.lt.s32.totalorder %s18, 1
      %s200 = scalar_select %p199, %s18, 1
      %p201 = scmp.lt.s32.totalorder %s198, 7
      %s202 = scalar_select %p201, %s198, 7
      %s203 = smul.addr %s200, 8
      %s204 = sadd.s32 %s202, %s203
      %s205 = smul.addr %s204, 4
      %s206 = scalar_lea.vmem %s3, %s205
      %s207 = smul.u32 8, %s19
      %v209 = vld [vmem:[%s197] sm:$0xf]
      %v210 = vld [vmem:[%s197 + $0x4] sm:$0xf]
      %v211 = vld [vmem:[%s197 + $0xc] sm:$0xf]
      %v212 = vld [vmem:[%s197 + $0x10] sm:$0xf]
      %v213 = vld [vmem:[%s197 + $0x18] sm:$0xf]
      %v214 = vld [vmem:[%s197 + $0x1c] sm:$0xf]
      %v215 = vld [vmem:[%s197 + $0x24] sm:$0xf]
      %v216 = vld [vmem:[%s197 + $0x28] sm:$0xf]
      %v217 = vld [vmem:[%s197 + $0x30] sm:$0xf]
      %v218 = vld [vmem:[%s197 + $0x34] sm:$0xf]
      %v219 = vld [vmem:[%s197 + $0x3c] sm:$0xf]
      %v220 = vld [vmem:[%s197 + $0x40] sm:$0xf]
      %v221 = vld [vmem:[%s197 + $0x48] sm:$0xf]
      %v222 = vld [vmem:[%s197 + $0x4c] sm:$0xf]
      %v223 = vld [vmem:[%s197 + $0x54] sm:$0xf]
      %v224 = vld [vmem:[%s197 + $0x58] sm:$0xf]
      %v225 = vld [vmem:[%s197 + $0x60] sm:$0xf]
      %v226 = vld [vmem:[%s197 + $0x64] sm:$0xf]
      %v227 = vld [vmem:[%s197 + $0x6c] sm:$0xf]
      %v228 = vld [vmem:[%s197 + $0x70] sm:$0xf]
      %v229 = vld [vmem:[%s197 + $0x78] sm:$0xf]
      %v230 = vld [vmem:[%s197 + $0x7c] sm:$0xf]
      %v231 = vld [vmem:[%s197 + $0x84] sm:$0xf]
      %v232 = vld [vmem:[%s197 + $0x88] sm:$0xf]
      %v233 = vld [vmem:[%s197 + $0x90] sm:$0xf]
      %v234 = vld [vmem:[%s197 + $0x94] sm:$0xf]
      %v235 = vld [vmem:[%s197 + $0x9c] sm:$0xf]
      %v236 = vld [vmem:[%s197 + $0xa0] sm:$0xf]
      %v237 = vld [vmem:[%s197 + $0xa8] sm:$0xf]
      %v238 = vld [vmem:[%s197 + $0xac] sm:$0xf]
      %v239 = vld [vmem:[%s197 + $0xb4] sm:$0xf]
      %v240 = vld [vmem:[%s197 + $0xb8] sm:$0xf]
      %v241 = vld [vmem:[%s1] sm:$0xf]
      %v242 = vld [vmem:[%s197 + $0x8] sm:$0x1]
      %v243 = vld [vmem:[%s197 + $0x14] sm:$0x1]
      %v244 = vld [vmem:[%s197 + $0x20] sm:$0x1]
      %v245 = vld [vmem:[%s197 + $0x2c] sm:$0x1]
      %v246 = vld [vmem:[%s197 + $0x38] sm:$0x1]
      %v247 = vld [vmem:[%s197 + $0x44] sm:$0x1]
      %v248 = vld [vmem:[%s197 + $0x50] sm:$0x1]
      %v249 = vld [vmem:[%s197 + $0x5c] sm:$0x1]
      %v250 = vld [vmem:[%s197 + $0x68] sm:$0x1]
      %v251 = vld [vmem:[%s197 + $0x74] sm:$0x1]
      %v252 = vld [vmem:[%s197 + $0x80] sm:$0x1]
      %v253 = vld [vmem:[%s197 + $0x8c] sm:$0x1]
      %v254 = vld [vmem:[%s197 + $0x98] sm:$0x1]
      %v255 = vld [vmem:[%s197 + $0xa4] sm:$0x1]
      %v256 = vld [vmem:[%s197 + $0xb0] sm:$0x1]
      %v257 = vld [vmem:[%s197 + $0xbc] sm:$0x1]
      %vm258 = vsmask.f32 3328
      %vm259 = vsmask.f32 7440
      %vm260 = vmor %vm258, %vm259
      %v262 = vshrl.u32 %v209, 16
      %v264 = vrot.slane %v262, 4
      %v265 = vshll.u32 %v209, 16
      %v267 = vrot.slane %v265, 5
      %v268 = vor.u32 %v264, %v267
      %v269 = vrot.slane %v268, 4
      %v271 = vshll.u32 %v210, 16
      %v273 = vrot.slane %v271, 5
      %v274 = vsel %vm260, %v269, %v273
      %v275 = vshrl.u32 %v210, 16
      %v277 = vrot.slane %v275, 4
      %v278 = vor.u32 %v277, %v273
      %v279 = vrot.slane %v278, 4
      %v281 = vshll.u32 %v242, 16
      %v283 = vrot.slane %v281, 5
      %v284 = vsel %vm260, %v279, %v283
      %v286 = vshrl.u32 %v211, 16
      %v288 = vrot.slane %v286, 4
      %v289 = vshll.u32 %v211, 16
      %v291 = vrot.slane %v289, 5
      %v292 = vor.u32 %v288, %v291
      %v293 = vrot.slane %v292, 4
      %v295 = vshll.u32 %v212, 16
      %v297 = vrot.slane %v295, 5
      %v298 = vsel %vm260, %v293, %v297
      %v299 = vshrl.u32 %v212, 16
      %v301 = vrot.slane %v299, 4
      %v302 = vor.u32 %v301, %v297
      %v303 = vrot.slane %v302, 4
      %v305 = vshll.u32 %v243, 16
      %v307 = vrot.slane %v305, 5
      %v308 = vsel %vm260, %v303, %v307
      %v310 = vshrl.u32 %v213, 16
      %v312 = vrot.slane %v310, 4
      %v313 = vshll.u32 %v213, 16
      %v315 = vrot.slane %v313, 5
      %v316 = vor.u32 %v312, %v315
      %v317 = vrot.slane %v316, 4
      %v319 = vshll.u32 %v214, 16
      %v321 = vrot.slane %v319, 5
      %v322 = vsel %vm260, %v317, %v321
      %v323 = vshrl.u32 %v214, 16
      %v325 = vrot.slane %v323, 4
      %v326 = vor.u32 %v325, %v321
      %v327 = vrot.slane %v326, 4
      %v329 = vshll.u32 %v244, 16
      %v331 = vrot.slane %v329, 5
      %v332 = vsel %vm260, %v327, %v331
      %v334 = vshrl.u32 %v215, 16
      %v336 = vrot.slane %v334, 4
      %v337 = vshll.u32 %v215, 16
      %v339 = vrot.slane %v337, 5
      %v340 = vor.u32 %v336, %v339
      %v341 = vrot.slane %v340, 4
      %v343 = vshll.u32 %v216, 16
      %v345 = vrot.slane %v343, 5
      %v346 = vsel %vm260, %v341, %v345
      %v347 = vshrl.u32 %v216, 16
      %v349 = vrot.slane %v347, 4
      %v350 = vor.u32 %v349, %v345
      %v351 = vrot.slane %v350, 4
      %v353 = vshll.u32 %v245, 16
      %v355 = vrot.slane %v353, 5
      %v356 = vsel %vm260, %v351, %v355
      %v358 = vshrl.u32 %v217, 16
      %v360 = vrot.slane %v358, 4
      %v361 = vshll.u32 %v217, 16
      %v363 = vrot.slane %v361, 5
      %v364 = vor.u32 %v360, %v363
      %v365 = vrot.slane %v364, 4
      %v367 = vshll.u32 %v218, 16
      %v369 = vrot.slane %v367, 5
      %v370 = vsel %vm260, %v365, %v369
      %v371 = vshrl.u32 %v218, 16
      %v373 = vrot.slane %v371, 4
      %v374 = vor.u32 %v373, %v369
      %v375 = vrot.slane %v374, 4
      %v377 = vshll.u32 %v246, 16
      %v379 = vrot.slane %v377, 5
      %v380 = vsel %vm260, %v375, %v379
      %v382 = vshrl.u32 %v219, 16
      %v384 = vrot.slane %v382, 4
      %v385 = vshll.u32 %v219, 16
      %v387 = vrot.slane %v385, 5
      %v388 = vor.u32 %v384, %v387
      %v389 = vrot.slane %v388, 4
      %v391 = vshll.u32 %v220, 16
      %v393 = vrot.slane %v391, 5
      %v394 = vsel %vm260, %v389, %v393
      %v395 = vshrl.u32 %v220, 16
      %v397 = vrot.slane %v395, 4
      %v398 = vor.u32 %v397, %v393
      %v399 = vrot.slane %v398, 4
      %v401 = vshll.u32 %v247, 16
      %v403 = vrot.slane %v401, 5
      %v404 = vsel %vm260, %v399, %v403
      %v406 = vshrl.u32 %v221, 16
      %v408 = vrot.slane %v406, 4
      %v409 = vshll.u32 %v221, 16
      %v411 = vrot.slane %v409, 5
      %v412 = vor.u32 %v408, %v411
      %v413 = vrot.slane %v412, 4
      %v415 = vshll.u32 %v222, 16
      %v417 = vrot.slane %v415, 5
      %v418 = vsel %vm260, %v413, %v417
      %v419 = vshrl.u32 %v222, 16
      %v421 = vrot.slane %v419, 4
      %v422 = vor.u32 %v421, %v417
      %v423 = vrot.slane %v422, 4
      %v425 = vshll.u32 %v248, 16
      %v427 = vrot.slane %v425, 5
      %v428 = vsel %vm260, %v423, %v427
      %v430 = vshrl.u32 %v223, 16
      %v432 = vrot.slane %v430, 4
      %v433 = vshll.u32 %v223, 16
      %v435 = vrot.slane %v433, 5
      %v436 = vor.u32 %v432, %v435
      %v437 = vrot.slane %v436, 4
      %v439 = vshll.u32 %v224, 16
      %v441 = vrot.slane %v439, 5
      %v442 = vsel %vm260, %v437, %v441
      %v443 = vshrl.u32 %v224, 16
      %v445 = vrot.slane %v443, 4
      %v446 = vor.u32 %v445, %v441
      %v447 = vrot.slane %v446, 4
      %v449 = vshll.u32 %v249, 16
      %v451 = vrot.slane %v449, 5
      %v452 = vsel %vm260, %v447, %v451
      %v454 = vshrl.u32 %v225, 16
      %v456 = vrot.slane %v454, 4
      %v457 = vshll.u32 %v225, 16
      %v459 = vrot.slane %v457, 5
      %v460 = vor.u32 %v456, %v459
      %v461 = vrot.slane %v460, 4
      %v463 = vshll.u32 %v226, 16
      %v465 = vrot.slane %v463, 5
      %v466 = vsel %vm260, %v461, %v465
      %v467 = vshrl.u32 %v226, 16
      %v469 = vrot.slane %v467, 4
      %v470 = vor.u32 %v469, %v465
      %v471 = vrot.slane %v470, 4
      %v473 = vshll.u32 %v250, 16
      %v475 = vrot.slane %v473, 5
      %v476 = vsel %vm260, %v471, %v475
      %v478 = vshrl.u32 %v227, 16
      %v480 = vrot.slane %v478, 4
      %v481 = vshll.u32 %v227, 16
      %v483 = vrot.slane %v481, 5
      %v484 = vor.u32 %v480, %v483
      %v485 = vrot.slane %v484, 4
      %v487 = vshll.u32 %v228, 16
      %v489 = vrot.slane %v487, 5
      %v490 = vsel %vm260, %v485, %v489
      %v491 = vshrl.u32 %v228, 16
      %v493 = vrot.slane %v491, 4
      %v494 = vor.u32 %v493, %v489
      %v495 = vrot.slane %v494, 4
      %v497 = vshll.u32 %v251, 16
      %v499 = vrot.slane %v497, 5
      %v500 = vsel %vm260, %v495, %v499
      %v502 = vshrl.u32 %v229, 16
      %v504 = vrot.slane %v502, 4
      %v505 = vshll.u32 %v229, 16
      %v507 = vrot.slane %v505, 5
      %v508 = vor.u32 %v504, %v507
      %v509 = vrot.slane %v508, 4
      %v511 = vshll.u32 %v230, 16
      %v513 = vrot.slane %v511, 5
      %v514 = vsel %vm260, %v509, %v513
      %v515 = vshrl.u32 %v230, 16
      %v517 = vrot.slane %v515, 4
      %v518 = vor.u32 %v517, %v513
      %v519 = vrot.slane %v518, 4
      %v521 = vshll.u32 %v252, 16
      %v523 = vrot.slane %v521, 5
      %v524 = vsel %vm260, %v519, %v523
      %v526 = vshrl.u32 %v231, 16
      %v528 = vrot.slane %v526, 4
      %v529 = vshll.u32 %v231, 16
      %v531 = vrot.slane %v529, 5
      %v532 = vor.u32 %v528, %v531
      %v533 = vrot.slane %v532, 4
      %v535 = vshll.u32 %v232, 16
      %v537 = vrot.slane %v535, 5
      %v538 = vsel %vm260, %v533, %v537
      %v539 = vshrl.u32 %v232, 16
      %v541 = vrot.slane %v539, 4
      %v542 = vor.u32 %v541, %v537
      %v543 = vrot.slane %v542, 4
      %v545 = vshll.u32 %v253, 16
      %v547 = vrot.slane %v545, 5
      %v548 = vsel %vm260, %v543, %v547
      %v550 = vshrl.u32 %v233, 16
      %v552 = vrot.slane %v550, 4
      %v553 = vshll.u32 %v233, 16
      %v555 = vrot.slane %v553, 5
      %v556 = vor.u32 %v552, %v555
      %v557 = vrot.slane %v556, 4
      %v559 = vshll.u32 %v234, 16
      %v561 = vrot.slane %v559, 5
      %v562 = vsel %vm260, %v557, %v561
      %v563 = vshrl.u32 %v234, 16
      %v565 = vrot.slane %v563, 4
      %v566 = vor.u32 %v565, %v561
      %v567 = vrot.slane %v566, 4
      %v569 = vshll.u32 %v254, 16
      %v571 = vrot.slane %v569, 5
      %v572 = vsel %vm260, %v567, %v571
      %v574 = vshrl.u32 %v235, 16
      %v576 = vrot.slane %v574, 4
      %v577 = vshll.u32 %v235, 16
      %v579 = vrot.slane %v577, 5
      %v580 = vor.u32 %v576, %v579
      %v581 = vrot.slane %v580, 4
      %v583 = vshll.u32 %v236, 16
      %v585 = vrot.slane %v583, 5
      %v586 = vsel %vm260, %v581, %v585
      %v587 = vshrl.u32 %v236, 16
      %v589 = vrot.slane %v587, 4
      %v590 = vor.u32 %v589, %v585
      %v591 = vrot.slane %v590, 4
      %v593 = vshll.u32 %v255, 16
      %v595 = vrot.slane %v593, 5
      %v596 = vsel %vm260, %v591, %v595
      %v598 = vshrl.u32 %v237, 16
      %v600 = vrot.slane %v598, 4
      %v601 = vshll.u32 %v237, 16
      %v603 = vrot.slane %v601, 5
      %v604 = vor.u32 %v600, %v603
      %v605 = vrot.slane %v604, 4
      %v607 = vshll.u32 %v238, 16
      %v609 = vrot.slane %v607, 5
      %v610 = vsel %vm260, %v605, %v609
      %v611 = vshrl.u32 %v238, 16
      %v613 = vrot.slane %v611, 4
      %v614 = vor.u32 %v613, %v609
      %v615 = vrot.slane %v614, 4
      %v617 = vshll.u32 %v256, 16
      %v619 = vrot.slane %v617, 5
      %v620 = vsel %vm260, %v615, %v619
      %v622 = vshrl.u32 %v239, 16
      %v624 = vrot.slane %v622, 4
      %v625 = vshll.u32 %v239, 16
      %v627 = vrot.slane %v625, 5
      %v628 = vor.u32 %v624, %v627
      %v629 = vrot.slane %v628, 4
      %v631 = vshll.u32 %v240, 16
      %v633 = vrot.slane %v631, 5
      %v634 = vsel %vm260, %v629, %v633
      %v635 = vshrl.u32 %v240, 16
      %v637 = vrot.slane %v635, 4
      %v638 = vor.u32 %v637, %v633
      %v639 = vrot.slane %v638, 4
      %v641 = vshll.u32 %v257, 16
      %v643 = vrot.slane %v641, 5
      %v644 = vsel %vm260, %v639, %v643
      %s645 = scalar_lea.vmem %s1, 4
      %v646 = vld [vmem:[%s645] sm:$0xf]
      %v647 = vunpack.c.l.b16 %v274
      %v648 = vunpack.c.l.b16 %v284
      %v649 = vunpack.c.l.b16 %v298
      %v650 = vunpack.c.l.b16 %v308
      %v651 = vunpack.c.l.b16 %v322
      %v652 = vunpack.c.l.b16 %v332
      %v653 = vunpack.c.l.b16 %v346
      %v654 = vunpack.c.l.b16 %v356
      %v655 = vunpack.c.l.b16 %v370
      %v656 = vunpack.c.l.b16 %v380
      %v657 = vunpack.c.l.b16 %v394
      %v658 = vunpack.c.l.b16 %v404
      %v659 = vunpack.c.l.b16 %v418
      %v660 = vunpack.c.l.b16 %v428
      %v661 = vunpack.c.l.b16 %v442
      %v662 = vunpack.c.l.b16 %v452
      %v663 = vunpack.c.l.b16 %v466
      %v664 = vunpack.c.l.b16 %v476
      %v665 = vunpack.c.l.b16 %v490
      %v666 = vunpack.c.l.b16 %v500
      %v667 = vunpack.c.l.b16 %v514
      %v668 = vunpack.c.l.b16 %v524
      %v669 = vunpack.c.l.b16 %v538
      %v670 = vunpack.c.l.b16 %v548
      %v671 = vunpack.c.l.b16 %v562
      %v672 = vunpack.c.l.b16 %v572
      %v673 = vunpack.c.l.b16 %v586
      %v674 = vunpack.c.l.b16 %v596
      %v675 = vunpack.c.l.b16 %v610
      %v676 = vunpack.c.l.b16 %v620
      %v677 = vunpack.c.l.b16 %v634
      %v678 = vunpack.c.l.b16 %v644
      %v679 = vpack.c.b16 %v648, %v647
      %v680 = vpack.c.b16 %v650, %v649
      %v681 = vpack.c.b16 %v652, %v651
      %v682 = vpack.c.b16 %v654, %v653
      %v683 = vpack.c.b16 %v656, %v655
      %v684 = vpack.c.b16 %v658, %v657
      %v685 = vpack.c.b16 %v660, %v659
      %v686 = vpack.c.b16 %v662, %v661
      %v687 = vpack.c.b16 %v664, %v663
      %v688 = vpack.c.b16 %v666, %v665
      %v689 = vpack.c.b16 %v668, %v667
      %v690 = vpack.c.b16 %v670, %v669
      %v691 = vpack.c.b16 %v672, %v671
      %v692 = vpack.c.b16 %v674, %v673
      %v693 = vpack.c.b16 %v676, %v675
      %v694 = vpack.c.b16 %v678, %v677
      %vm695 = vcmask 64512
      %v697 = vsel %vm695, %v679, 0
      %v700 = vsel %vm695, %v680, 0
      %v703 = vsel %vm695, %v681, 0
      %v706 = vsel %vm695, %v682, 0
      %v709 = vsel %vm695, %v683, 0
      %v712 = vsel %vm695, %v684, 0
      %v715 = vsel %vm695, %v685, 0
      %v718 = vsel %vm695, %v686, 0
      %v721 = vsel %vm695, %v687, 0
      %v724 = vsel %vm695, %v688, 0
      %v727 = vsel %vm695, %v689, 0
      %v730 = vsel %vm695, %v690, 0
      %v733 = vsel %vm695, %v691, 0
      %v736 = vsel %vm695, %v692, 0
      %v739 = vsel %vm695, %v693, 0
      %v742 = vsel %vm695, %v694, 0
      %vm744 = vcmask 1043456
      %v746 = vsel %vm744, %v646, 0
      %748 = vmatpush.bf16.msra.mxu0 0
      %749 = vmatpush.bf16.msra.mxu0 0
      %750 = vmatpush.bf16.msra.mxu0 0
      %751 = vmatpush.bf16.msra.mxu0 0
      %752 = vmatpush.bf16.msra.mxu0 0
      %753 = vmatpush.bf16.msra.mxu0 0
      %754 = vmatpush.bf16.msra.mxu0 0
      %755 = vmatpush.bf16.msra.mxu0 %v746
      %756 = vmatmul.bf16.gmra.mxu0 %v697
      %v757 = vpop.f32.mrf.mxu0
      %v758 = vadd.f32 0.0, %v757
      %v759 = vpop.f32.mrf.mxu0
      %v760 = vadd.f32 0.0, %v759
      %761 = vmatmul.bf16.gmra.mxu0 %v700
      %v762 = vpop.f32.mrf.mxu0
      %v763 = vadd.f32 0.0, %v762
      %v764 = vpop.f32.mrf.mxu0
      %v765 = vadd.f32 0.0, %v764
      %766 = vmatmul.bf16.gmra.mxu0 %v703
      %v767 = vpop.f32.mrf.mxu0
      %v768 = vadd.f32 0.0, %v767
      %v769 = vpop.f32.mrf.mxu0
      %v770 = vadd.f32 0.0, %v769
      %771 = vmatmul.bf16.gmra.mxu0 %v706
      %v772 = vpop.f32.mrf.mxu0
      %v773 = vadd.f32 0.0, %v772
      %v774 = vpop.f32.mrf.mxu0
      %v775 = vadd.f32 0.0, %v774
      %776 = vmatmul.bf16.gmra.mxu0 %v709
      %v777 = vpop.f32.mrf.mxu0
      %v778 = vadd.f32 0.0, %v777
      %v779 = vpop.f32.mrf.mxu0
      %v780 = vadd.f32 0.0, %v779
      %781 = vmatmul.bf16.gmra.mxu0 %v712
      %v782 = vpop.f32.mrf.mxu0
      %v783 = vadd.f32 0.0, %v782
      %v784 = vpop.f32.mrf.mxu0
      %v785 = vadd.f32 0.0, %v784
      %786 = vmatmul.bf16.gmra.mxu0 %v715
      %v787 = vpop.f32.mrf.mxu0
      %v788 = vadd.f32 0.0, %v787
      %v789 = vpop.f32.mrf.mxu0
      %v790 = vadd.f32 0.0, %v789
      %791 = vmatmul.bf16.gmra.mxu0 %v718
      %v792 = vpop.f32.mrf.mxu0
      %v793 = vadd.f32 0.0, %v792
      %v794 = vpop.f32.mrf.mxu0
      %v795 = vadd.f32 0.0, %v794
      %796 = vmatmul.bf16.gmra.mxu0 %v721
      %v797 = vpop.f32.mrf.mxu0
      %v798 = vadd.f32 0.0, %v797
      %v799 = vpop.f32.mrf.mxu0
      %v800 = vadd.f32 0.0, %v799
      %801 = vmatmul.bf16.gmra.mxu0 %v724
      %v802 = vpop.f32.mrf.mxu0
      %v803 = vadd.f32 0.0, %v802
      %v804 = vpop.f32.mrf.mxu0
      %v805 = vadd.f32 0.0, %v804
      %806 = vmatmul.bf16.gmra.mxu0 %v727
      %v807 = vpop.f32.mrf.mxu0
      %v808 = vadd.f32 0.0, %v807
      %v809 = vpop.f32.mrf.mxu0
      %v810 = vadd.f32 0.0, %v809
      %811 = vmatmul.bf16.gmra.mxu0 %v730
      %v812 = vpop.f32.mrf.mxu0
      %v813 = vadd.f32 0.0, %v812
      %v814 = vpop.f32.mrf.mxu0
      %v815 = vadd.f32 0.0, %v814
      %816 = vmatmul.bf16.gmra.mxu0 %v733
      %v817 = vpop.f32.mrf.mxu0
      %v818 = vadd.f32 0.0, %v817
      %v819 = vpop.f32.mrf.mxu0
      %v820 = vadd.f32 0.0, %v819
      %821 = vmatmul.bf16.gmra.mxu0 %v736
      %v822 = vpop.f32.mrf.mxu0
      %v823 = vadd.f32 0.0, %v822
      %v824 = vpop.f32.mrf.mxu0
      %v825 = vadd.f32 0.0, %v824
      %826 = vmatmul.bf16.gmra.mxu0 %v739
      %v827 = vpop.f32.mrf.mxu0
      %v828 = vadd.f32 0.0, %v827
      %v829 = vpop.f32.mrf.mxu0
      %v830 = vadd.f32 0.0, %v829
      %831 = vmatmul.bf16.gmra.mxu0 %v742
      %v832 = vpop.f32.mrf.mxu0
      %v833 = vadd.f32 0.0, %v832
      %v834 = vpop.f32.mrf.mxu0
      %v835 = vadd.f32 0.0, %v834
      %836 = vdwg.mxu0
      %v869 = vunpack.c.l.b16 %v209
      %v870 = vunpack.c.l.b16 %v210
      %v871 = vunpack.c.l.b16 %v211
      %v872 = vunpack.c.l.b16 %v212
      %v873 = vunpack.c.l.b16 %v213
      %v874 = vunpack.c.l.b16 %v214
      %v875 = vunpack.c.l.b16 %v215
      %v876 = vunpack.c.l.b16 %v216
      %v877 = vunpack.c.l.b16 %v217
      %v878 = vunpack.c.l.b16 %v218
      %v879 = vunpack.c.l.b16 %v219
      %v880 = vunpack.c.l.b16 %v220
      %v881 = vunpack.c.l.b16 %v221
      %v882 = vunpack.c.l.b16 %v222
      %v883 = vunpack.c.l.b16 %v223
      %v884 = vunpack.c.l.b16 %v224
      %v885 = vunpack.c.l.b16 %v225
      %v886 = vunpack.c.l.b16 %v226
      %v887 = vunpack.c.l.b16 %v227
      %v888 = vunpack.c.l.b16 %v228
      %v889 = vunpack.c.l.b16 %v229
      %v890 = vunpack.c.l.b16 %v230
      %v891 = vunpack.c.l.b16 %v231
      %v892 = vunpack.c.l.b16 %v232
      %v893 = vunpack.c.l.b16 %v233
      %v894 = vunpack.c.l.b16 %v234
      %v895 = vunpack.c.l.b16 %v235
      %v896 = vunpack.c.l.b16 %v236
      %v897 = vunpack.c.l.b16 %v237
      %v898 = vunpack.c.l.b16 %v238
      %v899 = vunpack.c.l.b16 %v239
      %v900 = vunpack.c.l.b16 %v240
      %v901 = vpack.c.b16 %v870, %v869
      %v902 = vpack.c.b16 %v872, %v871
      %v903 = vpack.c.b16 %v874, %v873
      %v904 = vpack.c.b16 %v876, %v875
      %v905 = vpack.c.b16 %v878, %v877
      %v906 = vpack.c.b16 %v880, %v879
      %v907 = vpack.c.b16 %v882, %v881
      %v908 = vpack.c.b16 %v884, %v883
      %v909 = vpack.c.b16 %v886, %v885
      %v910 = vpack.c.b16 %v888, %v887
      %v911 = vpack.c.b16 %v890, %v889
      %v912 = vpack.c.b16 %v892, %v891
      %v913 = vpack.c.b16 %v894, %v893
      %v914 = vpack.c.b16 %v896, %v895
      %v915 = vpack.c.b16 %v898, %v897
      %v916 = vpack.c.b16 %v900, %v899
      %v918 = vsel %vm695, %v901, 0
      %v921 = vsel %vm695, %v902, 0
      %v924 = vsel %vm695, %v903, 0
      %v927 = vsel %vm695, %v904, 0
      %v930 = vsel %vm695, %v905, 0
      %v933 = vsel %vm695, %v906, 0
      %v936 = vsel %vm695, %v907, 0
      %v939 = vsel %vm695, %v908, 0
      %v942 = vsel %vm695, %v909, 0
      %v945 = vsel %vm695, %v910, 0
      %v948 = vsel %vm695, %v911, 0
      %v951 = vsel %vm695, %v912, 0
      %v954 = vsel %vm695, %v913, 0
      %v957 = vsel %vm695, %v914, 0
      %v960 = vsel %vm695, %v915, 0
      %v963 = vsel %vm695, %v916, 0
      %v966 = vsel %vm744, %v241, 0
      %968 = vmatpush.bf16.msra.mxu0 0
      %969 = vmatpush.bf16.msra.mxu0 0
      %970 = vmatpush.bf16.msra.mxu0 0
      %971 = vmatpush.bf16.msra.mxu0 0
      %972 = vmatpush.bf16.msra.mxu0 0
      %973 = vmatpush.bf16.msra.mxu0 0
      %974 = vmatpush.bf16.msra.mxu0 0
      %975 = vmatpush.bf16.msra.mxu0 %v966
      %976 = vmatmul.bf16.gmra.mxu0 %v918
      %v977 = vpop.f32.mrf.mxu0
      %v978 = vadd.f32 %v758, %v977
      %v979 = vpop.f32.mrf.mxu0
      %v980 = vadd.f32 %v760, %v979
      %981 = vmatmul.bf16.gmra.mxu0 %v921
      %v982 = vpop.f32.mrf.mxu0
      %v983 = vadd.f32 %v763, %v982
      %v984 = vpop.f32.mrf.mxu0
      %v985 = vadd.f32 %v765, %v984
      %986 = vmatmul.bf16.gmra.mxu0 %v924
      %v987 = vpop.f32.mrf.mxu0
      %v988 = vadd.f32 %v768, %v987
      %v989 = vpop.f32.mrf.mxu0
      %v990 = vadd.f32 %v770, %v989
      %991 = vmatmul.bf16.gmra.mxu0 %v927
      %v992 = vpop.f32.mrf.mxu0
      %v993 = vadd.f32 %v773, %v992
      %v994 = vpop.f32.mrf.mxu0
      %v995 = vadd.f32 %v775, %v994
      %996 = vmatmul.bf16.gmra.mxu0 %v930
      %v997 = vpop.f32.mrf.mxu0
      %v998 = vadd.f32 %v778, %v997
      %v999 = vpop.f32.mrf.mxu0
      %v1000 = vadd.f32 %v780, %v999
      %1001 = vmatmul.bf16.gmra.mxu0 %v933
      %v1002 = vpop.f32.mrf.mxu0
      %v1003 = vadd.f32 %v783, %v1002
      %v1004 = vpop.f32.mrf.mxu0
      %v1005 = vadd.f32 %v785, %v1004
      %1006 = vmatmul.bf16.gmra.mxu0 %v936
      %v1007 = vpop.f32.mrf.mxu0
      %v1008 = vadd.f32 %v788, %v1007
      %v1009 = vpop.f32.mrf.mxu0
      %v1010 = vadd.f32 %v790, %v1009
      %1011 = vmatmul.bf16.gmra.mxu0 %v939
      %v1012 = vpop.f32.mrf.mxu0
      %v1013 = vadd.f32 %v793, %v1012
      %v1014 = vpop.f32.mrf.mxu0
      %v1015 = vadd.f32 %v795, %v1014
      %1016 = vmatmul.bf16.gmra.mxu0 %v942
      %v1017 = vpop.f32.mrf.mxu0
      %v1018 = vadd.f32 %v798, %v1017
      %v1019 = vpop.f32.mrf.mxu0
      %v1020 = vadd.f32 %v800, %v1019
      %1021 = vmatmul.bf16.gmra.mxu0 %v945
      %v1022 = vpop.f32.mrf.mxu0
      %v1023 = vadd.f32 %v803, %v1022
      %v1024 = vpop.f32.mrf.mxu0
      %v1025 = vadd.f32 %v805, %v1024
      %1026 = vmatmul.bf16.gmra.mxu0 %v948
      %v1027 = vpop.f32.mrf.mxu0
      %v1028 = vadd.f32 %v808, %v1027
      %v1029 = vpop.f32.mrf.mxu0
      %v1030 = vadd.f32 %v810, %v1029
      %1031 = vmatmul.bf16.gmra.mxu0 %v951
      %v1032 = vpop.f32.mrf.mxu0
      %v1033 = vadd.f32 %v813, %v1032
      %v1034 = vpop.f32.mrf.mxu0
      %v1035 = vadd.f32 %v815, %v1034
      %1036 = vmatmul.bf16.gmra.mxu0 %v954
      %v1037 = vpop.f32.mrf.mxu0
      %v1038 = vadd.f32 %v818, %v1037
      %v1039 = vpop.f32.mrf.mxu0
      %v1040 = vadd.f32 %v820, %v1039
      %1041 = vmatmul.bf16.gmra.mxu0 %v957
      %v1042 = vpop.f32.mrf.mxu0
      %v1043 = vadd.f32 %v823, %v1042
      %v1044 = vpop.f32.mrf.mxu0
      %v1045 = vadd.f32 %v825, %v1044
      %1046 = vmatmul.bf16.gmra.mxu0 %v960
      %v1047 = vpop.f32.mrf.mxu0
      %v1048 = vadd.f32 %v828, %v1047
      %v1049 = vpop.f32.mrf.mxu0
      %v1050 = vadd.f32 %v830, %v1049
      %1051 = vmatmul.bf16.gmra.mxu0 %v963
      %v1052 = vpop.f32.mrf.mxu0
      %v1053 = vadd.f32 %v833, %v1052
      %v1054 = vpop.f32.mrf.mxu0
      %v1055 = vadd.f32 %v835, %v1054
      %1056 = vdwg.mxu0
      %v1057 = vld [vmem:[%s197] sm:$0xe]
      %v1058 = vld [vmem:[%s197 + $0xc] sm:$0xe]
      %v1059 = vld [vmem:[%s197 + $0x18] sm:$0xe]
      %v1060 = vld [vmem:[%s197 + $0x24] sm:$0xe]
      %v1061 = vld [vmem:[%s197 + $0x30] sm:$0xe]
      %v1062 = vld [vmem:[%s197 + $0x3c] sm:$0xe]
      %v1063 = vld [vmem:[%s197 + $0x48] sm:$0xe]
      %v1064 = vld [vmem:[%s197 + $0x54] sm:$0xe]
      %v1065 = vld [vmem:[%s197 + $0x60] sm:$0xe]
      %v1066 = vld [vmem:[%s197 + $0x6c] sm:$0xe]
      %v1067 = vld [vmem:[%s197 + $0x78] sm:$0xe]
      %v1068 = vld [vmem:[%s197 + $0x84] sm:$0xe]
      %v1069 = vld [vmem:[%s197 + $0x90] sm:$0xe]
      %v1070 = vld [vmem:[%s197 + $0x9c] sm:$0xe]
      %v1071 = vld [vmem:[%s197 + $0xa8] sm:$0xe]
      %v1072 = vld [vmem:[%s197 + $0xb4] sm:$0xe]
      %vm1105 = vcmask 1042432
      %vm1106 = vcmask 1046532
      %vm1107 = vmor %vm1105, %vm1106
      %v1108 = vrot.slane %v1057, 5
      %v1109 = vrot.slane %v1108, 4
      %v1110 = vrot.slane %v210, 5
      %v1111 = vsel %vm1107, %v1109, %v1110
      %v1112 = vrot.slane %v1110, 4
      %v1113 = vrot.slane %v242, 5
      %v1114 = vsel %vm1107, %v1112, %v1113
      %v1115 = vrot.slane %v1058, 5
      %v1116 = vrot.slane %v1115, 4
      %v1117 = vrot.slane %v212, 5
      %v1118 = vsel %vm1107, %v1116, %v1117
      %v1119 = vrot.slane %v1117, 4
      %v1120 = vrot.slane %v243, 5
      %v1121 = vsel %vm1107, %v1119, %v1120
      %v1122 = vrot.slane %v1059, 5
      %v1123 = vrot.slane %v1122, 4
      %v1124 = vrot.slane %v214, 5
      %v1125 = vsel %vm1107, %v1123, %v1124
      %v1126 = vrot.slane %v1124, 4
      %v1127 = vrot.slane %v244, 5
      %v1128 = vsel %vm1107, %v1126, %v1127
      %v1129 = vrot.slane %v1060, 5
      %v1130 = vrot.slane %v1129, 4
      %v1131 = vrot.slane %v216, 5
      %v1132 = vsel %vm1107, %v1130, %v1131
      %v1133 = vrot.slane %v1131, 4
      %v1134 = vrot.slane %v245, 5
      %v1135 = vsel %vm1107, %v1133, %v1134
      %v1136 = vrot.slane %v1061, 5
      %v1137 = vrot.slane %v1136, 4
      %v1138 = vrot.slane %v218, 5
      %v1139 = vsel %vm1107, %v1137, %v1138
      %v1140 = vrot.slane %v1138, 4
      %v1141 = vrot.slane %v246, 5
      %v1142 = vsel %vm1107, %v1140, %v1141
      %v1143 = vrot.slane %v1062, 5
      %v1144 = vrot.slane %v1143, 4
      %v1145 = vrot.slane %v220, 5
      %v1146 = vsel %vm1107, %v1144, %v1145
      %v1147 = vrot.slane %v1145, 4
      %v1148 = vrot.slane %v247, 5
      %v1149 = vsel %vm1107, %v1147, %v1148
      %v1150 = vrot.slane %v1063, 5
      %v1151 = vrot.slane %v1150, 4
      %v1152 = vrot.slane %v222, 5
      %v1153 = vsel %vm1107, %v1151, %v1152
      %v1154 = vrot.slane %v1152, 4
      %v1155 = vrot.slane %v248, 5
      %v1156 = vsel %vm1107, %v1154, %v1155
      %v1157 = vrot.slane %v1064, 5
      %v1158 = vrot.slane %v1157, 4
      %v1159 = vrot.slane %v224, 5
      %v1160 = vsel %vm1107, %v1158, %v1159
      %v1161 = vrot.slane %v1159, 4
      %v1162 = vrot.slane %v249, 5
      %v1163 = vsel %vm1107, %v1161, %v1162
      %v1164 = vrot.slane %v1065, 5
      %v1165 = vrot.slane %v1164, 4
      %v1166 = vrot.slane %v226, 5
      %v1167 = vsel %vm1107, %v1165, %v1166
      %v1168 = vrot.slane %v1166, 4
      %v1169 = vrot.slane %v250, 5
      %v1170 = vsel %vm1107, %v1168, %v1169
      %v1171 = vrot.slane %v1066, 5
      %v1172 = vrot.slane %v1171, 4
      %v1173 = vrot.slane %v228, 5
      %v1174 = vsel %vm1107, %v1172, %v1173
      %v1175 = vrot.slane %v1173, 4
      %v1176 = vrot.slane %v251, 5
      %v1177 = vsel %vm1107, %v1175, %v1176
      %v1178 = vrot.slane %v1067, 5
      %v1179 = vrot.slane %v1178, 4
      %v1180 = vrot.slane %v230, 5
      %v1181 = vsel %vm1107, %v1179, %v1180
      %v1182 = vrot.slane %v1180, 4
      %v1183 = vrot.slane %v252, 5
      %v1184 = vsel %vm1107, %v1182, %v1183
      %v1185 = vrot.slane %v1068, 5
      %v1186 = vrot.slane %v1185, 4
      %v1187 = vrot.slane %v232, 5
      %v1188 = vsel %vm1107, %v1186, %v1187
      %v1189 = vrot.slane %v1187, 4
      %v1190 = vrot.slane %v253, 5
      %v1191 = vsel %vm1107, %v1189, %v1190
      %v1192 = vrot.slane %v1069, 5
      %v1193 = vrot.slane %v1192, 4
      %v1194 = vrot.slane %v234, 5
      %v1195 = vsel %vm1107, %v1193, %v1194
      %v1196 = vrot.slane %v1194, 4
      %v1197 = vrot.slane %v254, 5
      %v1198 = vsel %vm1107, %v1196, %v1197
      %v1199 = vrot.slane %v1070, 5
      %v1200 = vrot.slane %v1199, 4
      %v1201 = vrot.slane %v236, 5
      %v1202 = vsel %vm1107, %v1200, %v1201
      %v1203 = vrot.slane %v1201, 4
      %v1204 = vrot.slane %v255, 5
      %v1205 = vsel %vm1107, %v1203, %v1204
      %v1206 = vrot.slane %v1071, 5
      %v1207 = vrot.slane %v1206, 4
      %v1208 = vrot.slane %v238, 5
      %v1209 = vsel %vm1107, %v1207, %v1208
      %v1210 = vrot.slane %v1208, 4
      %v1211 = vrot.slane %v256, 5
      %v1212 = vsel %vm1107, %v1210, %v1211
      %v1213 = vrot.slane %v1072, 5
      %v1214 = vrot.slane %v1213, 4
      %v1215 = vrot.slane %v240, 5
      %v1216 = vsel %vm1107, %v1214, %v1215
      %v1217 = vrot.slane %v1215, 4
      %v1218 = vrot.slane %v257, 5
      %v1219 = vsel %vm1107, %v1217, %v1218
      %s1220 = scalar_lea.vmem %s1, 8
      %v1221 = vld [vmem:[%s1220] sm:$0xf]
      %v1222 = vunpack.c.l.b16 %v1111
      %v1223 = vunpack.c.l.b16 %v1114
      %v1224 = vunpack.c.l.b16 %v1118
      %v1225 = vunpack.c.l.b16 %v1121
      %v1226 = vunpack.c.l.b16 %v1125
      %v1227 = vunpack.c.l.b16 %v1128
      %v1228 = vunpack.c.l.b16 %v1132
      %v1229 = vunpack.c.l.b16 %v1135
      %v1230 = vunpack.c.l.b16 %v1139
      %v1231 = vunpack.c.l.b16 %v1142
      %v1232 = vunpack.c.l.b16 %v1146
      %v1233 = vunpack.c.l.b16 %v1149
      %v1234 = vunpack.c.l.b16 %v1153
      %v1235 = vunpack.c.l.b16 %v1156
      %v1236 = vunpack.c.l.b16 %v1160
      %v1237 = vunpack.c.l.b16 %v1163
      %v1238 = vunpack.c.l.b16 %v1167
      %v1239 = vunpack.c.l.b16 %v1170
      %v1240 = vunpack.c.l.b16 %v1174
      %v1241 = vunpack.c.l.b16 %v1177
      %v1242 = vunpack.c.l.b16 %v1181
      %v1243 = vunpack.c.l.b16 %v1184
      %v1244 = vunpack.c.l.b16 %v1188
      %v1245 = vunpack.c.l.b16 %v1191
      %v1246 = vunpack.c.l.b16 %v1195
      %v1247 = vunpack.c.l.b16 %v1198
      %v1248 = vunpack.c.l.b16 %v1202
      %v1249 = vunpack.c.l.b16 %v1205
      %v1250 = vunpack.c.l.b16 %v1209
      %v1251 = vunpack.c.l.b16 %v1212
      %v1252 = vunpack.c.l.b16 %v1216
      %v1253 = vunpack.c.l.b16 %v1219
      %v1254 = vpack.c.b16 %v1223, %v1222
      %v1255 = vpack.c.b16 %v1225, %v1224
      %v1256 = vpack.c.b16 %v1227, %v1226
      %v1257 = vpack.c.b16 %v1229, %v1228
      %v1258 = vpack.c.b16 %v1231, %v1230
      %v1259 = vpack.c.b16 %v1233, %v1232
      %v1260 = vpack.c.b16 %v1235, %v1234
      %v1261 = vpack.c.b16 %v1237, %v1236
      %v1262 = vpack.c.b16 %v1239, %v1238
      %v1263 = vpack.c.b16 %v1241, %v1240
      %v1264 = vpack.c.b16 %v1243, %v1242
      %v1265 = vpack.c.b16 %v1245, %v1244
      %v1266 = vpack.c.b16 %v1247, %v1246
      %v1267 = vpack.c.b16 %v1249, %v1248
      %v1268 = vpack.c.b16 %v1251, %v1250
      %v1269 = vpack.c.b16 %v1253, %v1252
      %v1271 = vsel %vm695, %v1254, 0
      %v1274 = vsel %vm695, %v1255, 0
      %v1277 = vsel %vm695, %v1256, 0
      %v1280 = vsel %vm695, %v1257, 0
      %v1283 = vsel %vm695, %v1258, 0
      %v1286 = vsel %vm695, %v1259, 0
      %v1289 = vsel %vm695, %v1260, 0
      %v1292 = vsel %vm695, %v1261, 0
      %v1295 = vsel %vm695, %v1262, 0
      %v1298 = vsel %vm695, %v1263, 0
      %v1301 = vsel %vm695, %v1264, 0
      %v1304 = vsel %vm695, %v1265, 0
      %v1307 = vsel %vm695, %v1266, 0
      %v1310 = vsel %vm695, %v1267, 0
      %v1313 = vsel %vm695, %v1268, 0
      %v1316 = vsel %vm695, %v1269, 0
      %v1319 = vsel %vm744, %v1221, 0
      %1321 = vmatpush.bf16.msra.mxu0 0
      %1322 = vmatpush.bf16.msra.mxu0 0
      %1323 = vmatpush.bf16.msra.mxu0 0
      %1324 = vmatpush.bf16.msra.mxu0 0
      %1325 = vmatpush.bf16.msra.mxu0 0
      %1326 = vmatpush.bf16.msra.mxu0 0
      %1327 = vmatpush.bf16.msra.mxu0 0
      %1328 = vmatpush.bf16.msra.mxu0 %v1319
      %1329 = vmatmul.bf16.gmra.mxu0 %v1271
      %v1330 = vpop.f32.mrf.mxu0
      %v1331 = vadd.f32 0.0, %v1330
      %v1332 = vpop.f32.mrf.mxu0
      %v1333 = vadd.f32 0.0, %v1332
      %1334 = vmatmul.bf16.gmra.mxu0 %v1274
      %v1335 = vpop.f32.mrf.mxu0
      %v1336 = vadd.f32 0.0, %v1335
      %v1337 = vpop.f32.mrf.mxu0
      %v1338 = vadd.f32 0.0, %v1337
      %1339 = vmatmul.bf16.gmra.mxu0 %v1277
      %v1340 = vpop.f32.mrf.mxu0
      %v1341 = vadd.f32 0.0, %v1340
      %v1342 = vpop.f32.mrf.mxu0
      %v1343 = vadd.f32 0.0, %v1342
      %1344 = vmatmul.bf16.gmra.mxu0 %v1280
      %v1345 = vpop.f32.mrf.mxu0
      %v1346 = vadd.f32 0.0, %v1345
      %v1347 = vpop.f32.mrf.mxu0
      %v1348 = vadd.f32 0.0, %v1347
      %1349 = vmatmul.bf16.gmra.mxu0 %v1283
      %v1350 = vpop.f32.mrf.mxu0
      %v1351 = vadd.f32 0.0, %v1350
      %v1352 = vpop.f32.mrf.mxu0
      %v1353 = vadd.f32 0.0, %v1352
      %1354 = vmatmul.bf16.gmra.mxu0 %v1286
      %v1355 = vpop.f32.mrf.mxu0
      %v1356 = vadd.f32 0.0, %v1355
      %v1357 = vpop.f32.mrf.mxu0
      %v1358 = vadd.f32 0.0, %v1357
      %1359 = vmatmul.bf16.gmra.mxu0 %v1289
      %v1360 = vpop.f32.mrf.mxu0
      %v1361 = vadd.f32 0.0, %v1360
      %v1362 = vpop.f32.mrf.mxu0
      %v1363 = vadd.f32 0.0, %v1362
      %1364 = vmatmul.bf16.gmra.mxu0 %v1292
      %v1365 = vpop.f32.mrf.mxu0
      %v1366 = vadd.f32 0.0, %v1365
      %v1367 = vpop.f32.mrf.mxu0
      %v1368 = vadd.f32 0.0, %v1367
      %1369 = vmatmul.bf16.gmra.mxu0 %v1295
      %v1370 = vpop.f32.mrf.mxu0
      %v1371 = vadd.f32 0.0, %v1370
      %v1372 = vpop.f32.mrf.mxu0
      %v1373 = vadd.f32 0.0, %v1372
      %1374 = vmatmul.bf16.gmra.mxu0 %v1298
      %v1375 = vpop.f32.mrf.mxu0
      %v1376 = vadd.f32 0.0, %v1375
      %v1377 = vpop.f32.mrf.mxu0
      %v1378 = vadd.f32 0.0, %v1377
      %1379 = vmatmul.bf16.gmra.mxu0 %v1301
      %v1380 = vpop.f32.mrf.mxu0
      %v1381 = vadd.f32 0.0, %v1380
      %v1382 = vpop.f32.mrf.mxu0
      %v1383 = vadd.f32 0.0, %v1382
      %1384 = vmatmul.bf16.gmra.mxu0 %v1304
      %v1385 = vpop.f32.mrf.mxu0
      %v1386 = vadd.f32 0.0, %v1385
      %v1387 = vpop.f32.mrf.mxu0
      %v1388 = vadd.f32 0.0, %v1387
      %1389 = vmatmul.bf16.gmra.mxu0 %v1307
      %v1390 = vpop.f32.mrf.mxu0
      %v1391 = vadd.f32 0.0, %v1390
      %v1392 = vpop.f32.mrf.mxu0
      %v1393 = vadd.f32 0.0, %v1392
      %1394 = vmatmul.bf16.gmra.mxu0 %v1310
      %v1395 = vpop.f32.mrf.mxu0
      %v1396 = vadd.f32 0.0, %v1395
      %v1397 = vpop.f32.mrf.mxu0
      %v1398 = vadd.f32 0.0, %v1397
      %1399 = vmatmul.bf16.gmra.mxu0 %v1313
      %v1400 = vpop.f32.mrf.mxu0
      %v1401 = vadd.f32 0.0, %v1400
      %v1402 = vpop.f32.mrf.mxu0
      %v1403 = vadd.f32 0.0, %v1402
      %1404 = vmatmul.bf16.gmra.mxu0 %v1316
      %v1405 = vpop.f32.mrf.mxu0
      %v1406 = vadd.f32 0.0, %v1405
      %v1407 = vpop.f32.mrf.mxu0
      %v1408 = vadd.f32 0.0, %v1407
      %1409 = vdwg.mxu0
      %v1410 = vadd.f32 %v978, %v1331
      %v1411 = vadd.f32 %v980, %v1333
      %v1412 = vadd.f32 %v983, %v1336
      %v1413 = vadd.f32 %v985, %v1338
      %v1414 = vadd.f32 %v988, %v1341
      %v1415 = vadd.f32 %v990, %v1343
      %v1416 = vadd.f32 %v993, %v1346
      %v1417 = vadd.f32 %v995, %v1348
      %v1418 = vadd.f32 %v998, %v1351
      %v1419 = vadd.f32 %v1000, %v1353
      %v1420 = vadd.f32 %v1003, %v1356
      %v1421 = vadd.f32 %v1005, %v1358
      %v1422 = vadd.f32 %v1008, %v1361
      %v1423 = vadd.f32 %v1010, %v1363
      %v1424 = vadd.f32 %v1013, %v1366
      %v1425 = vadd.f32 %v1015, %v1368
      %v1426 = vadd.f32 %v1018, %v1371
      %v1427 = vadd.f32 %v1020, %v1373
      %v1428 = vadd.f32 %v1023, %v1376
      %v1429 = vadd.f32 %v1025, %v1378
      %v1430 = vadd.f32 %v1028, %v1381
      %v1431 = vadd.f32 %v1030, %v1383
      %v1432 = vadd.f32 %v1033, %v1386
      %v1433 = vadd.f32 %v1035, %v1388
      %v1434 = vadd.f32 %v1038, %v1391
      %v1435 = vadd.f32 %v1040, %v1393
      %v1436 = vadd.f32 %v1043, %v1396
      %v1437 = vadd.f32 %v1045, %v1398
      %v1438 = vadd.f32 %v1048, %v1401
      %v1439 = vadd.f32 %v1050, %v1403
      %v1440 = vadd.f32 %v1053, %v1406
      %v1441 = vadd.f32 %v1055, %v1408
      %s1442 = scalar_lea.vmem %s197, 12
      %v1443 = vld [vmem:[%s1442] sm:$0xf]
      %v1444 = vld [vmem:[%s1442 + $0x4] sm:$0xf]
      %v1445 = vld [vmem:[%s1442 + $0xc] sm:$0xf]
      %v1446 = vld [vmem:[%s1442 + $0x10] sm:$0xf]
      %v1447 = vld [vmem:[%s1442 + $0x18] sm:$0xf]
      %v1448 = vld [vmem:[%s1442 + $0x1c] sm:$0xf]
      %v1449 = vld [vmem:[%s1442 + $0x24] sm:$0xf]
      %v1450 = vld [vmem:[%s1442 + $0x28] sm:$0xf]
      %v1451 = vld [vmem:[%s1442 + $0x30] sm:$0xf]
      %v1452 = vld [vmem:[%s1442 + $0x34] sm:$0xf]
      %v1453 = vld [vmem:[%s1442 + $0x3c] sm:$0xf]
      %v1454 = vld [vmem:[%s1442 + $0x40] sm:$0xf]
      %v1455 = vld [vmem:[%s1442 + $0x48] sm:$0xf]
      %v1456 = vld [vmem:[%s1442 + $0x4c] sm:$0xf]
      %v1457 = vld [vmem:[%s1442 + $0x54] sm:$0xf]
      %v1458 = vld [vmem:[%s1442 + $0x58] sm:$0xf]
      %v1459 = vld [vmem:[%s1442 + $0x60] sm:$0xf]
      %v1460 = vld [vmem:[%s1442 + $0x64] sm:$0xf]
      %v1461 = vld [vmem:[%s1442 + $0x6c] sm:$0xf]
      %v1462 = vld [vmem:[%s1442 + $0x70] sm:$0xf]
      %v1463 = vld [vmem:[%s1442 + $0x78] sm:$0xf]
      %v1464 = vld [vmem:[%s1442 + $0x7c] sm:$0xf]
      %v1465 = vld [vmem:[%s1442 + $0x84] sm:$0xf]
      %v1466 = vld [vmem:[%s1442 + $0x88] sm:$0xf]
      %v1467 = vld [vmem:[%s1442 + $0x90] sm:$0xf]
      %v1468 = vld [vmem:[%s1442 + $0x94] sm:$0xf]
      %v1469 = vld [vmem:[%s1442 + $0x9c] sm:$0xf]
      %v1470 = vld [vmem:[%s1442 + $0xa0] sm:$0xf]
      %v1471 = vld [vmem:[%s1442 + $0xa8] sm:$0xf]
      %v1472 = vld [vmem:[%s1442 + $0xac] sm:$0xf]
      %v1473 = vld [vmem:[%s1442 + $0xb4] sm:$0xf]
      %v1474 = vld [vmem:[%s1442 + $0xb8] sm:$0xf]
      %s1475 = scalar_lea.vmem %s1, 12
      %v1476 = vld [vmem:[%s1475] sm:$0xf]
      %v1509 = vunpack.c.l.b16 %v1443
      %v1510 = vunpack.c.l.b16 %v1444
      %v1511 = vunpack.c.l.b16 %v1445
      %v1512 = vunpack.c.l.b16 %v1446
      %v1513 = vunpack.c.l.b16 %v1447
      %v1514 = vunpack.c.l.b16 %v1448
      %v1515 = vunpack.c.l.b16 %v1449
      %v1516 = vunpack.c.l.b16 %v1450
      %v1517 = vunpack.c.l.b16 %v1451
      %v1518 = vunpack.c.l.b16 %v1452
      %v1519 = vunpack.c.l.b16 %v1453
      %v1520 = vunpack.c.l.b16 %v1454
      %v1521 = vunpack.c.l.b16 %v1455
      %v1522 = vunpack.c.l.b16 %v1456
      %v1523 = vunpack.c.l.b16 %v1457
      %v1524 = vunpack.c.l.b16 %v1458
      %v1525 = vunpack.c.l.b16 %v1459
      %v1526 = vunpack.c.l.b16 %v1460
      %v1527 = vunpack.c.l.b16 %v1461
      %v1528 = vunpack.c.l.b16 %v1462
      %v1529 = vunpack.c.l.b16 %v1463
      %v1530 = vunpack.c.l.b16 %v1464
      %v1531 = vunpack.c.l.b16 %v1465
      %v1532 = vunpack.c.l.b16 %v1466
      %v1533 = vunpack.c.l.b16 %v1467
      %v1534 = vunpack.c.l.b16 %v1468
      %v1535 = vunpack.c.l.b16 %v1469
      %v1536 = vunpack.c.l.b16 %v1470
      %v1537 = vunpack.c.l.b16 %v1471
      %v1538 = vunpack.c.l.b16 %v1472
      %v1539 = vunpack.c.l.b16 %v1473
      %v1540 = vunpack.c.l.b16 %v1474
      %v1541 = vpack.c.b16 %v1510, %v1509
      %v1542 = vpack.c.b16 %v1512, %v1511
      %v1543 = vpack.c.b16 %v1514, %v1513
      %v1544 = vpack.c.b16 %v1516, %v1515
      %v1545 = vpack.c.b16 %v1518, %v1517
      %v1546 = vpack.c.b16 %v1520, %v1519
      %v1547 = vpack.c.b16 %v1522, %v1521
      %v1548 = vpack.c.b16 %v1524, %v1523
      %v1549 = vpack.c.b16 %v1526, %v1525
      %v1550 = vpack.c.b16 %v1528, %v1527
      %v1551 = vpack.c.b16 %v1530, %v1529
      %v1552 = vpack.c.b16 %v1532, %v1531
      %v1553 = vpack.c.b16 %v1534, %v1533
      %v1554 = vpack.c.b16 %v1536, %v1535
      %v1555 = vpack.c.b16 %v1538, %v1537
      %v1556 = vpack.c.b16 %v1540, %v1539
      %v1558 = vsel %vm695, %v1541, 0
      %v1561 = vsel %vm695, %v1542, 0
      %v1564 = vsel %vm695, %v1543, 0
      %v1567 = vsel %vm695, %v1544, 0
      %v1570 = vsel %vm695, %v1545, 0
      %v1573 = vsel %vm695, %v1546, 0
      %v1576 = vsel %vm695, %v1547, 0
      %v1579 = vsel %vm695, %v1548, 0
      %v1582 = vsel %vm695, %v1549, 0
      %v1585 = vsel %vm695, %v1550, 0
      %v1588 = vsel %vm695, %v1551, 0
      %v1591 = vsel %vm695, %v1552, 0
      %v1594 = vsel %vm695, %v1553, 0
      %v1597 = vsel %vm695, %v1554, 0
      %v1600 = vsel %vm695, %v1555, 0
      %v1603 = vsel %vm695, %v1556, 0
      %v1606 = vsel %vm744, %v1476, 0
      %1608 = vmatpush.bf16.msra.mxu0 0
      %1609 = vmatpush.bf16.msra.mxu0 0
      %1610 = vmatpush.bf16.msra.mxu0 0
      %1611 = vmatpush.bf16.msra.mxu0 0
      %1612 = vmatpush.bf16.msra.mxu0 0
      %1613 = vmatpush.bf16.msra.mxu0 0
      %1614 = vmatpush.bf16.msra.mxu0 0
      %1615 = vmatpush.bf16.msra.mxu0 %v1606
      %1616 = vmatmul.bf16.gmra.mxu0 %v1558
      %v1617 = vpop.f32.mrf.mxu0
      %v1618 = vadd.f32 0.0, %v1617
      %v1619 = vpop.f32.mrf.mxu0
      %v1620 = vadd.f32 0.0, %v1619
      %1621 = vmatmul.bf16.gmra.mxu0 %v1561
      %v1622 = vpop.f32.mrf.mxu0
      %v1623 = vadd.f32 0.0, %v1622
      %v1624 = vpop.f32.mrf.mxu0
      %v1625 = vadd.f32 0.0, %v1624
      %1626 = vmatmul.bf16.gmra.mxu0 %v1564
      %v1627 = vpop.f32.mrf.mxu0
      %v1628 = vadd.f32 0.0, %v1627
      %v1629 = vpop.f32.mrf.mxu0
      %v1630 = vadd.f32 0.0, %v1629
      %1631 = vmatmul.bf16.gmra.mxu0 %v1567
      %v1632 = vpop.f32.mrf.mxu0
      %v1633 = vadd.f32 0.0, %v1632
      %v1634 = vpop.f32.mrf.mxu0
      %v1635 = vadd.f32 0.0, %v1634
      %1636 = vmatmul.bf16.gmra.mxu0 %v1570
      %v1637 = vpop.f32.mrf.mxu0
      %v1638 = vadd.f32 0.0, %v1637
      %v1639 = vpop.f32.mrf.mxu0
      %v1640 = vadd.f32 0.0, %v1639
      %1641 = vmatmul.bf16.gmra.mxu0 %v1573
      %v1642 = vpop.f32.mrf.mxu0
      %v1643 = vadd.f32 0.0, %v1642
      %v1644 = vpop.f32.mrf.mxu0
      %v1645 = vadd.f32 0.0, %v1644
      %1646 = vmatmul.bf16.gmra.mxu0 %v1576
      %v1647 = vpop.f32.mrf.mxu0
      %v1648 = vadd.f32 0.0, %v1647
      %v1649 = vpop.f32.mrf.mxu0
      %v1650 = vadd.f32 0.0, %v1649
      %1651 = vmatmul.bf16.gmra.mxu0 %v1579
      %v1652 = vpop.f32.mrf.mxu0
      %v1653 = vadd.f32 0.0, %v1652
      %v1654 = vpop.f32.mrf.mxu0
      %v1655 = vadd.f32 0.0, %v1654
      %1656 = vmatmul.bf16.gmra.mxu0 %v1582
      %v1657 = vpop.f32.mrf.mxu0
      %v1658 = vadd.f32 0.0, %v1657
      %v1659 = vpop.f32.mrf.mxu0
      %v1660 = vadd.f32 0.0, %v1659
      %1661 = vmatmul.bf16.gmra.mxu0 %v1585
      %v1662 = vpop.f32.mrf.mxu0
      %v1663 = vadd.f32 0.0, %v1662
      %v1664 = vpop.f32.mrf.mxu0
      %v1665 = vadd.f32 0.0, %v1664
      %1666 = vmatmul.bf16.gmra.mxu0 %v1588
      %v1667 = vpop.f32.mrf.mxu0
      %v1668 = vadd.f32 0.0, %v1667
      %v1669 = vpop.f32.mrf.mxu0
      %v1670 = vadd.f32 0.0, %v1669
      %1671 = vmatmul.bf16.gmra.mxu0 %v1591
      %v1672 = vpop.f32.mrf.mxu0
      %v1673 = vadd.f32 0.0, %v1672
      %v1674 = vpop.f32.mrf.mxu0
      %v1675 = vadd.f32 0.0, %v1674
      %1676 = vmatmul.bf16.gmra.mxu0 %v1594
      %v1677 = vpop.f32.mrf.mxu0
      %v1678 = vadd.f32 0.0, %v1677
      %v1679 = vpop.f32.mrf.mxu0
      %v1680 = vadd.f32 0.0, %v1679
      %1681 = vmatmul.bf16.gmra.mxu0 %v1597
      %v1682 = vpop.f32.mrf.mxu0
      %v1683 = vadd.f32 0.0, %v1682
      %v1684 = vpop.f32.mrf.mxu0
      %v1685 = vadd.f32 0.0, %v1684
      %1686 = vmatmul.bf16.gmra.mxu0 %v1600
      %v1687 = vpop.f32.mrf.mxu0
      %v1688 = vadd.f32 0.0, %v1687
      %v1689 = vpop.f32.mrf.mxu0
      %v1690 = vadd.f32 0.0, %v1689
      %1691 = vmatmul.bf16.gmra.mxu0 %v1603
      %v1692 = vpop.f32.mrf.mxu0
      %v1693 = vadd.f32 0.0, %v1692
      %v1694 = vpop.f32.mrf.mxu0
      %v1695 = vadd.f32 0.0, %v1694
      %1696 = vdwg.mxu0
      %v1697 = vadd.f32 %v1410, %v1618
      %v1698 = vadd.f32 %v1411, %v1620
      %v1699 = vadd.f32 %v1412, %v1623
      %v1700 = vadd.f32 %v1413, %v1625
      %v1701 = vadd.f32 %v1414, %v1628
      %v1702 = vadd.f32 %v1415, %v1630
      %v1703 = vadd.f32 %v1416, %v1633
      %v1704 = vadd.f32 %v1417, %v1635
      %v1705 = vadd.f32 %v1418, %v1638
      %v1706 = vadd.f32 %v1419, %v1640
      %v1707 = vadd.f32 %v1420, %v1643
      %v1708 = vadd.f32 %v1421, %v1645
      %v1709 = vadd.f32 %v1422, %v1648
      %v1710 = vadd.f32 %v1423, %v1650
      %v1711 = vadd.f32 %v1424, %v1653
      %v1712 = vadd.f32 %v1425, %v1655
      %v1713 = vadd.f32 %v1426, %v1658
      %v1714 = vadd.f32 %v1427, %v1660
      %v1715 = vadd.f32 %v1428, %v1663
      %v1716 = vadd.f32 %v1429, %v1665
      %v1717 = vadd.f32 %v1430, %v1668
      %v1718 = vadd.f32 %v1431, %v1670
      %v1719 = vadd.f32 %v1432, %v1673
      %v1720 = vadd.f32 %v1433, %v1675
      %v1721 = vadd.f32 %v1434, %v1678
      %v1722 = vadd.f32 %v1435, %v1680
      %v1723 = vadd.f32 %v1436, %v1683
      %v1724 = vadd.f32 %v1437, %v1685
      %v1725 = vadd.f32 %v1438, %v1688
      %v1726 = vadd.f32 %v1439, %v1690
      %v1727 = vadd.f32 %v1440, %v1693
      %v1728 = vadd.f32 %v1441, %v1695
      %v1729 = vld [vmem:[%s1442] sm:$0xf]
      %v1730 = vld [vmem:[%s1442 + $0x4] sm:$0xf]
      %v1731 = vld [vmem:[%s1442 + $0x8] sm:$0x1]
      %v1732 = vld [vmem:[%s1442 + $0xc] sm:$0xf]
      %v1733 = vld [vmem:[%s1442 + $0x10] sm:$0xf]
      %v1734 = vld [vmem:[%s1442 + $0x14] sm:$0x1]
      %v1735 = vld [vmem:[%s1442 + $0x18] sm:$0xf]
      %v1736 = vld [vmem:[%s1442 + $0x1c] sm:$0xf]
      %v1737 = vld [vmem:[%s1442 + $0x20] sm:$0x1]
      %v1738 = vld [vmem:[%s1442 + $0x24] sm:$0xf]
      %v1739 = vld [vmem:[%s1442 + $0x28] sm:$0xf]
      %v1740 = vld [vmem:[%s1442 + $0x2c] sm:$0x1]
      %v1741 = vld [vmem:[%s1442 + $0x30] sm:$0xf]
      %v1742 = vld [vmem:[%s1442 + $0x34] sm:$0xf]
      %v1743 = vld [vmem:[%s1442 + $0x38] sm:$0x1]
      %v1744 = vld [vmem:[%s1442 + $0x3c] sm:$0xf]
      %v1745 = vld [vmem:[%s1442 + $0x40] sm:$0xf]
      %v1746 = vld [vmem:[%s1442 + $0x44] sm:$0x1]
      %v1747 = vld [vmem:[%s1442 + $0x48] sm:$0xf]
      %v1748 = vld [vmem:[%s1442 + $0x4c] sm:$0xf]
      %v1749 = vld [vmem:[%s1442 + $0x50] sm:$0x1]
      %v1750 = vld [vmem:[%s1442 + $0x54] sm:$0xf]
      %v1751 = vld [vmem:[%s1442 + $0x58] sm:$0xf]
      %v1752 = vld [vmem:[%s1442 + $0x5c] sm:$0x1]
      %v1753 = vld [vmem:[%s1442 + $0x60] sm:$0xf]
      %v1754 = vld [vmem:[%s1442 + $0x64] sm:$0xf]
      %v1755 = vld [vmem:[%s1442 + $0x68] sm:$0x1]
      %v1756 = vld [vmem:[%s1442 + $0x6c] sm:$0xf]
      %v1757 = vld [vmem:[%s1442 + $0x70] sm:$0xf]
      %v1758 = vld [vmem:[%s1442 + $0x74] sm:$0x1]
      %v1759 = vld [vmem:[%s1442 + $0x78] sm:$0xf]
      %v1760 = vld [vmem:[%s1442 + $0x7c] sm:$0xf]
      %v1761 = vld [vmem:[%s1442 + $0x80] sm:$0x1]
      %v1762 = vld [vmem:[%s1442 + $0x84] sm:$0xf]
      %v1763 = vld [vmem:[%s1442 + $0x88] sm:$0xf]
      %v1764 = vld [vmem:[%s1442 + $0x8c] sm:$0x1]
      %v1765 = vld [vmem:[%s1442 + $0x90] sm:$0xf]
      %v1766 = vld [vmem:[%s1442 + $0x94] sm:$0xf]
      %v1767 = vld [vmem:[%s1442 + $0x98] sm:$0x1]
      %v1768 = vld [vmem:[%s1442 + $0x9c] sm:$0xf]
      %v1769 = vld [vmem:[%s1442 + $0xa0] sm:$0xf]
      %v1770 = vld [vmem:[%s1442 + $0xa4] sm:$0x1]
      %v1771 = vld [vmem:[%s1442 + $0xa8] sm:$0xf]
      %v1772 = vld [vmem:[%s1442 + $0xac] sm:$0xf]
      %v1773 = vld [vmem:[%s1442 + $0xb0] sm:$0x1]
      %v1774 = vld [vmem:[%s1442 + $0xb4] sm:$0xf]
      %v1775 = vld [vmem:[%s1442 + $0xb8] sm:$0xf]
      %v1776 = vld [vmem:[%s1442 + $0xbc] sm:$0x1]
      %v1778 = vshrl.u32 %v1729, 16
      %v1780 = vrot.slane %v1778, 4
      %v1781 = vshll.u32 %v1729, 16
      %v1783 = vrot.slane %v1781, 5
      %v1784 = vor.u32 %v1780, %v1783
      %v1785 = vrot.slane %v1784, 4
      %v1787 = vshll.u32 %v1730, 16
      %v1789 = vrot.slane %v1787, 5
      %v1790 = vsel %vm260, %v1785, %v1789
      %v1791 = vshrl.u32 %v1730, 16
      %v1793 = vrot.slane %v1791, 4
      %v1794 = vor.u32 %v1793, %v1789
      %v1795 = vrot.slane %v1794, 4
      %v1797 = vshll.u32 %v1731, 16
      %v1799 = vrot.slane %v1797, 5
      %v1800 = vsel %vm260, %v1795, %v1799
      %v1802 = vshrl.u32 %v1732, 16
      %v1804 = vrot.slane %v1802, 4
      %v1805 = vshll.u32 %v1732, 16
      %v1807 = vrot.slane %v1805, 5
      %v1808 = vor.u32 %v1804, %v1807
      %v1809 = vrot.slane %v1808, 4
      %v1811 = vshll.u32 %v1733, 16
      %v1813 = vrot.slane %v1811, 5
      %v1814 = vsel %vm260, %v1809, %v1813
      %v1815 = vshrl.u32 %v1733, 16
      %v1817 = vrot.slane %v1815, 4
      %v1818 = vor.u32 %v1817, %v1813
      %v1819 = vrot.slane %v1818, 4
      %v1821 = vshll.u32 %v1734, 16
      %v1823 = vrot.slane %v1821, 5
      %v1824 = vsel %vm260, %v1819, %v1823
      %v1826 = vshrl.u32 %v1735, 16
      %v1828 = vrot.slane %v1826, 4
      %v1829 = vshll.u32 %v1735, 16
      %v1831 = vrot.slane %v1829, 5
      %v1832 = vor.u32 %v1828, %v1831
      %v1833 = vrot.slane %v1832, 4
      %v1835 = vshll.u32 %v1736, 16
      %v1837 = vrot.slane %v1835, 5
      %v1838 = vsel %vm260, %v1833, %v1837
      %v1839 = vshrl.u32 %v1736, 16
      %v1841 = vrot.slane %v1839, 4
      %v1842 = vor.u32 %v1841, %v1837
      %v1843 = vrot.slane %v1842, 4
      %v1845 = vshll.u32 %v1737, 16
      %v1847 = vrot.slane %v1845, 5
      %v1848 = vsel %vm260, %v1843, %v1847
      %v1850 = vshrl.u32 %v1738, 16
      %v1852 = vrot.slane %v1850, 4
      %v1853 = vshll.u32 %v1738, 16
      %v1855 = vrot.slane %v1853, 5
      %v1856 = vor.u32 %v1852, %v1855
      %v1857 = vrot.slane %v1856, 4
      %v1859 = vshll.u32 %v1739, 16
      %v1861 = vrot.slane %v1859, 5
      %v1862 = vsel %vm260, %v1857, %v1861
      %v1863 = vshrl.u32 %v1739, 16
      %v1865 = vrot.slane %v1863, 4
      %v1866 = vor.u32 %v1865, %v1861
      %v1867 = vrot.slane %v1866, 4
      %v1869 = vshll.u32 %v1740, 16
      %v1871 = vrot.slane %v1869, 5
      %v1872 = vsel %vm260, %v1867, %v1871
      %v1874 = vshrl.u32 %v1741, 16
      %v1876 = vrot.slane %v1874, 4
      %v1877 = vshll.u32 %v1741, 16
      %v1879 = vrot.slane %v1877, 5
      %v1880 = vor.u32 %v1876, %v1879
      %v1881 = vrot.slane %v1880, 4
      %v1883 = vshll.u32 %v1742, 16
      %v1885 = vrot.slane %v1883, 5
      %v1886 = vsel %vm260, %v1881, %v1885
      %v1887 = vshrl.u32 %v1742, 16
      %v1889 = vrot.slane %v1887, 4
      %v1890 = vor.u32 %v1889, %v1885
      %v1891 = vrot.slane %v1890, 4
      %v1893 = vshll.u32 %v1743, 16
      %v1895 = vrot.slane %v1893, 5
      %v1896 = vsel %vm260, %v1891, %v1895
      %v1898 = vshrl.u32 %v1744, 16
      %v1900 = vrot.slane %v1898, 4
      %v1901 = vshll.u32 %v1744, 16
      %v1903 = vrot.slane %v1901, 5
      %v1904 = vor.u32 %v1900, %v1903
      %v1905 = vrot.slane %v1904, 4
      %v1907 = vshll.u32 %v1745, 16
      %v1909 = vrot.slane %v1907, 5
      %v1910 = vsel %vm260, %v1905, %v1909
      %v1911 = vshrl.u32 %v1745, 16
      %v1913 = vrot.slane %v1911, 4
      %v1914 = vor.u32 %v1913, %v1909
      %v1915 = vrot.slane %v1914, 4
      %v1917 = vshll.u32 %v1746, 16
      %v1919 = vrot.slane %v1917, 5
      %v1920 = vsel %vm260, %v1915, %v1919
      %v1922 = vshrl.u32 %v1747, 16
      %v1924 = vrot.slane %v1922, 4
      %v1925 = vshll.u32 %v1747, 16
      %v1927 = vrot.slane %v1925, 5
      %v1928 = vor.u32 %v1924, %v1927
      %v1929 = vrot.slane %v1928, 4
      %v1931 = vshll.u32 %v1748, 16
      %v1933 = vrot.slane %v1931, 5
      %v1934 = vsel %vm260, %v1929, %v1933
      %v1935 = vshrl.u32 %v1748, 16
      %v1937 = vrot.slane %v1935, 4
      %v1938 = vor.u32 %v1937, %v1933
      %v1939 = vrot.slane %v1938, 4
      %v1941 = vshll.u32 %v1749, 16
      %v1943 = vrot.slane %v1941, 5
      %v1944 = vsel %vm260, %v1939, %v1943
      %v1946 = vshrl.u32 %v1750, 16
      %v1948 = vrot.slane %v1946, 4
      %v1949 = vshll.u32 %v1750, 16
      %v1951 = vrot.slane %v1949, 5
      %v1952 = vor.u32 %v1948, %v1951
      %v1953 = vrot.slane %v1952, 4
      %v1955 = vshll.u32 %v1751, 16
      %v1957 = vrot.slane %v1955, 5
      %v1958 = vsel %vm260, %v1953, %v1957
      %v1959 = vshrl.u32 %v1751, 16
      %v1961 = vrot.slane %v1959, 4
      %v1962 = vor.u32 %v1961, %v1957
      %v1963 = vrot.slane %v1962, 4
      %v1965 = vshll.u32 %v1752, 16
      %v1967 = vrot.slane %v1965, 5
      %v1968 = vsel %vm260, %v1963, %v1967
      %v1970 = vshrl.u32 %v1753, 16
      %v1972 = vrot.slane %v1970, 4
      %v1973 = vshll.u32 %v1753, 16
      %v1975 = vrot.slane %v1973, 5
      %v1976 = vor.u32 %v1972, %v1975
      %v1977 = vrot.slane %v1976, 4
      %v1979 = vshll.u32 %v1754, 16
      %v1981 = vrot.slane %v1979, 5
      %v1982 = vsel %vm260, %v1977, %v1981
      %v1983 = vshrl.u32 %v1754, 16
      %v1985 = vrot.slane %v1983, 4
      %v1986 = vor.u32 %v1985, %v1981
      %v1987 = vrot.slane %v1986, 4
      %v1989 = vshll.u32 %v1755, 16
      %v1991 = vrot.slane %v1989, 5
      %v1992 = vsel %vm260, %v1987, %v1991
      %v1994 = vshrl.u32 %v1756, 16
      %v1996 = vrot.slane %v1994, 4
      %v1997 = vshll.u32 %v1756, 16
      %v1999 = vrot.slane %v1997, 5
      %v2000 = vor.u32 %v1996, %v1999
      %v2001 = vrot.slane %v2000, 4
      %v2003 = vshll.u32 %v1757, 16
      %v2005 = vrot.slane %v2003, 5
      %v2006 = vsel %vm260, %v2001, %v2005
      %v2007 = vshrl.u32 %v1757, 16
      %v2009 = vrot.slane %v2007, 4
      %v2010 = vor.u32 %v2009, %v2005
      %v2011 = vrot.slane %v2010, 4
      %v2013 = vshll.u32 %v1758, 16
      %v2015 = vrot.slane %v2013, 5
      %v2016 = vsel %vm260, %v2011, %v2015
      %v2018 = vshrl.u32 %v1759, 16
      %v2020 = vrot.slane %v2018, 4
      %v2021 = vshll.u32 %v1759, 16
      %v2023 = vrot.slane %v2021, 5
      %v2024 = vor.u32 %v2020, %v2023
      %v2025 = vrot.slane %v2024, 4
      %v2027 = vshll.u32 %v1760, 16
      %v2029 = vrot.slane %v2027, 5
      %v2030 = vsel %vm260, %v2025, %v2029
      %v2031 = vshrl.u32 %v1760, 16
      %v2033 = vrot.slane %v2031, 4
      %v2034 = vor.u32 %v2033, %v2029
      %v2035 = vrot.slane %v2034, 4
      %v2037 = vshll.u32 %v1761, 16
      %v2039 = vrot.slane %v2037, 5
      %v2040 = vsel %vm260, %v2035, %v2039
      %v2042 = vshrl.u32 %v1762, 16
      %v2044 = vrot.slane %v2042, 4
      %v2045 = vshll.u32 %v1762, 16
      %v2047 = vrot.slane %v2045, 5
      %v2048 = vor.u32 %v2044, %v2047
      %v2049 = vrot.slane %v2048, 4
      %v2051 = vshll.u32 %v1763, 16
      %v2053 = vrot.slane %v2051, 5
      %v2054 = vsel %vm260, %v2049, %v2053
      %v2055 = vshrl.u32 %v1763, 16
      %v2057 = vrot.slane %v2055, 4
      %v2058 = vor.u32 %v2057, %v2053
      %v2059 = vrot.slane %v2058, 4
      %v2061 = vshll.u32 %v1764, 16
      %v2063 = vrot.slane %v2061, 5
      %v2064 = vsel %vm260, %v2059, %v2063
      %v2066 = vshrl.u32 %v1765, 16
      %v2068 = vrot.slane %v2066, 4
      %v2069 = vshll.u32 %v1765, 16
      %v2071 = vrot.slane %v2069, 5
      %v2072 = vor.u32 %v2068, %v2071
      %v2073 = vrot.slane %v2072, 4
      %v2075 = vshll.u32 %v1766, 16
      %v2077 = vrot.slane %v2075, 5
      %v2078 = vsel %vm260, %v2073, %v2077
      %v2079 = vshrl.u32 %v1766, 16
      %v2081 = vrot.slane %v2079, 4
      %v2082 = vor.u32 %v2081, %v2077
      %v2083 = vrot.slane %v2082, 4
      %v2085 = vshll.u32 %v1767, 16
      %v2087 = vrot.slane %v2085, 5
      %v2088 = vsel %vm260, %v2083, %v2087
      %v2090 = vshrl.u32 %v1768, 16
      %v2092 = vrot.slane %v2090, 4
      %v2093 = vshll.u32 %v1768, 16
      %v2095 = vrot.slane %v2093, 5
      %v2096 = vor.u32 %v2092, %v2095
      %v2097 = vrot.slane %v2096, 4
      %v2099 = vshll.u32 %v1769, 16
      %v2101 = vrot.slane %v2099, 5
      %v2102 = vsel %vm260, %v2097, %v2101
      %v2103 = vshrl.u32 %v1769, 16
      %v2105 = vrot.slane %v2103, 4
      %v2106 = vor.u32 %v2105, %v2101
      %v2107 = vrot.slane %v2106, 4
      %v2109 = vshll.u32 %v1770, 16
      %v2111 = vrot.slane %v2109, 5
      %v2112 = vsel %vm260, %v2107, %v2111
      %v2114 = vshrl.u32 %v1771, 16
      %v2116 = vrot.slane %v2114, 4
      %v2117 = vshll.u32 %v1771, 16
      %v2119 = vrot.slane %v2117, 5
      %v2120 = vor.u32 %v2116, %v2119
      %v2121 = vrot.slane %v2120, 4
      %v2123 = vshll.u32 %v1772, 16
      %v2125 = vrot.slane %v2123, 5
      %v2126 = vsel %vm260, %v2121, %v2125
      %v2127 = vshrl.u32 %v1772, 16
      %v2129 = vrot.slane %v2127, 4
      %v2130 = vor.u32 %v2129, %v2125
      %v2131 = vrot.slane %v2130, 4
      %v2133 = vshll.u32 %v1773, 16
      %v2135 = vrot.slane %v2133, 5
      %v2136 = vsel %vm260, %v2131, %v2135
      %v2138 = vshrl.u32 %v1774, 16
      %v2140 = vrot.slane %v2138, 4
      %v2141 = vshll.u32 %v1774, 16
      %v2143 = vrot.slane %v2141, 5
      %v2144 = vor.u32 %v2140, %v2143
      %v2145 = vrot.slane %v2144, 4
      %v2147 = vshll.u32 %v1775, 16
      %v2149 = vrot.slane %v2147, 5
      %v2150 = vsel %vm260, %v2145, %v2149
      %v2151 = vshrl.u32 %v1775, 16
      %v2153 = vrot.slane %v2151, 4
      %v2154 = vor.u32 %v2153, %v2149
      %v2155 = vrot.slane %v2154, 4
      %v2157 = vshll.u32 %v1776, 16
      %v2159 = vrot.slane %v2157, 5
      %v2160 = vsel %vm260, %v2155, %v2159
      %s2161 = scalar_lea.vmem %s1, 16
      %v2162 = vld [vmem:[%s2161] sm:$0xf]
      %v2163 = vunpack.c.l.b16 %v1790
      %v2164 = vunpack.c.l.b16 %v1800
      %v2165 = vunpack.c.l.b16 %v1814
      %v2166 = vunpack.c.l.b16 %v1824
      %v2167 = vunpack.c.l.b16 %v1838
      %v2168 = vunpack.c.l.b16 %v1848
      %v2169 = vunpack.c.l.b16 %v1862
      %v2170 = vunpack.c.l.b16 %v1872
      %v2171 = vunpack.c.l.b16 %v1886
      %v2172 = vunpack.c.l.b16 %v1896
      %v2173 = vunpack.c.l.b16 %v1910
      %v2174 = vunpack.c.l.b16 %v1920
      %v2175 = vunpack.c.l.b16 %v1934
      %v2176 = vunpack.c.l.b16 %v1944
      %v2177 = vunpack.c.l.b16 %v1958
      %v2178 = vunpack.c.l.b16 %v1968
      %v2179 = vunpack.c.l.b16 %v1982
      %v2180 = vunpack.c.l.b16 %v1992
      %v2181 = vunpack.c.l.b16 %v2006
      %v2182 = vunpack.c.l.b16 %v2016
      %v2183 = vunpack.c.l.b16 %v2030
      %v2184 = vunpack.c.l.b16 %v2040
      %v2185 = vunpack.c.l.b16 %v2054
      %v2186 = vunpack.c.l.b16 %v2064
      %v2187 = vunpack.c.l.b16 %v2078
      %v2188 = vunpack.c.l.b16 %v2088
      %v2189 = vunpack.c.l.b16 %v2102
      %v2190 = vunpack.c.l.b16 %v2112
      %v2191 = vunpack.c.l.b16 %v2126
      %v2192 = vunpack.c.l.b16 %v2136
      %v2193 = vunpack.c.l.b16 %v2150
      %v2194 = vunpack.c.l.b16 %v2160
      %v2195 = vpack.c.b16 %v2164, %v2163
      %v2196 = vpack.c.b16 %v2166, %v2165
      %v2197 = vpack.c.b16 %v2168, %v2167
      %v2198 = vpack.c.b16 %v2170, %v2169
      %v2199 = vpack.c.b16 %v2172, %v2171
      %v2200 = vpack.c.b16 %v2174, %v2173
      %v2201 = vpack.c.b16 %v2176, %v2175
      %v2202 = vpack.c.b16 %v2178, %v2177
      %v2203 = vpack.c.b16 %v2180, %v2179
      %v2204 = vpack.c.b16 %v2182, %v2181
      %v2205 = vpack.c.b16 %v2184, %v2183
      %v2206 = vpack.c.b16 %v2186, %v2185
      %v2207 = vpack.c.b16 %v2188, %v2187
      %v2208 = vpack.c.b16 %v2190, %v2189
      %v2209 = vpack.c.b16 %v2192, %v2191
      %v2210 = vpack.c.b16 %v2194, %v2193
      %v2212 = vsel %vm695, %v2195, 0
      %v2215 = vsel %vm695, %v2196, 0
      %v2218 = vsel %vm695, %v2197, 0
      %v2221 = vsel %vm695, %v2198, 0
      %v2224 = vsel %vm695, %v2199, 0
      %v2227 = vsel %vm695, %v2200, 0
      %v2230 = vsel %vm695, %v2201, 0
      %v2233 = vsel %vm695, %v2202, 0
      %v2236 = vsel %vm695, %v2203, 0
      %v2239 = vsel %vm695, %v2204, 0
      %v2242 = vsel %vm695, %v2205, 0
      %v2245 = vsel %vm695, %v2206, 0
      %v2248 = vsel %vm695, %v2207, 0
      %v2251 = vsel %vm695, %v2208, 0
      %v2254 = vsel %vm695, %v2209, 0
      %v2257 = vsel %vm695, %v2210, 0
      %v2260 = vsel %vm744, %v2162, 0
      %2262 = vmatpush.bf16.msra.mxu0 0
      %2263 = vmatpush.bf16.msra.mxu0 0
      %2264 = vmatpush.bf16.msra.mxu0 0
      %2265 = vmatpush.bf16.msra.mxu0 0
      %2266 = vmatpush.bf16.msra.mxu0 0
      %2267 = vmatpush.bf16.msra.mxu0 0
      %2268 = vmatpush.bf16.msra.mxu0 0
      %2269 = vmatpush.bf16.msra.mxu0 %v2260
      %2270 = vmatmul.bf16.gmra.mxu0 %v2212
      %v2271 = vpop.f32.mrf.mxu0
      %v2272 = vadd.f32 0.0, %v2271
      %v2273 = vpop.f32.mrf.mxu0
      %v2274 = vadd.f32 0.0, %v2273
      %2275 = vmatmul.bf16.gmra.mxu0 %v2215
      %v2276 = vpop.f32.mrf.mxu0
      %v2277 = vadd.f32 0.0, %v2276
      %v2278 = vpop.f32.mrf.mxu0
      %v2279 = vadd.f32 0.0, %v2278
      %2280 = vmatmul.bf16.gmra.mxu0 %v2218
      %v2281 = vpop.f32.mrf.mxu0
      %v2282 = vadd.f32 0.0, %v2281
      %v2283 = vpop.f32.mrf.mxu0
      %v2284 = vadd.f32 0.0, %v2283
      %2285 = vmatmul.bf16.gmra.mxu0 %v2221
      %v2286 = vpop.f32.mrf.mxu0
      %v2287 = vadd.f32 0.0, %v2286
      %v2288 = vpop.f32.mrf.mxu0
      %v2289 = vadd.f32 0.0, %v2288
      %2290 = vmatmul.bf16.gmra.mxu0 %v2224
      %v2291 = vpop.f32.mrf.mxu0
      %v2292 = vadd.f32 0.0, %v2291
      %v2293 = vpop.f32.mrf.mxu0
      %v2294 = vadd.f32 0.0, %v2293
      %2295 = vmatmul.bf16.gmra.mxu0 %v2227
      %v2296 = vpop.f32.mrf.mxu0
      %v2297 = vadd.f32 0.0, %v2296
      %v2298 = vpop.f32.mrf.mxu0
      %v2299 = vadd.f32 0.0, %v2298
      %2300 = vmatmul.bf16.gmra.mxu0 %v2230
      %v2301 = vpop.f32.mrf.mxu0
      %v2302 = vadd.f32 0.0, %v2301
      %v2303 = vpop.f32.mrf.mxu0
      %v2304 = vadd.f32 0.0, %v2303
      %2305 = vmatmul.bf16.gmra.mxu0 %v2233
      %v2306 = vpop.f32.mrf.mxu0
      %v2307 = vadd.f32 0.0, %v2306
      %v2308 = vpop.f32.mrf.mxu0
      %v2309 = vadd.f32 0.0, %v2308
      %2310 = vmatmul.bf16.gmra.mxu0 %v2236
      %v2311 = vpop.f32.mrf.mxu0
      %v2312 = vadd.f32 0.0, %v2311
      %v2313 = vpop.f32.mrf.mxu0
      %v2314 = vadd.f32 0.0, %v2313
      %2315 = vmatmul.bf16.gmra.mxu0 %v2239
      %v2316 = vpop.f32.mrf.mxu0
      %v2317 = vadd.f32 0.0, %v2316
      %v2318 = vpop.f32.mrf.mxu0
      %v2319 = vadd.f32 0.0, %v2318
      %2320 = vmatmul.bf16.gmra.mxu0 %v2242
      %v2321 = vpop.f32.mrf.mxu0
      %v2322 = vadd.f32 0.0, %v2321
      %v2323 = vpop.f32.mrf.mxu0
      %v2324 = vadd.f32 0.0, %v2323
      %2325 = vmatmul.bf16.gmra.mxu0 %v2245
      %v2326 = vpop.f32.mrf.mxu0
      %v2327 = vadd.f32 0.0, %v2326
      %v2328 = vpop.f32.mrf.mxu0
      %v2329 = vadd.f32 0.0, %v2328
      %2330 = vmatmul.bf16.gmra.mxu0 %v2248
      %v2331 = vpop.f32.mrf.mxu0
      %v2332 = vadd.f32 0.0, %v2331
      %v2333 = vpop.f32.mrf.mxu0
      %v2334 = vadd.f32 0.0, %v2333
      %2335 = vmatmul.bf16.gmra.mxu0 %v2251
      %v2336 = vpop.f32.mrf.mxu0
      %v2337 = vadd.f32 0.0, %v2336
      %v2338 = vpop.f32.mrf.mxu0
      %v2339 = vadd.f32 0.0, %v2338
      %2340 = vmatmul.bf16.gmra.mxu0 %v2254
      %v2341 = vpop.f32.mrf.mxu0
      %v2342 = vadd.f32 0.0, %v2341
      %v2343 = vpop.f32.mrf.mxu0
      %v2344 = vadd.f32 0.0, %v2343
      %2345 = vmatmul.bf16.gmra.mxu0 %v2257
      %v2346 = vpop.f32.mrf.mxu0
      %v2347 = vadd.f32 0.0, %v2346
      %v2348 = vpop.f32.mrf.mxu0
      %v2349 = vadd.f32 0.0, %v2348
      %2350 = vdwg.mxu0
      %v2351 = vadd.f32 %v1697, %v2272
      %v2352 = vadd.f32 %v1698, %v2274
      %v2353 = vadd.f32 %v1699, %v2277
      %v2354 = vadd.f32 %v1700, %v2279
      %v2355 = vadd.f32 %v1701, %v2282
      %v2356 = vadd.f32 %v1702, %v2284
      %v2357 = vadd.f32 %v1703, %v2287
      %v2358 = vadd.f32 %v1704, %v2289
      %v2359 = vadd.f32 %v1705, %v2292
      %v2360 = vadd.f32 %v1706, %v2294
      %v2361 = vadd.f32 %v1707, %v2297
      %v2362 = vadd.f32 %v1708, %v2299
      %v2363 = vadd.f32 %v1709, %v2302
      %v2364 = vadd.f32 %v1710, %v2304
      %v2365 = vadd.f32 %v1711, %v2307
      %v2366 = vadd.f32 %v1712, %v2309
      %v2367 = vadd.f32 %v1713, %v2312
      %v2368 = vadd.f32 %v1714, %v2314
      %v2369 = vadd.f32 %v1715, %v2317
      %v2370 = vadd.f32 %v1716, %v2319
      %v2371 = vadd.f32 %v1717, %v2322
      %v2372 = vadd.f32 %v1718, %v2324
      %v2373 = vadd.f32 %v1719, %v2327
      %v2374 = vadd.f32 %v1720, %v2329
      %v2375 = vadd.f32 %v1721, %v2332
      %v2376 = vadd.f32 %v1722, %v2334
      %v2377 = vadd.f32 %v1723, %v2337
      %v2378 = vadd.f32 %v1724, %v2339
      %v2379 = vadd.f32 %v1725, %v2342
      %v2380 = vadd.f32 %v1726, %v2344
      %v2381 = vadd.f32 %v1727, %v2347
      %v2382 = vadd.f32 %v1728, %v2349
      %v2383 = vld [vmem:[%s1442] sm:$0xe]
      %v2384 = vld [vmem:[%s1442 + $0xc] sm:$0xe]
      %v2385 = vld [vmem:[%s1442 + $0x18] sm:$0xe]
      %v2386 = vld [vmem:[%s1442 + $0x24] sm:$0xe]
      %v2387 = vld [vmem:[%s1442 + $0x30] sm:$0xe]
      %v2388 = vld [vmem:[%s1442 + $0x3c] sm:$0xe]
      %v2389 = vld [vmem:[%s1442 + $0x48] sm:$0xe]
      %v2390 = vld [vmem:[%s1442 + $0x54] sm:$0xe]
      %v2391 = vld [vmem:[%s1442 + $0x60] sm:$0xe]
      %v2392 = vld [vmem:[%s1442 + $0x6c] sm:$0xe]
      %v2393 = vld [vmem:[%s1442 + $0x78] sm:$0xe]
      %v2394 = vld [vmem:[%s1442 + $0x84] sm:$0xe]
      %v2395 = vld [vmem:[%s1442 + $0x90] sm:$0xe]
      %v2396 = vld [vmem:[%s1442 + $0x9c] sm:$0xe]
      %v2397 = vld [vmem:[%s1442 + $0xa8] sm:$0xe]
      %v2398 = vld [vmem:[%s1442 + $0xb4] sm:$0xe]
      %v2447 = vrot.slane %v2383, 5
      %v2448 = vrot.slane %v2447, 4
      %v2449 = vrot.slane %v1730, 5
      %v2450 = vsel %vm1107, %v2448, %v2449
      %v2451 = vrot.slane %v2449, 4
      %v2452 = vrot.slane %v1731, 5
      %v2453 = vsel %vm1107, %v2451, %v2452
      %v2454 = vrot.slane %v2384, 5
      %v2455 = vrot.slane %v2454, 4
      %v2456 = vrot.slane %v1733, 5
      %v2457 = vsel %vm1107, %v2455, %v2456
      %v2458 = vrot.slane %v2456, 4
      %v2459 = vrot.slane %v1734, 5
      %v2460 = vsel %vm1107, %v2458, %v2459
      %v2461 = vrot.slane %v2385, 5
      %v2462 = vrot.slane %v2461, 4
      %v2463 = vrot.slane %v1736, 5
      %v2464 = vsel %vm1107, %v2462, %v2463
      %v2465 = vrot.slane %v2463, 4
      %v2466 = vrot.slane %v1737, 5
      %v2467 = vsel %vm1107, %v2465, %v2466
      %v2468 = vrot.slane %v2386, 5
      %v2469 = vrot.slane %v2468, 4
      %v2470 = vrot.slane %v1739, 5
      %v2471 = vsel %vm1107, %v2469, %v2470
      %v2472 = vrot.slane %v2470, 4
      %v2473 = vrot.slane %v1740, 5
      %v2474 = vsel %vm1107, %v2472, %v2473
      %v2475 = vrot.slane %v2387, 5
      %v2476 = vrot.slane %v2475, 4
      %v2477 = vrot.slane %v1742, 5
      %v2478 = vsel %vm1107, %v2476, %v2477
      %v2479 = vrot.slane %v2477, 4
      %v2480 = vrot.slane %v1743, 5
      %v2481 = vsel %vm1107, %v2479, %v2480
      %v2482 = vrot.slane %v2388, 5
      %v2483 = vrot.slane %v2482, 4
      %v2484 = vrot.slane %v1745, 5
      %v2485 = vsel %vm1107, %v2483, %v2484
      %v2486 = vrot.slane %v2484, 4
      %v2487 = vrot.slane %v1746, 5
      %v2488 = vsel %vm1107, %v2486, %v2487
      %v2489 = vrot.slane %v2389, 5
      %v2490 = vrot.slane %v2489, 4
      %v2491 = vrot.slane %v1748, 5
      %v2492 = vsel %vm1107, %v2490, %v2491
      %v2493 = vrot.slane %v2491, 4
      %v2494 = vrot.slane %v1749, 5
      %v2495 = vsel %vm1107, %v2493, %v2494
      %v2496 = vrot.slane %v2390, 5
      %v2497 = vrot.slane %v2496, 4
      %v2498 = vrot.slane %v1751, 5
      %v2499 = vsel %vm1107, %v2497, %v2498
      %v2500 = vrot.slane %v2498, 4
      %v2501 = vrot.slane %v1752, 5
      %v2502 = vsel %vm1107, %v2500, %v2501
      %v2503 = vrot.slane %v2391, 5
      %v2504 = vrot.slane %v2503, 4
      %v2505 = vrot.slane %v1754, 5
      %v2506 = vsel %vm1107, %v2504, %v2505
      %v2507 = vrot.slane %v2505, 4
      %v2508 = vrot.slane %v1755, 5
      %v2509 = vsel %vm1107, %v2507, %v2508
      %v2510 = vrot.slane %v2392, 5
      %v2511 = vrot.slane %v2510, 4
      %v2512 = vrot.slane %v1757, 5
      %v2513 = vsel %vm1107, %v2511, %v2512
      %v2514 = vrot.slane %v2512, 4
      %v2515 = vrot.slane %v1758, 5
      %v2516 = vsel %vm1107, %v2514, %v2515
      %v2517 = vrot.slane %v2393, 5
      %v2518 = vrot.slane %v2517, 4
      %v2519 = vrot.slane %v1760, 5
      %v2520 = vsel %vm1107, %v2518, %v2519
      %v2521 = vrot.slane %v2519, 4
      %v2522 = vrot.slane %v1761, 5
      %v2523 = vsel %vm1107, %v2521, %v2522
      %v2524 = vrot.slane %v2394, 5
      %v2525 = vrot.slane %v2524, 4
      %v2526 = vrot.slane %v1763, 5
      %v2527 = vsel %vm1107, %v2525, %v2526
      %v2528 = vrot.slane %v2526, 4
      %v2529 = vrot.slane %v1764, 5
      %v2530 = vsel %vm1107, %v2528, %v2529
      %v2531 = vrot.slane %v2395, 5
      %v2532 = vrot.slane %v2531, 4
      %v2533 = vrot.slane %v1766, 5
      %v2534 = vsel %vm1107, %v2532, %v2533
      %v2535 = vrot.slane %v2533, 4
      %v2536 = vrot.slane %v1767, 5
      %v2537 = vsel %vm1107, %v2535, %v2536
      %v2538 = vrot.slane %v2396, 5
      %v2539 = vrot.slane %v2538, 4
      %v2540 = vrot.slane %v1769, 5
      %v2541 = vsel %vm1107, %v2539, %v2540
      %v2542 = vrot.slane %v2540, 4
      %v2543 = vrot.slane %v1770, 5
      %v2544 = vsel %vm1107, %v2542, %v2543
      %v2545 = vrot.slane %v2397, 5
      %v2546 = vrot.slane %v2545, 4
      %v2547 = vrot.slane %v1772, 5
      %v2548 = vsel %vm1107, %v2546, %v2547
      %v2549 = vrot.slane %v2547, 4
      %v2550 = vrot.slane %v1773, 5
      %v2551 = vsel %vm1107, %v2549, %v2550
      %v2552 = vrot.slane %v2398, 5
      %v2553 = vrot.slane %v2552, 4
      %v2554 = vrot.slane %v1775, 5
      %v2555 = vsel %vm1107, %v2553, %v2554
      %v2556 = vrot.slane %v2554, 4
      %v2557 = vrot.slane %v1776, 5
      %v2558 = vsel %vm1107, %v2556, %v2557
      %s2559 = scalar_lea.vmem %s1, 20
      %v2560 = vld [vmem:[%s2559] sm:$0xf]
      %v2561 = vunpack.c.l.b16 %v2450
      %v2562 = vunpack.c.l.b16 %v2453
      %v2563 = vunpack.c.l.b16 %v2457
      %v2564 = vunpack.c.l.b16 %v2460
      %v2565 = vunpack.c.l.b16 %v2464
      %v2566 = vunpack.c.l.b16 %v2467
      %v2567 = vunpack.c.l.b16 %v2471
      %v2568 = vunpack.c.l.b16 %v2474
      %v2569 = vunpack.c.l.b16 %v2478
      %v2570 = vunpack.c.l.b16 %v2481
      %v2571 = vunpack.c.l.b16 %v2485
      %v2572 = vunpack.c.l.b16 %v2488
      %v2573 = vunpack.c.l.b16 %v2492
      %v2574 = vunpack.c.l.b16 %v2495
      %v2575 = vunpack.c.l.b16 %v2499
      %v2576 = vunpack.c.l.b16 %v2502
      %v2577 = vunpack.c.l.b16 %v2506
      %v2578 = vunpack.c.l.b16 %v2509
      %v2579 = vunpack.c.l.b16 %v2513
      %v2580 = vunpack.c.l.b16 %v2516
      %v2581 = vunpack.c.l.b16 %v2520
      %v2582 = vunpack.c.l.b16 %v2523
      %v2583 = vunpack.c.l.b16 %v2527
      %v2584 = vunpack.c.l.b16 %v2530
      %v2585 = vunpack.c.l.b16 %v2534
      %v2586 = vunpack.c.l.b16 %v2537
      %v2587 = vunpack.c.l.b16 %v2541
      %v2588 = vunpack.c.l.b16 %v2544
      %v2589 = vunpack.c.l.b16 %v2548
      %v2590 = vunpack.c.l.b16 %v2551
      %v2591 = vunpack.c.l.b16 %v2555
      %v2592 = vunpack.c.l.b16 %v2558
      %v2593 = vpack.c.b16 %v2562, %v2561
      %v2594 = vpack.c.b16 %v2564, %v2563
      %v2595 = vpack.c.b16 %v2566, %v2565
      %v2596 = vpack.c.b16 %v2568, %v2567
      %v2597 = vpack.c.b16 %v2570, %v2569
      %v2598 = vpack.c.b16 %v2572, %v2571
      %v2599 = vpack.c.b16 %v2574, %v2573
      %v2600 = vpack.c.b16 %v2576, %v2575
      %v2601 = vpack.c.b16 %v2578, %v2577
      %v2602 = vpack.c.b16 %v2580, %v2579
      %v2603 = vpack.c.b16 %v2582, %v2581
      %v2604 = vpack.c.b16 %v2584, %v2583
      %v2605 = vpack.c.b16 %v2586, %v2585
      %v2606 = vpack.c.b16 %v2588, %v2587
      %v2607 = vpack.c.b16 %v2590, %v2589
      %v2608 = vpack.c.b16 %v2592, %v2591
      %v2610 = vsel %vm695, %v2593, 0
      %v2613 = vsel %vm695, %v2594, 0
      %v2616 = vsel %vm695, %v2595, 0
      %v2619 = vsel %vm695, %v2596, 0
      %v2622 = vsel %vm695, %v2597, 0
      %v2625 = vsel %vm695, %v2598, 0
      %v2628 = vsel %vm695, %v2599, 0
      %v2631 = vsel %vm695, %v2600, 0
      %v2634 = vsel %vm695, %v2601, 0
      %v2637 = vsel %vm695, %v2602, 0
      %v2640 = vsel %vm695, %v2603, 0
      %v2643 = vsel %vm695, %v2604, 0
      %v2646 = vsel %vm695, %v2605, 0
      %v2649 = vsel %vm695, %v2606, 0
      %v2652 = vsel %vm695, %v2607, 0
      %v2655 = vsel %vm695, %v2608, 0
      %v2658 = vsel %vm744, %v2560, 0
      %2660 = vmatpush.bf16.msra.mxu0 0
      %2661 = vmatpush.bf16.msra.mxu0 0
      %2662 = vmatpush.bf16.msra.mxu0 0
      %2663 = vmatpush.bf16.msra.mxu0 0
      %2664 = vmatpush.bf16.msra.mxu0 0
      %2665 = vmatpush.bf16.msra.mxu0 0
      %2666 = vmatpush.bf16.msra.mxu0 0
      %2667 = vmatpush.bf16.msra.mxu0 %v2658
      %2668 = vmatmul.bf16.gmra.mxu0 %v2610
      %v2669 = vpop.f32.mrf.mxu0
      %v2670 = vadd.f32 0.0, %v2669
      %v2671 = vpop.f32.mrf.mxu0
      %v2672 = vadd.f32 0.0, %v2671
      %2673 = vmatmul.bf16.gmra.mxu0 %v2613
      %v2674 = vpop.f32.mrf.mxu0
      %v2675 = vadd.f32 0.0, %v2674
      %v2676 = vpop.f32.mrf.mxu0
      %v2677 = vadd.f32 0.0, %v2676
      %2678 = vmatmul.bf16.gmra.mxu0 %v2616
      %v2679 = vpop.f32.mrf.mxu0
      %v2680 = vadd.f32 0.0, %v2679
      %v2681 = vpop.f32.mrf.mxu0
      %v2682 = vadd.f32 0.0, %v2681
      %2683 = vmatmul.bf16.gmra.mxu0 %v2619
      %v2684 = vpop.f32.mrf.mxu0
      %v2685 = vadd.f32 0.0, %v2684
      %v2686 = vpop.f32.mrf.mxu0
      %v2687 = vadd.f32 0.0, %v2686
      %2688 = vmatmul.bf16.gmra.mxu0 %v2622
      %v2689 = vpop.f32.mrf.mxu0
      %v2690 = vadd.f32 0.0, %v2689
      %v2691 = vpop.f32.mrf.mxu0
      %v2692 = vadd.f32 0.0, %v2691
      %2693 = vmatmul.bf16.gmra.mxu0 %v2625
      %v2694 = vpop.f32.mrf.mxu0
      %v2695 = vadd.f32 0.0, %v2694
      %v2696 = vpop.f32.mrf.mxu0
      %v2697 = vadd.f32 0.0, %v2696
      %2698 = vmatmul.bf16.gmra.mxu0 %v2628
      %v2699 = vpop.f32.mrf.mxu0
      %v2700 = vadd.f32 0.0, %v2699
      %v2701 = vpop.f32.mrf.mxu0
      %v2702 = vadd.f32 0.0, %v2701
      %2703 = vmatmul.bf16.gmra.mxu0 %v2631
      %v2704 = vpop.f32.mrf.mxu0
      %v2705 = vadd.f32 0.0, %v2704
      %v2706 = vpop.f32.mrf.mxu0
      %v2707 = vadd.f32 0.0, %v2706
      %2708 = vmatmul.bf16.gmra.mxu0 %v2634
      %v2709 = vpop.f32.mrf.mxu0
      %v2710 = vadd.f32 0.0, %v2709
      %v2711 = vpop.f32.mrf.mxu0
      %v2712 = vadd.f32 0.0, %v2711
      %2713 = vmatmul.bf16.gmra.mxu0 %v2637
      %v2714 = vpop.f32.mrf.mxu0
      %v2715 = vadd.f32 0.0, %v2714
      %v2716 = vpop.f32.mrf.mxu0
      %v2717 = vadd.f32 0.0, %v2716
      %2718 = vmatmul.bf16.gmra.mxu0 %v2640
      %v2719 = vpop.f32.mrf.mxu0
      %v2720 = vadd.f32 0.0, %v2719
      %v2721 = vpop.f32.mrf.mxu0
      %v2722 = vadd.f32 0.0, %v2721
      %2723 = vmatmul.bf16.gmra.mxu0 %v2643
      %v2724 = vpop.f32.mrf.mxu0
      %v2725 = vadd.f32 0.0, %v2724
      %v2726 = vpop.f32.mrf.mxu0
      %v2727 = vadd.f32 0.0, %v2726
      %2728 = vmatmul.bf16.gmra.mxu0 %v2646
      %v2729 = vpop.f32.mrf.mxu0
      %v2730 = vadd.f32 0.0, %v2729
      %v2731 = vpop.f32.mrf.mxu0
      %v2732 = vadd.f32 0.0, %v2731
      %2733 = vmatmul.bf16.gmra.mxu0 %v2649
      %v2734 = vpop.f32.mrf.mxu0
      %v2735 = vadd.f32 0.0, %v2734
      %v2736 = vpop.f32.mrf.mxu0
      %v2737 = vadd.f32 0.0, %v2736
      %2738 = vmatmul.bf16.gmra.mxu0 %v2652
      %v2739 = vpop.f32.mrf.mxu0
      %v2740 = vadd.f32 0.0, %v2739
      %v2741 = vpop.f32.mrf.mxu0
      %v2742 = vadd.f32 0.0, %v2741
      %2743 = vmatmul.bf16.gmra.mxu0 %v2655
      %v2744 = vpop.f32.mrf.mxu0
      %v2745 = vadd.f32 0.0, %v2744
      %v2746 = vpop.f32.mrf.mxu0
      %v2747 = vadd.f32 0.0, %v2746
      %2748 = vdwg.mxu0
      %v2749 = vadd.f32 %v2351, %v2670
      %v2750 = vadd.f32 %v2352, %v2672
      %v2751 = vadd.f32 %v2353, %v2675
      %v2752 = vadd.f32 %v2354, %v2677
      %v2753 = vadd.f32 %v2355, %v2680
      %v2754 = vadd.f32 %v2356, %v2682
      %v2755 = vadd.f32 %v2357, %v2685
      %v2756 = vadd.f32 %v2358, %v2687
      %v2757 = vadd.f32 %v2359, %v2690
      %v2758 = vadd.f32 %v2360, %v2692
      %v2759 = vadd.f32 %v2361, %v2695
      %v2760 = vadd.f32 %v2362, %v2697
      %v2761 = vadd.f32 %v2363, %v2700
      %v2762 = vadd.f32 %v2364, %v2702
      %v2763 = vadd.f32 %v2365, %v2705
      %v2764 = vadd.f32 %v2366, %v2707
      %v2765 = vadd.f32 %v2367, %v2710
      %v2766 = vadd.f32 %v2368, %v2712
      %v2767 = vadd.f32 %v2369, %v2715
      %v2768 = vadd.f32 %v2370, %v2717
      %v2769 = vadd.f32 %v2371, %v2720
      %v2770 = vadd.f32 %v2372, %v2722
      %v2771 = vadd.f32 %v2373, %v2725
      %v2772 = vadd.f32 %v2374, %v2727
      %v2773 = vadd.f32 %v2375, %v2730
      %v2774 = vadd.f32 %v2376, %v2732
      %v2775 = vadd.f32 %v2377, %v2735
      %v2776 = vadd.f32 %v2378, %v2737
      %v2777 = vadd.f32 %v2379, %v2740
      %v2778 = vadd.f32 %v2380, %v2742
      %v2779 = vadd.f32 %v2381, %v2745
      %v2780 = vadd.f32 %v2382, %v2747
      %s2781 = scalar_lea.vmem %s197, 24
      %v2782 = vld [vmem:[%s2781] sm:$0xf]
      %v2783 = vld [vmem:[%s2781 + $0x4] sm:$0xf]
      %v2784 = vld [vmem:[%s2781 + $0xc] sm:$0xf]
      %v2785 = vld [vmem:[%s2781 + $0x10] sm:$0xf]
      %v2786 = vld [vmem:[%s2781 + $0x18] sm:$0xf]
      %v2787 = vld [vmem:[%s2781 + $0x1c] sm:$0xf]
      %v2788 = vld [vmem:[%s2781 + $0x24] sm:$0xf]
      %v2789 = vld [vmem:[%s2781 + $0x28] sm:$0xf]
      %v2790 = vld [vmem:[%s2781 + $0x30] sm:$0xf]
      %v2791 = vld [vmem:[%s2781 + $0x34] sm:$0xf]
      %v2792 = vld [vmem:[%s2781 + $0x3c] sm:$0xf]
      %v2793 = vld [vmem:[%s2781 + $0x40] sm:$0xf]
      %v2794 = vld [vmem:[%s2781 + $0x48] sm:$0xf]
      %v2795 = vld [vmem:[%s2781 + $0x4c] sm:$0xf]
      %v2796 = vld [vmem:[%s2781 + $0x54] sm:$0xf]
      %v2797 = vld [vmem:[%s2781 + $0x58] sm:$0xf]
      %v2798 = vld [vmem:[%s2781 + $0x60] sm:$0xf]
      %v2799 = vld [vmem:[%s2781 + $0x64] sm:$0xf]
      %v2800 = vld [vmem:[%s2781 + $0x6c] sm:$0xf]
      %v2801 = vld [vmem:[%s2781 + $0x70] sm:$0xf]
      %v2802 = vld [vmem:[%s2781 + $0x78] sm:$0xf]
      %v2803 = vld [vmem:[%s2781 + $0x7c] sm:$0xf]
      %v2804 = vld [vmem:[%s2781 + $0x84] sm:$0xf]
      %v2805 = vld [vmem:[%s2781 + $0x88] sm:$0xf]
      %v2806 = vld [vmem:[%s2781 + $0x90] sm:$0xf]
      %v2807 = vld [vmem:[%s2781 + $0x94] sm:$0xf]
      %v2808 = vld [vmem:[%s2781 + $0x9c] sm:$0xf]
      %v2809 = vld [vmem:[%s2781 + $0xa0] sm:$0xf]
      %v2810 = vld [vmem:[%s2781 + $0xa8] sm:$0xf]
      %v2811 = vld [vmem:[%s2781 + $0xac] sm:$0xf]
      %v2812 = vld [vmem:[%s2781 + $0xb4] sm:$0xf]
      %v2813 = vld [vmem:[%s2781 + $0xb8] sm:$0xf]
      %s2814 = scalar_lea.vmem %s1, 24
      %v2815 = vld [vmem:[%s2814] sm:$0xf]
      %v2848 = vunpack.c.l.b16 %v2782
      %v2849 = vunpack.c.l.b16 %v2783
      %v2850 = vunpack.c.l.b16 %v2784
      %v2851 = vunpack.c.l.b16 %v2785
      %v2852 = vunpack.c.l.b16 %v2786
      %v2853 = vunpack.c.l.b16 %v2787
      %v2854 = vunpack.c.l.b16 %v2788
      %v2855 = vunpack.c.l.b16 %v2789
      %v2856 = vunpack.c.l.b16 %v2790
      %v2857 = vunpack.c.l.b16 %v2791
      %v2858 = vunpack.c.l.b16 %v2792
      %v2859 = vunpack.c.l.b16 %v2793
      %v2860 = vunpack.c.l.b16 %v2794
      %v2861 = vunpack.c.l.b16 %v2795
      %v2862 = vunpack.c.l.b16 %v2796
      %v2863 = vunpack.c.l.b16 %v2797
      %v2864 = vunpack.c.l.b16 %v2798
      %v2865 = vunpack.c.l.b16 %v2799
      %v2866 = vunpack.c.l.b16 %v2800
      %v2867 = vunpack.c.l.b16 %v2801
      %v2868 = vunpack.c.l.b16 %v2802
      %v2869 = vunpack.c.l.b16 %v2803
      %v2870 = vunpack.c.l.b16 %v2804
      %v2871 = vunpack.c.l.b16 %v2805
      %v2872 = vunpack.c.l.b16 %v2806
      %v2873 = vunpack.c.l.b16 %v2807
      %v2874 = vunpack.c.l.b16 %v2808
      %v2875 = vunpack.c.l.b16 %v2809
      %v2876 = vunpack.c.l.b16 %v2810
      %v2877 = vunpack.c.l.b16 %v2811
      %v2878 = vunpack.c.l.b16 %v2812
      %v2879 = vunpack.c.l.b16 %v2813
      %v2880 = vpack.c.b16 %v2849, %v2848
      %v2881 = vpack.c.b16 %v2851, %v2850
      %v2882 = vpack.c.b16 %v2853, %v2852
      %v2883 = vpack.c.b16 %v2855, %v2854
      %v2884 = vpack.c.b16 %v2857, %v2856
      %v2885 = vpack.c.b16 %v2859, %v2858
      %v2886 = vpack.c.b16 %v2861, %v2860
      %v2887 = vpack.c.b16 %v2863, %v2862
      %v2888 = vpack.c.b16 %v2865, %v2864
      %v2889 = vpack.c.b16 %v2867, %v2866
      %v2890 = vpack.c.b16 %v2869, %v2868
      %v2891 = vpack.c.b16 %v2871, %v2870
      %v2892 = vpack.c.b16 %v2873, %v2872
      %v2893 = vpack.c.b16 %v2875, %v2874
      %v2894 = vpack.c.b16 %v2877, %v2876
      %v2895 = vpack.c.b16 %v2879, %v2878
      %v2897 = vsel %vm695, %v2880, 0
      %v2900 = vsel %vm695, %v2881, 0
      %v2903 = vsel %vm695, %v2882, 0
      %v2906 = vsel %vm695, %v2883, 0
      %v2909 = vsel %vm695, %v2884, 0
      %v2912 = vsel %vm695, %v2885, 0
      %v2915 = vsel %vm695, %v2886, 0
      %v2918 = vsel %vm695, %v2887, 0
      %v2921 = vsel %vm695, %v2888, 0
      %v2924 = vsel %vm695, %v2889, 0
      %v2927 = vsel %vm695, %v2890, 0
      %v2930 = vsel %vm695, %v2891, 0
      %v2933 = vsel %vm695, %v2892, 0
      %v2936 = vsel %vm695, %v2893, 0
      %v2939 = vsel %vm695, %v2894, 0
      %v2942 = vsel %vm695, %v2895, 0
      %v2945 = vsel %vm744, %v2815, 0
      %2947 = vmatpush.bf16.msra.mxu0 0
      %2948 = vmatpush.bf16.msra.mxu0 0
      %2949 = vmatpush.bf16.msra.mxu0 0
      %2950 = vmatpush.bf16.msra.mxu0 0
      %2951 = vmatpush.bf16.msra.mxu0 0
      %2952 = vmatpush.bf16.msra.mxu0 0
      %2953 = vmatpush.bf16.msra.mxu0 0
      %2954 = vmatpush.bf16.msra.mxu0 %v2945
      %2955 = vmatmul.bf16.gmra.mxu0 %v2897
      %v2956 = vpop.f32.mrf.mxu0
      %v2957 = vadd.f32 0.0, %v2956
      %v2958 = vpop.f32.mrf.mxu0
      %v2959 = vadd.f32 0.0, %v2958
      %2960 = vmatmul.bf16.gmra.mxu0 %v2900
      %v2961 = vpop.f32.mrf.mxu0
      %v2962 = vadd.f32 0.0, %v2961
      %v2963 = vpop.f32.mrf.mxu0
      %v2964 = vadd.f32 0.0, %v2963
      %2965 = vmatmul.bf16.gmra.mxu0 %v2903
      %v2966 = vpop.f32.mrf.mxu0
      %v2967 = vadd.f32 0.0, %v2966
      %v2968 = vpop.f32.mrf.mxu0
      %v2969 = vadd.f32 0.0, %v2968
      %2970 = vmatmul.bf16.gmra.mxu0 %v2906
      %v2971 = vpop.f32.mrf.mxu0
      %v2972 = vadd.f32 0.0, %v2971
      %v2973 = vpop.f32.mrf.mxu0
      %v2974 = vadd.f32 0.0, %v2973
      %2975 = vmatmul.bf16.gmra.mxu0 %v2909
      %v2976 = vpop.f32.mrf.mxu0
      %v2977 = vadd.f32 0.0, %v2976
      %v2978 = vpop.f32.mrf.mxu0
      %v2979 = vadd.f32 0.0, %v2978
      %2980 = vmatmul.bf16.gmra.mxu0 %v2912
      %v2981 = vpop.f32.mrf.mxu0
      %v2982 = vadd.f32 0.0, %v2981
      %v2983 = vpop.f32.mrf.mxu0
      %v2984 = vadd.f32 0.0, %v2983
      %2985 = vmatmul.bf16.gmra.mxu0 %v2915
      %v2986 = vpop.f32.mrf.mxu0
      %v2987 = vadd.f32 0.0, %v2986
      %v2988 = vpop.f32.mrf.mxu0
      %v2989 = vadd.f32 0.0, %v2988
      %2990 = vmatmul.bf16.gmra.mxu0 %v2918
      %v2991 = vpop.f32.mrf.mxu0
      %v2992 = vadd.f32 0.0, %v2991
      %v2993 = vpop.f32.mrf.mxu0
      %v2994 = vadd.f32 0.0, %v2993
      %2995 = vmatmul.bf16.gmra.mxu0 %v2921
      %v2996 = vpop.f32.mrf.mxu0
      %v2997 = vadd.f32 0.0, %v2996
      %v2998 = vpop.f32.mrf.mxu0
      %v2999 = vadd.f32 0.0, %v2998
      %3000 = vmatmul.bf16.gmra.mxu0 %v2924
      %v3001 = vpop.f32.mrf.mxu0
      %v3002 = vadd.f32 0.0, %v3001
      %v3003 = vpop.f32.mrf.mxu0
      %v3004 = vadd.f32 0.0, %v3003
      %3005 = vmatmul.bf16.gmra.mxu0 %v2927
      %v3006 = vpop.f32.mrf.mxu0
      %v3007 = vadd.f32 0.0, %v3006
      %v3008 = vpop.f32.mrf.mxu0
      %v3009 = vadd.f32 0.0, %v3008
      %3010 = vmatmul.bf16.gmra.mxu0 %v2930
      %v3011 = vpop.f32.mrf.mxu0
      %v3012 = vadd.f32 0.0, %v3011
      %v3013 = vpop.f32.mrf.mxu0
      %v3014 = vadd.f32 0.0, %v3013
      %3015 = vmatmul.bf16.gmra.mxu0 %v2933
      %v3016 = vpop.f32.mrf.mxu0
      %v3017 = vadd.f32 0.0, %v3016
      %v3018 = vpop.f32.mrf.mxu0
      %v3019 = vadd.f32 0.0, %v3018
      %3020 = vmatmul.bf16.gmra.mxu0 %v2936
      %v3021 = vpop.f32.mrf.mxu0
      %v3022 = vadd.f32 0.0, %v3021
      %v3023 = vpop.f32.mrf.mxu0
      %v3024 = vadd.f32 0.0, %v3023
      %3025 = vmatmul.bf16.gmra.mxu0 %v2939
      %v3026 = vpop.f32.mrf.mxu0
      %v3027 = vadd.f32 0.0, %v3026
      %v3028 = vpop.f32.mrf.mxu0
      %v3029 = vadd.f32 0.0, %v3028
      %3030 = vmatmul.bf16.gmra.mxu0 %v2942
      %v3031 = vpop.f32.mrf.mxu0
      %v3032 = vadd.f32 0.0, %v3031
      %v3033 = vpop.f32.mrf.mxu0
      %v3034 = vadd.f32 0.0, %v3033
      %3035 = vdwg.mxu0
      %v3036 = vadd.f32 %v2749, %v2957
      %v3037 = vadd.f32 %v2750, %v2959
      %v3038 = vadd.f32 %v2751, %v2962
      %v3039 = vadd.f32 %v2752, %v2964
      %v3040 = vadd.f32 %v2753, %v2967
      %v3041 = vadd.f32 %v2754, %v2969
      %v3042 = vadd.f32 %v2755, %v2972
      %v3043 = vadd.f32 %v2756, %v2974
      %v3044 = vadd.f32 %v2757, %v2977
      %v3045 = vadd.f32 %v2758, %v2979
      %v3046 = vadd.f32 %v2759, %v2982
      %v3047 = vadd.f32 %v2760, %v2984
      %v3048 = vadd.f32 %v2761, %v2987
      %v3049 = vadd.f32 %v2762, %v2989
      %v3050 = vadd.f32 %v2763, %v2992
      %v3051 = vadd.f32 %v2764, %v2994
      %v3052 = vadd.f32 %v2765, %v2997
      %v3053 = vadd.f32 %v2766, %v2999
      %v3054 = vadd.f32 %v2767, %v3002
      %v3055 = vadd.f32 %v2768, %v3004
      %v3056 = vadd.f32 %v2769, %v3007
      %v3057 = vadd.f32 %v2770, %v3009
      %v3058 = vadd.f32 %v2771, %v3012
      %v3059 = vadd.f32 %v2772, %v3014
      %v3060 = vadd.f32 %v2773, %v3017
      %v3061 = vadd.f32 %v2774, %v3019
      %v3062 = vadd.f32 %v2775, %v3022
      %v3063 = vadd.f32 %v2776, %v3024
      %v3064 = vadd.f32 %v2777, %v3027
      %v3065 = vadd.f32 %v2778, %v3029
      %v3066 = vadd.f32 %v2779, %v3032
      %v3067 = vadd.f32 %v2780, %v3034
      %v3068 = vld [vmem:[%s2781] sm:$0xf]
      %v3069 = vld [vmem:[%s2781 + $0x4] sm:$0xf]
      %v3070 = vld [vmem:[%s2781 + $0x8] sm:$0x1]
      %v3071 = vld [vmem:[%s2781 + $0xc] sm:$0xf]
      %v3072 = vld [vmem:[%s2781 + $0x10] sm:$0xf]
      %v3073 = vld [vmem:[%s2781 + $0x14] sm:$0x1]
      %v3074 = vld [vmem:[%s2781 + $0x18] sm:$0xf]
      %v3075 = vld [vmem:[%s2781 + $0x1c] sm:$0xf]
      %v3076 = vld [vmem:[%s2781 + $0x20] sm:$0x1]
      %v3077 = vld [vmem:[%s2781 + $0x24] sm:$0xf]
      %v3078 = vld [vmem:[%s2781 + $0x28] sm:$0xf]
      %v3079 = vld [vmem:[%s2781 + $0x2c] sm:$0x1]
      %v3080 = vld [vmem:[%s2781 + $0x30] sm:$0xf]
      %v3081 = vld [vmem:[%s2781 + $0x34] sm:$0xf]
      %v3082 = vld [vmem:[%s2781 + $0x38] sm:$0x1]
      %v3083 = vld [vmem:[%s2781 + $0x3c] sm:$0xf]
      %v3084 = vld [vmem:[%s2781 + $0x40] sm:$0xf]
      %v3085 = vld [vmem:[%s2781 + $0x44] sm:$0x1]
      %v3086 = vld [vmem:[%s2781 + $0x48] sm:$0xf]
      %v3087 = vld [vmem:[%s2781 + $0x4c] sm:$0xf]
      %v3088 = vld [vmem:[%s2781 + $0x50] sm:$0x1]
      %v3089 = vld [vmem:[%s2781 + $0x54] sm:$0xf]
      %v3090 = vld [vmem:[%s2781 + $0x58] sm:$0xf]
      %v3091 = vld [vmem:[%s2781 + $0x5c] sm:$0x1]
      %v3092 = vld [vmem:[%s2781 + $0x60] sm:$0xf]
      %v3093 = vld [vmem:[%s2781 + $0x64] sm:$0xf]
      %v3094 = vld [vmem:[%s2781 + $0x68] sm:$0x1]
      %v3095 = vld [vmem:[%s2781 + $0x6c] sm:$0xf]
      %v3096 = vld [vmem:[%s2781 + $0x70] sm:$0xf]
      %v3097 = vld [vmem:[%s2781 + $0x74] sm:$0x1]
      %v3098 = vld [vmem:[%s2781 + $0x78] sm:$0xf]
      %v3099 = vld [vmem:[%s2781 + $0x7c] sm:$0xf]
      %v3100 = vld [vmem:[%s2781 + $0x80] sm:$0x1]
      %v3101 = vld [vmem:[%s2781 + $0x84] sm:$0xf]
      %v3102 = vld [vmem:[%s2781 + $0x88] sm:$0xf]
      %v3103 = vld [vmem:[%s2781 + $0x8c] sm:$0x1]
      %v3104 = vld [vmem:[%s2781 + $0x90] sm:$0xf]
      %v3105 = vld [vmem:[%s2781 + $0x94] sm:$0xf]
      %v3106 = vld [vmem:[%s2781 + $0x98] sm:$0x1]
      %v3107 = vld [vmem:[%s2781 + $0x9c] sm:$0xf]
      %v3108 = vld [vmem:[%s2781 + $0xa0] sm:$0xf]
      %v3109 = vld [vmem:[%s2781 + $0xa4] sm:$0x1]
      %v3110 = vld [vmem:[%s2781 + $0xa8] sm:$0xf]
      %v3111 = vld [vmem:[%s2781 + $0xac] sm:$0xf]
      %v3112 = vld [vmem:[%s2781 + $0xb0] sm:$0x1]
      %v3113 = vld [vmem:[%s2781 + $0xb4] sm:$0xf]
      %v3114 = vld [vmem:[%s2781 + $0xb8] sm:$0xf]
      %v3115 = vld [vmem:[%s2781 + $0xbc] sm:$0x1]
      %v3117 = vshrl.u32 %v3068, 16
      %v3119 = vrot.slane %v3117, 4
      %v3120 = vshll.u32 %v3068, 16
      %v3122 = vrot.slane %v3120, 5
      %v3123 = vor.u32 %v3119, %v3122
      %v3124 = vrot.slane %v3123, 4
      %v3126 = vshll.u32 %v3069, 16
      %v3128 = vrot.slane %v3126, 5
      %v3129 = vsel %vm260, %v3124, %v3128
      %v3130 = vshrl.u32 %v3069, 16
      %v3132 = vrot.slane %v3130, 4
      %v3133 = vor.u32 %v3132, %v3128
      %v3134 = vrot.slane %v3133, 4
      %v3136 = vshll.u32 %v3070, 16
      %v3138 = vrot.slane %v3136, 5
      %v3139 = vsel %vm260, %v3134, %v3138
      %v3141 = vshrl.u32 %v3071, 16
      %v3143 = vrot.slane %v3141, 4
      %v3144 = vshll.u32 %v3071, 16
      %v3146 = vrot.slane %v3144, 5
      %v3147 = vor.u32 %v3143, %v3146
      %v3148 = vrot.slane %v3147, 4
      %v3150 = vshll.u32 %v3072, 16
      %v3152 = vrot.slane %v3150, 5
      %v3153 = vsel %vm260, %v3148, %v3152
      %v3154 = vshrl.u32 %v3072, 16
      %v3156 = vrot.slane %v3154, 4
      %v3157 = vor.u32 %v3156, %v3152
      %v3158 = vrot.slane %v3157, 4
      %v3160 = vshll.u32 %v3073, 16
      %v3162 = vrot.slane %v3160, 5
      %v3163 = vsel %vm260, %v3158, %v3162
      %v3165 = vshrl.u32 %v3074, 16
      %v3167 = vrot.slane %v3165, 4
      %v3168 = vshll.u32 %v3074, 16
      %v3170 = vrot.slane %v3168, 5
      %v3171 = vor.u32 %v3167, %v3170
      %v3172 = vrot.slane %v3171, 4
      %v3174 = vshll.u32 %v3075, 16
      %v3176 = vrot.slane %v3174, 5
      %v3177 = vsel %vm260, %v3172, %v3176
      %v3178 = vshrl.u32 %v3075, 16
      %v3180 = vrot.slane %v3178, 4
      %v3181 = vor.u32 %v3180, %v3176
      %v3182 = vrot.slane %v3181, 4
      %v3184 = vshll.u32 %v3076, 16
      %v3186 = vrot.slane %v3184, 5
      %v3187 = vsel %vm260, %v3182, %v3186
      %v3189 = vshrl.u32 %v3077, 16
      %v3191 = vrot.slane %v3189, 4
      %v3192 = vshll.u32 %v3077, 16
      %v3194 = vrot.slane %v3192, 5
      %v3195 = vor.u32 %v3191, %v3194
      %v3196 = vrot.slane %v3195, 4
      %v3198 = vshll.u32 %v3078, 16
      %v3200 = vrot.slane %v3198, 5
      %v3201 = vsel %vm260, %v3196, %v3200
      %v3202 = vshrl.u32 %v3078, 16
      %v3204 = vrot.slane %v3202, 4
      %v3205 = vor.u32 %v3204, %v3200
      %v3206 = vrot.slane %v3205, 4
      %v3208 = vshll.u32 %v3079, 16
      %v3210 = vrot.slane %v3208, 5
      %v3211 = vsel %vm260, %v3206, %v3210
      %v3213 = vshrl.u32 %v3080, 16
      %v3215 = vrot.slane %v3213, 4
      %v3216 = vshll.u32 %v3080, 16
      %v3218 = vrot.slane %v3216, 5
      %v3219 = vor.u32 %v3215, %v3218
      %v3220 = vrot.slane %v3219, 4
      %v3222 = vshll.u32 %v3081, 16
      %v3224 = vrot.slane %v3222, 5
      %v3225 = vsel %vm260, %v3220, %v3224
      %v3226 = vshrl.u32 %v3081, 16
      %v3228 = vrot.slane %v3226, 4
      %v3229 = vor.u32 %v3228, %v3224
      %v3230 = vrot.slane %v3229, 4
      %v3232 = vshll.u32 %v3082, 16
      %v3234 = vrot.slane %v3232, 5
      %v3235 = vsel %vm260, %v3230, %v3234
      %v3237 = vshrl.u32 %v3083, 16
      %v3239 = vrot.slane %v3237, 4
      %v3240 = vshll.u32 %v3083, 16
      %v3242 = vrot.slane %v3240, 5
      %v3243 = vor.u32 %v3239, %v3242
      %v3244 = vrot.slane %v3243, 4
      %v3246 = vshll.u32 %v3084, 16
      %v3248 = vrot.slane %v3246, 5
      %v3249 = vsel %vm260, %v3244, %v3248
      %v3250 = vshrl.u32 %v3084, 16
      %v3252 = vrot.slane %v3250, 4
      %v3253 = vor.u32 %v3252, %v3248
      %v3254 = vrot.slane %v3253, 4
      %v3256 = vshll.u32 %v3085, 16
      %v3258 = vrot.slane %v3256, 5
      %v3259 = vsel %vm260, %v3254, %v3258
      %v3261 = vshrl.u32 %v3086, 16
      %v3263 = vrot.slane %v3261, 4
      %v3264 = vshll.u32 %v3086, 16
      %v3266 = vrot.slane %v3264, 5
      %v3267 = vor.u32 %v3263, %v3266
      %v3268 = vrot.slane %v3267, 4
      %v3270 = vshll.u32 %v3087, 16
      %v3272 = vrot.slane %v3270, 5
      %v3273 = vsel %vm260, %v3268, %v3272
      %v3274 = vshrl.u32 %v3087, 16
      %v3276 = vrot.slane %v3274, 4
      %v3277 = vor.u32 %v3276, %v3272
      %v3278 = vrot.slane %v3277, 4
      %v3280 = vshll.u32 %v3088, 16
      %v3282 = vrot.slane %v3280, 5
      %v3283 = vsel %vm260, %v3278, %v3282
      %v3285 = vshrl.u32 %v3089, 16
      %v3287 = vrot.slane %v3285, 4
      %v3288 = vshll.u32 %v3089, 16
      %v3290 = vrot.slane %v3288, 5
      %v3291 = vor.u32 %v3287, %v3290
      %v3292 = vrot.slane %v3291, 4
      %v3294 = vshll.u32 %v3090, 16
      %v3296 = vrot.slane %v3294, 5
      %v3297 = vsel %vm260, %v3292, %v3296
      %v3298 = vshrl.u32 %v3090, 16
      %v3300 = vrot.slane %v3298, 4
      %v3301 = vor.u32 %v3300, %v3296
      %v3302 = vrot.slane %v3301, 4
      %v3304 = vshll.u32 %v3091, 16
      %v3306 = vrot.slane %v3304, 5
      %v3307 = vsel %vm260, %v3302, %v3306
      %v3309 = vshrl.u32 %v3092, 16
      %v3311 = vrot.slane %v3309, 4
      %v3312 = vshll.u32 %v3092, 16
      %v3314 = vrot.slane %v3312, 5
      %v3315 = vor.u32 %v3311, %v3314
      %v3316 = vrot.slane %v3315, 4
      %v3318 = vshll.u32 %v3093, 16
      %v3320 = vrot.slane %v3318, 5
      %v3321 = vsel %vm260, %v3316, %v3320
      %v3322 = vshrl.u32 %v3093, 16
      %v3324 = vrot.slane %v3322, 4
      %v3325 = vor.u32 %v3324, %v3320
      %v3326 = vrot.slane %v3325, 4
      %v3328 = vshll.u32 %v3094, 16
      %v3330 = vrot.slane %v3328, 5
      %v3331 = vsel %vm260, %v3326, %v3330
      %v3333 = vshrl.u32 %v3095, 16
      %v3335 = vrot.slane %v3333, 4
      %v3336 = vshll.u32 %v3095, 16
      %v3338 = vrot.slane %v3336, 5
      %v3339 = vor.u32 %v3335, %v3338
      %v3340 = vrot.slane %v3339, 4
      %v3342 = vshll.u32 %v3096, 16
      %v3344 = vrot.slane %v3342, 5
      %v3345 = vsel %vm260, %v3340, %v3344
      %v3346 = vshrl.u32 %v3096, 16
      %v3348 = vrot.slane %v3346, 4
      %v3349 = vor.u32 %v3348, %v3344
      %v3350 = vrot.slane %v3349, 4
      %v3352 = vshll.u32 %v3097, 16
      %v3354 = vrot.slane %v3352, 5
      %v3355 = vsel %vm260, %v3350, %v3354
      %v3357 = vshrl.u32 %v3098, 16
      %v3359 = vrot.slane %v3357, 4
      %v3360 = vshll.u32 %v3098, 16
      %v3362 = vrot.slane %v3360, 5
      %v3363 = vor.u32 %v3359, %v3362
      %v3364 = vrot.slane %v3363, 4
      %v3366 = vshll.u32 %v3099, 16
      %v3368 = vrot.slane %v3366, 5
      %v3369 = vsel %vm260, %v3364, %v3368
      %v3370 = vshrl.u32 %v3099, 16
      %v3372 = vrot.slane %v3370, 4
      %v3373 = vor.u32 %v3372, %v3368
      %v3374 = vrot.slane %v3373, 4
      %v3376 = vshll.u32 %v3100, 16
      %v3378 = vrot.slane %v3376, 5
      %v3379 = vsel %vm260, %v3374, %v3378
      %v3381 = vshrl.u32 %v3101, 16
      %v3383 = vrot.slane %v3381, 4
      %v3384 = vshll.u32 %v3101, 16
      %v3386 = vrot.slane %v3384, 5
      %v3387 = vor.u32 %v3383, %v3386
      %v3388 = vrot.slane %v3387, 4
      %v3390 = vshll.u32 %v3102, 16
      %v3392 = vrot.slane %v3390, 5
      %v3393 = vsel %vm260, %v3388, %v3392
      %v3394 = vshrl.u32 %v3102, 16
      %v3396 = vrot.slane %v3394, 4
      %v3397 = vor.u32 %v3396, %v3392
      %v3398 = vrot.slane %v3397, 4
      %v3400 = vshll.u32 %v3103, 16
      %v3402 = vrot.slane %v3400, 5
      %v3403 = vsel %vm260, %v3398, %v3402
      %v3405 = vshrl.u32 %v3104, 16
      %v3407 = vrot.slane %v3405, 4
      %v3408 = vshll.u32 %v3104, 16
      %v3410 = vrot.slane %v3408, 5
      %v3411 = vor.u32 %v3407, %v3410
      %v3412 = vrot.slane %v3411, 4
      %v3414 = vshll.u32 %v3105, 16
      %v3416 = vrot.slane %v3414, 5
      %v3417 = vsel %vm260, %v3412, %v3416
      %v3418 = vshrl.u32 %v3105, 16
      %v3420 = vrot.slane %v3418, 4
      %v3421 = vor.u32 %v3420, %v3416
      %v3422 = vrot.slane %v3421, 4
      %v3424 = vshll.u32 %v3106, 16
      %v3426 = vrot.slane %v3424, 5
      %v3427 = vsel %vm260, %v3422, %v3426
      %v3429 = vshrl.u32 %v3107, 16
      %v3431 = vrot.slane %v3429, 4
      %v3432 = vshll.u32 %v3107, 16
      %v3434 = vrot.slane %v3432, 5
      %v3435 = vor.u32 %v3431, %v3434
      %v3436 = vrot.slane %v3435, 4
      %v3438 = vshll.u32 %v3108, 16
      %v3440 = vrot.slane %v3438, 5
      %v3441 = vsel %vm260, %v3436, %v3440
      %v3442 = vshrl.u32 %v3108, 16
      %v3444 = vrot.slane %v3442, 4
      %v3445 = vor.u32 %v3444, %v3440
      %v3446 = vrot.slane %v3445, 4
      %v3448 = vshll.u32 %v3109, 16
      %v3450 = vrot.slane %v3448, 5
      %v3451 = vsel %vm260, %v3446, %v3450
      %v3453 = vshrl.u32 %v3110, 16
      %v3455 = vrot.slane %v3453, 4
      %v3456 = vshll.u32 %v3110, 16
      %v3458 = vrot.slane %v3456, 5
      %v3459 = vor.u32 %v3455, %v3458
      %v3460 = vrot.slane %v3459, 4
      %v3462 = vshll.u32 %v3111, 16
      %v3464 = vrot.slane %v3462, 5
      %v3465 = vsel %vm260, %v3460, %v3464
      %v3466 = vshrl.u32 %v3111, 16
      %v3468 = vrot.slane %v3466, 4
      %v3469 = vor.u32 %v3468, %v3464
      %v3470 = vrot.slane %v3469, 4
      %v3472 = vshll.u32 %v3112, 16
      %v3474 = vrot.slane %v3472, 5
      %v3475 = vsel %vm260, %v3470, %v3474
      %v3477 = vshrl.u32 %v3113, 16
      %v3479 = vrot.slane %v3477, 4
      %v3480 = vshll.u32 %v3113, 16
      %v3482 = vrot.slane %v3480, 5
      %v3483 = vor.u32 %v3479, %v3482
      %v3484 = vrot.slane %v3483, 4
      %v3486 = vshll.u32 %v3114, 16
      %v3488 = vrot.slane %v3486, 5
      %v3489 = vsel %vm260, %v3484, %v3488
      %v3490 = vshrl.u32 %v3114, 16
      %v3492 = vrot.slane %v3490, 4
      %v3493 = vor.u32 %v3492, %v3488
      %v3494 = vrot.slane %v3493, 4
      %v3496 = vshll.u32 %v3115, 16
      %v3498 = vrot.slane %v3496, 5
      %v3499 = vsel %vm260, %v3494, %v3498
      %s3500 = scalar_lea.vmem %s1, 28
      %v3501 = vld [vmem:[%s3500] sm:$0xf]
      %v3502 = vunpack.c.l.b16 %v3129
      %v3503 = vunpack.c.l.b16 %v3139
      %v3504 = vunpack.c.l.b16 %v3153
      %v3505 = vunpack.c.l.b16 %v3163
      %v3506 = vunpack.c.l.b16 %v3177
      %v3507 = vunpack.c.l.b16 %v3187
      %v3508 = vunpack.c.l.b16 %v3201
      %v3509 = vunpack.c.l.b16 %v3211
      %v3510 = vunpack.c.l.b16 %v3225
      %v3511 = vunpack.c.l.b16 %v3235
      %v3512 = vunpack.c.l.b16 %v3249
      %v3513 = vunpack.c.l.b16 %v3259
      %v3514 = vunpack.c.l.b16 %v3273
      %v3515 = vunpack.c.l.b16 %v3283
      %v3516 = vunpack.c.l.b16 %v3297
      %v3517 = vunpack.c.l.b16 %v3307
      %v3518 = vunpack.c.l.b16 %v3321
      %v3519 = vunpack.c.l.b16 %v3331
      %v3520 = vunpack.c.l.b16 %v3345
      %v3521 = vunpack.c.l.b16 %v3355
      %v3522 = vunpack.c.l.b16 %v3369
      %v3523 = vunpack.c.l.b16 %v3379
      %v3524 = vunpack.c.l.b16 %v3393
      %v3525 = vunpack.c.l.b16 %v3403
      %v3526 = vunpack.c.l.b16 %v3417
      %v3527 = vunpack.c.l.b16 %v3427
      %v3528 = vunpack.c.l.b16 %v3441
      %v3529 = vunpack.c.l.b16 %v3451
      %v3530 = vunpack.c.l.b16 %v3465
      %v3531 = vunpack.c.l.b16 %v3475
      %v3532 = vunpack.c.l.b16 %v3489
      %v3533 = vunpack.c.l.b16 %v3499
      %v3534 = vpack.c.b16 %v3503, %v3502
      %v3535 = vpack.c.b16 %v3505, %v3504
      %v3536 = vpack.c.b16 %v3507, %v3506
      %v3537 = vpack.c.b16 %v3509, %v3508
      %v3538 = vpack.c.b16 %v3511, %v3510
      %v3539 = vpack.c.b16 %v3513, %v3512
      %v3540 = vpack.c.b16 %v3515, %v3514
      %v3541 = vpack.c.b16 %v3517, %v3516
      %v3542 = vpack.c.b16 %v3519, %v3518
      %v3543 = vpack.c.b16 %v3521, %v3520
      %v3544 = vpack.c.b16 %v3523, %v3522
      %v3545 = vpack.c.b16 %v3525, %v3524
      %v3546 = vpack.c.b16 %v3527, %v3526
      %v3547 = vpack.c.b16 %v3529, %v3528
      %v3548 = vpack.c.b16 %v3531, %v3530
      %v3549 = vpack.c.b16 %v3533, %v3532
      %v3551 = vsel %vm695, %v3534, 0
      %v3554 = vsel %vm695, %v3535, 0
      %v3557 = vsel %vm695, %v3536, 0
      %v3560 = vsel %vm695, %v3537, 0
      %v3563 = vsel %vm695, %v3538, 0
      %v3566 = vsel %vm695, %v3539, 0
      %v3569 = vsel %vm695, %v3540, 0
      %v3572 = vsel %vm695, %v3541, 0
      %v3575 = vsel %vm695, %v3542, 0
      %v3578 = vsel %vm695, %v3543, 0
      %v3581 = vsel %vm695, %v3544, 0
      %v3584 = vsel %vm695, %v3545, 0
      %v3587 = vsel %vm695, %v3546, 0
      %v3590 = vsel %vm695, %v3547, 0
      %v3593 = vsel %vm695, %v3548, 0
      %v3596 = vsel %vm695, %v3549, 0
      %v3599 = vsel %vm744, %v3501, 0
      %3601 = vmatpush.bf16.msra.mxu0 0
      %3602 = vmatpush.bf16.msra.mxu0 0
      %3603 = vmatpush.bf16.msra.mxu0 0
      %3604 = vmatpush.bf16.msra.mxu0 0
      %3605 = vmatpush.bf16.msra.mxu0 0
      %3606 = vmatpush.bf16.msra.mxu0 0
      %3607 = vmatpush.bf16.msra.mxu0 0
      %3608 = vmatpush.bf16.msra.mxu0 %v3599
      %3609 = vmatmul.bf16.gmra.mxu0 %v3551
      %v3610 = vpop.f32.mrf.mxu0
      %v3611 = vadd.f32 0.0, %v3610
      %v3612 = vpop.f32.mrf.mxu0
      %v3613 = vadd.f32 0.0, %v3612
      %3614 = vmatmul.bf16.gmra.mxu0 %v3554
      %v3615 = vpop.f32.mrf.mxu0
      %v3616 = vadd.f32 0.0, %v3615
      %v3617 = vpop.f32.mrf.mxu0
      %v3618 = vadd.f32 0.0, %v3617
      %3619 = vmatmul.bf16.gmra.mxu0 %v3557
      %v3620 = vpop.f32.mrf.mxu0
      %v3621 = vadd.f32 0.0, %v3620
      %v3622 = vpop.f32.mrf.mxu0
      %v3623 = vadd.f32 0.0, %v3622
      %3624 = vmatmul.bf16.gmra.mxu0 %v3560
      %v3625 = vpop.f32.mrf.mxu0
      %v3626 = vadd.f32 0.0, %v3625
      %v3627 = vpop.f32.mrf.mxu0
      %v3628 = vadd.f32 0.0, %v3627
      %3629 = vmatmul.bf16.gmra.mxu0 %v3563
      %v3630 = vpop.f32.mrf.mxu0
      %v3631 = vadd.f32 0.0, %v3630
      %v3632 = vpop.f32.mrf.mxu0
      %v3633 = vadd.f32 0.0, %v3632
      %3634 = vmatmul.bf16.gmra.mxu0 %v3566
      %v3635 = vpop.f32.mrf.mxu0
      %v3636 = vadd.f32 0.0, %v3635
      %v3637 = vpop.f32.mrf.mxu0
      %v3638 = vadd.f32 0.0, %v3637
      %3639 = vmatmul.bf16.gmra.mxu0 %v3569
      %v3640 = vpop.f32.mrf.mxu0
      %v3641 = vadd.f32 0.0, %v3640
      %v3642 = vpop.f32.mrf.mxu0
      %v3643 = vadd.f32 0.0, %v3642
      %3644 = vmatmul.bf16.gmra.mxu0 %v3572
      %v3645 = vpop.f32.mrf.mxu0
      %v3646 = vadd.f32 0.0, %v3645
      %v3647 = vpop.f32.mrf.mxu0
      %v3648 = vadd.f32 0.0, %v3647
      %3649 = vmatmul.bf16.gmra.mxu0 %v3575
      %v3650 = vpop.f32.mrf.mxu0
      %v3651 = vadd.f32 0.0, %v3650
      %v3652 = vpop.f32.mrf.mxu0
      %v3653 = vadd.f32 0.0, %v3652
      %3654 = vmatmul.bf16.gmra.mxu0 %v3578
      %v3655 = vpop.f32.mrf.mxu0
      %v3656 = vadd.f32 0.0, %v3655
      %v3657 = vpop.f32.mrf.mxu0
      %v3658 = vadd.f32 0.0, %v3657
      %3659 = vmatmul.bf16.gmra.mxu0 %v3581
      %v3660 = vpop.f32.mrf.mxu0
      %v3661 = vadd.f32 0.0, %v3660
      %v3662 = vpop.f32.mrf.mxu0
      %v3663 = vadd.f32 0.0, %v3662
      %3664 = vmatmul.bf16.gmra.mxu0 %v3584
      %v3665 = vpop.f32.mrf.mxu0
      %v3666 = vadd.f32 0.0, %v3665
      %v3667 = vpop.f32.mrf.mxu0
      %v3668 = vadd.f32 0.0, %v3667
      %3669 = vmatmul.bf16.gmra.mxu0 %v3587
      %v3670 = vpop.f32.mrf.mxu0
      %v3671 = vadd.f32 0.0, %v3670
      %v3672 = vpop.f32.mrf.mxu0
      %v3673 = vadd.f32 0.0, %v3672
      %3674 = vmatmul.bf16.gmra.mxu0 %v3590
      %v3675 = vpop.f32.mrf.mxu0
      %v3676 = vadd.f32 0.0, %v3675
      %v3677 = vpop.f32.mrf.mxu0
      %v3678 = vadd.f32 0.0, %v3677
      %3679 = vmatmul.bf16.gmra.mxu0 %v3593
      %v3680 = vpop.f32.mrf.mxu0
      %v3681 = vadd.f32 0.0, %v3680
      %v3682 = vpop.f32.mrf.mxu0
      %v3683 = vadd.f32 0.0, %v3682
      %3684 = vmatmul.bf16.gmra.mxu0 %v3596
      %v3685 = vpop.f32.mrf.mxu0
      %v3686 = vadd.f32 0.0, %v3685
      %v3687 = vpop.f32.mrf.mxu0
      %v3688 = vadd.f32 0.0, %v3687
      %3689 = vdwg.mxu0
      %v3690 = vadd.f32 %v3036, %v3611
      %v3691 = vadd.f32 %v3037, %v3613
      %v3692 = vadd.f32 %v3038, %v3616
      %v3693 = vadd.f32 %v3039, %v3618
      %v3694 = vadd.f32 %v3040, %v3621
      %v3695 = vadd.f32 %v3041, %v3623
      %v3696 = vadd.f32 %v3042, %v3626
      %v3697 = vadd.f32 %v3043, %v3628
      %v3698 = vadd.f32 %v3044, %v3631
      %v3699 = vadd.f32 %v3045, %v3633
      %v3700 = vadd.f32 %v3046, %v3636
      %v3701 = vadd.f32 %v3047, %v3638
      %v3702 = vadd.f32 %v3048, %v3641
      %v3703 = vadd.f32 %v3049, %v3643
      %v3704 = vadd.f32 %v3050, %v3646
      %v3705 = vadd.f32 %v3051, %v3648
      %v3706 = vadd.f32 %v3052, %v3651
      %v3707 = vadd.f32 %v3053, %v3653
      %v3708 = vadd.f32 %v3054, %v3656
      %v3709 = vadd.f32 %v3055, %v3658
      %v3710 = vadd.f32 %v3056, %v3661
      %v3711 = vadd.f32 %v3057, %v3663
      %v3712 = vadd.f32 %v3058, %v3666
      %v3713 = vadd.f32 %v3059, %v3668
      %v3714 = vadd.f32 %v3060, %v3671
      %v3715 = vadd.f32 %v3061, %v3673
      %v3716 = vadd.f32 %v3062, %v3676
      %v3717 = vadd.f32 %v3063, %v3678
      %v3718 = vadd.f32 %v3064, %v3681
      %v3719 = vadd.f32 %v3065, %v3683
      %v3720 = vadd.f32 %v3066, %v3686
      %v3721 = vadd.f32 %v3067, %v3688
      %v3722 = vld [vmem:[%s2781] sm:$0xe]
      %v3723 = vld [vmem:[%s2781 + $0xc] sm:$0xe]
      %v3724 = vld [vmem:[%s2781 + $0x18] sm:$0xe]
      %v3725 = vld [vmem:[%s2781 + $0x24] sm:$0xe]
      %v3726 = vld [vmem:[%s2781 + $0x30] sm:$0xe]
      %v3727 = vld [vmem:[%s2781 + $0x3c] sm:$0xe]
      %v3728 = vld [vmem:[%s2781 + $0x48] sm:$0xe]
      %v3729 = vld [vmem:[%s2781 + $0x54] sm:$0xe]
      %v3730 = vld [vmem:[%s2781 + $0x60] sm:$0xe]
      %v3731 = vld [vmem:[%s2781 + $0x6c] sm:$0xe]
      %v3732 = vld [vmem:[%s2781 + $0x78] sm:$0xe]
      %v3733 = vld [vmem:[%s2781 + $0x84] sm:$0xe]
      %v3734 = vld [vmem:[%s2781 + $0x90] sm:$0xe]
      %v3735 = vld [vmem:[%s2781 + $0x9c] sm:$0xe]
      %v3736 = vld [vmem:[%s2781 + $0xa8] sm:$0xe]
      %v3737 = vld [vmem:[%s2781 + $0xb4] sm:$0xe]
      %v3786 = vrot.slane %v3722, 5
      %v3787 = vrot.slane %v3786, 4
      %v3788 = vrot.slane %v3069, 5
      %v3789 = vsel %vm1107, %v3787, %v3788
      %v3790 = vrot.slane %v3788, 4
      %v3791 = vrot.slane %v3070, 5
      %v3792 = vsel %vm1107, %v3790, %v3791
      %v3793 = vrot.slane %v3723, 5
      %v3794 = vrot.slane %v3793, 4
      %v3795 = vrot.slane %v3072, 5
      %v3796 = vsel %vm1107, %v3794, %v3795
      %v3797 = vrot.slane %v3795, 4
      %v3798 = vrot.slane %v3073, 5
      %v3799 = vsel %vm1107, %v3797, %v3798
      %v3800 = vrot.slane %v3724, 5
      %v3801 = vrot.slane %v3800, 4
      %v3802 = vrot.slane %v3075, 5
      %v3803 = vsel %vm1107, %v3801, %v3802
      %v3804 = vrot.slane %v3802, 4
      %v3805 = vrot.slane %v3076, 5
      %v3806 = vsel %vm1107, %v3804, %v3805
      %v3807 = vrot.slane %v3725, 5
      %v3808 = vrot.slane %v3807, 4
      %v3809 = vrot.slane %v3078, 5
      %v3810 = vsel %vm1107, %v3808, %v3809
      %v3811 = vrot.slane %v3809, 4
      %v3812 = vrot.slane %v3079, 5
      %v3813 = vsel %vm1107, %v3811, %v3812
      %v3814 = vrot.slane %v3726, 5
      %v3815 = vrot.slane %v3814, 4
      %v3816 = vrot.slane %v3081, 5
      %v3817 = vsel %vm1107, %v3815, %v3816
      %v3818 = vrot.slane %v3816, 4
      %v3819 = vrot.slane %v3082, 5
      %v3820 = vsel %vm1107, %v3818, %v3819
      %v3821 = vrot.slane %v3727, 5
      %v3822 = vrot.slane %v3821, 4
      %v3823 = vrot.slane %v3084, 5
      %v3824 = vsel %vm1107, %v3822, %v3823
      %v3825 = vrot.slane %v3823, 4
      %v3826 = vrot.slane %v3085, 5
      %v3827 = vsel %vm1107, %v3825, %v3826
      %v3828 = vrot.slane %v3728, 5
      %v3829 = vrot.slane %v3828, 4
      %v3830 = vrot.slane %v3087, 5
      %v3831 = vsel %vm1107, %v3829, %v3830
      %v3832 = vrot.slane %v3830, 4
      %v3833 = vrot.slane %v3088, 5
      %v3834 = vsel %vm1107, %v3832, %v3833
      %v3835 = vrot.slane %v3729, 5
      %v3836 = vrot.slane %v3835, 4
      %v3837 = vrot.slane %v3090, 5
      %v3838 = vsel %vm1107, %v3836, %v3837
      %v3839 = vrot.slane %v3837, 4
      %v3840 = vrot.slane %v3091, 5
      %v3841 = vsel %vm1107, %v3839, %v3840
      %v3842 = vrot.slane %v3730, 5
      %v3843 = vrot.slane %v3842, 4
      %v3844 = vrot.slane %v3093, 5
      %v3845 = vsel %vm1107, %v3843, %v3844
      %v3846 = vrot.slane %v3844, 4
      %v3847 = vrot.slane %v3094, 5
      %v3848 = vsel %vm1107, %v3846, %v3847
      %v3849 = vrot.slane %v3731, 5
      %v3850 = vrot.slane %v3849, 4
      %v3851 = vrot.slane %v3096, 5
      %v3852 = vsel %vm1107, %v3850, %v3851
      %v3853 = vrot.slane %v3851, 4
      %v3854 = vrot.slane %v3097, 5
      %v3855 = vsel %vm1107, %v3853, %v3854
      %v3856 = vrot.slane %v3732, 5
      %v3857 = vrot.slane %v3856, 4
      %v3858 = vrot.slane %v3099, 5
      %v3859 = vsel %vm1107, %v3857, %v3858
      %v3860 = vrot.slane %v3858, 4
      %v3861 = vrot.slane %v3100, 5
      %v3862 = vsel %vm1107, %v3860, %v3861
      %v3863 = vrot.slane %v3733, 5
      %v3864 = vrot.slane %v3863, 4
      %v3865 = vrot.slane %v3102, 5
      %v3866 = vsel %vm1107, %v3864, %v3865
      %v3867 = vrot.slane %v3865, 4
      %v3868 = vrot.slane %v3103, 5
      %v3869 = vsel %vm1107, %v3867, %v3868
      %v3870 = vrot.slane %v3734, 5
      %v3871 = vrot.slane %v3870, 4
      %v3872 = vrot.slane %v3105, 5
      %v3873 = vsel %vm1107, %v3871, %v3872
      %v3874 = vrot.slane %v3872, 4
      %v3875 = vrot.slane %v3106, 5
      %v3876 = vsel %vm1107, %v3874, %v3875
      %v3877 = vrot.slane %v3735, 5
      %v3878 = vrot.slane %v3877, 4
      %v3879 = vrot.slane %v3108, 5
      %v3880 = vsel %vm1107, %v3878, %v3879
      %v3881 = vrot.slane %v3879, 4
      %v3882 = vrot.slane %v3109, 5
      %v3883 = vsel %vm1107, %v3881, %v3882
      %v3884 = vrot.slane %v3736, 5
      %v3885 = vrot.slane %v3884, 4
      %v3886 = vrot.slane %v3111, 5
      %v3887 = vsel %vm1107, %v3885, %v3886
      %v3888 = vrot.slane %v3886, 4
      %v3889 = vrot.slane %v3112, 5
      %v3890 = vsel %vm1107, %v3888, %v3889
      %v3891 = vrot.slane %v3737, 5
      %v3892 = vrot.slane %v3891, 4
      %v3893 = vrot.slane %v3114, 5
      %v3894 = vsel %vm1107, %v3892, %v3893
      %v3895 = vrot.slane %v3893, 4
      %v3896 = vrot.slane %v3115, 5
      %v3897 = vsel %vm1107, %v3895, %v3896
      %s3898 = scalar_lea.vmem %s1, 32
      %v3899 = vld [vmem:[%s3898] sm:$0xf]
      %v3900 = vunpack.c.l.b16 %v3789
      %v3901 = vunpack.c.l.b16 %v3792
      %v3902 = vunpack.c.l.b16 %v3796
      %v3903 = vunpack.c.l.b16 %v3799
      %v3904 = vunpack.c.l.b16 %v3803
      %v3905 = vunpack.c.l.b16 %v3806
      %v3906 = vunpack.c.l.b16 %v3810
      %v3907 = vunpack.c.l.b16 %v3813
      %v3908 = vunpack.c.l.b16 %v3817
      %v3909 = vunpack.c.l.b16 %v3820
      %v3910 = vunpack.c.l.b16 %v3824
      %v3911 = vunpack.c.l.b16 %v3827
      %v3912 = vunpack.c.l.b16 %v3831
      %v3913 = vunpack.c.l.b16 %v3834
      %v3914 = vunpack.c.l.b16 %v3838
      %v3915 = vunpack.c.l.b16 %v3841
      %v3916 = vunpack.c.l.b16 %v3845
      %v3917 = vunpack.c.l.b16 %v3848
      %v3918 = vunpack.c.l.b16 %v3852
      %v3919 = vunpack.c.l.b16 %v3855
      %v3920 = vunpack.c.l.b16 %v3859
      %v3921 = vunpack.c.l.b16 %v3862
      %v3922 = vunpack.c.l.b16 %v3866
      %v3923 = vunpack.c.l.b16 %v3869
      %v3924 = vunpack.c.l.b16 %v3873
      %v3925 = vunpack.c.l.b16 %v3876
      %v3926 = vunpack.c.l.b16 %v3880
      %v3927 = vunpack.c.l.b16 %v3883
      %v3928 = vunpack.c.l.b16 %v3887
      %v3929 = vunpack.c.l.b16 %v3890
      %v3930 = vunpack.c.l.b16 %v3894
      %v3931 = vunpack.c.l.b16 %v3897
      %v3932 = vpack.c.b16 %v3901, %v3900
      %v3933 = vpack.c.b16 %v3903, %v3902
      %v3934 = vpack.c.b16 %v3905, %v3904
      %v3935 = vpack.c.b16 %v3907, %v3906
      %v3936 = vpack.c.b16 %v3909, %v3908
      %v3937 = vpack.c.b16 %v3911, %v3910
      %v3938 = vpack.c.b16 %v3913, %v3912
      %v3939 = vpack.c.b16 %v3915, %v3914
      %v3940 = vpack.c.b16 %v3917, %v3916
      %v3941 = vpack.c.b16 %v3919, %v3918
      %v3942 = vpack.c.b16 %v3921, %v3920
      %v3943 = vpack.c.b16 %v3923, %v3922
      %v3944 = vpack.c.b16 %v3925, %v3924
      %v3945 = vpack.c.b16 %v3927, %v3926
      %v3946 = vpack.c.b16 %v3929, %v3928
      %v3947 = vpack.c.b16 %v3931, %v3930
      %v3949 = vsel %vm695, %v3932, 0
      %v3952 = vsel %vm695, %v3933, 0
      %v3955 = vsel %vm695, %v3934, 0
      %v3958 = vsel %vm695, %v3935, 0
      %v3961 = vsel %vm695, %v3936, 0
      %v3964 = vsel %vm695, %v3937, 0
      %v3967 = vsel %vm695, %v3938, 0
      %v3970 = vsel %vm695, %v3939, 0
      %v3973 = vsel %vm695, %v3940, 0
      %v3976 = vsel %vm695, %v3941, 0
      %v3979 = vsel %vm695, %v3942, 0
      %v3982 = vsel %vm695, %v3943, 0
      %v3985 = vsel %vm695, %v3944, 0
      %v3988 = vsel %vm695, %v3945, 0
      %v3991 = vsel %vm695, %v3946, 0
      %v3994 = vsel %vm695, %v3947, 0
      %v3997 = vsel %vm744, %v3899, 0
      %3999 = vmatpush.bf16.msra.mxu0 0
      %4000 = vmatpush.bf16.msra.mxu0 0
      %4001 = vmatpush.bf16.msra.mxu0 0
      %4002 = vmatpush.bf16.msra.mxu0 0
      %4003 = vmatpush.bf16.msra.mxu0 0
      %4004 = vmatpush.bf16.msra.mxu0 0
      %4005 = vmatpush.bf16.msra.mxu0 0
      %4006 = vmatpush.bf16.msra.mxu0 %v3997
      %4007 = vmatmul.bf16.gmra.mxu0 %v3949
      %v4008 = vpop.f32.mrf.mxu0
      %v4009 = vadd.f32 0.0, %v4008
      %v4010 = vpop.f32.mrf.mxu0
      %v4011 = vadd.f32 0.0, %v4010
      %4012 = vmatmul.bf16.gmra.mxu0 %v3952
      %v4013 = vpop.f32.mrf.mxu0
      %v4014 = vadd.f32 0.0, %v4013
      %v4015 = vpop.f32.mrf.mxu0
      %v4016 = vadd.f32 0.0, %v4015
      %4017 = vmatmul.bf16.gmra.mxu0 %v3955
      %v4018 = vpop.f32.mrf.mxu0
      %v4019 = vadd.f32 0.0, %v4018
      %v4020 = vpop.f32.mrf.mxu0
      %v4021 = vadd.f32 0.0, %v4020
      %4022 = vmatmul.bf16.gmra.mxu0 %v3958
      %v4023 = vpop.f32.mrf.mxu0
      %v4024 = vadd.f32 0.0, %v4023
      %v4025 = vpop.f32.mrf.mxu0
      %v4026 = vadd.f32 0.0, %v4025
      %4027 = vmatmul.bf16.gmra.mxu0 %v3961
      %v4028 = vpop.f32.mrf.mxu0
      %v4029 = vadd.f32 0.0, %v4028
      %v4030 = vpop.f32.mrf.mxu0
      %v4031 = vadd.f32 0.0, %v4030
      %4032 = vmatmul.bf16.gmra.mxu0 %v3964
      %v4033 = vpop.f32.mrf.mxu0
      %v4034 = vadd.f32 0.0, %v4033
      %v4035 = vpop.f32.mrf.mxu0
      %v4036 = vadd.f32 0.0, %v4035
      %4037 = vmatmul.bf16.gmra.mxu0 %v3967
      %v4038 = vpop.f32.mrf.mxu0
      %v4039 = vadd.f32 0.0, %v4038
      %v4040 = vpop.f32.mrf.mxu0
      %v4041 = vadd.f32 0.0, %v4040
      %4042 = vmatmul.bf16.gmra.mxu0 %v3970
      %v4043 = vpop.f32.mrf.mxu0
      %v4044 = vadd.f32 0.0, %v4043
      %v4045 = vpop.f32.mrf.mxu0
      %v4046 = vadd.f32 0.0, %v4045
      %4047 = vmatmul.bf16.gmra.mxu0 %v3973
      %v4048 = vpop.f32.mrf.mxu0
      %v4049 = vadd.f32 0.0, %v4048
      %v4050 = vpop.f32.mrf.mxu0
      %v4051 = vadd.f32 0.0, %v4050
      %4052 = vmatmul.bf16.gmra.mxu0 %v3976
      %v4053 = vpop.f32.mrf.mxu0
      %v4054 = vadd.f32 0.0, %v4053
      %v4055 = vpop.f32.mrf.mxu0
      %v4056 = vadd.f32 0.0, %v4055
      %4057 = vmatmul.bf16.gmra.mxu0 %v3979
      %v4058 = vpop.f32.mrf.mxu0
      %v4059 = vadd.f32 0.0, %v4058
      %v4060 = vpop.f32.mrf.mxu0
      %v4061 = vadd.f32 0.0, %v4060
      %4062 = vmatmul.bf16.gmra.mxu0 %v3982
      %v4063 = vpop.f32.mrf.mxu0
      %v4064 = vadd.f32 0.0, %v4063
      %v4065 = vpop.f32.mrf.mxu0
      %v4066 = vadd.f32 0.0, %v4065
      %4067 = vmatmul.bf16.gmra.mxu0 %v3985
      %v4068 = vpop.f32.mrf.mxu0
      %v4069 = vadd.f32 0.0, %v4068
      %v4070 = vpop.f32.mrf.mxu0
      %v4071 = vadd.f32 0.0, %v4070
      %4072 = vmatmul.bf16.gmra.mxu0 %v3988
      %v4073 = vpop.f32.mrf.mxu0
      %v4074 = vadd.f32 0.0, %v4073
      %v4075 = vpop.f32.mrf.mxu0
      %v4076 = vadd.f32 0.0, %v4075
      %4077 = vmatmul.bf16.gmra.mxu0 %v3991
      %v4078 = vpop.f32.mrf.mxu0
      %v4079 = vadd.f32 0.0, %v4078
      %v4080 = vpop.f32.mrf.mxu0
      %v4081 = vadd.f32 0.0, %v4080
      %4082 = vmatmul.bf16.gmra.mxu0 %v3994
      %v4083 = vpop.f32.mrf.mxu0
      %v4084 = vadd.f32 0.0, %v4083
      %v4085 = vpop.f32.mrf.mxu0
      %v4086 = vadd.f32 0.0, %v4085
      %4087 = vdwg.mxu0
      %v4088 = vadd.f32 %v3690, %v4009
      %v4089 = vadd.f32 %v3691, %v4011
      %v4090 = vadd.f32 %v3692, %v4014
      %v4091 = vadd.f32 %v3693, %v4016
      %v4092 = vadd.f32 %v3694, %v4019
      %v4093 = vadd.f32 %v3695, %v4021
      %v4094 = vadd.f32 %v3696, %v4024
      %v4095 = vadd.f32 %v3697, %v4026
      %v4096 = vadd.f32 %v3698, %v4029
      %v4097 = vadd.f32 %v3699, %v4031
      %v4098 = vadd.f32 %v3700, %v4034
      %v4099 = vadd.f32 %v3701, %v4036
      %v4100 = vadd.f32 %v3702, %v4039
      %v4101 = vadd.f32 %v3703, %v4041
      %v4102 = vadd.f32 %v3704, %v4044
      %v4103 = vadd.f32 %v3705, %v4046
      %v4104 = vadd.f32 %v3706, %v4049
      %v4105 = vadd.f32 %v3707, %v4051
      %v4106 = vadd.f32 %v3708, %v4054
      %v4107 = vadd.f32 %v3709, %v4056
      %v4108 = vadd.f32 %v3710, %v4059
      %v4109 = vadd.f32 %v3711, %v4061
      %v4110 = vadd.f32 %v3712, %v4064
      %v4111 = vadd.f32 %v3713, %v4066
      %v4112 = vadd.f32 %v3714, %v4069
      %v4113 = vadd.f32 %v3715, %v4071
      %v4114 = vadd.f32 %v3716, %v4074
      %v4115 = vadd.f32 %v3717, %v4076
      %v4116 = vadd.f32 %v3718, %v4079
      %v4117 = vadd.f32 %v3719, %v4081
      %v4118 = vadd.f32 %v3720, %v4084
      %v4119 = vadd.f32 %v3721, %v4086
      %v4120 = vld [vmem:[%s2] sm:$0x1]
      %v4122 = vperm.slane %v4120, 0
      %v4124 = vadd.f32 %v4088, %v4122
      %v4125 = vadd.f32 %v4089, %v4122
      %v4126 = vadd.f32 %v4090, %v4122
      %v4127 = vadd.f32 %v4091, %v4122
      %v4128 = vadd.f32 %v4092, %v4122
      %v4129 = vadd.f32 %v4093, %v4122
      %v4130 = vadd.f32 %v4094, %v4122
      %v4131 = vadd.f32 %v4095, %v4122
      %v4132 = vadd.f32 %v4096, %v4122
      %v4133 = vadd.f32 %v4097, %v4122
      %v4134 = vadd.f32 %v4098, %v4122
      %v4135 = vadd.f32 %v4099, %v4122
      %v4136 = vadd.f32 %v4100, %v4122
      %v4137 = vadd.f32 %v4101, %v4122
      %v4138 = vadd.f32 %v4102, %v4122
      %v4139 = vadd.f32 %v4103, %v4122
      %v4140 = vadd.f32 %v4104, %v4122
      %v4141 = vadd.f32 %v4105, %v4122
      %v4142 = vadd.f32 %v4106, %v4122
      %v4143 = vadd.f32 %v4107, %v4122
      %v4144 = vadd.f32 %v4108, %v4122
      %v4145 = vadd.f32 %v4109, %v4122
      %v4146 = vadd.f32 %v4110, %v4122
      %v4147 = vadd.f32 %v4111, %v4122
      %v4148 = vadd.f32 %v4112, %v4122
      %v4149 = vadd.f32 %v4113, %v4122
      %v4150 = vadd.f32 %v4114, %v4122
      %v4151 = vadd.f32 %v4115, %v4122
      %v4152 = vadd.f32 %v4116, %v4122
      %v4153 = vadd.f32 %v4117, %v4122
      %v4154 = vadd.f32 %v4118, %v4122
      %v4155 = vadd.f32 %v4119, %v4122
      %v4156 = vmax.f32 %v4124, 0.0
      %v4157 = vmax.f32 %v4125, 0.0
      %v4158 = vmax.f32 %v4126, 0.0
      %v4159 = vmax.f32 %v4127, 0.0
      %v4160 = vmax.f32 %v4128, 0.0
      %v4161 = vmax.f32 %v4129, 0.0
      %v4162 = vmax.f32 %v4130, 0.0
      %v4163 = vmax.f32 %v4131, 0.0
      %v4164 = vmax.f32 %v4132, 0.0
      %v4165 = vmax.f32 %v4133, 0.0
      %v4166 = vmax.f32 %v4134, 0.0
      %v4167 = vmax.f32 %v4135, 0.0
      %v4168 = vmax.f32 %v4136, 0.0
      %v4169 = vmax.f32 %v4137, 0.0
      %v4170 = vmax.f32 %v4138, 0.0
      %v4171 = vmax.f32 %v4139, 0.0
      %v4172 = vmax.f32 %v4140, 0.0
      %v4173 = vmax.f32 %v4141, 0.0
      %v4174 = vmax.f32 %v4142, 0.0
      %v4175 = vmax.f32 %v4143, 0.0
      %v4176 = vmax.f32 %v4144, 0.0
      %v4177 = vmax.f32 %v4145, 0.0
      %v4178 = vmax.f32 %v4146, 0.0
      %v4179 = vmax.f32 %v4147, 0.0
      %v4180 = vmax.f32 %v4148, 0.0
      %v4181 = vmax.f32 %v4149, 0.0
      %v4182 = vmax.f32 %v4150, 0.0
      %v4183 = vmax.f32 %v4151, 0.0
      %v4184 = vmax.f32 %v4152, 0.0
      %v4185 = vmax.f32 %v4153, 0.0
      %v4186 = vmax.f32 %v4154, 0.0
      %v4187 = vmax.f32 %v4155, 0.0
      %v4188 = vmax.f32 %v4156, %v4158
      %v4189 = vmax.f32 %v4157, %v4159
      %4190 = vst [vmem:[#allocation2] sm:$0xff] %v4188
      %4191 = vst [vmem:[#allocation2 + $0x8] sm:$0xff] %v4189
      %v4192 = vmax.f32 %v4160, %v4162
      %v4193 = vmax.f32 %v4161, %v4163
      %s4194 = scalar_lea.vmem [#allocation2], 16
      %4195 = vst [vmem:[%s4194] sm:$0xff] %v4192
      %4196 = vst [vmem:[%s4194 + $0x8] sm:$0xff] %v4193
      %v4197 = vmax.f32 %v4164, %v4166
      %v4198 = vmax.f32 %v4165, %v4167
      %s4199 = scalar_lea.vmem [#allocation2], 32
      %4200 = vst [vmem:[%s4199] sm:$0xff] %v4197
      %4201 = vst [vmem:[%s4199 + $0x8] sm:$0xff] %v4198
      %v4202 = vmax.f32 %v4168, %v4170
      %v4203 = vmax.f32 %v4169, %v4171
      %s4204 = scalar_lea.vmem [#allocation2], 48
      %4205 = vst [vmem:[%s4204] sm:$0xff] %v4202
      %4206 = vst [vmem:[%s4204 + $0x8] sm:$0xff] %v4203
      %v4207 = vmax.f32 %v4172, %v4174
      %v4208 = vmax.f32 %v4173, %v4175
      %s4209 = scalar_lea.vmem [#allocation2], 64
      %4210 = vst [vmem:[%s4209] sm:$0xff] %v4207
      %4211 = vst [vmem:[%s4209 + $0x8] sm:$0xff] %v4208
      %v4212 = vmax.f32 %v4176, %v4178
      %v4213 = vmax.f32 %v4177, %v4179
      %s4214 = scalar_lea.vmem [#allocation2], 80
      %4215 = vst [vmem:[%s4214] sm:$0xff] %v4212
      %4216 = vst [vmem:[%s4214 + $0x8] sm:$0xff] %v4213
      %v4217 = vmax.f32 %v4180, %v4182
      %v4218 = vmax.f32 %v4181, %v4183
      %s4219 = scalar_lea.vmem [#allocation2], 96
      %4220 = vst [vmem:[%s4219] sm:$0xff] %v4217
      %4221 = vst [vmem:[%s4219 + $0x8] sm:$0xff] %v4218
      %v4222 = vmax.f32 %v4184, %v4186
      %v4223 = vmax.f32 %v4185, %v4187
      %s4224 = scalar_lea.vmem [#allocation2], 112
      %4225 = vst [vmem:[%s4224] sm:$0xff] %v4222
      %4226 = vst [vmem:[%s4224 + $0x8] sm:$0xff] %v4223
      %v4227 = vld [vmem:[#allocation2] ss:$2 sm:$0xff]
      %s4228 = scalar_lea.vmem [#allocation2], 16
      %v4229 = vld [vmem:[%s4228] ss:$2 sm:$0xff]
      %s4230 = scalar_lea.vmem [#allocation2], 32
      %v4231 = vld [vmem:[%s4230] ss:$2 sm:$0xff]
      %s4232 = scalar_lea.vmem [#allocation2], 48
      %v4233 = vld [vmem:[%s4232] ss:$2 sm:$0xff]
      %s4234 = scalar_lea.vmem [#allocation2], 64
      %v4235 = vld [vmem:[%s4234] ss:$2 sm:$0xff]
      %s4236 = scalar_lea.vmem [#allocation2], 80
      %v4237 = vld [vmem:[%s4236] ss:$2 sm:$0xff]
      %s4238 = scalar_lea.vmem [#allocation2], 96
      %v4239 = vld [vmem:[%s4238] ss:$2 sm:$0xff]
      %s4240 = scalar_lea.vmem [#allocation2], 112
      %v4241 = vld [vmem:[%s4240] ss:$2 sm:$0xff]
      %s4242 = scalar_lea.vmem [#allocation2], 1
      %v4243 = vld [vmem:[%s4242] ss:$2 sm:$0xff]
      %s4244 = scalar_lea.vmem [#allocation2], 17
      %v4245 = vld [vmem:[%s4244] ss:$2 sm:$0xff]
      %s4246 = scalar_lea.vmem [#allocation2], 33
      %v4247 = vld [vmem:[%s4246] ss:$2 sm:$0xff]
      %s4248 = scalar_lea.vmem [#allocation2], 49
      %v4249 = vld [vmem:[%s4248] ss:$2 sm:$0xff]
      %s4250 = scalar_lea.vmem [#allocation2], 65
      %v4251 = vld [vmem:[%s4250] ss:$2 sm:$0xff]
      %s4252 = scalar_lea.vmem [#allocation2], 81
      %v4253 = vld [vmem:[%s4252] ss:$2 sm:$0xff]
      %s4254 = scalar_lea.vmem [#allocation2], 97
      %v4255 = vld [vmem:[%s4254] ss:$2 sm:$0xff]
      %s4256 = scalar_lea.vmem [#allocation2], 113
      %v4257 = vld [vmem:[%s4256] ss:$2 sm:$0xff]
      %v4258 = vmax.f32 %v4227, %v4243
      %v4259 = vmax.f32 %v4229, %v4245
      %v4260 = vmax.f32 %v4231, %v4247
      %v4261 = vmax.f32 %v4233, %v4249
      %v4262 = vmax.f32 %v4235, %v4251
      %v4263 = vmax.f32 %v4237, %v4253
      %v4264 = vmax.f32 %v4239, %v4255
      %v4265 = vmax.f32 %v4241, %v4257
      %v4266 = vpack.c.bf16 %v4258, %v4258
      %v4267 = vpack.c.bf16 %v4259, %v4259
      %v4268 = vpack.c.bf16 %v4260, %v4260
      %v4269 = vpack.c.bf16 %v4261, %v4261
      %v4270 = vpack.c.bf16 %v4262, %v4262
      %v4271 = vpack.c.bf16 %v4263, %v4263
      %v4272 = vpack.c.bf16 %v4264, %v4264
      %v4273 = vpack.c.bf16 %v4265, %v4265
      %4274 = vst [vmem:[%s206] sm:$0xf] %v4266
      %4275 = vst [vmem:[%s206 + $0x4] sm:$0xf] %v4267
      %4276 = vst [vmem:[%s206 + $0x8] sm:$0xf] %v4268
      %4277 = vst [vmem:[%s206 + $0xc] sm:$0xf] %v4269
      %4278 = vst [vmem:[%s206 + $0x10] sm:$0xf] %v4270
      %4279 = vst [vmem:[%s206 + $0x14] sm:$0xf] %v4271
      %4280 = vst [vmem:[%s206 + $0x18] sm:$0xf] %v4272
      %4281 = vst [vmem:[%s206 + $0x1c] sm:$0xf] %v4273
      %s4282 = smul.u32 8, %s19
      %p4283 = scmp.lt.s32.totalorder %s18, 1
      %s4284 = scalar_select %p4283, %s18, 1
      %p4285 = scmp.lt.s32.totalorder %s4282, 7
      %s4286 = scalar_select %p4285, %s4282, 7
      %s4287 = smul.addr %s4284, 8
      %s4288 = sadd.s32 %s4286, %s4287
      %s4289 = smul.addr %s4288, 4
      %s4290 = scalar_lea.vmem %s3, %s4289
      // Predicated region
      $region33: #{simple_cnn_forward.6} parent=31 // pred_check
        %p4291 = pneg %p116
      $region34: #{simple_cnn_forward.6} parent=31 // pred_check_branch
        %4293 = sbr.rel (%p4291) target = $region36
      $region35: #{simple_cnn_forward.6} parent=31 // pred_region
        %s4294 = smul.u32 8, %s19
      $region36: #{simple_cnn_forward.6} parent=31 // pred_fallthru
        _
    $region32: #{simple_cnn_forward.6} parent=5 // pred_fallthru
      _
    %p4295 = scmp.le.s32.totalorder 2, %s9
    // Predicated region
    $region37: #{simple_cnn_forward.6} parent=5 // pred_check
      %p4296 = pneg %p4295
    $region38: #{simple_cnn_forward.6} parent=5 // pred_check_branch
      %4298 = sbr.rel (%p4296) target = $region40
    $region39: #{simple_cnn_forward.6} parent=5 // pred_region
      %s4299 = ssub.s32 %s9, 2
      // Predicated region
      $region41: #{simple_cnn_forward.6} parent=39 // pred_check
        %p4300 = pneg %p122
      $region42: #{simple_cnn_forward.6} parent=39 // pred_check_branch
        %4302 = sbr.rel (%p4300) target = $region44
      $region43: #{simple_cnn_forward.6} parent=39 // pred_region
        %s4303 = smul.u32 8, %s21
        %p4304 = scmp.lt.s32.totalorder %s20, 1
        %s4305 = scalar_select %p4304, %s20, 1
        %p4306 = scmp.lt.s32.totalorder %s4303, 7
        %s4307 = scalar_select %p4306, %s4303, 7
        %s4308 = smul.addr %s4305, 8
        %s4309 = sadd.s32 %s4307, %s4308
        %s4310 = smul.addr %s4309, 4
        %s4311 = scalar_lea.vmem %s3, %s4310
      $region44: #{simple_cnn_forward.6} parent=39 // pred_fallthru
        _
    $region40: #{simple_cnn_forward.6} parent=5 // pred_fallthru
      _
  $region6: #{simple_cnn_forward.6} parent=0 // loop_footer
    %s13 = sadd.s32 1, %s9
  $region7: #{simple_cnn_forward.6} parent=0 // loop_footer_branch
    %8 = sbr.rel target = $region3
  $region8: #{simple_cnn_forward.6} parent=0 // loop_exit
    _

</llo_original>
